<compile_context>
chip_gen: v6e
topology: v6e:2x2x1
jax: 0.10.0
libtpu: 0.0.40
codegen_flags: <defaults>
</compile_context>

<pallas_src>
import functools

import jax
import jax.numpy as jnp
from jax import lax
from jax.experimental import pallas as pl
from jax.experimental.pallas import tpu as pltpu


def _round_up(x, m):
    return ((x + m - 1) // m) * m


# Leading 'parallel' grid axis width: shards pixel tiles across the 2 TensorCores on
# v7x; on single-core chips (v5e/v6e) it is just 2 sequential outer grid steps.
_NUM_CORE_SPLITS = 2
_VMEM_LIMIT_BYTES = 48 * 1024 * 1024  # raise scoped VMEM so tile_n=4096 fits everywhere


# ----------------------------------------------------------------------------
# Kernel 1: fused per-pixel head chain + prototype-statistics accumulation
# ----------------------------------------------------------------------------
def _fused_head_kernel(xin_ref,
                       w0_ref, b0_ref, wh_ref, bh_ref,
                       wu1_ref, bu1_ref, wu2_ref, bu2_ref,
                       slab_ref, invsig_ref, musig_ref, count_ref,
                       *, cin, nclasses, d, f):
    # zero this core's resident accumulator slice on its first pixel tile
    @pl.when(pl.program_id(1) == 0)
    def _():
        invsig_ref[...] = jnp.zeros_like(invsig_ref)
        musig_ref[...] = jnp.zeros_like(musig_ref)
        count_ref[...] = jnp.zeros_like(count_ref)

    xin = xin_ref[...]                                  # (tn, cin+2) = [x | label | mask]
    tn = xin.shape[0]
    x = xin[:, :cin]
    lab = jnp.maximum(xin[:, cin:cin + 1], 0.0)         # relu(label) (negatives -> class 0)
    msk = xin[:, cin + 1:cin + 2]

    # valid = one_hot(label) * mask, built on the VPU (no HBM one-hot array)
    cls_iota = lax.broadcasted_iota(jnp.int32, (tn, nclasses), 1).astype(jnp.float32)
    valid = jnp.where(cls_iota == lab, msk, 0.0)        # (tn, C)

    # backbone stand-in: 1x1-conv trunk + heads
    w0 = w0_ref[...]
    if cin == 1:
        # Cin == 1: K=1 matmul is a degenerate outer product -> keep it on the VPU.
        h = x * w0 + b0_ref[...]
    else:
        h = jnp.dot(x, w0, preferred_element_type=jnp.float32) + b0_ref[...]
    h = jnp.maximum(h, 0.0)                              # (tn, hidden)

    # fused cls/mu/feat heads: single MXU pass, layout [ mu | feat | cls ]
    hm = jnp.dot(h, wh_ref[...], preferred_element_type=jnp.float32) + bh_ref[...]
    mu = hm[:, :d]
    feat = jnp.maximum(hm[:, d:d + f], 0.0)
    cls = hm[:, d + f:d + f + nclasses]

    # uncertainty head: inverse_sigma^2 = softplus(w2 . relu(w1 . feat)) + eps
    u = jnp.maximum(
        jnp.dot(feat, wu1_ref[...], preferred_element_type=jnp.float32) + bu1_ref[...], 0.0)
    inv_sig = jax.nn.softplus(
        jnp.dot(u, wu2_ref[...], preferred_element_type=jnp.float32) + bu2_ref[...]) + 1e-6
    sigma = 1.0 / inv_sig                                # sigma^2 = 1 / inverse_sigma^2

    # precision-weighted per-class statistics (MXU; transpose folded via dot_general)
    #   invsig_sum[c,d] = sum_n valid[n,c] / sigma[n,d]
    #   musig_sum[c,d]  = sum_n valid[n,c] * mu[n,d] / sigma[n,d]
    dn = (((0,), (0,)), ((), ()))
    invsig_ref[...] += lax.dot_general(valid, inv_sig, dn,
                                       preferred_element_type=jnp.float32)[None]
    musig_ref[...] += lax.dot_general(valid, mu * inv_sig, dn,
                                      preferred_element_type=jnp.float32)[None]
    count_ref[...] += jnp.sum(valid, axis=0, keepdims=True)[None]

    # dense slab (no pad lanes): [ mu | sigma | cls ]
    slab_ref[...] = jnp.concatenate([mu, sigma, cls], axis=1).astype(slab_ref.dtype)


def pallas_fused_head(xin, packed, *, cin, nclasses, d, f, hidden, tile_n):
    n = xin.shape[0]
    slab_w = 2 * d + nclasses
    nc = _NUM_CORE_SPLITS
    assert n % (tile_n * nc) == 0
    j_tiles = n // (tile_n * nc)

    const = lambda shape: pl.BlockSpec(shape, lambda c, j: (0, 0))
    grid_spec = pltpu.PrefetchScalarGridSpec(
        num_scalar_prefetch=0,
        grid=(nc, j_tiles),
        in_specs=[
            pl.BlockSpec((tile_n, cin + 2), lambda c, j: (c * j_tiles + j, 0)),
            const((cin, hidden)), const((1, hidden)),
            const((hidden, d + f + nclasses)), const((1, d + f + nclasses)),
            const((f, d)), const((1, d)),
            const((d, d)), const((1, d)),
        ],
        out_specs=(
            pl.BlockSpec((tile_n, slab_w), lambda c, j: (c * j_tiles + j, 0)),
            pl.BlockSpec((1, nclasses, d), lambda c, j: (c, 0, 0)),   # per-core partials
            pl.BlockSpec((1, nclasses, d), lambda c, j: (c, 0, 0)),
            pl.BlockSpec((1, 1, nclasses), lambda c, j: (c, 0, 0)),
        ),
    )
    return pl.pallas_call(
        functools.partial(_fused_head_kernel, cin=cin, nclasses=nclasses, d=d, f=f),
        out_shape=(
            jax.ShapeDtypeStruct((n, slab_w), jnp.float32),
            jax.ShapeDtypeStruct((nc, nclasses, d), jnp.float32),
            jax.ShapeDtypeStruct((nc, nclasses, d), jnp.float32),
            jax.ShapeDtypeStruct((nc, 1, nclasses), jnp.float32),
        ),
        grid_spec=grid_spec,
        compiler_params=pltpu.CompilerParams(
            dimension_semantics=("parallel", "arbitrary"),
            vmem_limit_bytes=_VMEM_LIMIT_BYTES),
    )(xin, packed["w0"], packed["b0"], packed["wh"], packed["bh"],
      packed["wu1"], packed["bu1"], packed["wu2"], packed["bu2"])


# ----------------------------------------------------------------------------
# Kernel 2: mutual likelihood score against the (just-initialized) prototypes
# ----------------------------------------------------------------------------
def _mls_kernel(slab_ref, pmu_ref, psig_ref, red_ref, o_ref, *, d):
    slab = slab_ref[...]                    # (tn, 2D+C)
    mu = slab[:, :d]                        # (tn, D)
    sig = slab[:, d:2 * d]                  # (tn, D)  sigma^2

    # F.normalize(dim=-1), eps=1e-12 (prototype side is pre-normalized in wrapper)
    nrm = jnp.sqrt(jnp.sum(mu * mu, axis=-1, keepdims=True))
    mu_n = mu / jnp.maximum(nrm, 1e-12)

    c = red_ref.shape[1]
    mu_t = jnp.tile(mu_n, (1, c))           # (tn, C*D)
    sig_t = jnp.tile(sig, (1, c))           # (tn, C*D)
    diff = mu_t - pmu_ref[...]              # pmu_ref: (1, C*D), class-major
    down = sig_t + psig_ref[...]
    term = diff * diff / down + jnp.log(down)
    # per-class D-reduction on the MXU; `red` folds mean over D, -0.5 and 1/temp
    o_ref[...] = jnp.dot(term, red_ref[...],
                         preferred_element_type=jnp.float32).astype(o_ref.dtype)


def pallas_mls(slab, pmu_flat, psig_flat, red, *, d, tile_n):
    n, slab_w = slab.shape
    cd, c = red.shape
    assert n % tile_n == 0
    grid_spec = pltpu.PrefetchScalarGridSpec(
        num_scalar_prefetch=0,
        grid=(n // tile_n,),
        in_specs=[
            pl.BlockSpec((tile_n, slab_w), lambda i: (i, 0)),
            pl.BlockSpec((1, cd), lambda i: (0, 0)),
            pl.BlockSpec((1, cd), lambda i: (0, 0)),
            pl.BlockSpec((cd, c), lambda i: (0, 0)),
        ],
        out_specs=pl.BlockSpec((tile_n, c), lambda i: (i, 0)),
    )
    return pl.pallas_call(
        functools.partial(_mls_kernel, d=d),
        out_shape=jax.ShapeDtypeStruct((n, c), jnp.float32),
        grid_spec=grid_spec,
        compiler_params=pltpu.CompilerParams(
            dimension_semantics=("parallel",),
            vmem_limit_bytes=_VMEM_LIMIT_BYTES),
    )(slab, pmu_flat, psig_flat, red)


# ----------------------------------------------------------------------------
# Model (UNetProto forward) glue
# ----------------------------------------------------------------------------
def init_params(key, inchannel=1, nclasses=4, embed_dim=32, hidden=64, uncer_in=16):
    ks = jax.random.split(key, 6)

    def w(k, shape, scale=0.1):
        return (scale * jax.random.normal(k, shape)).astype(jnp.float32)

    return {
        "w0": w(ks[0], (inchannel, hidden)), "b0": jnp.zeros((1, hidden), jnp.float32),
        "wc": w(ks[1], (hidden, nclasses)), "bc": jnp.zeros((1, nclasses), jnp.float32),
        "wm": w(ks[2], (hidden, embed_dim)), "bm": jnp.zeros((1, embed_dim), jnp.float32),
        "wf": w(ks[3], (hidden, uncer_in)), "bf": jnp.zeros((1, uncer_in), jnp.float32),
        "wu1": w(ks[4], (uncer_in, embed_dim)), "bu1": jnp.zeros((1, embed_dim), jnp.float32),
        "wu2": w(ks[5], (embed_dim, embed_dim)), "bu2": jnp.zeros((1, embed_dim), jnp.float32),
    }


def _pack_params(params):
    # fused head weight layout: [ mu | feat | cls ] (mu lane-0 aligned)
    return {
        "w0": params["w0"], "b0": params["b0"],
        "wh": jnp.concatenate([params["wm"], params["wf"], params["wc"]], axis=1),
        "bh": jnp.concatenate([params["bm"], params["bf"], params["bc"]], axis=1),
        "wu1": params["wu1"], "bu1": params["bu1"],
        "wu2": params["wu2"], "bu2": params["bu2"],
    }


def unet_proto_forward(params, x_2d, label, mask=None, nclasses=4, temp=100.0,
                       tile_n=4096):
    B, Cin, H, W = x_2d.shape
    N = B * H * W
    D = params["wm"].shape[1]
    F_ = params["wf"].shape[1]
    hidden = params["w0"].shape[1]

    # NCHW -> flattened channels-last pixel matrix; merge x / label / mask into one
    # input stream (valid one-hot is built inside the kernel).
    # NOTE: negative / ignore labels map to class 0 (same as torch.relu+scatter);
    # `mask` must zero those pixels for correct prototype statistics.
    x_pix = x_2d.transpose(0, 2, 3, 1).reshape(N, Cin).astype(jnp.float32)
    lab_col = label.reshape(N, 1).astype(jnp.float32)
    if mask is None:
        mask_col = jnp.ones((N, 1), jnp.float32)
    else:
        mask_col = mask.reshape(N, 1).astype(jnp.float32)
    xin = jnp.concatenate([x_pix, lab_col, mask_col], axis=1)     # (N, Cin+2)

    # tile sizing: big tiles amortize per-step pipeline overhead; clamp for small N.
    tile_n = max(256, min(int(tile_n), _round_up(N, 256)))
    n_pad = _round_up(N, tile_n * _NUM_CORE_SPLITS)
    if n_pad != N:
        xin = jnp.pad(xin, ((0, n_pad - N), (0, 0)))   # pad rows: mask==0 -> no stats

    packed = _pack_params(params)
    slab, invsig_p, musig_p, count_p = pallas_fused_head(
        xin, packed, cin=Cin, nclasses=nclasses, d=D, f=F_, hidden=hidden, tile_n=tile_n)

    # combine the per-core partial sums (wrapper-side reduction over the parallel axis)
    invsig_sum = invsig_p.sum(axis=0)                    # (C, D)
    musig_sum = musig_p.sum(axis=0)                      # (C, D)
    counts = count_p.sum(axis=(0, 1))                    # (C,)

    # Prototype initialization (self.initialize): precision-weighted class means.
    flag = jnp.all(counts > 0)  # False == "Initialization fails, class i is empty"
    protos_sigma = jnp.where(invsig_sum > 0, 1.0 / invsig_sum, 1e32)
    protos_mu = protos_sigma * musig_sum

    # Prototype-side normalization hoisted out of the per-tile MLS kernel.
    pnrm = jnp.sqrt(jnp.sum(protos_mu * protos_mu, axis=-1, keepdims=True))
    pmu_n = protos_mu / jnp.maximum(pnrm, 1e-12)
    pmu_flat = pmu_n.reshape(1, nclasses * D)
    psig_flat = protos_sigma.reshape(1, nclasses * D)

    # per-class indicator matrix; folds mean over D, the -0.5 factor and 1/temp
    row_cls = jnp.arange(nclasses * D, dtype=jnp.int32) // D
    red = (row_cls[:, None] == jnp.arange(nclasses, dtype=jnp.int32)[None, :])
    red = red.astype(jnp.float32) * (-0.5 / (D * float(temp)))

    # mutual_likelihood_score (sim_mode='dist') / temp
    proto_sim = pallas_mls(slab, pmu_flat, psig_flat, red, d=D, tile_n=tile_n)[:N]

    def to_nchw(a):  # spec requires NCHW outputs (PyTorch convention)
        return a.reshape(B, H, W, a.shape[-1]).transpose(0, 3, 1, 2)

    mu_nchw = to_nchw(slab[:N, 0:D])
    sigma_nchw = to_nchw(slab[:N, D:2 * D])
    cls_seg = to_nchw(slab[:N, 2 * D:2 * D + nclasses])
    # if initialization failed, forward returns classifier output as proto_seg
    proto_seg = jnp.where(flag, to_nchw(proto_sim), cls_seg)

    return {"cls_seg": cls_seg,
            "sigma": sigma_nchw,
            "mu": mu_nchw,
            "proto_seg": proto_seg}


if __name__ == "__main__":
    B, Cin, H, W = 2, 1, 16, 16
    nclasses, embed_dim = 4, 32

    key = jax.random.PRNGKey(0)
    kx, kl, kp = jax.random.split(key, 3)
    x = jax.random.normal(kx, (B, Cin, H, W), dtype=jnp.float32)
    label = jax.random.randint(kl, (B, H, W), 0, nclasses, dtype=jnp.int32)
    mask = jnp.ones((B, H, W), jnp.float32)

    params = init_params(kp, inchannel=Cin, nclasses=nclasses, embed_dim=embed_dim)

    fwd = jax.jit(functools.partial(unet_proto_forward, nclasses=nclasses, temp=100.0))
    out = fwd(params, x, label, mask)
    for k in ("cls_seg", "proto_seg", "mu", "sigma"):
        jax.block_until_ready(out[k])

    assert out["cls_seg"].shape == (B, nclasses, H, W)
    assert out["proto_seg"].shape == (B, nclasses, H, W)
    assert out["mu"].shape == (B, embed_dim, H, W)
    assert out["sigma"].shape == (B, embed_dim, H, W)
    print("KERNEL_OK")
</pallas_src>

<mosaic_0001>
module attributes {stable_mosaic.version = 11 : i64} {
  func.func @_fused_head_kernel(%arg0: i32, %arg1: i32, %arg2: memref<512x3xf32, #tpu.memory_space<vmem>>, %arg3: memref<1x64xf32, #tpu.memory_space<vmem>>, %arg4: memref<1x64xf32, #tpu.memory_space<vmem>>, %arg5: memref<64x52xf32, #tpu.memory_space<vmem>>, %arg6: memref<1x52xf32, #tpu.memory_space<vmem>>, %arg7: memref<16x32xf32, #tpu.memory_space<vmem>>, %arg8: memref<1x32xf32, #tpu.memory_space<vmem>>, %arg9: memref<32x32xf32, #tpu.memory_space<vmem>>, %arg10: memref<1x32xf32, #tpu.memory_space<vmem>>, %arg11: memref<512x68xf32, #tpu.memory_space<vmem>>, %arg12: memref<1x4x32xf32, #tpu.memory_space<vmem>>, %arg13: memref<1x4x32xf32, #tpu.memory_space<vmem>>, %arg14: memref<1x1x4xf32, #tpu.memory_space<vmem>>) attributes {dimension_semantics = [#tpu.dimension_semantics<parallel>, #tpu.dimension_semantics<arbitrary>], iteration_bounds = array<i64: 2, 1>, scalar_prefetch = 0 : i64, scratch_operands = 0 : i64, tpu.core_type = #tpu.core_type<tc>, window_params = [{transform_indices = @transform_0, window_bounds = array<i64: 512, 3>}, {pipeline_mode = #tpu.pipeline_mode<synchronous>, transform_indices = @transform_1, window_bounds = array<i64: 1, 64>}, {pipeline_mode = #tpu.pipeline_mode<synchronous>, transform_indices = @transform_2, window_bounds = array<i64: 1, 64>}, {pipeline_mode = #tpu.pipeline_mode<synchronous>, transform_indices = @transform_3, window_bounds = array<i64: 64, 52>}, {pipeline_mode = #tpu.pipeline_mode<synchronous>, transform_indices = @transform_4, window_bounds = array<i64: 1, 52>}, {pipeline_mode = #tpu.pipeline_mode<synchronous>, transform_indices = @transform_5, window_bounds = array<i64: 16, 32>}, {pipeline_mode = #tpu.pipeline_mode<synchronous>, transform_indices = @transform_6, window_bounds = array<i64: 1, 32>}, {pipeline_mode = #tpu.pipeline_mode<synchronous>, transform_indices = @transform_7, window_bounds = array<i64: 32, 32>}, {pipeline_mode = #tpu.pipeline_mode<synchronous>, transform_indices = @transform_8, window_bounds = array<i64: 1, 32>}, {transform_indices = @transform_9, window_bounds = array<i64: 512, 68>}, {transform_indices = @transform_10, window_bounds = array<i64: 1, 4, 32>}, {transform_indices = @transform_11, window_bounds = array<i64: 1, 4, 32>}, {transform_indices = @transform_12, window_bounds = array<i64: 1, 1, 4>}]} {
    %c0_i32 = arith.constant 0 : i32
    %0 = arith.cmpi eq, %arg1, %c0_i32 : i32
    %1 = arith.extui %0 : i1 to i32
    %c0_i32_0 = arith.constant 0 : i32
    %2 = arith.cmpi ne, %1, %c0_i32_0 : i32
    scf.if %2 {
      %cst_52 = arith.constant 0.000000e+00 : f32
      %85 = vector.broadcast %cst_52 : f32 to vector<1x4x32xf32>
      %c0_53 = arith.constant 0 : index
      %c0_54 = arith.constant 0 : index
      %c0_55 = arith.constant 0 : index
      %86 = vector.load %arg12[%c0_53, %c0_54, %c0_55] : memref<1x4x32xf32, #tpu.memory_space<vmem>>, vector<1x4x32xf32>
      tpu.vector_store %arg12[%c0_53, %c0_54, %c0_55], %85 {strides = array<i32>} : memref<1x4x32xf32, #tpu.memory_space<vmem>>, vector<1x4x32xf32>,
      %cst_56 = arith.constant 0.000000e+00 : f32
      %87 = vector.broadcast %cst_56 : f32 to vector<1x4x32xf32>
      %c0_57 = arith.constant 0 : index
      %c0_58 = arith.constant 0 : index
      %c0_59 = arith.constant 0 : index
      %88 = vector.load %arg13[%c0_57, %c0_58, %c0_59] : memref<1x4x32xf32, #tpu.memory_space<vmem>>, vector<1x4x32xf32>
      tpu.vector_store %arg13[%c0_57, %c0_58, %c0_59], %87 {strides = array<i32>} : memref<1x4x32xf32, #tpu.memory_space<vmem>>, vector<1x4x32xf32>,
      %cst_60 = arith.constant 0.000000e+00 : f32
      %89 = vector.broadcast %cst_60 : f32 to vector<1x1x4xf32>
      %c0_61 = arith.constant 0 : index
      %c0_62 = arith.constant 0 : index
      %c0_63 = arith.constant 0 : index
      %90 = vector.load %arg14[%c0_61, %c0_62, %c0_63] : memref<1x1x4xf32, #tpu.memory_space<vmem>>, vector<1x1x4xf32>
      tpu.vector_store %arg14[%c0_61, %c0_62, %c0_63], %89 {strides = array<i32>} : memref<1x1x4xf32, #tpu.memory_space<vmem>>, vector<1x1x4xf32>,
    } else {
    }
    %c0 = arith.constant 0 : index
    %c0_1 = arith.constant 0 : index
    %3 = vector.load %arg2[%c0, %c0_1] : memref<512x3xf32, #tpu.memory_space<vmem>>, vector<512x3xf32>
    %4 = vector.extract_strided_slice %3 {offsets = [0, 0], sizes = [512, 1], strides = [1, 1]} : vector<512x3xf32> to vector<512x1xf32>
    %5 = vector.extract_strided_slice %3 {offsets = [0, 1], sizes = [512, 1], strides = [1, 1]} : vector<512x3xf32> to vector<512x1xf32>
    %cst = arith.constant 0.000000e+00 : f32
    %6 = vector.broadcast %cst : f32 to vector<512x1xf32>
    %7 = arith.maximumf %5, %6 : vector<512x1xf32>
    %8 = vector.extract_strided_slice %3 {offsets = [0, 2], sizes = [512, 1], strides = [1, 1]} : vector<512x3xf32> to vector<512x1xf32>
    %9 = tpu.iota {dimensions = array<i32: 1>} : vector<512x4xi32>
    %10 = arith.sitofp %9 : vector<512x4xi32> to vector<512x4xf32>
    %11 = vector.broadcast %7 : vector<512x1xf32> to vector<512x4xf32>
    %12 = arith.cmpf oeq, %10, %11 : vector<512x4xf32>
    %cst_2 = arith.constant 0.000000e+00 : f32
    %13 = vector.shape_cast %8 : vector<512x1xf32> to vector<512x1xf32>
    %14 = vector.broadcast %13 : vector<512x1xf32> to vector<512x4xf32>
    %15 = vector.broadcast %cst_2 : f32 to vector<512x4xf32>
    %16 = arith.select %12, %14, %15 : vector<512x4xi1>, vector<512x4xf32>
    %c0_3 = arith.constant 0 : index
    %c0_4 = arith.constant 0 : index
    %17 = vector.load %arg3[%c0_3, %c0_4] : memref<1x64xf32, #tpu.memory_space<vmem>>, vector<1x64xf32>
    %18 = vector.broadcast %4 : vector<512x1xf32> to vector<512x64xf32>
    %19 = vector.broadcast %17 : vector<1x64xf32> to vector<512x64xf32>
    %20 = arith.mulf %18, %19 : vector<512x64xf32>
    %c0_5 = arith.constant 0 : index
    %c0_6 = arith.constant 0 : index
    %21 = vector.load %arg4[%c0_5, %c0_6] : memref<1x64xf32, #tpu.memory_space<vmem>>, vector<1x64xf32>
    %22 = vector.broadcast %21 : vector<1x64xf32> to vector<512x64xf32>
    %23 = arith.addf %20, %22 : vector<512x64xf32>
    %cst_7 = arith.constant 0.000000e+00 : f32
    %24 = vector.broadcast %cst_7 : f32 to vector<512x64xf32>
    %25 = arith.maximumf %23, %24 : vector<512x64xf32>
    %c0_8 = arith.constant 0 : index
    %c0_9 = arith.constant 0 : index
    %26 = vector.load %arg5[%c0_8, %c0_9] : memref<64x52xf32, #tpu.memory_space<vmem>>, vector<64x52xf32>
    %cst_10 = arith.constant dense<0.000000e+00> : vector<512x52xf32>
    %27 = tpu.matmul %25, %26, %cst_10 {dimension_numbers = #tpu.dot_dimension_numbers<[1], [0], [0], [1], [0, 0, 1, 1], [], []>} : vector<512x64xf32>, vector<64x52xf32>, vector<512x52xf32> -> vector<512x52xf32>
    %c0_11 = arith.constant 0 : index
    %c0_12 = arith.constant 0 : index
    %28 = vector.load %arg6[%c0_11, %c0_12] : memref<1x52xf32, #tpu.memory_space<vmem>>, vector<1x52xf32>
    %29 = vector.broadcast %28 : vector<1x52xf32> to vector<512x52xf32>
    %30 = arith.addf %27, %29 : vector<512x52xf32>
    %31 = vector.extract_strided_slice %30 {offsets = [0, 0], sizes = [512, 32], strides = [1, 1]} : vector<512x52xf32> to vector<512x32xf32>
    %32 = vector.extract_strided_slice %30 {offsets = [0, 32], sizes = [512, 16], strides = [1, 1]} : vector<512x52xf32> to vector<512x16xf32>
    %cst_13 = arith.constant 0.000000e+00 : f32
    %33 = vector.broadcast %cst_13 : f32 to vector<512x16xf32>
    %34 = arith.maximumf %32, %33 : vector<512x16xf32>
    %35 = vector.extract_strided_slice %30 {offsets = [0, 48], sizes = [512, 4], strides = [1, 1]} : vector<512x52xf32> to vector<512x4xf32>
    %c0_14 = arith.constant 0 : index
    %c0_15 = arith.constant 0 : index
    %36 = vector.load %arg7[%c0_14, %c0_15] : memref<16x32xf32, #tpu.memory_space<vmem>>, vector<16x32xf32>
    %cst_16 = arith.constant dense<0.000000e+00> : vector<512x32xf32>
    %37 = tpu.matmul %34, %36, %cst_16 {dimension_numbers = #tpu.dot_dimension_numbers<[1], [0], [0], [1], [0, 0, 1, 1], [], []>} : vector<512x16xf32>, vector<16x32xf32>, vector<512x32xf32> -> vector<512x32xf32>
    %c0_17 = arith.constant 0 : index
    %c0_18 = arith.constant 0 : index
    %38 = vector.load %arg8[%c0_17, %c0_18] : memref<1x32xf32, #tpu.memory_space<vmem>>, vector<1x32xf32>
    %39 = vector.broadcast %38 : vector<1x32xf32> to vector<512x32xf32>
    %40 = arith.addf %37, %39 : vector<512x32xf32>
    %cst_19 = arith.constant 0.000000e+00 : f32
    %41 = vector.broadcast %cst_19 : f32 to vector<512x32xf32>
    %42 = arith.maximumf %40, %41 : vector<512x32xf32>
    %c0_20 = arith.constant 0 : index
    %c0_21 = arith.constant 0 : index
    %43 = vector.load %arg9[%c0_20, %c0_21] : memref<32x32xf32, #tpu.memory_space<vmem>>, vector<32x32xf32>
    %cst_22 = arith.constant dense<0.000000e+00> : vector<512x32xf32>
    %44 = tpu.matmul %42, %43, %cst_22 {dimension_numbers = #tpu.dot_dimension_numbers<[1], [0], [0], [1], [0, 0, 1, 1], [], []>} : vector<512x32xf32>, vector<32x32xf32>, vector<512x32xf32> -> vector<512x32xf32>
    %c0_23 = arith.constant 0 : index
    %c0_24 = arith.constant 0 : index
    %45 = vector.load %arg10[%c0_23, %c0_24] : memref<1x32xf32, #tpu.memory_space<vmem>>, vector<1x32xf32>
    %46 = vector.broadcast %45 : vector<1x32xf32> to vector<512x32xf32>
    %47 = arith.addf %44, %46 : vector<512x32xf32>
    %cst_25 = arith.constant 0.000000e+00 : f32
    %48 = vector.broadcast %cst_25 : f32 to vector<512x32xf32>
    %49 = arith.maximumf %47, %48 : vector<512x32xf32>
    %50 = vector.broadcast %cst_25 : f32 to vector<512x32xf32>
    %51 = arith.subf %47, %50 : vector<512x32xf32>
    %52 = arith.cmpf one, %51, %51 : vector<512x32xf32>
    %53 = vector.broadcast %cst_25 : f32 to vector<512x32xf32>
    %54 = arith.addf %47, %53 : vector<512x32xf32>
    %55 = math.absf %51 : vector<512x32xf32>
    %cst_26 = arith.constant 0.000000e+00 : f32
    %56 = vector.broadcast %cst_26 : f32 to vector<512x32xf32>
    %57 = arith.subf %56, %55 : vector<512x32xf32>
    %58 = math.exp %57 : vector<512x32xf32>
    %59 = math.log1p %58 : vector<512x32xf32>
    %60 = arith.addf %49, %59 : vector<512x32xf32>
    %61 = arith.select %52, %54, %60 : vector<512x32xi1>, vector<512x32xf32>
    %cst_27 = arith.constant 9.99999997E-7 : f32
    %62 = vector.broadcast %cst_27 : f32 to vector<512x32xf32>
    %63 = arith.addf %61, %62 : vector<512x32xf32>
    %cst_28 = arith.constant 1.000000e+00 : f32
    %64 = vector.broadcast %cst_28 : f32 to vector<512x32xf32>
    %65 = arith.divf %64, %63 : vector<512x32xf32>
    %c0_29 = arith.constant 0 : index
    %c0_30 = arith.constant 0 : index
    %c0_31 = arith.constant 0 : index
    %66 = vector.load %arg12[%c0_29, %c0_30, %c0_31] : memref<1x4x32xf32, #tpu.memory_space<vmem>>, vector<1x4x32xf32>
    %cst_32 = arith.constant dense<0.000000e+00> : vector<4x32xf32>
    %67 = tpu.matmul %16, %63, %cst_32 {dimension_numbers = #tpu.dot_dimension_numbers<[0], [0], [1], [1], [0, 1, 1, 1], [], []>} : vector<512x4xf32>, vector<512x32xf32>, vector<4x32xf32> -> vector<4x32xf32>
    %68 = vector.shape_cast %67 : vector<4x32xf32> to vector<1x4x32xf32>
    %69 = arith.addf %66, %68 : vector<1x4x32xf32>
    %c0_33 = arith.constant 0 : index
    %c0_34 = arith.constant 0 : index
    %c0_35 = arith.constant 0 : index
    %70 = vector.load %arg12[%c0_33, %c0_34, %c0_35] : memref<1x4x32xf32, #tpu.memory_space<vmem>>, vector<1x4x32xf32>
    tpu.vector_store %arg12[%c0_33, %c0_34, %c0_35], %69 {strides = array<i32>} : memref<1x4x32xf32, #tpu.memory_space<vmem>>, vector<1x4x32xf32>,
    %c0_36 = arith.constant 0 : index
    %c0_37 = arith.constant 0 : index
    %c0_38 = arith.constant 0 : index
    %71 = vector.load %arg13[%c0_36, %c0_37, %c0_38] : memref<1x4x32xf32, #tpu.memory_space<vmem>>, vector<1x4x32xf32>
    %72 = arith.mulf %31, %63 : vector<512x32xf32>
    %cst_39 = arith.constant dense<0.000000e+00> : vector<4x32xf32>
    %73 = tpu.matmul %16, %72, %cst_39 {dimension_numbers = #tpu.dot_dimension_numbers<[0], [0], [1], [1], [0, 1, 1, 1], [], []>} : vector<512x4xf32>, vector<512x32xf32>, vector<4x32xf32> -> vector<4x32xf32>
    %74 = vector.shape_cast %73 : vector<4x32xf32> to vector<1x4x32xf32>
    %75 = arith.addf %71, %74 : vector<1x4x32xf32>
    %c0_40 = arith.constant 0 : index
    %c0_41 = arith.constant 0 : index
    %c0_42 = arith.constant 0 : index
    %76 = vector.load %arg13[%c0_40, %c0_41, %c0_42] : memref<1x4x32xf32, #tpu.memory_space<vmem>>, vector<1x4x32xf32>
    tpu.vector_store %arg13[%c0_40, %c0_41, %c0_42], %75 {strides = array<i32>} : memref<1x4x32xf32, #tpu.memory_space<vmem>>, vector<1x4x32xf32>,
    %c0_43 = arith.constant 0 : index
    %c0_44 = arith.constant 0 : index
    %c0_45 = arith.constant 0 : index
    %77 = vector.load %arg14[%c0_43, %c0_44, %c0_45] : memref<1x1x4xf32, #tpu.memory_space<vmem>>, vector<1x1x4xf32>
    %cst_46 = arith.constant dense<0.000000e+00> : vector<4xf32>
    %78 = vector.multi_reduction <add>, %16, %cst_46 [0] : vector<512x4xf32> to vector<4xf32>
    %79 = vector.shape_cast %78 : vector<4xf32> to vector<1x4xf32>
    %80 = vector.shape_cast %79 : vector<1x4xf32> to vector<1x1x4xf32>
    %81 = arith.addf %77, %80 : vector<1x1x4xf32>
    %c0_47 = arith.constant 0 : index
    %c0_48 = arith.constant 0 : index
    %c0_49 = arith.constant 0 : index
    %82 = vector.load %arg14[%c0_47, %c0_48, %c0_49] : memref<1x1x4xf32, #tpu.memory_space<vmem>>, vector<1x1x4xf32>
    tpu.vector_store %arg14[%c0_47, %c0_48, %c0_49], %81 {strides = array<i32>} : memref<1x1x4xf32, #tpu.memory_space<vmem>>, vector<1x1x4xf32>,
    %83 = tpu.concatenate %31, %65, %35 in 1 : vector<512x32xf32>, vector<512x32xf32>, vector<512x4xf32> -> vector<512x68xf32>
    %c0_50 = arith.constant 0 : index
    %c0_51 = arith.constant 0 : index
    %84 = vector.load %arg11[%c0_50, %c0_51] : memref<512x68xf32, #tpu.memory_space<vmem>>, vector<512x68xf32>
    tpu.vector_store %arg11[%c0_50, %c0_51], %83 {strides = array<i32>} : memref<512x68xf32, #tpu.memory_space<vmem>>, vector<512x68xf32>,
    return
  }
  func.func @transform_0(%arg0: i32, %arg1: i32) -> (i32, i32) {
    %c1_i32 = arith.constant 1 : i32
    %0 = arith.muli %arg0, %c1_i32 : i32
    %1 = arith.addi %0, %arg1 : i32
    %c0_i32 = arith.constant 0 : i32
    %c0_i32_0 = arith.constant 0 : i32
    return %1, %c0_i32 : i32, i32
  }
  func.func @transform_1(%arg0: i32, %arg1: i32) -> (i32, i32) {
    %c0_i32 = arith.constant 0 : i32
    %c0_i32_0 = arith.constant 0 : i32
    %c0_i32_1 = arith.constant 0 : i32
    return %c0_i32, %c0_i32_0 : i32, i32
  }
  func.func @transform_2(%arg0: i32, %arg1: i32) -> (i32, i32) {
    %c0_i32 = arith.constant 0 : i32
    %c0_i32_0 = arith.constant 0 : i32
    %c0_i32_1 = arith.constant 0 : i32
    return %c0_i32, %c0_i32_0 : i32, i32
  }
  func.func @transform_3(%arg0: i32, %arg1: i32) -> (i32, i32) {
    %c0_i32 = arith.constant 0 : i32
    %c0_i32_0 = arith.constant 0 : i32
    %c0_i32_1 = arith.constant 0 : i32
    return %c0_i32, %c0_i32_0 : i32, i32
  }
  func.func @transform_4(%arg0: i32, %arg1: i32) -> (i32, i32) {
    %c0_i32 = arith.constant 0 : i32
    %c0_i32_0 = arith.constant 0 : i32
    %c0_i32_1 = arith.constant 0 : i32
    return %c0_i32, %c0_i32_0 : i32, i32
  }
  func.func @transform_5(%arg0: i32, %arg1: i32) -> (i32, i32) {
    %c0_i32 = arith.constant 0 : i32
    %c0_i32_0 = arith.constant 0 : i32
    %c0_i32_1 = arith.constant 0 : i32
    return %c0_i32, %c0_i32_0 : i32, i32
  }
  func.func @transform_6(%arg0: i32, %arg1: i32) -> (i32, i32) {
    %c0_i32 = arith.constant 0 : i32
    %c0_i32_0 = arith.constant 0 : i32
    %c0_i32_1 = arith.constant 0 : i32
    return %c0_i32, %c0_i32_0 : i32, i32
  }
  func.func @transform_7(%arg0: i32, %arg1: i32) -> (i32, i32) {
    %c0_i32 = arith.constant 0 : i32
    %c0_i32_0 = arith.constant 0 : i32
    %c0_i32_1 = arith.constant 0 : i32
    return %c0_i32, %c0_i32_0 : i32, i32
  }
  func.func @transform_8(%arg0: i32, %arg1: i32) -> (i32, i32) {
    %c0_i32 = arith.constant 0 : i32
    %c0_i32_0 = arith.constant 0 : i32
    %c0_i32_1 = arith.constant 0 : i32
    return %c0_i32, %c0_i32_0 : i32, i32
  }
  func.func @transform_9(%arg0: i32, %arg1: i32) -> (i32, i32) {
    %c1_i32 = arith.constant 1 : i32
    %0 = arith.muli %arg0, %c1_i32 : i32
    %1 = arith.addi %0, %arg1 : i32
    %c0_i32 = arith.constant 0 : i32
    %c0_i32_0 = arith.constant 0 : i32
    return %1, %c0_i32 : i32, i32
  }
  func.func @transform_10(%arg0: i32, %arg1: i32) -> (i32, i32, i32) {
    %c0_i32 = arith.constant 0 : i32
    %c0_i32_0 = arith.constant 0 : i32
    %c0_i32_1 = arith.constant 0 : i32
    return %arg0, %c0_i32, %c0_i32_0 : i32, i32, i32
  }
  func.func @transform_11(%arg0: i32, %arg1: i32) -> (i32, i32, i32) {
    %c0_i32 = arith.constant 0 : i32
    %c0_i32_0 = arith.constant 0 : i32
    %c0_i32_1 = arith.constant 0 : i32
    return %arg0, %c0_i32, %c0_i32_0 : i32, i32, i32
  }
  func.func @transform_12(%arg0: i32, %arg1: i32) -> (i32, i32, i32) {
    %c0_i32 = arith.constant 0 : i32
    %c0_i32_0 = arith.constant 0 : i32
    %c0_i32_1 = arith.constant 0 : i32
    return %arg0, %c0_i32, %c0_i32_0 : i32, i32, i32
  }
}

module attributes {stable_mosaic.version = 11 : i64} {
  func.func @_mls_kernel(%arg0: i32, %arg1: memref<512x68xf32, #tpu.memory_space<vmem>>, %arg2: memref<1x128xf32, #tpu.memory_space<vmem>>, %arg3: memref<1x128xf32, #tpu.memory_space<vmem>>, %arg4: memref<128x4xf32, #tpu.memory_space<vmem>>, %arg5: memref<512x4xf32, #tpu.memory_space<vmem>>) attributes {dimension_semantics = [#tpu.dimension_semantics<parallel>], iteration_bounds = array<i64: 2>, scalar_prefetch = 0 : i64, scratch_operands = 0 : i64, tpu.core_type = #tpu.core_type<tc>, window_params = [{transform_indices = @transform_0, window_bounds = array<i64: 512, 68>}, {pipeline_mode = #tpu.pipeline_mode<synchronous>, transform_indices = @transform_1, window_bounds = array<i64: 1, 128>}, {pipeline_mode = #tpu.pipeline_mode<synchronous>, transform_indices = @transform_2, window_bounds = array<i64: 1, 128>}, {pipeline_mode = #tpu.pipeline_mode<synchronous>, transform_indices = @transform_3, window_bounds = array<i64: 128, 4>}, {transform_indices = @transform_4, window_bounds = array<i64: 512, 4>}]} {
    %c0 = arith.constant 0 : index
    %c0_0 = arith.constant 0 : index
    %0 = vector.load %arg1[%c0, %c0_0] : memref<512x68xf32, #tpu.memory_space<vmem>>, vector<512x68xf32>
    %1 = vector.extract_strided_slice %0 {offsets = [0, 0], sizes = [512, 32], strides = [1, 1]} : vector<512x68xf32> to vector<512x32xf32>
    %2 = vector.extract_strided_slice %0 {offsets = [0, 32], sizes = [512, 32], strides = [1, 1]} : vector<512x68xf32> to vector<512x32xf32>
    %3 = arith.mulf %1, %1 : vector<512x32xf32>
    %cst = arith.constant dense<0.000000e+00> : vector<512xf32>
    %4 = vector.multi_reduction <add>, %3, %cst [1] : vector<512x32xf32> to vector<512xf32>
    %5 = vector.shape_cast %4 : vector<512xf32> to vector<512x1xf32>
    %6 = math.sqrt %5 : vector<512x1xf32>
    %cst_1 = arith.constant 9.99999996E-13 : f32
    %7 = vector.broadcast %cst_1 : f32 to vector<512x1xf32>
    %8 = arith.maximumf %6, %7 : vector<512x1xf32>
    %9 = vector.broadcast %8 : vector<512x1xf32> to vector<512x32xf32>
    %10 = arith.divf %1, %9 : vector<512x32xf32>
    %11 = tpu.concatenate %10, %10, %10, %10 in 1 : vector<512x32xf32>, vector<512x32xf32>, vector<512x32xf32>, vector<512x32xf32> -> vector<512x128xf32>
    %12 = tpu.concatenate %2, %2, %2, %2 in 1 : vector<512x32xf32>, vector<512x32xf32>, vector<512x32xf32>, vector<512x32xf32> -> vector<512x128xf32>
    %c0_2 = arith.constant 0 : index
    %c0_3 = arith.constant 0 : index
    %13 = vector.load %arg2[%c0_2, %c0_3] : memref<1x128xf32, #tpu.memory_space<vmem>>, vector<1x128xf32>
    %14 = vector.broadcast %13 : vector<1x128xf32> to vector<512x128xf32>
    %15 = arith.subf %11, %14 : vector<512x128xf32>
    %c0_4 = arith.constant 0 : index
    %c0_5 = arith.constant 0 : index
    %16 = vector.load %arg3[%c0_4, %c0_5] : memref<1x128xf32, #tpu.memory_space<vmem>>, vector<1x128xf32>
    %17 = vector.broadcast %16 : vector<1x128xf32> to vector<512x128xf32>
    %18 = arith.addf %12, %17 : vector<512x128xf32>
    %19 = arith.mulf %15, %15 : vector<512x128xf32>
    %20 = arith.divf %19, %18 : vector<512x128xf32>
    %21 = math.log %18 : vector<512x128xf32>
    %22 = arith.addf %20, %21 : vector<512x128xf32>
    %c0_6 = arith.constant 0 : index
    %c0_7 = arith.constant 0 : index
    %23 = vector.load %arg4[%c0_6, %c0_7] : memref<128x4xf32, #tpu.memory_space<vmem>>, vector<128x4xf32>
    %cst_8 = arith.constant dense<0.000000e+00> : vector<512x4xf32>
    %24 = tpu.matmul %22, %23, %cst_8 {dimension_numbers = #tpu.dot_dimension_numbers<[1], [0], [0], [1], [0, 0, 1, 1], [], []>} : vector<512x128xf32>, vector<128x4xf32>, vector<512x4xf32> -> vector<512x4xf32>
    %c0_9 = arith.constant 0 : index
    %c0_10 = arith.constant 0 : index
    %25 = vector.load %arg5[%c0_9, %c0_10] : memref<512x4xf32, #tpu.memory_space<vmem>>, vector<512x4xf32>
    tpu.vector_store %arg5[%c0_9, %c0_10], %24 {strides = array<i32>} : memref<512x4xf32, #tpu.memory_space<vmem>>, vector<512x4xf32>,
    return
  }
  func.func @transform_0(%arg0: i32) -> (i32, i32) {
    %c0_i32 = arith.constant 0 : i32
    %c0_i32_0 = arith.constant 0 : i32
    return %arg0, %c0_i32 : i32, i32
  }
  func.func @transform_1(%arg0: i32) -> (i32, i32) {
    %c0_i32 = arith.constant 0 : i32
    %c0_i32_0 = arith.constant 0 : i32
    %c0_i32_1 = arith.constant 0 : i32
    return %c0_i32, %c0_i32_0 : i32, i32
  }
  func.func @transform_2(%arg0: i32) -> (i32, i32) {
    %c0_i32 = arith.constant 0 : i32
    %c0_i32_0 = arith.constant 0 : i32
    %c0_i32_1 = arith.constant 0 : i32
    return %c0_i32, %c0_i32_0 : i32, i32
  }
  func.func @transform_3(%arg0: i32) -> (i32, i32) {
    %c0_i32 = arith.constant 0 : i32
    %c0_i32_0 = arith.constant 0 : i32
    %c0_i32_1 = arith.constant 0 : i32
    return %c0_i32, %c0_i32_0 : i32, i32
  }
  func.func @transform_4(%arg0: i32) -> (i32, i32) {
    %c0_i32 = arith.constant 0 : i32
    %c0_i32_0 = arith.constant 0 : i32
    return %arg0, %c0_i32 : i32, i32
  }
}

</mosaic_0001>

<llo_original>
// kernel: unet_proto_forward.3
$region0: #{unet_proto_forward.3}
  #allocation0 [shape = 'u32[]', space=smem, size = 0x4, offset = 0x4, fixed_abs, tag = 'smem constant byte address 0x4 - core index']
  #allocation1 [shape = 'u32[144,128]{1,0:T(1,128)}', space=vmem, size = 0x12000, scoped, tag = 'internal scratch']
  %s0 = inlined_call_operand.vmem [shape: f32[1024,68], index: 0, kind: input, shape index: {}]
  %s1 = inlined_call_operand.vmem [shape: f32[1,128], index: 1, kind: input, shape index: {}]
  %s2 = inlined_call_operand.vmem [shape: f32[1,128], index: 2, kind: input, shape index: {}]
  %s3 = inlined_call_operand.vmem [shape: f32[128,4], index: 3, kind: input, shape index: {}]
  %s4 = inlined_call_operand.vmem [shape: f32[1024,4], index: 4, kind: output, shape index: {}]
  %s5 = sld [smem:[#allocation0]]
  $region49: #{unet_proto_forward.3} parent=0
    _
  %s7 = ssub.s32 1, %s5
  %s8 = scalar_select 0, %s7, %s5
  loop: start=0, step=1, limit=4
  $region2: #{unet_proto_forward.3} parent=0 // loop_pre_header
    _
  $region3: #{unet_proto_forward.3} parent=0 // loop_header
    %s10 = sphi 0, %s14
    %p11 = scmp.ge.s32.totalorder %s10, 4
    %s20 = sphi 0, %s22
    %s23 = sphi 0, %s20
    %s24 = sphi 0, %s23
    %s40 = sphi 0, %s24
    %s44 = sphi 0, %s44
    %s46 = sphi 0, %s44
    %s47 = sphi 0, %s46
    %s61 = sphi 0, %s47
    %s65 = sphi 0, %s65
    %s67 = sphi 0, %s65
    %s68 = sphi 0, %s67
    %s82 = sphi 0, %s68
    %s86 = sphi 0, %s86
    %s88 = sphi 0, %s86
    %s89 = sphi 0, %s88
    %s103 = sphi 0, %s89
    %s109 = sphi 0, %s111
    %s112 = sphi 0, %s109
    %s113 = sphi 0, %s112
    %s129 = sphi 0, %s113
  $region4: #{unet_proto_forward.3} parent=0 // loop_header_branch
    %13 = sbr.rel (%p11) target = $region8
  $region5: #{unet_proto_forward.3} parent=0 // loop_body
    %s15 = ssub.s32 %s10, 1
    %s16 = ssub.s32 %s10, 2
    %s17 = sadd.s32 %s10, 1
    %s18 = ssub.s32 %s10, %s17
    %p19 = scmp.eq.s32.totalorder %s18, 0
    %s21 = sadd.s32 %s20, 1
    %s22 = scalar_select %p19, %s20, %s21
    %p25 = pneg %p19
    %p26 = scmp.eq.s32.totalorder %s10, 1
    %p27 = por %p25, %p26
    %p28 = scmp.ne.s32.totalorder %s20, %s23
    %p29 = scmp.eq.s32.totalorder %s10, 0
    %p30 = por %p28, %p29
    %p31 = scmp.ne.s32.totalorder %s20, %s23
    %p32 = scmp.eq.s32.totalorder %s15, 1
    %p33 = por %p31, %p32
    %p34 = scmp.ne.s32.totalorder %s23, %s24
    %p35 = scmp.eq.s32.totalorder %s15, 0
    %p36 = por %p34, %p35
    %p37 = scmp.ne.s32.totalorder %s23, %s24
    %p38 = scmp.eq.s32.totalorder %s16, 1
    %p39 = por %p37, %p38
    %p41 = scmp.ne.s32.totalorder %s24, %s40
    %p42 = scmp.eq.s32.totalorder %s16, 0
    %p43 = por %p41, %p42
    %s45 = sadd.s32 %s44, 1
    %p48 = scmp.eq.s32.totalorder %s10, 1
    %p49 = scmp.ne.s32.totalorder %s44, %s46
    %p50 = scmp.eq.s32.totalorder %s10, 0
    %p51 = por %p49, %p50
    %p52 = scmp.ne.s32.totalorder %s44, %s46
    %p53 = scmp.eq.s32.totalorder %s15, 1
    %p54 = por %p52, %p53
    %p55 = scmp.ne.s32.totalorder %s46, %s47
    %p56 = scmp.eq.s32.totalorder %s15, 0
    %p57 = por %p55, %p56
    %p58 = scmp.ne.s32.totalorder %s46, %s47
    %p59 = scmp.eq.s32.totalorder %s16, 1
    %p60 = por %p58, %p59
    %p62 = scmp.ne.s32.totalorder %s47, %s61
    %p63 = scmp.eq.s32.totalorder %s16, 0
    %p64 = por %p62, %p63
    %s66 = sadd.s32 %s65, 1
    %p69 = scmp.eq.s32.totalorder %s10, 1
    %p70 = scmp.ne.s32.totalorder %s65, %s67
    %p71 = scmp.eq.s32.totalorder %s10, 0
    %p72 = por %p70, %p71
    %p73 = scmp.ne.s32.totalorder %s65, %s67
    %p74 = scmp.eq.s32.totalorder %s15, 1
    %p75 = por %p73, %p74
    %p76 = scmp.ne.s32.totalorder %s67, %s68
    %p77 = scmp.eq.s32.totalorder %s15, 0
    %p78 = por %p76, %p77
    %p79 = scmp.ne.s32.totalorder %s67, %s68
    %p80 = scmp.eq.s32.totalorder %s16, 1
    %p81 = por %p79, %p80
    %p83 = scmp.ne.s32.totalorder %s68, %s82
    %p84 = scmp.eq.s32.totalorder %s16, 0
    %p85 = por %p83, %p84
    %s87 = sadd.s32 %s86, 1
    %p90 = scmp.eq.s32.totalorder %s10, 1
    %p91 = scmp.ne.s32.totalorder %s86, %s88
    %p92 = scmp.eq.s32.totalorder %s10, 0
    %p93 = por %p91, %p92
    %p94 = scmp.ne.s32.totalorder %s86, %s88
    %p95 = scmp.eq.s32.totalorder %s15, 1
    %p96 = por %p94, %p95
    %p97 = scmp.ne.s32.totalorder %s88, %s89
    %p98 = scmp.eq.s32.totalorder %s15, 0
    %p99 = por %p97, %p98
    %p100 = scmp.ne.s32.totalorder %s88, %s89
    %p101 = scmp.eq.s32.totalorder %s16, 1
    %p102 = por %p100, %p101
    %p104 = scmp.ne.s32.totalorder %s89, %s103
    %p105 = scmp.eq.s32.totalorder %s16, 0
    %p106 = por %p104, %p105
    %s107 = ssub.s32 %s10, %s17
    %p108 = scmp.eq.s32.totalorder %s107, 0
    %s110 = sadd.s32 %s109, 1
    %s111 = scalar_select %p108, %s109, %s110
    %p114 = pneg %p108
    %p115 = scmp.eq.s32.totalorder %s10, 1
    %p116 = por %p114, %p115
    %p117 = scmp.ne.s32.totalorder %s109, %s112
    %p118 = scmp.eq.s32.totalorder %s10, 0
    %p119 = por %p117, %p118
    %p120 = scmp.ne.s32.totalorder %s109, %s112
    %p121 = scmp.eq.s32.totalorder %s15, 1
    %p122 = por %p120, %p121
    %p123 = scmp.ne.s32.totalorder %s112, %s113
    %p124 = scmp.eq.s32.totalorder %s15, 0
    %p125 = por %p123, %p124
    %p126 = scmp.ne.s32.totalorder %s112, %s113
    %p127 = scmp.eq.s32.totalorder %s16, 1
    %p128 = por %p126, %p127
    %p130 = scmp.ne.s32.totalorder %s113, %s129
    %p131 = scmp.eq.s32.totalorder %s16, 0
    %p132 = por %p130, %p131
    %p133 = scmp.le.s32.totalorder 1, %s10
    %p134 = scmp.lt.s32.totalorder %s10, 3
    %p135 = pnand %p133, %p134
    %p136 = pneg %p135
    // Predicated region
    $region9: #{unet_proto_forward.3} parent=5 // pred_check
      _
    $region10: #{unet_proto_forward.3} parent=5 // pred_check_branch
      %138 = sbr.rel (%p135) target = $region12
    $region11: #{unet_proto_forward.3} parent=5 // pred_region
      %s139 = ssub.s32 %s10, 1
      // Predicated region
      $region13: #{unet_proto_forward.3} parent=11 // pred_check
        %p140 = pneg %p57
      $region14: #{unet_proto_forward.3} parent=11 // pred_check_branch
        %142 = sbr.rel (%p140) target = $region16
      $region15: #{unet_proto_forward.3} parent=11 // pred_region
        _
      $region16: #{unet_proto_forward.3} parent=11 // pred_fallthru
        _
      // Predicated region
      $region17: #{unet_proto_forward.3} parent=11 // pred_check
        %p143 = pneg %p78
      $region18: #{unet_proto_forward.3} parent=11 // pred_check_branch
        %145 = sbr.rel (%p143) target = $region20
      $region19: #{unet_proto_forward.3} parent=11 // pred_region
        _
      $region20: #{unet_proto_forward.3} parent=11 // pred_fallthru
        _
      // Predicated region
      $region21: #{unet_proto_forward.3} parent=11 // pred_check
        %p146 = pneg %p99
      $region22: #{unet_proto_forward.3} parent=11 // pred_check_branch
        %148 = sbr.rel (%p146) target = $region24
      $region23: #{unet_proto_forward.3} parent=11 // pred_region
        _
      $region24: #{unet_proto_forward.3} parent=11 // pred_fallthru
        _
    $region12: #{unet_proto_forward.3} parent=5 // pred_fallthru
      _
    %p149 = scmp.lt.s32.totalorder %s10, 2
    // Predicated region
    $region25: #{unet_proto_forward.3} parent=5 // pred_check
      %p150 = pneg %p149
    $region26: #{unet_proto_forward.3} parent=5 // pred_check_branch
      %152 = sbr.rel (%p150) target = $region28
    $region27: #{unet_proto_forward.3} parent=5 // pred_region
      // Predicated region
      $region29: #{unet_proto_forward.3} parent=27 // pred_check
        %p153 = pneg %p30
      $region30: #{unet_proto_forward.3} parent=27 // pred_check_branch
        %155 = sbr.rel (%p153) target = $region32
      $region31: #{unet_proto_forward.3} parent=27 // pred_region
        %s156 = smul.u32 64, %s10
        %p157 = scmp.lt.s32.totalorder %s156, 127
        %s158 = scalar_select %p157, %s156, 127
        %s159 = smul.addr %s158, 8
        %s160 = scalar_lea.vmem %s0, %s159
        %s161 = smul.u32 64, %s10
      $region32: #{unet_proto_forward.3} parent=27 // pred_fallthru
        _
    $region28: #{unet_proto_forward.3} parent=5 // pred_fallthru
      _
    %p162 = scmp.le.s32.totalorder 1, %s10
    %p163 = scmp.lt.s32.totalorder %s10, 3
    %p164 = pnand %p162, %p163
    %p165 = pneg %p164
    // Predicated region
    $region33: #{unet_proto_forward.3} parent=5 // pred_check
      _
    $region34: #{unet_proto_forward.3} parent=5 // pred_check_branch
      %167 = sbr.rel (%p164) target = $region36
    $region35: #{unet_proto_forward.3} parent=5 // pred_region
      %s168 = ssub.s32 %s10, 1
      %s169 = smul.u32 64, %s15
      %p170 = scmp.lt.s32.totalorder %s169, 127
      %s171 = scalar_select %p170, %s169, 127
      %s172 = smul.addr %s171, 8
      %s173 = scalar_lea.vmem %s0, %s172
      %p174 = pneg %p36
      %p175 = pneg %p33
      %p176 = pneg %p57
      %p177 = pneg %p54
      %p178 = pneg %p78
      %p179 = pneg %p75
      %p180 = pneg %p99
      %p181 = pneg %p96
      %p182 = pneg %p125
      %p183 = pneg %p122
      %s184 = smul.u32 64, %s15
      %p185 = scmp.lt.s32.totalorder %s184, 127
      %s186 = scalar_select %p185, %s184, 127
      %s187 = smul.addr %s186, 8
      %s188 = scalar_lea.vmem %s4, %s187
      %s189 = smul.u32 64, %s15
      %p190 = scmp.lt.s32.totalorder %s189, 127
      %s191 = scalar_select %p190, %s189, 127
      %s192 = smul.addr %s191, 8
      %s193 = scalar_lea.vmem %s0, %s192
      %s194 = smul.u32 64, %s15
      %s195 = smul.u32 64, %s15
      %p196 = scmp.lt.s32.totalorder %s195, 127
      %s197 = scalar_select %p196, %s195, 127
      %s198 = smul.addr %s197, 8
      %s199 = scalar_lea.vmem %s4, %s198
      %s200 = smul.u32 64, %s15
      %v201 = vld [vmem:[%s193] sm:$0xff]
      %v202 = vld [vmem:[%s193 + $0x8] sm:$0xff]
      %v203 = vld [vmem:[%s193 + $0x10] sm:$0xff]
      %v204 = vld [vmem:[%s193 + $0x18] sm:$0xff]
      %v205 = vld [vmem:[%s193 + $0x20] sm:$0xff]
      %v206 = vld [vmem:[%s193 + $0x28] sm:$0xff]
      %v207 = vld [vmem:[%s193 + $0x30] sm:$0xff]
      %v208 = vld [vmem:[%s193 + $0x38] sm:$0xff]
      %v209 = vld [vmem:[%s193 + $0x40] sm:$0xff]
      %v210 = vld [vmem:[%s193 + $0x48] sm:$0xff]
      %v211 = vld [vmem:[%s193 + $0x50] sm:$0xff]
      %v212 = vld [vmem:[%s193 + $0x58] sm:$0xff]
      %v213 = vld [vmem:[%s193 + $0x60] sm:$0xff]
      %v214 = vld [vmem:[%s193 + $0x68] sm:$0xff]
      %v215 = vld [vmem:[%s193 + $0x70] sm:$0xff]
      %v216 = vld [vmem:[%s193 + $0x78] sm:$0xff]
      %v217 = vld [vmem:[%s193 + $0x80] sm:$0xff]
      %v218 = vld [vmem:[%s193 + $0x88] sm:$0xff]
      %v219 = vld [vmem:[%s193 + $0x90] sm:$0xff]
      %v220 = vld [vmem:[%s193 + $0x98] sm:$0xff]
      %v221 = vld [vmem:[%s193 + $0xa0] sm:$0xff]
      %v222 = vld [vmem:[%s193 + $0xa8] sm:$0xff]
      %v223 = vld [vmem:[%s193 + $0xb0] sm:$0xff]
      %v224 = vld [vmem:[%s193 + $0xb8] sm:$0xff]
      %v225 = vld [vmem:[%s193 + $0xc0] sm:$0xff]
      %v226 = vld [vmem:[%s193 + $0xc8] sm:$0xff]
      %v227 = vld [vmem:[%s193 + $0xd0] sm:$0xff]
      %v228 = vld [vmem:[%s193 + $0xd8] sm:$0xff]
      %v229 = vld [vmem:[%s193 + $0xe0] sm:$0xff]
      %v230 = vld [vmem:[%s193 + $0xe8] sm:$0xff]
      %v231 = vld [vmem:[%s193 + $0xf0] sm:$0xff]
      %v232 = vld [vmem:[%s193 + $0xf8] sm:$0xff]
      %v233 = vld [vmem:[%s193 + $0x100] sm:$0xff]
      %v234 = vld [vmem:[%s193 + $0x108] sm:$0xff]
      %v235 = vld [vmem:[%s193 + $0x110] sm:$0xff]
      %v236 = vld [vmem:[%s193 + $0x118] sm:$0xff]
      %v237 = vld [vmem:[%s193 + $0x120] sm:$0xff]
      %v238 = vld [vmem:[%s193 + $0x128] sm:$0xff]
      %v239 = vld [vmem:[%s193 + $0x130] sm:$0xff]
      %v240 = vld [vmem:[%s193 + $0x138] sm:$0xff]
      %v241 = vld [vmem:[%s193 + $0x140] sm:$0xff]
      %v242 = vld [vmem:[%s193 + $0x148] sm:$0xff]
      %v243 = vld [vmem:[%s193 + $0x150] sm:$0xff]
      %v244 = vld [vmem:[%s193 + $0x158] sm:$0xff]
      %v245 = vld [vmem:[%s193 + $0x160] sm:$0xff]
      %v246 = vld [vmem:[%s193 + $0x168] sm:$0xff]
      %v247 = vld [vmem:[%s193 + $0x170] sm:$0xff]
      %v248 = vld [vmem:[%s193 + $0x178] sm:$0xff]
      %v249 = vld [vmem:[%s193 + $0x180] sm:$0xff]
      %v250 = vld [vmem:[%s193 + $0x188] sm:$0xff]
      %v251 = vld [vmem:[%s193 + $0x190] sm:$0xff]
      %v252 = vld [vmem:[%s193 + $0x198] sm:$0xff]
      %v253 = vld [vmem:[%s193 + $0x1a0] sm:$0xff]
      %v254 = vld [vmem:[%s193 + $0x1a8] sm:$0xff]
      %v255 = vld [vmem:[%s193 + $0x1b0] sm:$0xff]
      %v256 = vld [vmem:[%s193 + $0x1b8] sm:$0xff]
      %v257 = vld [vmem:[%s193 + $0x1c0] sm:$0xff]
      %v258 = vld [vmem:[%s193 + $0x1c8] sm:$0xff]
      %v259 = vld [vmem:[%s193 + $0x1d0] sm:$0xff]
      %v260 = vld [vmem:[%s193 + $0x1d8] sm:$0xff]
      %v261 = vld [vmem:[%s193 + $0x1e0] sm:$0xff]
      %v262 = vld [vmem:[%s193 + $0x1e8] sm:$0xff]
      %v263 = vld [vmem:[%s193 + $0x1f0] sm:$0xff]
      %v264 = vld [vmem:[%s193 + $0x1f8] sm:$0xff]
      %v265 = vmul.f32 %v201, %v201
      %v266 = vmul.f32 %v202, %v202
      %v267 = vmul.f32 %v203, %v203
      %v268 = vmul.f32 %v204, %v204
      %v269 = vmul.f32 %v205, %v205
      %v270 = vmul.f32 %v206, %v206
      %v271 = vmul.f32 %v207, %v207
      %v272 = vmul.f32 %v208, %v208
      %v273 = vmul.f32 %v209, %v209
      %v274 = vmul.f32 %v210, %v210
      %v275 = vmul.f32 %v211, %v211
      %v276 = vmul.f32 %v212, %v212
      %v277 = vmul.f32 %v213, %v213
      %v278 = vmul.f32 %v214, %v214
      %v279 = vmul.f32 %v215, %v215
      %v280 = vmul.f32 %v216, %v216
      %v281 = vmul.f32 %v217, %v217
      %v282 = vmul.f32 %v218, %v218
      %v283 = vmul.f32 %v219, %v219
      %v284 = vmul.f32 %v220, %v220
      %v285 = vmul.f32 %v221, %v221
      %v286 = vmul.f32 %v222, %v222
      %v287 = vmul.f32 %v223, %v223
      %v288 = vmul.f32 %v224, %v224
      %v289 = vmul.f32 %v225, %v225
      %v290 = vmul.f32 %v226, %v226
      %v291 = vmul.f32 %v227, %v227
      %v292 = vmul.f32 %v228, %v228
      %v293 = vmul.f32 %v229, %v229
      %v294 = vmul.f32 %v230, %v230
      %v295 = vmul.f32 %v231, %v231
      %v296 = vmul.f32 %v232, %v232
      %v297 = vmul.f32 %v233, %v233
      %v298 = vmul.f32 %v234, %v234
      %v299 = vmul.f32 %v235, %v235
      %v300 = vmul.f32 %v236, %v236
      %v301 = vmul.f32 %v237, %v237
      %v302 = vmul.f32 %v238, %v238
      %v303 = vmul.f32 %v239, %v239
      %v304 = vmul.f32 %v240, %v240
      %v305 = vmul.f32 %v241, %v241
      %v306 = vmul.f32 %v242, %v242
      %v307 = vmul.f32 %v243, %v243
      %v308 = vmul.f32 %v244, %v244
      %v309 = vmul.f32 %v245, %v245
      %v310 = vmul.f32 %v246, %v246
      %v311 = vmul.f32 %v247, %v247
      %v312 = vmul.f32 %v248, %v248
      %v313 = vmul.f32 %v249, %v249
      %v314 = vmul.f32 %v250, %v250
      %v315 = vmul.f32 %v251, %v251
      %v316 = vmul.f32 %v252, %v252
      %v317 = vmul.f32 %v253, %v253
      %v318 = vmul.f32 %v254, %v254
      %v319 = vmul.f32 %v255, %v255
      %v320 = vmul.f32 %v256, %v256
      %v321 = vmul.f32 %v257, %v257
      %v322 = vmul.f32 %v258, %v258
      %v323 = vmul.f32 %v259, %v259
      %v324 = vmul.f32 %v260, %v260
      %v325 = vmul.f32 %v261, %v261
      %v326 = vmul.f32 %v262, %v262
      %v327 = vmul.f32 %v263, %v263
      %v328 = vmul.f32 %v264, %v264
      %vm329 = vcmask 261120
      %v330 = vsel %vm329, %v265, 0.0
      %331 = vadd.xlane.f32.xlu0 %v330
      %v332 = vpop.xlane.xlu0 %331
      %v333 = vsel %vm329, %v266, 0.0
      %334 = vadd.xlane.f32.xlu0 %v333
      %v335 = vpop.xlane.xlu0 %334
      %v336 = vsel %vm329, %v267, 0.0
      %337 = vadd.xlane.f32.xlu0 %v336
      %v338 = vpop.xlane.xlu0 %337
      %v339 = vsel %vm329, %v268, 0.0
      %340 = vadd.xlane.f32.xlu0 %v339
      %v341 = vpop.xlane.xlu0 %340
      %v342 = vsel %vm329, %v269, 0.0
      %343 = vadd.xlane.f32.xlu0 %v342
      %v344 = vpop.xlane.xlu0 %343
      %v345 = vsel %vm329, %v270, 0.0
      %346 = vadd.xlane.f32.xlu0 %v345
      %v347 = vpop.xlane.xlu0 %346
      %v348 = vsel %vm329, %v271, 0.0
      %349 = vadd.xlane.f32.xlu0 %v348
      %v350 = vpop.xlane.xlu0 %349
      %v351 = vsel %vm329, %v272, 0.0
      %352 = vadd.xlane.f32.xlu0 %v351
      %v353 = vpop.xlane.xlu0 %352
      %v354 = vsel %vm329, %v273, 0.0
      %355 = vadd.xlane.f32.xlu0 %v354
      %v356 = vpop.xlane.xlu0 %355
      %v357 = vsel %vm329, %v274, 0.0
      %358 = vadd.xlane.f32.xlu0 %v357
      %v359 = vpop.xlane.xlu0 %358
      %v360 = vsel %vm329, %v275, 0.0
      %361 = vadd.xlane.f32.xlu0 %v360
      %v362 = vpop.xlane.xlu0 %361
      %v363 = vsel %vm329, %v276, 0.0
      %364 = vadd.xlane.f32.xlu0 %v363
      %v365 = vpop.xlane.xlu0 %364
      %v366 = vsel %vm329, %v277, 0.0
      %367 = vadd.xlane.f32.xlu0 %v366
      %v368 = vpop.xlane.xlu0 %367
      %v369 = vsel %vm329, %v278, 0.0
      %370 = vadd.xlane.f32.xlu0 %v369
      %v371 = vpop.xlane.xlu0 %370
      %v372 = vsel %vm329, %v279, 0.0
      %373 = vadd.xlane.f32.xlu0 %v372
      %v374 = vpop.xlane.xlu0 %373
      %v375 = vsel %vm329, %v280, 0.0
      %376 = vadd.xlane.f32.xlu0 %v375
      %v377 = vpop.xlane.xlu0 %376
      %v378 = vsel %vm329, %v281, 0.0
      %379 = vadd.xlane.f32.xlu0 %v378
      %v380 = vpop.xlane.xlu0 %379
      %v381 = vsel %vm329, %v282, 0.0
      %382 = vadd.xlane.f32.xlu0 %v381
      %v383 = vpop.xlane.xlu0 %382
      %v384 = vsel %vm329, %v283, 0.0
      %385 = vadd.xlane.f32.xlu0 %v384
      %v386 = vpop.xlane.xlu0 %385
      %v387 = vsel %vm329, %v284, 0.0
      %388 = vadd.xlane.f32.xlu0 %v387
      %v389 = vpop.xlane.xlu0 %388
      %v390 = vsel %vm329, %v285, 0.0
      %391 = vadd.xlane.f32.xlu0 %v390
      %v392 = vpop.xlane.xlu0 %391
      %v393 = vsel %vm329, %v286, 0.0
      %394 = vadd.xlane.f32.xlu0 %v393
      %v395 = vpop.xlane.xlu0 %394
      %v396 = vsel %vm329, %v287, 0.0
      %397 = vadd.xlane.f32.xlu0 %v396
      %v398 = vpop.xlane.xlu0 %397
      %v399 = vsel %vm329, %v288, 0.0
      %400 = vadd.xlane.f32.xlu0 %v399
      %v401 = vpop.xlane.xlu0 %400
      %v402 = vsel %vm329, %v289, 0.0
      %403 = vadd.xlane.f32.xlu0 %v402
      %v404 = vpop.xlane.xlu0 %403
      %v405 = vsel %vm329, %v290, 0.0
      %406 = vadd.xlane.f32.xlu0 %v405
      %v407 = vpop.xlane.xlu0 %406
      %v408 = vsel %vm329, %v291, 0.0
      %409 = vadd.xlane.f32.xlu0 %v408
      %v410 = vpop.xlane.xlu0 %409
      %v411 = vsel %vm329, %v292, 0.0
      %412 = vadd.xlane.f32.xlu0 %v411
      %v413 = vpop.xlane.xlu0 %412
      %v414 = vsel %vm329, %v293, 0.0
      %415 = vadd.xlane.f32.xlu0 %v414
      %v416 = vpop.xlane.xlu0 %415
      %v417 = vsel %vm329, %v294, 0.0
      %418 = vadd.xlane.f32.xlu0 %v417
      %v419 = vpop.xlane.xlu0 %418
      %v420 = vsel %vm329, %v295, 0.0
      %421 = vadd.xlane.f32.xlu0 %v420
      %v422 = vpop.xlane.xlu0 %421
      %v423 = vsel %vm329, %v296, 0.0
      %424 = vadd.xlane.f32.xlu0 %v423
      %v425 = vpop.xlane.xlu0 %424
      %v426 = vsel %vm329, %v297, 0.0
      %427 = vadd.xlane.f32.xlu0 %v426
      %v428 = vpop.xlane.xlu0 %427
      %v429 = vsel %vm329, %v298, 0.0
      %430 = vadd.xlane.f32.xlu0 %v429
      %v431 = vpop.xlane.xlu0 %430
      %v432 = vsel %vm329, %v299, 0.0
      %433 = vadd.xlane.f32.xlu0 %v432
      %v434 = vpop.xlane.xlu0 %433
      %v435 = vsel %vm329, %v300, 0.0
      %436 = vadd.xlane.f32.xlu0 %v435
      %v437 = vpop.xlane.xlu0 %436
      %v438 = vsel %vm329, %v301, 0.0
      %439 = vadd.xlane.f32.xlu0 %v438
      %v440 = vpop.xlane.xlu0 %439
      %v441 = vsel %vm329, %v302, 0.0
      %442 = vadd.xlane.f32.xlu0 %v441
      %v443 = vpop.xlane.xlu0 %442
      %v444 = vsel %vm329, %v303, 0.0
      %445 = vadd.xlane.f32.xlu0 %v444
      %v446 = vpop.xlane.xlu0 %445
      %v447 = vsel %vm329, %v304, 0.0
      %448 = vadd.xlane.f32.xlu0 %v447
      %v449 = vpop.xlane.xlu0 %448
      %v450 = vsel %vm329, %v305, 0.0
      %451 = vadd.xlane.f32.xlu0 %v450
      %v452 = vpop.xlane.xlu0 %451
      %v453 = vsel %vm329, %v306, 0.0
      %454 = vadd.xlane.f32.xlu0 %v453
      %v455 = vpop.xlane.xlu0 %454
      %v456 = vsel %vm329, %v307, 0.0
      %457 = vadd.xlane.f32.xlu0 %v456
      %v458 = vpop.xlane.xlu0 %457
      %v459 = vsel %vm329, %v308, 0.0
      %460 = vadd.xlane.f32.xlu0 %v459
      %v461 = vpop.xlane.xlu0 %460
      %v462 = vsel %vm329, %v309, 0.0
      %463 = vadd.xlane.f32.xlu0 %v462
      %v464 = vpop.xlane.xlu0 %463
      %v465 = vsel %vm329, %v310, 0.0
      %466 = vadd.xlane.f32.xlu0 %v465
      %v467 = vpop.xlane.xlu0 %466
      %v468 = vsel %vm329, %v311, 0.0
      %469 = vadd.xlane.f32.xlu0 %v468
      %v470 = vpop.xlane.xlu0 %469
      %v471 = vsel %vm329, %v312, 0.0
      %472 = vadd.xlane.f32.xlu0 %v471
      %v473 = vpop.xlane.xlu0 %472
      %v474 = vsel %vm329, %v313, 0.0
      %475 = vadd.xlane.f32.xlu0 %v474
      %v476 = vpop.xlane.xlu0 %475
      %v477 = vsel %vm329, %v314, 0.0
      %478 = vadd.xlane.f32.xlu0 %v477
      %v479 = vpop.xlane.xlu0 %478
      %v480 = vsel %vm329, %v315, 0.0
      %481 = vadd.xlane.f32.xlu0 %v480
      %v482 = vpop.xlane.xlu0 %481
      %v483 = vsel %vm329, %v316, 0.0
      %484 = vadd.xlane.f32.xlu0 %v483
      %v485 = vpop.xlane.xlu0 %484
      %v486 = vsel %vm329, %v317, 0.0
      %487 = vadd.xlane.f32.xlu0 %v486
      %v488 = vpop.xlane.xlu0 %487
      %v489 = vsel %vm329, %v318, 0.0
      %490 = vadd.xlane.f32.xlu0 %v489
      %v491 = vpop.xlane.xlu0 %490
      %v492 = vsel %vm329, %v319, 0.0
      %493 = vadd.xlane.f32.xlu0 %v492
      %v494 = vpop.xlane.xlu0 %493
      %v495 = vsel %vm329, %v320, 0.0
      %496 = vadd.xlane.f32.xlu0 %v495
      %v497 = vpop.xlane.xlu0 %496
      %v498 = vsel %vm329, %v321, 0.0
      %499 = vadd.xlane.f32.xlu0 %v498
      %v500 = vpop.xlane.xlu0 %499
      %v501 = vsel %vm329, %v322, 0.0
      %502 = vadd.xlane.f32.xlu0 %v501
      %v503 = vpop.xlane.xlu0 %502
      %v504 = vsel %vm329, %v323, 0.0
      %505 = vadd.xlane.f32.xlu0 %v504
      %v506 = vpop.xlane.xlu0 %505
      %v507 = vsel %vm329, %v324, 0.0
      %508 = vadd.xlane.f32.xlu0 %v507
      %v509 = vpop.xlane.xlu0 %508
      %v510 = vsel %vm329, %v325, 0.0
      %511 = vadd.xlane.f32.xlu0 %v510
      %v512 = vpop.xlane.xlu0 %511
      %v513 = vsel %vm329, %v326, 0.0
      %514 = vadd.xlane.f32.xlu0 %v513
      %v515 = vpop.xlane.xlu0 %514
      %v516 = vsel %vm329, %v327, 0.0
      %517 = vadd.xlane.f32.xlu0 %v516
      %v518 = vpop.xlane.xlu0 %517
      %v519 = vsel %vm329, %v328, 0.0
      %520 = vadd.xlane.f32.xlu0 %v519
      %v521 = vpop.xlane.xlu0 %520
      %v522 = vrsqrt.pop %v332
      %v523 = vmul.f32 %v332, %v522
      %vm524 = vcmp.eq.f32.partialorder %v332, inf
      %v525 = vsel %vm524, %v332, %v523
      %vm526 = vcmp.eq.f32.partialorder %v332, 0.0
      %v527 = vand.u32 %v332, 2147483648
      %v528 = vsel %vm526, %v527, %v525
      %v529 = vrsqrt.pop %v335
      %v530 = vmul.f32 %v335, %v529
      %vm531 = vcmp.eq.f32.partialorder %v335, inf
      %v532 = vsel %vm531, %v335, %v530
      %vm533 = vcmp.eq.f32.partialorder %v335, 0.0
      %v534 = vand.u32 %v335, 2147483648
      %v535 = vsel %vm533, %v534, %v532
      %v536 = vrsqrt.pop %v338
      %v537 = vmul.f32 %v338, %v536
      %vm538 = vcmp.eq.f32.partialorder %v338, inf
      %v539 = vsel %vm538, %v338, %v537
      %vm540 = vcmp.eq.f32.partialorder %v338, 0.0
      %v541 = vand.u32 %v338, 2147483648
      %v542 = vsel %vm540, %v541, %v539
      %v543 = vrsqrt.pop %v341
      %v544 = vmul.f32 %v341, %v543
      %vm545 = vcmp.eq.f32.partialorder %v341, inf
      %v546 = vsel %vm545, %v341, %v544
      %vm547 = vcmp.eq.f32.partialorder %v341, 0.0
      %v548 = vand.u32 %v341, 2147483648
      %v549 = vsel %vm547, %v548, %v546
      %v550 = vrsqrt.pop %v344
      %v551 = vmul.f32 %v344, %v550
      %vm552 = vcmp.eq.f32.partialorder %v344, inf
      %v553 = vsel %vm552, %v344, %v551
      %vm554 = vcmp.eq.f32.partialorder %v344, 0.0
      %v555 = vand.u32 %v344, 2147483648
      %v556 = vsel %vm554, %v555, %v553
      %v557 = vrsqrt.pop %v347
      %v558 = vmul.f32 %v347, %v557
      %vm559 = vcmp.eq.f32.partialorder %v347, inf
      %v560 = vsel %vm559, %v347, %v558
      %vm561 = vcmp.eq.f32.partialorder %v347, 0.0
      %v562 = vand.u32 %v347, 2147483648
      %v563 = vsel %vm561, %v562, %v560
      %v564 = vrsqrt.pop %v350
      %v565 = vmul.f32 %v350, %v564
      %vm566 = vcmp.eq.f32.partialorder %v350, inf
      %v567 = vsel %vm566, %v350, %v565
      %vm568 = vcmp.eq.f32.partialorder %v350, 0.0
      %v569 = vand.u32 %v350, 2147483648
      %v570 = vsel %vm568, %v569, %v567
      %v571 = vrsqrt.pop %v353
      %v572 = vmul.f32 %v353, %v571
      %vm573 = vcmp.eq.f32.partialorder %v353, inf
      %v574 = vsel %vm573, %v353, %v572
      %vm575 = vcmp.eq.f32.partialorder %v353, 0.0
      %v576 = vand.u32 %v353, 2147483648
      %v577 = vsel %vm575, %v576, %v574
      %v578 = vrsqrt.pop %v356
      %v579 = vmul.f32 %v356, %v578
      %vm580 = vcmp.eq.f32.partialorder %v356, inf
      %v581 = vsel %vm580, %v356, %v579
      %vm582 = vcmp.eq.f32.partialorder %v356, 0.0
      %v583 = vand.u32 %v356, 2147483648
      %v584 = vsel %vm582, %v583, %v581
      %v585 = vrsqrt.pop %v359
      %v586 = vmul.f32 %v359, %v585
      %vm587 = vcmp.eq.f32.partialorder %v359, inf
      %v588 = vsel %vm587, %v359, %v586
      %vm589 = vcmp.eq.f32.partialorder %v359, 0.0
      %v590 = vand.u32 %v359, 2147483648
      %v591 = vsel %vm589, %v590, %v588
      %v592 = vrsqrt.pop %v362
      %v593 = vmul.f32 %v362, %v592
      %vm594 = vcmp.eq.f32.partialorder %v362, inf
      %v595 = vsel %vm594, %v362, %v593
      %vm596 = vcmp.eq.f32.partialorder %v362, 0.0
      %v597 = vand.u32 %v362, 2147483648
      %v598 = vsel %vm596, %v597, %v595
      %v599 = vrsqrt.pop %v365
      %v600 = vmul.f32 %v365, %v599
      %vm601 = vcmp.eq.f32.partialorder %v365, inf
      %v602 = vsel %vm601, %v365, %v600
      %vm603 = vcmp.eq.f32.partialorder %v365, 0.0
      %v604 = vand.u32 %v365, 2147483648
      %v605 = vsel %vm603, %v604, %v602
      %v606 = vrsqrt.pop %v368
      %v607 = vmul.f32 %v368, %v606
      %vm608 = vcmp.eq.f32.partialorder %v368, inf
      %v609 = vsel %vm608, %v368, %v607
      %vm610 = vcmp.eq.f32.partialorder %v368, 0.0
      %v611 = vand.u32 %v368, 2147483648
      %v612 = vsel %vm610, %v611, %v609
      %v613 = vrsqrt.pop %v371
      %v614 = vmul.f32 %v371, %v613
      %vm615 = vcmp.eq.f32.partialorder %v371, inf
      %v616 = vsel %vm615, %v371, %v614
      %vm617 = vcmp.eq.f32.partialorder %v371, 0.0
      %v618 = vand.u32 %v371, 2147483648
      %v619 = vsel %vm617, %v618, %v616
      %v620 = vrsqrt.pop %v374
      %v621 = vmul.f32 %v374, %v620
      %vm622 = vcmp.eq.f32.partialorder %v374, inf
      %v623 = vsel %vm622, %v374, %v621
      %vm624 = vcmp.eq.f32.partialorder %v374, 0.0
      %v625 = vand.u32 %v374, 2147483648
      %v626 = vsel %vm624, %v625, %v623
      %v627 = vrsqrt.pop %v377
      %v628 = vmul.f32 %v377, %v627
      %vm629 = vcmp.eq.f32.partialorder %v377, inf
      %v630 = vsel %vm629, %v377, %v628
      %vm631 = vcmp.eq.f32.partialorder %v377, 0.0
      %v632 = vand.u32 %v377, 2147483648
      %v633 = vsel %vm631, %v632, %v630
      %v634 = vrsqrt.pop %v380
      %v635 = vmul.f32 %v380, %v634
      %vm636 = vcmp.eq.f32.partialorder %v380, inf
      %v637 = vsel %vm636, %v380, %v635
      %vm638 = vcmp.eq.f32.partialorder %v380, 0.0
      %v639 = vand.u32 %v380, 2147483648
      %v640 = vsel %vm638, %v639, %v637
      %v641 = vrsqrt.pop %v383
      %v642 = vmul.f32 %v383, %v641
      %vm643 = vcmp.eq.f32.partialorder %v383, inf
      %v644 = vsel %vm643, %v383, %v642
      %vm645 = vcmp.eq.f32.partialorder %v383, 0.0
      %v646 = vand.u32 %v383, 2147483648
      %v647 = vsel %vm645, %v646, %v644
      %v648 = vrsqrt.pop %v386
      %v649 = vmul.f32 %v386, %v648
      %vm650 = vcmp.eq.f32.partialorder %v386, inf
      %v651 = vsel %vm650, %v386, %v649
      %vm652 = vcmp.eq.f32.partialorder %v386, 0.0
      %v653 = vand.u32 %v386, 2147483648
      %v654 = vsel %vm652, %v653, %v651
      %v655 = vrsqrt.pop %v389
      %v656 = vmul.f32 %v389, %v655
      %vm657 = vcmp.eq.f32.partialorder %v389, inf
      %v658 = vsel %vm657, %v389, %v656
      %vm659 = vcmp.eq.f32.partialorder %v389, 0.0
      %v660 = vand.u32 %v389, 2147483648
      %v661 = vsel %vm659, %v660, %v658
      %v662 = vrsqrt.pop %v392
      %v663 = vmul.f32 %v392, %v662
      %vm664 = vcmp.eq.f32.partialorder %v392, inf
      %v665 = vsel %vm664, %v392, %v663
      %vm666 = vcmp.eq.f32.partialorder %v392, 0.0
      %v667 = vand.u32 %v392, 2147483648
      %v668 = vsel %vm666, %v667, %v665
      %v669 = vrsqrt.pop %v395
      %v670 = vmul.f32 %v395, %v669
      %vm671 = vcmp.eq.f32.partialorder %v395, inf
      %v672 = vsel %vm671, %v395, %v670
      %vm673 = vcmp.eq.f32.partialorder %v395, 0.0
      %v674 = vand.u32 %v395, 2147483648
      %v675 = vsel %vm673, %v674, %v672
      %v676 = vrsqrt.pop %v398
      %v677 = vmul.f32 %v398, %v676
      %vm678 = vcmp.eq.f32.partialorder %v398, inf
      %v679 = vsel %vm678, %v398, %v677
      %vm680 = vcmp.eq.f32.partialorder %v398, 0.0
      %v681 = vand.u32 %v398, 2147483648
      %v682 = vsel %vm680, %v681, %v679
      %v683 = vrsqrt.pop %v401
      %v684 = vmul.f32 %v401, %v683
      %vm685 = vcmp.eq.f32.partialorder %v401, inf
      %v686 = vsel %vm685, %v401, %v684
      %vm687 = vcmp.eq.f32.partialorder %v401, 0.0
      %v688 = vand.u32 %v401, 2147483648
      %v689 = vsel %vm687, %v688, %v686
      %v690 = vrsqrt.pop %v404
      %v691 = vmul.f32 %v404, %v690
      %vm692 = vcmp.eq.f32.partialorder %v404, inf
      %v693 = vsel %vm692, %v404, %v691
      %vm694 = vcmp.eq.f32.partialorder %v404, 0.0
      %v695 = vand.u32 %v404, 2147483648
      %v696 = vsel %vm694, %v695, %v693
      %v697 = vrsqrt.pop %v407
      %v698 = vmul.f32 %v407, %v697
      %vm699 = vcmp.eq.f32.partialorder %v407, inf
      %v700 = vsel %vm699, %v407, %v698
      %vm701 = vcmp.eq.f32.partialorder %v407, 0.0
      %v702 = vand.u32 %v407, 2147483648
      %v703 = vsel %vm701, %v702, %v700
      %v704 = vrsqrt.pop %v410
      %v705 = vmul.f32 %v410, %v704
      %vm706 = vcmp.eq.f32.partialorder %v410, inf
      %v707 = vsel %vm706, %v410, %v705
      %vm708 = vcmp.eq.f32.partialorder %v410, 0.0
      %v709 = vand.u32 %v410, 2147483648
      %v710 = vsel %vm708, %v709, %v707
      %v711 = vrsqrt.pop %v413
      %v712 = vmul.f32 %v413, %v711
      %vm713 = vcmp.eq.f32.partialorder %v413, inf
      %v714 = vsel %vm713, %v413, %v712
      %vm715 = vcmp.eq.f32.partialorder %v413, 0.0
      %v716 = vand.u32 %v413, 2147483648
      %v717 = vsel %vm715, %v716, %v714
      %v718 = vrsqrt.pop %v416
      %v719 = vmul.f32 %v416, %v718
      %vm720 = vcmp.eq.f32.partialorder %v416, inf
      %v721 = vsel %vm720, %v416, %v719
      %vm722 = vcmp.eq.f32.partialorder %v416, 0.0
      %v723 = vand.u32 %v416, 2147483648
      %v724 = vsel %vm722, %v723, %v721
      %v725 = vrsqrt.pop %v419
      %v726 = vmul.f32 %v419, %v725
      %vm727 = vcmp.eq.f32.partialorder %v419, inf
      %v728 = vsel %vm727, %v419, %v726
      %vm729 = vcmp.eq.f32.partialorder %v419, 0.0
      %v730 = vand.u32 %v419, 2147483648
      %v731 = vsel %vm729, %v730, %v728
      %v732 = vrsqrt.pop %v422
      %v733 = vmul.f32 %v422, %v732
      %vm734 = vcmp.eq.f32.partialorder %v422, inf
      %v735 = vsel %vm734, %v422, %v733
      %vm736 = vcmp.eq.f32.partialorder %v422, 0.0
      %v737 = vand.u32 %v422, 2147483648
      %v738 = vsel %vm736, %v737, %v735
      %v739 = vrsqrt.pop %v425
      %v740 = vmul.f32 %v425, %v739
      %vm741 = vcmp.eq.f32.partialorder %v425, inf
      %v742 = vsel %vm741, %v425, %v740
      %vm743 = vcmp.eq.f32.partialorder %v425, 0.0
      %v744 = vand.u32 %v425, 2147483648
      %v745 = vsel %vm743, %v744, %v742
      %v746 = vrsqrt.pop %v428
      %v747 = vmul.f32 %v428, %v746
      %vm748 = vcmp.eq.f32.partialorder %v428, inf
      %v749 = vsel %vm748, %v428, %v747
      %vm750 = vcmp.eq.f32.partialorder %v428, 0.0
      %v751 = vand.u32 %v428, 2147483648
      %v752 = vsel %vm750, %v751, %v749
      %v753 = vrsqrt.pop %v431
      %v754 = vmul.f32 %v431, %v753
      %vm755 = vcmp.eq.f32.partialorder %v431, inf
      %v756 = vsel %vm755, %v431, %v754
      %vm757 = vcmp.eq.f32.partialorder %v431, 0.0
      %v758 = vand.u32 %v431, 2147483648
      %v759 = vsel %vm757, %v758, %v756
      %v760 = vrsqrt.pop %v434
      %v761 = vmul.f32 %v434, %v760
      %vm762 = vcmp.eq.f32.partialorder %v434, inf
      %v763 = vsel %vm762, %v434, %v761
      %vm764 = vcmp.eq.f32.partialorder %v434, 0.0
      %v765 = vand.u32 %v434, 2147483648
      %v766 = vsel %vm764, %v765, %v763
      %v767 = vrsqrt.pop %v437
      %v768 = vmul.f32 %v437, %v767
      %vm769 = vcmp.eq.f32.partialorder %v437, inf
      %v770 = vsel %vm769, %v437, %v768
      %vm771 = vcmp.eq.f32.partialorder %v437, 0.0
      %v772 = vand.u32 %v437, 2147483648
      %v773 = vsel %vm771, %v772, %v770
      %v774 = vrsqrt.pop %v440
      %v775 = vmul.f32 %v440, %v774
      %vm776 = vcmp.eq.f32.partialorder %v440, inf
      %v777 = vsel %vm776, %v440, %v775
      %vm778 = vcmp.eq.f32.partialorder %v440, 0.0
      %v779 = vand.u32 %v440, 2147483648
      %v780 = vsel %vm778, %v779, %v777
      %v781 = vrsqrt.pop %v443
      %v782 = vmul.f32 %v443, %v781
      %vm783 = vcmp.eq.f32.partialorder %v443, inf
      %v784 = vsel %vm783, %v443, %v782
      %vm785 = vcmp.eq.f32.partialorder %v443, 0.0
      %v786 = vand.u32 %v443, 2147483648
      %v787 = vsel %vm785, %v786, %v784
      %v788 = vrsqrt.pop %v446
      %v789 = vmul.f32 %v446, %v788
      %vm790 = vcmp.eq.f32.partialorder %v446, inf
      %v791 = vsel %vm790, %v446, %v789
      %vm792 = vcmp.eq.f32.partialorder %v446, 0.0
      %v793 = vand.u32 %v446, 2147483648
      %v794 = vsel %vm792, %v793, %v791
      %v795 = vrsqrt.pop %v449
      %v796 = vmul.f32 %v449, %v795
      %vm797 = vcmp.eq.f32.partialorder %v449, inf
      %v798 = vsel %vm797, %v449, %v796
      %vm799 = vcmp.eq.f32.partialorder %v449, 0.0
      %v800 = vand.u32 %v449, 2147483648
      %v801 = vsel %vm799, %v800, %v798
      %v802 = vrsqrt.pop %v452
      %v803 = vmul.f32 %v452, %v802
      %vm804 = vcmp.eq.f32.partialorder %v452, inf
      %v805 = vsel %vm804, %v452, %v803
      %vm806 = vcmp.eq.f32.partialorder %v452, 0.0
      %v807 = vand.u32 %v452, 2147483648
      %v808 = vsel %vm806, %v807, %v805
      %v809 = vrsqrt.pop %v455
      %v810 = vmul.f32 %v455, %v809
      %vm811 = vcmp.eq.f32.partialorder %v455, inf
      %v812 = vsel %vm811, %v455, %v810
      %vm813 = vcmp.eq.f32.partialorder %v455, 0.0
      %v814 = vand.u32 %v455, 2147483648
      %v815 = vsel %vm813, %v814, %v812
      %v816 = vrsqrt.pop %v458
      %v817 = vmul.f32 %v458, %v816
      %vm818 = vcmp.eq.f32.partialorder %v458, inf
      %v819 = vsel %vm818, %v458, %v817
      %vm820 = vcmp.eq.f32.partialorder %v458, 0.0
      %v821 = vand.u32 %v458, 2147483648
      %v822 = vsel %vm820, %v821, %v819
      %v823 = vrsqrt.pop %v461
      %v824 = vmul.f32 %v461, %v823
      %vm825 = vcmp.eq.f32.partialorder %v461, inf
      %v826 = vsel %vm825, %v461, %v824
      %vm827 = vcmp.eq.f32.partialorder %v461, 0.0
      %v828 = vand.u32 %v461, 2147483648
      %v829 = vsel %vm827, %v828, %v826
      %v830 = vrsqrt.pop %v464
      %v831 = vmul.f32 %v464, %v830
      %vm832 = vcmp.eq.f32.partialorder %v464, inf
      %v833 = vsel %vm832, %v464, %v831
      %vm834 = vcmp.eq.f32.partialorder %v464, 0.0
      %v835 = vand.u32 %v464, 2147483648
      %v836 = vsel %vm834, %v835, %v833
      %v837 = vrsqrt.pop %v467
      %v838 = vmul.f32 %v467, %v837
      %vm839 = vcmp.eq.f32.partialorder %v467, inf
      %v840 = vsel %vm839, %v467, %v838
      %vm841 = vcmp.eq.f32.partialorder %v467, 0.0
      %v842 = vand.u32 %v467, 2147483648
      %v843 = vsel %vm841, %v842, %v840
      %v844 = vrsqrt.pop %v470
      %v845 = vmul.f32 %v470, %v844
      %vm846 = vcmp.eq.f32.partialorder %v470, inf
      %v847 = vsel %vm846, %v470, %v845
      %vm848 = vcmp.eq.f32.partialorder %v470, 0.0
      %v849 = vand.u32 %v470, 2147483648
      %v850 = vsel %vm848, %v849, %v847
      %v851 = vrsqrt.pop %v473
      %v852 = vmul.f32 %v473, %v851
      %vm853 = vcmp.eq.f32.partialorder %v473, inf
      %v854 = vsel %vm853, %v473, %v852
      %vm855 = vcmp.eq.f32.partialorder %v473, 0.0
      %v856 = vand.u32 %v473, 2147483648
      %v857 = vsel %vm855, %v856, %v854
      %v858 = vrsqrt.pop %v476
      %v859 = vmul.f32 %v476, %v858
      %vm860 = vcmp.eq.f32.partialorder %v476, inf
      %v861 = vsel %vm860, %v476, %v859
      %vm862 = vcmp.eq.f32.partialorder %v476, 0.0
      %v863 = vand.u32 %v476, 2147483648
      %v864 = vsel %vm862, %v863, %v861
      %v865 = vrsqrt.pop %v479
      %v866 = vmul.f32 %v479, %v865
      %vm867 = vcmp.eq.f32.partialorder %v479, inf
      %v868 = vsel %vm867, %v479, %v866
      %vm869 = vcmp.eq.f32.partialorder %v479, 0.0
      %v870 = vand.u32 %v479, 2147483648
      %v871 = vsel %vm869, %v870, %v868
      %v872 = vrsqrt.pop %v482
      %v873 = vmul.f32 %v482, %v872
      %vm874 = vcmp.eq.f32.partialorder %v482, inf
      %v875 = vsel %vm874, %v482, %v873
      %vm876 = vcmp.eq.f32.partialorder %v482, 0.0
      %v877 = vand.u32 %v482, 2147483648
      %v878 = vsel %vm876, %v877, %v875
      %v879 = vrsqrt.pop %v485
      %v880 = vmul.f32 %v485, %v879
      %vm881 = vcmp.eq.f32.partialorder %v485, inf
      %v882 = vsel %vm881, %v485, %v880
      %vm883 = vcmp.eq.f32.partialorder %v485, 0.0
      %v884 = vand.u32 %v485, 2147483648
      %v885 = vsel %vm883, %v884, %v882
      %v886 = vrsqrt.pop %v488
      %v887 = vmul.f32 %v488, %v886
      %vm888 = vcmp.eq.f32.partialorder %v488, inf
      %v889 = vsel %vm888, %v488, %v887
      %vm890 = vcmp.eq.f32.partialorder %v488, 0.0
      %v891 = vand.u32 %v488, 2147483648
      %v892 = vsel %vm890, %v891, %v889
      %v893 = vrsqrt.pop %v491
      %v894 = vmul.f32 %v491, %v893
      %vm895 = vcmp.eq.f32.partialorder %v491, inf
      %v896 = vsel %vm895, %v491, %v894
      %vm897 = vcmp.eq.f32.partialorder %v491, 0.0
      %v898 = vand.u32 %v491, 2147483648
      %v899 = vsel %vm897, %v898, %v896
      %v900 = vrsqrt.pop %v494
      %v901 = vmul.f32 %v494, %v900
      %vm902 = vcmp.eq.f32.partialorder %v494, inf
      %v903 = vsel %vm902, %v494, %v901
      %vm904 = vcmp.eq.f32.partialorder %v494, 0.0
      %v905 = vand.u32 %v494, 2147483648
      %v906 = vsel %vm904, %v905, %v903
      %v907 = vrsqrt.pop %v497
      %v908 = vmul.f32 %v497, %v907
      %vm909 = vcmp.eq.f32.partialorder %v497, inf
      %v910 = vsel %vm909, %v497, %v908
      %vm911 = vcmp.eq.f32.partialorder %v497, 0.0
      %v912 = vand.u32 %v497, 2147483648
      %v913 = vsel %vm911, %v912, %v910
      %v914 = vrsqrt.pop %v500
      %v915 = vmul.f32 %v500, %v914
      %vm916 = vcmp.eq.f32.partialorder %v500, inf
      %v917 = vsel %vm916, %v500, %v915
      %vm918 = vcmp.eq.f32.partialorder %v500, 0.0
      %v919 = vand.u32 %v500, 2147483648
      %v920 = vsel %vm918, %v919, %v917
      %v921 = vrsqrt.pop %v503
      %v922 = vmul.f32 %v503, %v921
      %vm923 = vcmp.eq.f32.partialorder %v503, inf
      %v924 = vsel %vm923, %v503, %v922
      %vm925 = vcmp.eq.f32.partialorder %v503, 0.0
      %v926 = vand.u32 %v503, 2147483648
      %v927 = vsel %vm925, %v926, %v924
      %v928 = vrsqrt.pop %v506
      %v929 = vmul.f32 %v506, %v928
      %vm930 = vcmp.eq.f32.partialorder %v506, inf
      %v931 = vsel %vm930, %v506, %v929
      %vm932 = vcmp.eq.f32.partialorder %v506, 0.0
      %v933 = vand.u32 %v506, 2147483648
      %v934 = vsel %vm932, %v933, %v931
      %v935 = vrsqrt.pop %v509
      %v936 = vmul.f32 %v509, %v935
      %vm937 = vcmp.eq.f32.partialorder %v509, inf
      %v938 = vsel %vm937, %v509, %v936
      %vm939 = vcmp.eq.f32.partialorder %v509, 0.0
      %v940 = vand.u32 %v509, 2147483648
      %v941 = vsel %vm939, %v940, %v938
      %v942 = vrsqrt.pop %v512
      %v943 = vmul.f32 %v512, %v942
      %vm944 = vcmp.eq.f32.partialorder %v512, inf
      %v945 = vsel %vm944, %v512, %v943
      %vm946 = vcmp.eq.f32.partialorder %v512, 0.0
      %v947 = vand.u32 %v512, 2147483648
      %v948 = vsel %vm946, %v947, %v945
      %v949 = vrsqrt.pop %v515
      %v950 = vmul.f32 %v515, %v949
      %vm951 = vcmp.eq.f32.partialorder %v515, inf
      %v952 = vsel %vm951, %v515, %v950
      %vm953 = vcmp.eq.f32.partialorder %v515, 0.0
      %v954 = vand.u32 %v515, 2147483648
      %v955 = vsel %vm953, %v954, %v952
      %v956 = vrsqrt.pop %v518
      %v957 = vmul.f32 %v518, %v956
      %vm958 = vcmp.eq.f32.partialorder %v518, inf
      %v959 = vsel %vm958, %v518, %v957
      %vm960 = vcmp.eq.f32.partialorder %v518, 0.0
      %v961 = vand.u32 %v518, 2147483648
      %v962 = vsel %vm960, %v961, %v959
      %v963 = vrsqrt.pop %v521
      %v964 = vmul.f32 %v521, %v963
      %vm965 = vcmp.eq.f32.partialorder %v521, inf
      %v966 = vsel %vm965, %v521, %v964
      %vm967 = vcmp.eq.f32.partialorder %v521, 0.0
      %v968 = vand.u32 %v521, 2147483648
      %v969 = vsel %vm967, %v968, %v966
      %v970 = vmax.f32 %v528, 1e-12
      %v971 = vmax.f32 %v535, 1e-12
      %v972 = vmax.f32 %v542, 1e-12
      %v973 = vmax.f32 %v549, 1e-12
      %v974 = vmax.f32 %v556, 1e-12
      %v975 = vmax.f32 %v563, 1e-12
      %v976 = vmax.f32 %v570, 1e-12
      %v977 = vmax.f32 %v577, 1e-12
      %v978 = vmax.f32 %v584, 1e-12
      %v979 = vmax.f32 %v591, 1e-12
      %v980 = vmax.f32 %v598, 1e-12
      %v981 = vmax.f32 %v605, 1e-12
      %v982 = vmax.f32 %v612, 1e-12
      %v983 = vmax.f32 %v619, 1e-12
      %v984 = vmax.f32 %v626, 1e-12
      %v985 = vmax.f32 %v633, 1e-12
      %v986 = vmax.f32 %v640, 1e-12
      %v987 = vmax.f32 %v647, 1e-12
      %v988 = vmax.f32 %v654, 1e-12
      %v989 = vmax.f32 %v661, 1e-12
      %v990 = vmax.f32 %v668, 1e-12
      %v991 = vmax.f32 %v675, 1e-12
      %v992 = vmax.f32 %v682, 1e-12
      %v993 = vmax.f32 %v689, 1e-12
      %v994 = vmax.f32 %v696, 1e-12
      %v995 = vmax.f32 %v703, 1e-12
      %v996 = vmax.f32 %v710, 1e-12
      %v997 = vmax.f32 %v717, 1e-12
      %v998 = vmax.f32 %v724, 1e-12
      %v999 = vmax.f32 %v731, 1e-12
      %v1000 = vmax.f32 %v738, 1e-12
      %v1001 = vmax.f32 %v745, 1e-12
      %v1002 = vmax.f32 %v752, 1e-12
      %v1003 = vmax.f32 %v759, 1e-12
      %v1004 = vmax.f32 %v766, 1e-12
      %v1005 = vmax.f32 %v773, 1e-12
      %v1006 = vmax.f32 %v780, 1e-12
      %v1007 = vmax.f32 %v787, 1e-12
      %v1008 = vmax.f32 %v794, 1e-12
      %v1009 = vmax.f32 %v801, 1e-12
      %v1010 = vmax.f32 %v808, 1e-12
      %v1011 = vmax.f32 %v815, 1e-12
      %v1012 = vmax.f32 %v822, 1e-12
      %v1013 = vmax.f32 %v829, 1e-12
      %v1014 = vmax.f32 %v836, 1e-12
      %v1015 = vmax.f32 %v843, 1e-12
      %v1016 = vmax.f32 %v850, 1e-12
      %v1017 = vmax.f32 %v857, 1e-12
      %v1018 = vmax.f32 %v864, 1e-12
      %v1019 = vmax.f32 %v871, 1e-12
      %v1020 = vmax.f32 %v878, 1e-12
      %v1021 = vmax.f32 %v885, 1e-12
      %v1022 = vmax.f32 %v892, 1e-12
      %v1023 = vmax.f32 %v899, 1e-12
      %v1024 = vmax.f32 %v906, 1e-12
      %v1025 = vmax.f32 %v913, 1e-12
      %v1026 = vmax.f32 %v920, 1e-12
      %v1027 = vmax.f32 %v927, 1e-12
      %v1028 = vmax.f32 %v934, 1e-12
      %v1029 = vmax.f32 %v941, 1e-12
      %v1030 = vmax.f32 %v948, 1e-12
      %v1031 = vmax.f32 %v955, 1e-12
      %v1032 = vmax.f32 %v962, 1e-12
      %v1033 = vmax.f32 %v969, 1e-12
      %v1034 = vrcp.pop %v970
      %v1035 = vmul.f32 %v201, %v1034
      %v1036 = vrcp.pop %v971
      %v1037 = vmul.f32 %v202, %v1036
      %v1038 = vrcp.pop %v972
      %v1039 = vmul.f32 %v203, %v1038
      %v1040 = vrcp.pop %v973
      %v1041 = vmul.f32 %v204, %v1040
      %v1042 = vrcp.pop %v974
      %v1043 = vmul.f32 %v205, %v1042
      %v1044 = vrcp.pop %v975
      %v1045 = vmul.f32 %v206, %v1044
      %v1046 = vrcp.pop %v976
      %v1047 = vmul.f32 %v207, %v1046
      %v1048 = vrcp.pop %v977
      %v1049 = vmul.f32 %v208, %v1048
      %v1050 = vrcp.pop %v978
      %v1051 = vmul.f32 %v209, %v1050
      %v1052 = vrcp.pop %v979
      %v1053 = vmul.f32 %v210, %v1052
      %v1054 = vrcp.pop %v980
      %v1055 = vmul.f32 %v211, %v1054
      %v1056 = vrcp.pop %v981
      %v1057 = vmul.f32 %v212, %v1056
      %v1058 = vrcp.pop %v982
      %v1059 = vmul.f32 %v213, %v1058
      %v1060 = vrcp.pop %v983
      %v1061 = vmul.f32 %v214, %v1060
      %v1062 = vrcp.pop %v984
      %v1063 = vmul.f32 %v215, %v1062
      %v1064 = vrcp.pop %v985
      %v1065 = vmul.f32 %v216, %v1064
      %v1066 = vrcp.pop %v986
      %v1067 = vmul.f32 %v217, %v1066
      %v1068 = vrcp.pop %v987
      %v1069 = vmul.f32 %v218, %v1068
      %v1070 = vrcp.pop %v988
      %v1071 = vmul.f32 %v219, %v1070
      %v1072 = vrcp.pop %v989
      %v1073 = vmul.f32 %v220, %v1072
      %v1074 = vrcp.pop %v990
      %v1075 = vmul.f32 %v221, %v1074
      %v1076 = vrcp.pop %v991
      %v1077 = vmul.f32 %v222, %v1076
      %v1078 = vrcp.pop %v992
      %v1079 = vmul.f32 %v223, %v1078
      %v1080 = vrcp.pop %v993
      %v1081 = vmul.f32 %v224, %v1080
      %v1082 = vrcp.pop %v994
      %v1083 = vmul.f32 %v225, %v1082
      %v1084 = vrcp.pop %v995
      %v1085 = vmul.f32 %v226, %v1084
      %v1086 = vrcp.pop %v996
      %v1087 = vmul.f32 %v227, %v1086
      %v1088 = vrcp.pop %v997
      %v1089 = vmul.f32 %v228, %v1088
      %v1090 = vrcp.pop %v998
      %v1091 = vmul.f32 %v229, %v1090
      %v1092 = vrcp.pop %v999
      %v1093 = vmul.f32 %v230, %v1092
      %v1094 = vrcp.pop %v1000
      %v1095 = vmul.f32 %v231, %v1094
      %v1096 = vrcp.pop %v1001
      %v1097 = vmul.f32 %v232, %v1096
      %v1098 = vrcp.pop %v1002
      %v1099 = vmul.f32 %v233, %v1098
      %v1100 = vrcp.pop %v1003
      %v1101 = vmul.f32 %v234, %v1100
      %v1102 = vrcp.pop %v1004
      %v1103 = vmul.f32 %v235, %v1102
      %v1104 = vrcp.pop %v1005
      %v1105 = vmul.f32 %v236, %v1104
      %v1106 = vrcp.pop %v1006
      %v1107 = vmul.f32 %v237, %v1106
      %v1108 = vrcp.pop %v1007
      %v1109 = vmul.f32 %v238, %v1108
      %v1110 = vrcp.pop %v1008
      %v1111 = vmul.f32 %v239, %v1110
      %v1112 = vrcp.pop %v1009
      %v1113 = vmul.f32 %v240, %v1112
      %v1114 = vrcp.pop %v1010
      %v1115 = vmul.f32 %v241, %v1114
      %v1116 = vrcp.pop %v1011
      %v1117 = vmul.f32 %v242, %v1116
      %v1118 = vrcp.pop %v1012
      %v1119 = vmul.f32 %v243, %v1118
      %v1120 = vrcp.pop %v1013
      %v1121 = vmul.f32 %v244, %v1120
      %v1122 = vrcp.pop %v1014
      %v1123 = vmul.f32 %v245, %v1122
      %v1124 = vrcp.pop %v1015
      %v1125 = vmul.f32 %v246, %v1124
      %v1126 = vrcp.pop %v1016
      %v1127 = vmul.f32 %v247, %v1126
      %v1128 = vrcp.pop %v1017
      %v1129 = vmul.f32 %v248, %v1128
      %v1130 = vrcp.pop %v1018
      %v1131 = vmul.f32 %v249, %v1130
      %v1132 = vrcp.pop %v1019
      %v1133 = vmul.f32 %v250, %v1132
      %v1134 = vrcp.pop %v1020
      %v1135 = vmul.f32 %v251, %v1134
      %v1136 = vrcp.pop %v1021
      %v1137 = vmul.f32 %v252, %v1136
      %v1138 = vrcp.pop %v1022
      %v1139 = vmul.f32 %v253, %v1138
      %v1140 = vrcp.pop %v1023
      %v1141 = vmul.f32 %v254, %v1140
      %v1142 = vrcp.pop %v1024
      %v1143 = vmul.f32 %v255, %v1142
      %v1144 = vrcp.pop %v1025
      %v1145 = vmul.f32 %v256, %v1144
      %v1146 = vrcp.pop %v1026
      %v1147 = vmul.f32 %v257, %v1146
      %v1148 = vrcp.pop %v1027
      %v1149 = vmul.f32 %v258, %v1148
      %v1150 = vrcp.pop %v1028
      %v1151 = vmul.f32 %v259, %v1150
      %v1152 = vrcp.pop %v1029
      %v1153 = vmul.f32 %v260, %v1152
      %v1154 = vrcp.pop %v1030
      %v1155 = vmul.f32 %v261, %v1154
      %v1156 = vrcp.pop %v1031
      %v1157 = vmul.f32 %v262, %v1156
      %v1158 = vrcp.pop %v1032
      %v1159 = vmul.f32 %v263, %v1158
      %v1160 = vrcp.pop %v1033
      %v1161 = vmul.f32 %v264, %v1160
      %1226 = vrot.lane.b32.xlu0 %v1035, 32
      %v1227 = vpop.permute.xlu0 %1226
      %1228 = vrot.lane.b32.xlu0 %v1037, 32
      %v1229 = vpop.permute.xlu0 %1228
      %1230 = vrot.lane.b32.xlu0 %v1039, 32
      %v1231 = vpop.permute.xlu0 %1230
      %1232 = vrot.lane.b32.xlu0 %v1041, 32
      %v1233 = vpop.permute.xlu0 %1232
      %1234 = vrot.lane.b32.xlu0 %v1043, 32
      %v1235 = vpop.permute.xlu0 %1234
      %1236 = vrot.lane.b32.xlu0 %v1045, 32
      %v1237 = vpop.permute.xlu0 %1236
      %1238 = vrot.lane.b32.xlu0 %v1047, 32
      %v1239 = vpop.permute.xlu0 %1238
      %1240 = vrot.lane.b32.xlu0 %v1049, 32
      %v1241 = vpop.permute.xlu0 %1240
      %1242 = vrot.lane.b32.xlu0 %v1051, 32
      %v1243 = vpop.permute.xlu0 %1242
      %1244 = vrot.lane.b32.xlu0 %v1053, 32
      %v1245 = vpop.permute.xlu0 %1244
      %1246 = vrot.lane.b32.xlu0 %v1055, 32
      %v1247 = vpop.permute.xlu0 %1246
      %1248 = vrot.lane.b32.xlu0 %v1057, 32
      %v1249 = vpop.permute.xlu0 %1248
      %1250 = vrot.lane.b32.xlu0 %v1059, 32
      %v1251 = vpop.permute.xlu0 %1250
      %1252 = vrot.lane.b32.xlu0 %v1061, 32
      %v1253 = vpop.permute.xlu0 %1252
      %1254 = vrot.lane.b32.xlu0 %v1063, 32
      %v1255 = vpop.permute.xlu0 %1254
      %1256 = vrot.lane.b32.xlu0 %v1065, 32
      %v1257 = vpop.permute.xlu0 %1256
      %1258 = vrot.lane.b32.xlu0 %v1067, 32
      %v1259 = vpop.permute.xlu0 %1258
      %1260 = vrot.lane.b32.xlu0 %v1069, 32
      %v1261 = vpop.permute.xlu0 %1260
      %1262 = vrot.lane.b32.xlu0 %v1071, 32
      %v1263 = vpop.permute.xlu0 %1262
      %1264 = vrot.lane.b32.xlu0 %v1073, 32
      %v1265 = vpop.permute.xlu0 %1264
      %1266 = vrot.lane.b32.xlu0 %v1075, 32
      %v1267 = vpop.permute.xlu0 %1266
      %1268 = vrot.lane.b32.xlu0 %v1077, 32
      %v1269 = vpop.permute.xlu0 %1268
      %1270 = vrot.lane.b32.xlu0 %v1079, 32
      %v1271 = vpop.permute.xlu0 %1270
      %1272 = vrot.lane.b32.xlu0 %v1081, 32
      %v1273 = vpop.permute.xlu0 %1272
      %1274 = vrot.lane.b32.xlu0 %v1083, 32
      %v1275 = vpop.permute.xlu0 %1274
      %1276 = vrot.lane.b32.xlu0 %v1085, 32
      %v1277 = vpop.permute.xlu0 %1276
      %1278 = vrot.lane.b32.xlu0 %v1087, 32
      %v1279 = vpop.permute.xlu0 %1278
      %1280 = vrot.lane.b32.xlu0 %v1089, 32
      %v1281 = vpop.permute.xlu0 %1280
      %1282 = vrot.lane.b32.xlu0 %v1091, 32
      %v1283 = vpop.permute.xlu0 %1282
      %1284 = vrot.lane.b32.xlu0 %v1093, 32
      %v1285 = vpop.permute.xlu0 %1284
      %1286 = vrot.lane.b32.xlu0 %v1095, 32
      %v1287 = vpop.permute.xlu0 %1286
      %1288 = vrot.lane.b32.xlu0 %v1097, 32
      %v1289 = vpop.permute.xlu0 %1288
      %1290 = vrot.lane.b32.xlu0 %v1099, 32
      %v1291 = vpop.permute.xlu0 %1290
      %1292 = vrot.lane.b32.xlu0 %v1101, 32
      %v1293 = vpop.permute.xlu0 %1292
      %1294 = vrot.lane.b32.xlu0 %v1103, 32
      %v1295 = vpop.permute.xlu0 %1294
      %1296 = vrot.lane.b32.xlu0 %v1105, 32
      %v1297 = vpop.permute.xlu0 %1296
      %1298 = vrot.lane.b32.xlu0 %v1107, 32
      %v1299 = vpop.permute.xlu0 %1298
      %1300 = vrot.lane.b32.xlu0 %v1109, 32
      %v1301 = vpop.permute.xlu0 %1300
      %1302 = vrot.lane.b32.xlu0 %v1111, 32
      %v1303 = vpop.permute.xlu0 %1302
      %1304 = vrot.lane.b32.xlu0 %v1113, 32
      %v1305 = vpop.permute.xlu0 %1304
      %1306 = vrot.lane.b32.xlu0 %v1115, 32
      %v1307 = vpop.permute.xlu0 %1306
      %1308 = vrot.lane.b32.xlu0 %v1117, 32
      %v1309 = vpop.permute.xlu0 %1308
      %1310 = vrot.lane.b32.xlu0 %v1119, 32
      %v1311 = vpop.permute.xlu0 %1310
      %1312 = vrot.lane.b32.xlu0 %v1121, 32
      %v1313 = vpop.permute.xlu0 %1312
      %1314 = vrot.lane.b32.xlu0 %v1123, 32
      %v1315 = vpop.permute.xlu0 %1314
      %1316 = vrot.lane.b32.xlu0 %v1125, 32
      %v1317 = vpop.permute.xlu0 %1316
      %1318 = vrot.lane.b32.xlu0 %v1127, 32
      %v1319 = vpop.permute.xlu0 %1318
      %1320 = vrot.lane.b32.xlu0 %v1129, 32
      %v1321 = vpop.permute.xlu0 %1320
      %1322 = vrot.lane.b32.xlu0 %v1131, 32
      %v1323 = vpop.permute.xlu0 %1322
      %1324 = vrot.lane.b32.xlu0 %v1133, 32
      %v1325 = vpop.permute.xlu0 %1324
      %1326 = vrot.lane.b32.xlu0 %v1135, 32
      %v1327 = vpop.permute.xlu0 %1326
      %1328 = vrot.lane.b32.xlu0 %v1137, 32
      %v1329 = vpop.permute.xlu0 %1328
      %1330 = vrot.lane.b32.xlu0 %v1139, 32
      %v1331 = vpop.permute.xlu0 %1330
      %1332 = vrot.lane.b32.xlu0 %v1141, 32
      %v1333 = vpop.permute.xlu0 %1332
      %1334 = vrot.lane.b32.xlu0 %v1143, 32
      %v1335 = vpop.permute.xlu0 %1334
      %1336 = vrot.lane.b32.xlu0 %v1145, 32
      %v1337 = vpop.permute.xlu0 %1336
      %1338 = vrot.lane.b32.xlu0 %v1147, 32
      %v1339 = vpop.permute.xlu0 %1338
      %1340 = vrot.lane.b32.xlu0 %v1149, 32
      %v1341 = vpop.permute.xlu0 %1340
      %1342 = vrot.lane.b32.xlu0 %v1151, 32
      %v1343 = vpop.permute.xlu0 %1342
      %1344 = vrot.lane.b32.xlu0 %v1153, 32
      %v1345 = vpop.permute.xlu0 %1344
      %1346 = vrot.lane.b32.xlu0 %v1155, 32
      %v1347 = vpop.permute.xlu0 %1346
      %1348 = vrot.lane.b32.xlu0 %v1157, 32
      %v1349 = vpop.permute.xlu0 %1348
      %1350 = vrot.lane.b32.xlu0 %v1159, 32
      %v1351 = vpop.permute.xlu0 %1350
      %1352 = vrot.lane.b32.xlu0 %v1161, 32
      %v1353 = vpop.permute.xlu0 %1352
      %1418 = vrot.lane.b32.xlu0 %v1035, 64
      %v1419 = vpop.permute.xlu0 %1418
      %1420 = vrot.lane.b32.xlu0 %v1037, 64
      %v1421 = vpop.permute.xlu0 %1420
      %1422 = vrot.lane.b32.xlu0 %v1039, 64
      %v1423 = vpop.permute.xlu0 %1422
      %1424 = vrot.lane.b32.xlu0 %v1041, 64
      %v1425 = vpop.permute.xlu0 %1424
      %1426 = vrot.lane.b32.xlu0 %v1043, 64
      %v1427 = vpop.permute.xlu0 %1426
      %1428 = vrot.lane.b32.xlu0 %v1045, 64
      %v1429 = vpop.permute.xlu0 %1428
      %1430 = vrot.lane.b32.xlu0 %v1047, 64
      %v1431 = vpop.permute.xlu0 %1430
      %1432 = vrot.lane.b32.xlu0 %v1049, 64
      %v1433 = vpop.permute.xlu0 %1432
      %1434 = vrot.lane.b32.xlu0 %v1051, 64
      %v1435 = vpop.permute.xlu0 %1434
      %1436 = vrot.lane.b32.xlu0 %v1053, 64
      %v1437 = vpop.permute.xlu0 %1436
      %1438 = vrot.lane.b32.xlu0 %v1055, 64
      %v1439 = vpop.permute.xlu0 %1438
      %1440 = vrot.lane.b32.xlu0 %v1057, 64
      %v1441 = vpop.permute.xlu0 %1440
      %1442 = vrot.lane.b32.xlu0 %v1059, 64
      %v1443 = vpop.permute.xlu0 %1442
      %1444 = vrot.lane.b32.xlu0 %v1061, 64
      %v1445 = vpop.permute.xlu0 %1444
      %1446 = vrot.lane.b32.xlu0 %v1063, 64
      %v1447 = vpop.permute.xlu0 %1446
      %1448 = vrot.lane.b32.xlu0 %v1065, 64
      %v1449 = vpop.permute.xlu0 %1448
      %1450 = vrot.lane.b32.xlu0 %v1067, 64
      %v1451 = vpop.permute.xlu0 %1450
      %1452 = vrot.lane.b32.xlu0 %v1069, 64
      %v1453 = vpop.permute.xlu0 %1452
      %1454 = vrot.lane.b32.xlu0 %v1071, 64
      %v1455 = vpop.permute.xlu0 %1454
      %1456 = vrot.lane.b32.xlu0 %v1073, 64
      %v1457 = vpop.permute.xlu0 %1456
      %1458 = vrot.lane.b32.xlu0 %v1075, 64
      %v1459 = vpop.permute.xlu0 %1458
      %1460 = vrot.lane.b32.xlu0 %v1077, 64
      %v1461 = vpop.permute.xlu0 %1460
      %1462 = vrot.lane.b32.xlu0 %v1079, 64
      %v1463 = vpop.permute.xlu0 %1462
      %1464 = vrot.lane.b32.xlu0 %v1081, 64
      %v1465 = vpop.permute.xlu0 %1464
      %1466 = vrot.lane.b32.xlu0 %v1083, 64
      %v1467 = vpop.permute.xlu0 %1466
      %1468 = vrot.lane.b32.xlu0 %v1085, 64
      %v1469 = vpop.permute.xlu0 %1468
      %1470 = vrot.lane.b32.xlu0 %v1087, 64
      %v1471 = vpop.permute.xlu0 %1470
      %1472 = vrot.lane.b32.xlu0 %v1089, 64
      %v1473 = vpop.permute.xlu0 %1472
      %1474 = vrot.lane.b32.xlu0 %v1091, 64
      %v1475 = vpop.permute.xlu0 %1474
      %1476 = vrot.lane.b32.xlu0 %v1093, 64
      %v1477 = vpop.permute.xlu0 %1476
      %1478 = vrot.lane.b32.xlu0 %v1095, 64
      %v1479 = vpop.permute.xlu0 %1478
      %1480 = vrot.lane.b32.xlu0 %v1097, 64
      %v1481 = vpop.permute.xlu0 %1480
      %1482 = vrot.lane.b32.xlu0 %v1099, 64
      %v1483 = vpop.permute.xlu0 %1482
      %1484 = vrot.lane.b32.xlu0 %v1101, 64
      %v1485 = vpop.permute.xlu0 %1484
      %1486 = vrot.lane.b32.xlu0 %v1103, 64
      %v1487 = vpop.permute.xlu0 %1486
      %1488 = vrot.lane.b32.xlu0 %v1105, 64
      %v1489 = vpop.permute.xlu0 %1488
      %1490 = vrot.lane.b32.xlu0 %v1107, 64
      %v1491 = vpop.permute.xlu0 %1490
      %1492 = vrot.lane.b32.xlu0 %v1109, 64
      %v1493 = vpop.permute.xlu0 %1492
      %1494 = vrot.lane.b32.xlu0 %v1111, 64
      %v1495 = vpop.permute.xlu0 %1494
      %1496 = vrot.lane.b32.xlu0 %v1113, 64
      %v1497 = vpop.permute.xlu0 %1496
      %1498 = vrot.lane.b32.xlu0 %v1115, 64
      %v1499 = vpop.permute.xlu0 %1498
      %1500 = vrot.lane.b32.xlu0 %v1117, 64
      %v1501 = vpop.permute.xlu0 %1500
      %1502 = vrot.lane.b32.xlu0 %v1119, 64
      %v1503 = vpop.permute.xlu0 %1502
      %1504 = vrot.lane.b32.xlu0 %v1121, 64
      %v1505 = vpop.permute.xlu0 %1504
      %1506 = vrot.lane.b32.xlu0 %v1123, 64
      %v1507 = vpop.permute.xlu0 %1506
      %1508 = vrot.lane.b32.xlu0 %v1125, 64
      %v1509 = vpop.permute.xlu0 %1508
      %1510 = vrot.lane.b32.xlu0 %v1127, 64
      %v1511 = vpop.permute.xlu0 %1510
      %1512 = vrot.lane.b32.xlu0 %v1129, 64
      %v1513 = vpop.permute.xlu0 %1512
      %1514 = vrot.lane.b32.xlu0 %v1131, 64
      %v1515 = vpop.permute.xlu0 %1514
      %1516 = vrot.lane.b32.xlu0 %v1133, 64
      %v1517 = vpop.permute.xlu0 %1516
      %1518 = vrot.lane.b32.xlu0 %v1135, 64
      %v1519 = vpop.permute.xlu0 %1518
      %1520 = vrot.lane.b32.xlu0 %v1137, 64
      %v1521 = vpop.permute.xlu0 %1520
      %1522 = vrot.lane.b32.xlu0 %v1139, 64
      %v1523 = vpop.permute.xlu0 %1522
      %1524 = vrot.lane.b32.xlu0 %v1141, 64
      %v1525 = vpop.permute.xlu0 %1524
      %1526 = vrot.lane.b32.xlu0 %v1143, 64
      %v1527 = vpop.permute.xlu0 %1526
      %1528 = vrot.lane.b32.xlu0 %v1145, 64
      %v1529 = vpop.permute.xlu0 %1528
      %1530 = vrot.lane.b32.xlu0 %v1147, 64
      %v1531 = vpop.permute.xlu0 %1530
      %1532 = vrot.lane.b32.xlu0 %v1149, 64
      %v1533 = vpop.permute.xlu0 %1532
      %1534 = vrot.lane.b32.xlu0 %v1151, 64
      %v1535 = vpop.permute.xlu0 %1534
      %1536 = vrot.lane.b32.xlu0 %v1153, 64
      %v1537 = vpop.permute.xlu0 %1536
      %1538 = vrot.lane.b32.xlu0 %v1155, 64
      %v1539 = vpop.permute.xlu0 %1538
      %1540 = vrot.lane.b32.xlu0 %v1157, 64
      %v1541 = vpop.permute.xlu0 %1540
      %1542 = vrot.lane.b32.xlu0 %v1159, 64
      %v1543 = vpop.permute.xlu0 %1542
      %1544 = vrot.lane.b32.xlu0 %v1161, 64
      %v1545 = vpop.permute.xlu0 %1544
      %1610 = vrot.lane.b32.xlu0 %v1035, 96
      %v1611 = vpop.permute.xlu0 %1610
      %1612 = vrot.lane.b32.xlu0 %v1037, 96
      %v1613 = vpop.permute.xlu0 %1612
      %1614 = vrot.lane.b32.xlu0 %v1039, 96
      %v1615 = vpop.permute.xlu0 %1614
      %1616 = vrot.lane.b32.xlu0 %v1041, 96
      %v1617 = vpop.permute.xlu0 %1616
      %1618 = vrot.lane.b32.xlu0 %v1043, 96
      %v1619 = vpop.permute.xlu0 %1618
      %1620 = vrot.lane.b32.xlu0 %v1045, 96
      %v1621 = vpop.permute.xlu0 %1620
      %1622 = vrot.lane.b32.xlu0 %v1047, 96
      %v1623 = vpop.permute.xlu0 %1622
      %1624 = vrot.lane.b32.xlu0 %v1049, 96
      %v1625 = vpop.permute.xlu0 %1624
      %1626 = vrot.lane.b32.xlu0 %v1051, 96
      %v1627 = vpop.permute.xlu0 %1626
      %1628 = vrot.lane.b32.xlu0 %v1053, 96
      %v1629 = vpop.permute.xlu0 %1628
      %1630 = vrot.lane.b32.xlu0 %v1055, 96
      %v1631 = vpop.permute.xlu0 %1630
      %1632 = vrot.lane.b32.xlu0 %v1057, 96
      %v1633 = vpop.permute.xlu0 %1632
      %1634 = vrot.lane.b32.xlu0 %v1059, 96
      %v1635 = vpop.permute.xlu0 %1634
      %1636 = vrot.lane.b32.xlu0 %v1061, 96
      %v1637 = vpop.permute.xlu0 %1636
      %1638 = vrot.lane.b32.xlu0 %v1063, 96
      %v1639 = vpop.permute.xlu0 %1638
      %1640 = vrot.lane.b32.xlu0 %v1065, 96
      %v1641 = vpop.permute.xlu0 %1640
      %1642 = vrot.lane.b32.xlu0 %v1067, 96
      %v1643 = vpop.permute.xlu0 %1642
      %1644 = vrot.lane.b32.xlu0 %v1069, 96
      %v1645 = vpop.permute.xlu0 %1644
      %1646 = vrot.lane.b32.xlu0 %v1071, 96
      %v1647 = vpop.permute.xlu0 %1646
      %1648 = vrot.lane.b32.xlu0 %v1073, 96
      %v1649 = vpop.permute.xlu0 %1648
      %1650 = vrot.lane.b32.xlu0 %v1075, 96
      %v1651 = vpop.permute.xlu0 %1650
      %1652 = vrot.lane.b32.xlu0 %v1077, 96
      %v1653 = vpop.permute.xlu0 %1652
      %1654 = vrot.lane.b32.xlu0 %v1079, 96
      %v1655 = vpop.permute.xlu0 %1654
      %1656 = vrot.lane.b32.xlu0 %v1081, 96
      %v1657 = vpop.permute.xlu0 %1656
      %1658 = vrot.lane.b32.xlu0 %v1083, 96
      %v1659 = vpop.permute.xlu0 %1658
      %1660 = vrot.lane.b32.xlu0 %v1085, 96
      %v1661 = vpop.permute.xlu0 %1660
      %1662 = vrot.lane.b32.xlu0 %v1087, 96
      %v1663 = vpop.permute.xlu0 %1662
      %1664 = vrot.lane.b32.xlu0 %v1089, 96
      %v1665 = vpop.permute.xlu0 %1664
      %1666 = vrot.lane.b32.xlu0 %v1091, 96
      %v1667 = vpop.permute.xlu0 %1666
      %1668 = vrot.lane.b32.xlu0 %v1093, 96
      %v1669 = vpop.permute.xlu0 %1668
      %1670 = vrot.lane.b32.xlu0 %v1095, 96
      %v1671 = vpop.permute.xlu0 %1670
      %1672 = vrot.lane.b32.xlu0 %v1097, 96
      %v1673 = vpop.permute.xlu0 %1672
      %1674 = vrot.lane.b32.xlu0 %v1099, 96
      %v1675 = vpop.permute.xlu0 %1674
      %1676 = vrot.lane.b32.xlu0 %v1101, 96
      %v1677 = vpop.permute.xlu0 %1676
      %1678 = vrot.lane.b32.xlu0 %v1103, 96
      %v1679 = vpop.permute.xlu0 %1678
      %1680 = vrot.lane.b32.xlu0 %v1105, 96
      %v1681 = vpop.permute.xlu0 %1680
      %1682 = vrot.lane.b32.xlu0 %v1107, 96
      %v1683 = vpop.permute.xlu0 %1682
      %1684 = vrot.lane.b32.xlu0 %v1109, 96
      %v1685 = vpop.permute.xlu0 %1684
      %1686 = vrot.lane.b32.xlu0 %v1111, 96
      %v1687 = vpop.permute.xlu0 %1686
      %1688 = vrot.lane.b32.xlu0 %v1113, 96
      %v1689 = vpop.permute.xlu0 %1688
      %1690 = vrot.lane.b32.xlu0 %v1115, 96
      %v1691 = vpop.permute.xlu0 %1690
      %1692 = vrot.lane.b32.xlu0 %v1117, 96
      %v1693 = vpop.permute.xlu0 %1692
      %1694 = vrot.lane.b32.xlu0 %v1119, 96
      %v1695 = vpop.permute.xlu0 %1694
      %1696 = vrot.lane.b32.xlu0 %v1121, 96
      %v1697 = vpop.permute.xlu0 %1696
      %1698 = vrot.lane.b32.xlu0 %v1123, 96
      %v1699 = vpop.permute.xlu0 %1698
      %1700 = vrot.lane.b32.xlu0 %v1125, 96
      %v1701 = vpop.permute.xlu0 %1700
      %1702 = vrot.lane.b32.xlu0 %v1127, 96
      %v1703 = vpop.permute.xlu0 %1702
      %1704 = vrot.lane.b32.xlu0 %v1129, 96
      %v1705 = vpop.permute.xlu0 %1704
      %1706 = vrot.lane.b32.xlu0 %v1131, 96
      %v1707 = vpop.permute.xlu0 %1706
      %1708 = vrot.lane.b32.xlu0 %v1133, 96
      %v1709 = vpop.permute.xlu0 %1708
      %1710 = vrot.lane.b32.xlu0 %v1135, 96
      %v1711 = vpop.permute.xlu0 %1710
      %1712 = vrot.lane.b32.xlu0 %v1137, 96
      %v1713 = vpop.permute.xlu0 %1712
      %1714 = vrot.lane.b32.xlu0 %v1139, 96
      %v1715 = vpop.permute.xlu0 %1714
      %1716 = vrot.lane.b32.xlu0 %v1141, 96
      %v1717 = vpop.permute.xlu0 %1716
      %1718 = vrot.lane.b32.xlu0 %v1143, 96
      %v1719 = vpop.permute.xlu0 %1718
      %1720 = vrot.lane.b32.xlu0 %v1145, 96
      %v1721 = vpop.permute.xlu0 %1720
      %1722 = vrot.lane.b32.xlu0 %v1147, 96
      %v1723 = vpop.permute.xlu0 %1722
      %1724 = vrot.lane.b32.xlu0 %v1149, 96
      %v1725 = vpop.permute.xlu0 %1724
      %1726 = vrot.lane.b32.xlu0 %v1151, 96
      %v1727 = vpop.permute.xlu0 %1726
      %1728 = vrot.lane.b32.xlu0 %v1153, 96
      %v1729 = vpop.permute.xlu0 %1728
      %1730 = vrot.lane.b32.xlu0 %v1155, 96
      %v1731 = vpop.permute.xlu0 %1730
      %1732 = vrot.lane.b32.xlu0 %v1157, 96
      %v1733 = vpop.permute.xlu0 %1732
      %1734 = vrot.lane.b32.xlu0 %v1159, 96
      %v1735 = vpop.permute.xlu0 %1734
      %1736 = vrot.lane.b32.xlu0 %v1161, 96
      %v1737 = vpop.permute.xlu0 %1736
      %v1802 = vsel %vm329, %v1035, %v1227
      %v1803 = vsel %vm329, %v1037, %v1229
      %v1804 = vsel %vm329, %v1039, %v1231
      %v1805 = vsel %vm329, %v1041, %v1233
      %v1806 = vsel %vm329, %v1043, %v1235
      %v1807 = vsel %vm329, %v1045, %v1237
      %v1808 = vsel %vm329, %v1047, %v1239
      %v1809 = vsel %vm329, %v1049, %v1241
      %v1810 = vsel %vm329, %v1051, %v1243
      %v1811 = vsel %vm329, %v1053, %v1245
      %v1812 = vsel %vm329, %v1055, %v1247
      %v1813 = vsel %vm329, %v1057, %v1249
      %v1814 = vsel %vm329, %v1059, %v1251
      %v1815 = vsel %vm329, %v1061, %v1253
      %v1816 = vsel %vm329, %v1063, %v1255
      %v1817 = vsel %vm329, %v1065, %v1257
      %v1818 = vsel %vm329, %v1067, %v1259
      %v1819 = vsel %vm329, %v1069, %v1261
      %v1820 = vsel %vm329, %v1071, %v1263
      %v1821 = vsel %vm329, %v1073, %v1265
      %v1822 = vsel %vm329, %v1075, %v1267
      %v1823 = vsel %vm329, %v1077, %v1269
      %v1824 = vsel %vm329, %v1079, %v1271
      %v1825 = vsel %vm329, %v1081, %v1273
      %v1826 = vsel %vm329, %v1083, %v1275
      %v1827 = vsel %vm329, %v1085, %v1277
      %v1828 = vsel %vm329, %v1087, %v1279
      %v1829 = vsel %vm329, %v1089, %v1281
      %v1830 = vsel %vm329, %v1091, %v1283
      %v1831 = vsel %vm329, %v1093, %v1285
      %v1832 = vsel %vm329, %v1095, %v1287
      %v1833 = vsel %vm329, %v1097, %v1289
      %v1834 = vsel %vm329, %v1099, %v1291
      %v1835 = vsel %vm329, %v1101, %v1293
      %v1836 = vsel %vm329, %v1103, %v1295
      %v1837 = vsel %vm329, %v1105, %v1297
      %v1838 = vsel %vm329, %v1107, %v1299
      %v1839 = vsel %vm329, %v1109, %v1301
      %v1840 = vsel %vm329, %v1111, %v1303
      %v1841 = vsel %vm329, %v1113, %v1305
      %v1842 = vsel %vm329, %v1115, %v1307
      %v1843 = vsel %vm329, %v1117, %v1309
      %v1844 = vsel %vm329, %v1119, %v1311
      %v1845 = vsel %vm329, %v1121, %v1313
      %v1846 = vsel %vm329, %v1123, %v1315
      %v1847 = vsel %vm329, %v1125, %v1317
      %v1848 = vsel %vm329, %v1127, %v1319
      %v1849 = vsel %vm329, %v1129, %v1321
      %v1850 = vsel %vm329, %v1131, %v1323
      %v1851 = vsel %vm329, %v1133, %v1325
      %v1852 = vsel %vm329, %v1135, %v1327
      %v1853 = vsel %vm329, %v1137, %v1329
      %v1854 = vsel %vm329, %v1139, %v1331
      %v1855 = vsel %vm329, %v1141, %v1333
      %v1856 = vsel %vm329, %v1143, %v1335
      %v1857 = vsel %vm329, %v1145, %v1337
      %v1858 = vsel %vm329, %v1147, %v1339
      %v1859 = vsel %vm329, %v1149, %v1341
      %v1860 = vsel %vm329, %v1151, %v1343
      %v1861 = vsel %vm329, %v1153, %v1345
      %v1862 = vsel %vm329, %v1155, %v1347
      %v1863 = vsel %vm329, %v1157, %v1349
      %v1864 = vsel %vm329, %v1159, %v1351
      %v1865 = vsel %vm329, %v1161, %v1353
      %vm1866 = vcmask 523264
      %v1867 = vsel %vm1866, %v1802, %v1419
      %v1868 = vsel %vm1866, %v1803, %v1421
      %v1869 = vsel %vm1866, %v1804, %v1423
      %v1870 = vsel %vm1866, %v1805, %v1425
      %v1871 = vsel %vm1866, %v1806, %v1427
      %v1872 = vsel %vm1866, %v1807, %v1429
      %v1873 = vsel %vm1866, %v1808, %v1431
      %v1874 = vsel %vm1866, %v1809, %v1433
      %v1875 = vsel %vm1866, %v1810, %v1435
      %v1876 = vsel %vm1866, %v1811, %v1437
      %v1877 = vsel %vm1866, %v1812, %v1439
      %v1878 = vsel %vm1866, %v1813, %v1441
      %v1879 = vsel %vm1866, %v1814, %v1443
      %v1880 = vsel %vm1866, %v1815, %v1445
      %v1881 = vsel %vm1866, %v1816, %v1447
      %v1882 = vsel %vm1866, %v1817, %v1449
      %v1883 = vsel %vm1866, %v1818, %v1451
      %v1884 = vsel %vm1866, %v1819, %v1453
      %v1885 = vsel %vm1866, %v1820, %v1455
      %v1886 = vsel %vm1866, %v1821, %v1457
      %v1887 = vsel %vm1866, %v1822, %v1459
      %v1888 = vsel %vm1866, %v1823, %v1461
      %v1889 = vsel %vm1866, %v1824, %v1463
      %v1890 = vsel %vm1866, %v1825, %v1465
      %v1891 = vsel %vm1866, %v1826, %v1467
      %v1892 = vsel %vm1866, %v1827, %v1469
      %v1893 = vsel %vm1866, %v1828, %v1471
      %v1894 = vsel %vm1866, %v1829, %v1473
      %v1895 = vsel %vm1866, %v1830, %v1475
      %v1896 = vsel %vm1866, %v1831, %v1477
      %v1897 = vsel %vm1866, %v1832, %v1479
      %v1898 = vsel %vm1866, %v1833, %v1481
      %v1899 = vsel %vm1866, %v1834, %v1483
      %v1900 = vsel %vm1866, %v1835, %v1485
      %v1901 = vsel %vm1866, %v1836, %v1487
      %v1902 = vsel %vm1866, %v1837, %v1489
      %v1903 = vsel %vm1866, %v1838, %v1491
      %v1904 = vsel %vm1866, %v1839, %v1493
      %v1905 = vsel %vm1866, %v1840, %v1495
      %v1906 = vsel %vm1866, %v1841, %v1497
      %v1907 = vsel %vm1866, %v1842, %v1499
      %v1908 = vsel %vm1866, %v1843, %v1501
      %v1909 = vsel %vm1866, %v1844, %v1503
      %v1910 = vsel %vm1866, %v1845, %v1505
      %v1911 = vsel %vm1866, %v1846, %v1507
      %v1912 = vsel %vm1866, %v1847, %v1509
      %v1913 = vsel %vm1866, %v1848, %v1511
      %v1914 = vsel %vm1866, %v1849, %v1513
      %v1915 = vsel %vm1866, %v1850, %v1515
      %v1916 = vsel %vm1866, %v1851, %v1517
      %v1917 = vsel %vm1866, %v1852, %v1519
      %v1918 = vsel %vm1866, %v1853, %v1521
      %v1919 = vsel %vm1866, %v1854, %v1523
      %v1920 = vsel %vm1866, %v1855, %v1525
      %v1921 = vsel %vm1866, %v1856, %v1527
      %v1922 = vsel %vm1866, %v1857, %v1529
      %v1923 = vsel %vm1866, %v1858, %v1531
      %v1924 = vsel %vm1866, %v1859, %v1533
      %v1925 = vsel %vm1866, %v1860, %v1535
      %v1926 = vsel %vm1866, %v1861, %v1537
      %v1927 = vsel %vm1866, %v1862, %v1539
      %v1928 = vsel %vm1866, %v1863, %v1541
      %v1929 = vsel %vm1866, %v1864, %v1543
      %v1930 = vsel %vm1866, %v1865, %v1545
      %vm1931 = vcmask 785408
      %v1932 = vsel %vm1931, %v1867, %v1611
      %v1933 = vsel %vm1931, %v1868, %v1613
      %v1934 = vsel %vm1931, %v1869, %v1615
      %v1935 = vsel %vm1931, %v1870, %v1617
      %v1936 = vsel %vm1931, %v1871, %v1619
      %v1937 = vsel %vm1931, %v1872, %v1621
      %v1938 = vsel %vm1931, %v1873, %v1623
      %v1939 = vsel %vm1931, %v1874, %v1625
      %v1940 = vsel %vm1931, %v1875, %v1627
      %v1941 = vsel %vm1931, %v1876, %v1629
      %v1942 = vsel %vm1931, %v1877, %v1631
      %v1943 = vsel %vm1931, %v1878, %v1633
      %v1944 = vsel %vm1931, %v1879, %v1635
      %v1945 = vsel %vm1931, %v1880, %v1637
      %v1946 = vsel %vm1931, %v1881, %v1639
      %v1947 = vsel %vm1931, %v1882, %v1641
      %v1948 = vsel %vm1931, %v1883, %v1643
      %v1949 = vsel %vm1931, %v1884, %v1645
      %v1950 = vsel %vm1931, %v1885, %v1647
      %v1951 = vsel %vm1931, %v1886, %v1649
      %v1952 = vsel %vm1931, %v1887, %v1651
      %v1953 = vsel %vm1931, %v1888, %v1653
      %v1954 = vsel %vm1931, %v1889, %v1655
      %v1955 = vsel %vm1931, %v1890, %v1657
      %v1956 = vsel %vm1931, %v1891, %v1659
      %v1957 = vsel %vm1931, %v1892, %v1661
      %v1958 = vsel %vm1931, %v1893, %v1663
      %v1959 = vsel %vm1931, %v1894, %v1665
      %v1960 = vsel %vm1931, %v1895, %v1667
      %v1961 = vsel %vm1931, %v1896, %v1669
      %v1962 = vsel %vm1931, %v1897, %v1671
      %v1963 = vsel %vm1931, %v1898, %v1673
      %v1964 = vsel %vm1931, %v1899, %v1675
      %v1965 = vsel %vm1931, %v1900, %v1677
      %v1966 = vsel %vm1931, %v1901, %v1679
      %v1967 = vsel %vm1931, %v1902, %v1681
      %v1968 = vsel %vm1931, %v1903, %v1683
      %v1969 = vsel %vm1931, %v1904, %v1685
      %v1970 = vsel %vm1931, %v1905, %v1687
      %v1971 = vsel %vm1931, %v1906, %v1689
      %v1972 = vsel %vm1931, %v1907, %v1691
      %v1973 = vsel %vm1931, %v1908, %v1693
      %v1974 = vsel %vm1931, %v1909, %v1695
      %v1975 = vsel %vm1931, %v1910, %v1697
      %v1976 = vsel %vm1931, %v1911, %v1699
      %v1977 = vsel %vm1931, %v1912, %v1701
      %v1978 = vsel %vm1931, %v1913, %v1703
      %v1979 = vsel %vm1931, %v1914, %v1705
      %v1980 = vsel %vm1931, %v1915, %v1707
      %v1981 = vsel %vm1931, %v1916, %v1709
      %v1982 = vsel %vm1931, %v1917, %v1711
      %v1983 = vsel %vm1931, %v1918, %v1713
      %v1984 = vsel %vm1931, %v1919, %v1715
      %v1985 = vsel %vm1931, %v1920, %v1717
      %v1986 = vsel %vm1931, %v1921, %v1719
      %v1987 = vsel %vm1931, %v1922, %v1721
      %v1988 = vsel %vm1931, %v1923, %v1723
      %v1989 = vsel %vm1931, %v1924, %v1725
      %v1990 = vsel %vm1931, %v1925, %v1727
      %v1991 = vsel %vm1931, %v1926, %v1729
      %v1992 = vsel %vm1931, %v1927, %v1731
      %v1993 = vsel %vm1931, %v1928, %v1733
      %v1994 = vsel %vm1931, %v1929, %v1735
      %v1995 = vsel %vm1931, %v1930, %v1737
      %2060 = vrot.lane.b32.xlu0 %v201, 96
      %v2061 = vpop.permute.xlu0 %2060
      %2062 = vrot.lane.b32.xlu0 %v202, 96
      %v2063 = vpop.permute.xlu0 %2062
      %2064 = vrot.lane.b32.xlu0 %v203, 96
      %v2065 = vpop.permute.xlu0 %2064
      %2066 = vrot.lane.b32.xlu0 %v204, 96
      %v2067 = vpop.permute.xlu0 %2066
      %2068 = vrot.lane.b32.xlu0 %v205, 96
      %v2069 = vpop.permute.xlu0 %2068
      %2070 = vrot.lane.b32.xlu0 %v206, 96
      %v2071 = vpop.permute.xlu0 %2070
      %2072 = vrot.lane.b32.xlu0 %v207, 96
      %v2073 = vpop.permute.xlu0 %2072
      %2074 = vrot.lane.b32.xlu0 %v208, 96
      %v2075 = vpop.permute.xlu0 %2074
      %2076 = vrot.lane.b32.xlu0 %v209, 96
      %v2077 = vpop.permute.xlu0 %2076
      %2078 = vrot.lane.b32.xlu0 %v210, 96
      %v2079 = vpop.permute.xlu0 %2078
      %2080 = vrot.lane.b32.xlu0 %v211, 96
      %v2081 = vpop.permute.xlu0 %2080
      %2082 = vrot.lane.b32.xlu0 %v212, 96
      %v2083 = vpop.permute.xlu0 %2082
      %2084 = vrot.lane.b32.xlu0 %v213, 96
      %v2085 = vpop.permute.xlu0 %2084
      %2086 = vrot.lane.b32.xlu0 %v214, 96
      %v2087 = vpop.permute.xlu0 %2086
      %2088 = vrot.lane.b32.xlu0 %v215, 96
      %v2089 = vpop.permute.xlu0 %2088
      %2090 = vrot.lane.b32.xlu0 %v216, 96
      %v2091 = vpop.permute.xlu0 %2090
      %2092 = vrot.lane.b32.xlu0 %v217, 96
      %v2093 = vpop.permute.xlu0 %2092
      %2094 = vrot.lane.b32.xlu0 %v218, 96
      %v2095 = vpop.permute.xlu0 %2094
      %2096 = vrot.lane.b32.xlu0 %v219, 96
      %v2097 = vpop.permute.xlu0 %2096
      %2098 = vrot.lane.b32.xlu0 %v220, 96
      %v2099 = vpop.permute.xlu0 %2098
      %2100 = vrot.lane.b32.xlu0 %v221, 96
      %v2101 = vpop.permute.xlu0 %2100
      %2102 = vrot.lane.b32.xlu0 %v222, 96
      %v2103 = vpop.permute.xlu0 %2102
      %2104 = vrot.lane.b32.xlu0 %v223, 96
      %v2105 = vpop.permute.xlu0 %2104
      %2106 = vrot.lane.b32.xlu0 %v224, 96
      %v2107 = vpop.permute.xlu0 %2106
      %2108 = vrot.lane.b32.xlu0 %v225, 96
      %v2109 = vpop.permute.xlu0 %2108
      %2110 = vrot.lane.b32.xlu0 %v226, 96
      %v2111 = vpop.permute.xlu0 %2110
      %2112 = vrot.lane.b32.xlu0 %v227, 96
      %v2113 = vpop.permute.xlu0 %2112
      %2114 = vrot.lane.b32.xlu0 %v228, 96
      %v2115 = vpop.permute.xlu0 %2114
      %2116 = vrot.lane.b32.xlu0 %v229, 96
      %v2117 = vpop.permute.xlu0 %2116
      %2118 = vrot.lane.b32.xlu0 %v230, 96
      %v2119 = vpop.permute.xlu0 %2118
      %2120 = vrot.lane.b32.xlu0 %v231, 96
      %v2121 = vpop.permute.xlu0 %2120
      %2122 = vrot.lane.b32.xlu0 %v232, 96
      %v2123 = vpop.permute.xlu0 %2122
      %2124 = vrot.lane.b32.xlu0 %v233, 96
      %v2125 = vpop.permute.xlu0 %2124
      %2126 = vrot.lane.b32.xlu0 %v234, 96
      %v2127 = vpop.permute.xlu0 %2126
      %2128 = vrot.lane.b32.xlu0 %v235, 96
      %v2129 = vpop.permute.xlu0 %2128
      %2130 = vrot.lane.b32.xlu0 %v236, 96
      %v2131 = vpop.permute.xlu0 %2130
      %2132 = vrot.lane.b32.xlu0 %v237, 96
      %v2133 = vpop.permute.xlu0 %2132
      %2134 = vrot.lane.b32.xlu0 %v238, 96
      %v2135 = vpop.permute.xlu0 %2134
      %2136 = vrot.lane.b32.xlu0 %v239, 96
      %v2137 = vpop.permute.xlu0 %2136
      %2138 = vrot.lane.b32.xlu0 %v240, 96
      %v2139 = vpop.permute.xlu0 %2138
      %2140 = vrot.lane.b32.xlu0 %v241, 96
      %v2141 = vpop.permute.xlu0 %2140
      %2142 = vrot.lane.b32.xlu0 %v242, 96
      %v2143 = vpop.permute.xlu0 %2142
      %2144 = vrot.lane.b32.xlu0 %v243, 96
      %v2145 = vpop.permute.xlu0 %2144
      %2146 = vrot.lane.b32.xlu0 %v244, 96
      %v2147 = vpop.permute.xlu0 %2146
      %2148 = vrot.lane.b32.xlu0 %v245, 96
      %v2149 = vpop.permute.xlu0 %2148
      %2150 = vrot.lane.b32.xlu0 %v246, 96
      %v2151 = vpop.permute.xlu0 %2150
      %2152 = vrot.lane.b32.xlu0 %v247, 96
      %v2153 = vpop.permute.xlu0 %2152
      %2154 = vrot.lane.b32.xlu0 %v248, 96
      %v2155 = vpop.permute.xlu0 %2154
      %2156 = vrot.lane.b32.xlu0 %v249, 96
      %v2157 = vpop.permute.xlu0 %2156
      %2158 = vrot.lane.b32.xlu0 %v250, 96
      %v2159 = vpop.permute.xlu0 %2158
      %2160 = vrot.lane.b32.xlu0 %v251, 96
      %v2161 = vpop.permute.xlu0 %2160
      %2162 = vrot.lane.b32.xlu0 %v252, 96
      %v2163 = vpop.permute.xlu0 %2162
      %2164 = vrot.lane.b32.xlu0 %v253, 96
      %v2165 = vpop.permute.xlu0 %2164
      %2166 = vrot.lane.b32.xlu0 %v254, 96
      %v2167 = vpop.permute.xlu0 %2166
      %2168 = vrot.lane.b32.xlu0 %v255, 96
      %v2169 = vpop.permute.xlu0 %2168
      %2170 = vrot.lane.b32.xlu0 %v256, 96
      %v2171 = vpop.permute.xlu0 %2170
      %2172 = vrot.lane.b32.xlu0 %v257, 96
      %v2173 = vpop.permute.xlu0 %2172
      %2174 = vrot.lane.b32.xlu0 %v258, 96
      %v2175 = vpop.permute.xlu0 %2174
      %2176 = vrot.lane.b32.xlu0 %v259, 96
      %v2177 = vpop.permute.xlu0 %2176
      %2178 = vrot.lane.b32.xlu0 %v260, 96
      %v2179 = vpop.permute.xlu0 %2178
      %2180 = vrot.lane.b32.xlu0 %v261, 96
      %v2181 = vpop.permute.xlu0 %2180
      %2182 = vrot.lane.b32.xlu0 %v262, 96
      %v2183 = vpop.permute.xlu0 %2182
      %2184 = vrot.lane.b32.xlu0 %v263, 96
      %v2185 = vpop.permute.xlu0 %2184
      %2186 = vrot.lane.b32.xlu0 %v264, 96
      %v2187 = vpop.permute.xlu0 %2186
      %2252 = vrot.lane.b32.xlu0 %v201, 32
      %v2253 = vpop.permute.xlu0 %2252
      %2254 = vrot.lane.b32.xlu0 %v202, 32
      %v2255 = vpop.permute.xlu0 %2254
      %2256 = vrot.lane.b32.xlu0 %v203, 32
      %v2257 = vpop.permute.xlu0 %2256
      %2258 = vrot.lane.b32.xlu0 %v204, 32
      %v2259 = vpop.permute.xlu0 %2258
      %2260 = vrot.lane.b32.xlu0 %v205, 32
      %v2261 = vpop.permute.xlu0 %2260
      %2262 = vrot.lane.b32.xlu0 %v206, 32
      %v2263 = vpop.permute.xlu0 %2262
      %2264 = vrot.lane.b32.xlu0 %v207, 32
      %v2265 = vpop.permute.xlu0 %2264
      %2266 = vrot.lane.b32.xlu0 %v208, 32
      %v2267 = vpop.permute.xlu0 %2266
      %2268 = vrot.lane.b32.xlu0 %v209, 32
      %v2269 = vpop.permute.xlu0 %2268
      %2270 = vrot.lane.b32.xlu0 %v210, 32
      %v2271 = vpop.permute.xlu0 %2270
      %2272 = vrot.lane.b32.xlu0 %v211, 32
      %v2273 = vpop.permute.xlu0 %2272
      %2274 = vrot.lane.b32.xlu0 %v212, 32
      %v2275 = vpop.permute.xlu0 %2274
      %2276 = vrot.lane.b32.xlu0 %v213, 32
      %v2277 = vpop.permute.xlu0 %2276
      %2278 = vrot.lane.b32.xlu0 %v214, 32
      %v2279 = vpop.permute.xlu0 %2278
      %2280 = vrot.lane.b32.xlu0 %v215, 32
      %v2281 = vpop.permute.xlu0 %2280
      %2282 = vrot.lane.b32.xlu0 %v216, 32
      %v2283 = vpop.permute.xlu0 %2282
      %2284 = vrot.lane.b32.xlu0 %v217, 32
      %v2285 = vpop.permute.xlu0 %2284
      %2286 = vrot.lane.b32.xlu0 %v218, 32
      %v2287 = vpop.permute.xlu0 %2286
      %2288 = vrot.lane.b32.xlu0 %v219, 32
      %v2289 = vpop.permute.xlu0 %2288
      %2290 = vrot.lane.b32.xlu0 %v220, 32
      %v2291 = vpop.permute.xlu0 %2290
      %2292 = vrot.lane.b32.xlu0 %v221, 32
      %v2293 = vpop.permute.xlu0 %2292
      %2294 = vrot.lane.b32.xlu0 %v222, 32
      %v2295 = vpop.permute.xlu0 %2294
      %2296 = vrot.lane.b32.xlu0 %v223, 32
      %v2297 = vpop.permute.xlu0 %2296
      %2298 = vrot.lane.b32.xlu0 %v224, 32
      %v2299 = vpop.permute.xlu0 %2298
      %2300 = vrot.lane.b32.xlu0 %v225, 32
      %v2301 = vpop.permute.xlu0 %2300
      %2302 = vrot.lane.b32.xlu0 %v226, 32
      %v2303 = vpop.permute.xlu0 %2302
      %2304 = vrot.lane.b32.xlu0 %v227, 32
      %v2305 = vpop.permute.xlu0 %2304
      %2306 = vrot.lane.b32.xlu0 %v228, 32
      %v2307 = vpop.permute.xlu0 %2306
      %2308 = vrot.lane.b32.xlu0 %v229, 32
      %v2309 = vpop.permute.xlu0 %2308
      %2310 = vrot.lane.b32.xlu0 %v230, 32
      %v2311 = vpop.permute.xlu0 %2310
      %2312 = vrot.lane.b32.xlu0 %v231, 32
      %v2313 = vpop.permute.xlu0 %2312
      %2314 = vrot.lane.b32.xlu0 %v232, 32
      %v2315 = vpop.permute.xlu0 %2314
      %2316 = vrot.lane.b32.xlu0 %v233, 32
      %v2317 = vpop.permute.xlu0 %2316
      %2318 = vrot.lane.b32.xlu0 %v234, 32
      %v2319 = vpop.permute.xlu0 %2318
      %2320 = vrot.lane.b32.xlu0 %v235, 32
      %v2321 = vpop.permute.xlu0 %2320
      %2322 = vrot.lane.b32.xlu0 %v236, 32
      %v2323 = vpop.permute.xlu0 %2322
      %2324 = vrot.lane.b32.xlu0 %v237, 32
      %v2325 = vpop.permute.xlu0 %2324
      %2326 = vrot.lane.b32.xlu0 %v238, 32
      %v2327 = vpop.permute.xlu0 %2326
      %2328 = vrot.lane.b32.xlu0 %v239, 32
      %v2329 = vpop.permute.xlu0 %2328
      %2330 = vrot.lane.b32.xlu0 %v240, 32
      %v2331 = vpop.permute.xlu0 %2330
      %2332 = vrot.lane.b32.xlu0 %v241, 32
      %v2333 = vpop.permute.xlu0 %2332
      %2334 = vrot.lane.b32.xlu0 %v242, 32
      %v2335 = vpop.permute.xlu0 %2334
      %2336 = vrot.lane.b32.xlu0 %v243, 32
      %v2337 = vpop.permute.xlu0 %2336
      %2338 = vrot.lane.b32.xlu0 %v244, 32
      %v2339 = vpop.permute.xlu0 %2338
      %2340 = vrot.lane.b32.xlu0 %v245, 32
      %v2341 = vpop.permute.xlu0 %2340
      %2342 = vrot.lane.b32.xlu0 %v246, 32
      %v2343 = vpop.permute.xlu0 %2342
      %2344 = vrot.lane.b32.xlu0 %v247, 32
      %v2345 = vpop.permute.xlu0 %2344
      %2346 = vrot.lane.b32.xlu0 %v248, 32
      %v2347 = vpop.permute.xlu0 %2346
      %2348 = vrot.lane.b32.xlu0 %v249, 32
      %v2349 = vpop.permute.xlu0 %2348
      %2350 = vrot.lane.b32.xlu0 %v250, 32
      %v2351 = vpop.permute.xlu0 %2350
      %2352 = vrot.lane.b32.xlu0 %v251, 32
      %v2353 = vpop.permute.xlu0 %2352
      %2354 = vrot.lane.b32.xlu0 %v252, 32
      %v2355 = vpop.permute.xlu0 %2354
      %2356 = vrot.lane.b32.xlu0 %v253, 32
      %v2357 = vpop.permute.xlu0 %2356
      %2358 = vrot.lane.b32.xlu0 %v254, 32
      %v2359 = vpop.permute.xlu0 %2358
      %2360 = vrot.lane.b32.xlu0 %v255, 32
      %v2361 = vpop.permute.xlu0 %2360
      %2362 = vrot.lane.b32.xlu0 %v256, 32
      %v2363 = vpop.permute.xlu0 %2362
      %2364 = vrot.lane.b32.xlu0 %v257, 32
      %v2365 = vpop.permute.xlu0 %2364
      %2366 = vrot.lane.b32.xlu0 %v258, 32
      %v2367 = vpop.permute.xlu0 %2366
      %2368 = vrot.lane.b32.xlu0 %v259, 32
      %v2369 = vpop.permute.xlu0 %2368
      %2370 = vrot.lane.b32.xlu0 %v260, 32
      %v2371 = vpop.permute.xlu0 %2370
      %2372 = vrot.lane.b32.xlu0 %v261, 32
      %v2373 = vpop.permute.xlu0 %2372
      %2374 = vrot.lane.b32.xlu0 %v262, 32
      %v2375 = vpop.permute.xlu0 %2374
      %2376 = vrot.lane.b32.xlu0 %v263, 32
      %v2377 = vpop.permute.xlu0 %2376
      %2378 = vrot.lane.b32.xlu0 %v264, 32
      %v2379 = vpop.permute.xlu0 %2378
      %2444 = vrot.lane.b32.xlu0 %v201, 64
      %v2445 = vpop.permute.xlu0 %2444
      %2446 = vrot.lane.b32.xlu0 %v202, 64
      %v2447 = vpop.permute.xlu0 %2446
      %2448 = vrot.lane.b32.xlu0 %v203, 64
      %v2449 = vpop.permute.xlu0 %2448
      %2450 = vrot.lane.b32.xlu0 %v204, 64
      %v2451 = vpop.permute.xlu0 %2450
      %2452 = vrot.lane.b32.xlu0 %v205, 64
      %v2453 = vpop.permute.xlu0 %2452
      %2454 = vrot.lane.b32.xlu0 %v206, 64
      %v2455 = vpop.permute.xlu0 %2454
      %2456 = vrot.lane.b32.xlu0 %v207, 64
      %v2457 = vpop.permute.xlu0 %2456
      %2458 = vrot.lane.b32.xlu0 %v208, 64
      %v2459 = vpop.permute.xlu0 %2458
      %2460 = vrot.lane.b32.xlu0 %v209, 64
      %v2461 = vpop.permute.xlu0 %2460
      %2462 = vrot.lane.b32.xlu0 %v210, 64
      %v2463 = vpop.permute.xlu0 %2462
      %2464 = vrot.lane.b32.xlu0 %v211, 64
      %v2465 = vpop.permute.xlu0 %2464
      %2466 = vrot.lane.b32.xlu0 %v212, 64
      %v2467 = vpop.permute.xlu0 %2466
      %2468 = vrot.lane.b32.xlu0 %v213, 64
      %v2469 = vpop.permute.xlu0 %2468
      %2470 = vrot.lane.b32.xlu0 %v214, 64
      %v2471 = vpop.permute.xlu0 %2470
      %2472 = vrot.lane.b32.xlu0 %v215, 64
      %v2473 = vpop.permute.xlu0 %2472
      %2474 = vrot.lane.b32.xlu0 %v216, 64
      %v2475 = vpop.permute.xlu0 %2474
      %2476 = vrot.lane.b32.xlu0 %v217, 64
      %v2477 = vpop.permute.xlu0 %2476
      %2478 = vrot.lane.b32.xlu0 %v218, 64
      %v2479 = vpop.permute.xlu0 %2478
      %2480 = vrot.lane.b32.xlu0 %v219, 64
      %v2481 = vpop.permute.xlu0 %2480
      %2482 = vrot.lane.b32.xlu0 %v220, 64
      %v2483 = vpop.permute.xlu0 %2482
      %2484 = vrot.lane.b32.xlu0 %v221, 64
      %v2485 = vpop.permute.xlu0 %2484
      %2486 = vrot.lane.b32.xlu0 %v222, 64
      %v2487 = vpop.permute.xlu0 %2486
      %2488 = vrot.lane.b32.xlu0 %v223, 64
      %v2489 = vpop.permute.xlu0 %2488
      %2490 = vrot.lane.b32.xlu0 %v224, 64
      %v2491 = vpop.permute.xlu0 %2490
      %2492 = vrot.lane.b32.xlu0 %v225, 64
      %v2493 = vpop.permute.xlu0 %2492
      %2494 = vrot.lane.b32.xlu0 %v226, 64
      %v2495 = vpop.permute.xlu0 %2494
      %2496 = vrot.lane.b32.xlu0 %v227, 64
      %v2497 = vpop.permute.xlu0 %2496
      %2498 = vrot.lane.b32.xlu0 %v228, 64
      %v2499 = vpop.permute.xlu0 %2498
      %2500 = vrot.lane.b32.xlu0 %v229, 64
      %v2501 = vpop.permute.xlu0 %2500
      %2502 = vrot.lane.b32.xlu0 %v230, 64
      %v2503 = vpop.permute.xlu0 %2502
      %2504 = vrot.lane.b32.xlu0 %v231, 64
      %v2505 = vpop.permute.xlu0 %2504
      %2506 = vrot.lane.b32.xlu0 %v232, 64
      %v2507 = vpop.permute.xlu0 %2506
      %2508 = vrot.lane.b32.xlu0 %v233, 64
      %v2509 = vpop.permute.xlu0 %2508
      %2510 = vrot.lane.b32.xlu0 %v234, 64
      %v2511 = vpop.permute.xlu0 %2510
      %2512 = vrot.lane.b32.xlu0 %v235, 64
      %v2513 = vpop.permute.xlu0 %2512
      %2514 = vrot.lane.b32.xlu0 %v236, 64
      %v2515 = vpop.permute.xlu0 %2514
      %2516 = vrot.lane.b32.xlu0 %v237, 64
      %v2517 = vpop.permute.xlu0 %2516
      %2518 = vrot.lane.b32.xlu0 %v238, 64
      %v2519 = vpop.permute.xlu0 %2518
      %2520 = vrot.lane.b32.xlu0 %v239, 64
      %v2521 = vpop.permute.xlu0 %2520
      %2522 = vrot.lane.b32.xlu0 %v240, 64
      %v2523 = vpop.permute.xlu0 %2522
      %2524 = vrot.lane.b32.xlu0 %v241, 64
      %v2525 = vpop.permute.xlu0 %2524
      %2526 = vrot.lane.b32.xlu0 %v242, 64
      %v2527 = vpop.permute.xlu0 %2526
      %2528 = vrot.lane.b32.xlu0 %v243, 64
      %v2529 = vpop.permute.xlu0 %2528
      %2530 = vrot.lane.b32.xlu0 %v244, 64
      %v2531 = vpop.permute.xlu0 %2530
      %2532 = vrot.lane.b32.xlu0 %v245, 64
      %v2533 = vpop.permute.xlu0 %2532
      %2534 = vrot.lane.b32.xlu0 %v246, 64
      %v2535 = vpop.permute.xlu0 %2534
      %2536 = vrot.lane.b32.xlu0 %v247, 64
      %v2537 = vpop.permute.xlu0 %2536
      %2538 = vrot.lane.b32.xlu0 %v248, 64
      %v2539 = vpop.permute.xlu0 %2538
      %2540 = vrot.lane.b32.xlu0 %v249, 64
      %v2541 = vpop.permute.xlu0 %2540
      %2542 = vrot.lane.b32.xlu0 %v250, 64
      %v2543 = vpop.permute.xlu0 %2542
      %2544 = vrot.lane.b32.xlu0 %v251, 64
      %v2545 = vpop.permute.xlu0 %2544
      %2546 = vrot.lane.b32.xlu0 %v252, 64
      %v2547 = vpop.permute.xlu0 %2546
      %2548 = vrot.lane.b32.xlu0 %v253, 64
      %v2549 = vpop.permute.xlu0 %2548
      %2550 = vrot.lane.b32.xlu0 %v254, 64
      %v2551 = vpop.permute.xlu0 %2550
      %2552 = vrot.lane.b32.xlu0 %v255, 64
      %v2553 = vpop.permute.xlu0 %2552
      %2554 = vrot.lane.b32.xlu0 %v256, 64
      %v2555 = vpop.permute.xlu0 %2554
      %2556 = vrot.lane.b32.xlu0 %v257, 64
      %v2557 = vpop.permute.xlu0 %2556
      %2558 = vrot.lane.b32.xlu0 %v258, 64
      %v2559 = vpop.permute.xlu0 %2558
      %2560 = vrot.lane.b32.xlu0 %v259, 64
      %v2561 = vpop.permute.xlu0 %2560
      %2562 = vrot.lane.b32.xlu0 %v260, 64
      %v2563 = vpop.permute.xlu0 %2562
      %2564 = vrot.lane.b32.xlu0 %v261, 64
      %v2565 = vpop.permute.xlu0 %2564
      %2566 = vrot.lane.b32.xlu0 %v262, 64
      %v2567 = vpop.permute.xlu0 %2566
      %2568 = vrot.lane.b32.xlu0 %v263, 64
      %v2569 = vpop.permute.xlu0 %2568
      %2570 = vrot.lane.b32.xlu0 %v264, 64
      %v2571 = vpop.permute.xlu0 %2570
      %v2636 = vsel %vm329, %v2061, %v201
      %v2637 = vsel %vm329, %v2063, %v202
      %v2638 = vsel %vm329, %v2065, %v203
      %v2639 = vsel %vm329, %v2067, %v204
      %v2640 = vsel %vm329, %v2069, %v205
      %v2641 = vsel %vm329, %v2071, %v206
      %v2642 = vsel %vm329, %v2073, %v207
      %v2643 = vsel %vm329, %v2075, %v208
      %v2644 = vsel %vm329, %v2077, %v209
      %v2645 = vsel %vm329, %v2079, %v210
      %v2646 = vsel %vm329, %v2081, %v211
      %v2647 = vsel %vm329, %v2083, %v212
      %v2648 = vsel %vm329, %v2085, %v213
      %v2649 = vsel %vm329, %v2087, %v214
      %v2650 = vsel %vm329, %v2089, %v215
      %v2651 = vsel %vm329, %v2091, %v216
      %v2652 = vsel %vm329, %v2093, %v217
      %v2653 = vsel %vm329, %v2095, %v218
      %v2654 = vsel %vm329, %v2097, %v219
      %v2655 = vsel %vm329, %v2099, %v220
      %v2656 = vsel %vm329, %v2101, %v221
      %v2657 = vsel %vm329, %v2103, %v222
      %v2658 = vsel %vm329, %v2105, %v223
      %v2659 = vsel %vm329, %v2107, %v224
      %v2660 = vsel %vm329, %v2109, %v225
      %v2661 = vsel %vm329, %v2111, %v226
      %v2662 = vsel %vm329, %v2113, %v227
      %v2663 = vsel %vm329, %v2115, %v228
      %v2664 = vsel %vm329, %v2117, %v229
      %v2665 = vsel %vm329, %v2119, %v230
      %v2666 = vsel %vm329, %v2121, %v231
      %v2667 = vsel %vm329, %v2123, %v232
      %v2668 = vsel %vm329, %v2125, %v233
      %v2669 = vsel %vm329, %v2127, %v234
      %v2670 = vsel %vm329, %v2129, %v235
      %v2671 = vsel %vm329, %v2131, %v236
      %v2672 = vsel %vm329, %v2133, %v237
      %v2673 = vsel %vm329, %v2135, %v238
      %v2674 = vsel %vm329, %v2137, %v239
      %v2675 = vsel %vm329, %v2139, %v240
      %v2676 = vsel %vm329, %v2141, %v241
      %v2677 = vsel %vm329, %v2143, %v242
      %v2678 = vsel %vm329, %v2145, %v243
      %v2679 = vsel %vm329, %v2147, %v244
      %v2680 = vsel %vm329, %v2149, %v245
      %v2681 = vsel %vm329, %v2151, %v246
      %v2682 = vsel %vm329, %v2153, %v247
      %v2683 = vsel %vm329, %v2155, %v248
      %v2684 = vsel %vm329, %v2157, %v249
      %v2685 = vsel %vm329, %v2159, %v250
      %v2686 = vsel %vm329, %v2161, %v251
      %v2687 = vsel %vm329, %v2163, %v252
      %v2688 = vsel %vm329, %v2165, %v253
      %v2689 = vsel %vm329, %v2167, %v254
      %v2690 = vsel %vm329, %v2169, %v255
      %v2691 = vsel %vm329, %v2171, %v256
      %v2692 = vsel %vm329, %v2173, %v257
      %v2693 = vsel %vm329, %v2175, %v258
      %v2694 = vsel %vm329, %v2177, %v259
      %v2695 = vsel %vm329, %v2179, %v260
      %v2696 = vsel %vm329, %v2181, %v261
      %v2697 = vsel %vm329, %v2183, %v262
      %v2698 = vsel %vm329, %v2185, %v263
      %v2699 = vsel %vm329, %v2187, %v264
      %v2700 = vsel %vm1866, %v2636, %v2253
      %v2701 = vsel %vm1866, %v2637, %v2255
      %v2702 = vsel %vm1866, %v2638, %v2257
      %v2703 = vsel %vm1866, %v2639, %v2259
      %v2704 = vsel %vm1866, %v2640, %v2261
      %v2705 = vsel %vm1866, %v2641, %v2263
      %v2706 = vsel %vm1866, %v2642, %v2265
      %v2707 = vsel %vm1866, %v2643, %v2267
      %v2708 = vsel %vm1866, %v2644, %v2269
      %v2709 = vsel %vm1866, %v2645, %v2271
      %v2710 = vsel %vm1866, %v2646, %v2273
      %v2711 = vsel %vm1866, %v2647, %v2275
      %v2712 = vsel %vm1866, %v2648, %v2277
      %v2713 = vsel %vm1866, %v2649, %v2279
      %v2714 = vsel %vm1866, %v2650, %v2281
      %v2715 = vsel %vm1866, %v2651, %v2283
      %v2716 = vsel %vm1866, %v2652, %v2285
      %v2717 = vsel %vm1866, %v2653, %v2287
      %v2718 = vsel %vm1866, %v2654, %v2289
      %v2719 = vsel %vm1866, %v2655, %v2291
      %v2720 = vsel %vm1866, %v2656, %v2293
      %v2721 = vsel %vm1866, %v2657, %v2295
      %v2722 = vsel %vm1866, %v2658, %v2297
      %v2723 = vsel %vm1866, %v2659, %v2299
      %v2724 = vsel %vm1866, %v2660, %v2301
      %v2725 = vsel %vm1866, %v2661, %v2303
      %v2726 = vsel %vm1866, %v2662, %v2305
      %v2727 = vsel %vm1866, %v2663, %v2307
      %v2728 = vsel %vm1866, %v2664, %v2309
      %v2729 = vsel %vm1866, %v2665, %v2311
      %v2730 = vsel %vm1866, %v2666, %v2313
      %v2731 = vsel %vm1866, %v2667, %v2315
      %v2732 = vsel %vm1866, %v2668, %v2317
      %v2733 = vsel %vm1866, %v2669, %v2319
      %v2734 = vsel %vm1866, %v2670, %v2321
      %v2735 = vsel %vm1866, %v2671, %v2323
      %v2736 = vsel %vm1866, %v2672, %v2325
      %v2737 = vsel %vm1866, %v2673, %v2327
      %v2738 = vsel %vm1866, %v2674, %v2329
      %v2739 = vsel %vm1866, %v2675, %v2331
      %v2740 = vsel %vm1866, %v2676, %v2333
      %v2741 = vsel %vm1866, %v2677, %v2335
      %v2742 = vsel %vm1866, %v2678, %v2337
      %v2743 = vsel %vm1866, %v2679, %v2339
      %v2744 = vsel %vm1866, %v2680, %v2341
      %v2745 = vsel %vm1866, %v2681, %v2343
      %v2746 = vsel %vm1866, %v2682, %v2345
      %v2747 = vsel %vm1866, %v2683, %v2347
      %v2748 = vsel %vm1866, %v2684, %v2349
      %v2749 = vsel %vm1866, %v2685, %v2351
      %v2750 = vsel %vm1866, %v2686, %v2353
      %v2751 = vsel %vm1866, %v2687, %v2355
      %v2752 = vsel %vm1866, %v2688, %v2357
      %v2753 = vsel %vm1866, %v2689, %v2359
      %v2754 = vsel %vm1866, %v2690, %v2361
      %v2755 = vsel %vm1866, %v2691, %v2363
      %v2756 = vsel %vm1866, %v2692, %v2365
      %v2757 = vsel %vm1866, %v2693, %v2367
      %v2758 = vsel %vm1866, %v2694, %v2369
      %v2759 = vsel %vm1866, %v2695, %v2371
      %v2760 = vsel %vm1866, %v2696, %v2373
      %v2761 = vsel %vm1866, %v2697, %v2375
      %v2762 = vsel %vm1866, %v2698, %v2377
      %v2763 = vsel %vm1866, %v2699, %v2379
      %v2764 = vsel %vm1931, %v2700, %v2445
      %v2765 = vsel %vm1931, %v2701, %v2447
      %v2766 = vsel %vm1931, %v2702, %v2449
      %v2767 = vsel %vm1931, %v2703, %v2451
      %v2768 = vsel %vm1931, %v2704, %v2453
      %v2769 = vsel %vm1931, %v2705, %v2455
      %v2770 = vsel %vm1931, %v2706, %v2457
      %v2771 = vsel %vm1931, %v2707, %v2459
      %v2772 = vsel %vm1931, %v2708, %v2461
      %v2773 = vsel %vm1931, %v2709, %v2463
      %v2774 = vsel %vm1931, %v2710, %v2465
      %v2775 = vsel %vm1931, %v2711, %v2467
      %v2776 = vsel %vm1931, %v2712, %v2469
      %v2777 = vsel %vm1931, %v2713, %v2471
      %v2778 = vsel %vm1931, %v2714, %v2473
      %v2779 = vsel %vm1931, %v2715, %v2475
      %v2780 = vsel %vm1931, %v2716, %v2477
      %v2781 = vsel %vm1931, %v2717, %v2479
      %v2782 = vsel %vm1931, %v2718, %v2481
      %v2783 = vsel %vm1931, %v2719, %v2483
      %v2784 = vsel %vm1931, %v2720, %v2485
      %v2785 = vsel %vm1931, %v2721, %v2487
      %v2786 = vsel %vm1931, %v2722, %v2489
      %v2787 = vsel %vm1931, %v2723, %v2491
      %v2788 = vsel %vm1931, %v2724, %v2493
      %v2789 = vsel %vm1931, %v2725, %v2495
      %v2790 = vsel %vm1931, %v2726, %v2497
      %v2791 = vsel %vm1931, %v2727, %v2499
      %v2792 = vsel %vm1931, %v2728, %v2501
      %v2793 = vsel %vm1931, %v2729, %v2503
      %v2794 = vsel %vm1931, %v2730, %v2505
      %v2795 = vsel %vm1931, %v2731, %v2507
      %v2796 = vsel %vm1931, %v2732, %v2509
      %v2797 = vsel %vm1931, %v2733, %v2511
      %v2798 = vsel %vm1931, %v2734, %v2513
      %v2799 = vsel %vm1931, %v2735, %v2515
      %v2800 = vsel %vm1931, %v2736, %v2517
      %v2801 = vsel %vm1931, %v2737, %v2519
      %v2802 = vsel %vm1931, %v2738, %v2521
      %v2803 = vsel %vm1931, %v2739, %v2523
      %v2804 = vsel %vm1931, %v2740, %v2525
      %v2805 = vsel %vm1931, %v2741, %v2527
      %v2806 = vsel %vm1931, %v2742, %v2529
      %v2807 = vsel %vm1931, %v2743, %v2531
      %v2808 = vsel %vm1931, %v2744, %v2533
      %v2809 = vsel %vm1931, %v2745, %v2535
      %v2810 = vsel %vm1931, %v2746, %v2537
      %v2811 = vsel %vm1931, %v2747, %v2539
      %v2812 = vsel %vm1931, %v2748, %v2541
      %v2813 = vsel %vm1931, %v2749, %v2543
      %v2814 = vsel %vm1931, %v2750, %v2545
      %v2815 = vsel %vm1931, %v2751, %v2547
      %v2816 = vsel %vm1931, %v2752, %v2549
      %v2817 = vsel %vm1931, %v2753, %v2551
      %v2818 = vsel %vm1931, %v2754, %v2553
      %v2819 = vsel %vm1931, %v2755, %v2555
      %v2820 = vsel %vm1931, %v2756, %v2557
      %v2821 = vsel %vm1931, %v2757, %v2559
      %v2822 = vsel %vm1931, %v2758, %v2561
      %v2823 = vsel %vm1931, %v2759, %v2563
      %v2824 = vsel %vm1931, %v2760, %v2565
      %v2825 = vsel %vm1931, %v2761, %v2567
      %v2826 = vsel %vm1931, %v2762, %v2569
      %v2827 = vsel %vm1931, %v2763, %v2571
      %v2828 = vld [vmem:[%s1] sm:$0x1]
      %v2830 = vlaneseq
      %v2831 = vshrl.u32 %v2830, 7
      %v2832 = vsub.s32 0, %v2831
      %v2833 = vrot.slane %v2828, %v2832
      %v2835 = vsub.f32 %v1932, %v2833
      %v2836 = vsub.f32 %v1933, %v2833
      %v2837 = vsub.f32 %v1934, %v2833
      %v2838 = vsub.f32 %v1935, %v2833
      %v2839 = vsub.f32 %v1936, %v2833
      %v2840 = vsub.f32 %v1937, %v2833
      %v2841 = vsub.f32 %v1938, %v2833
      %v2842 = vsub.f32 %v1939, %v2833
      %v2843 = vsub.f32 %v1940, %v2833
      %v2844 = vsub.f32 %v1941, %v2833
      %v2845 = vsub.f32 %v1942, %v2833
      %v2846 = vsub.f32 %v1943, %v2833
      %v2847 = vsub.f32 %v1944, %v2833
      %v2848 = vsub.f32 %v1945, %v2833
      %v2849 = vsub.f32 %v1946, %v2833
      %v2850 = vsub.f32 %v1947, %v2833
      %v2851 = vsub.f32 %v1948, %v2833
      %v2852 = vsub.f32 %v1949, %v2833
      %v2853 = vsub.f32 %v1950, %v2833
      %v2854 = vsub.f32 %v1951, %v2833
      %v2855 = vsub.f32 %v1952, %v2833
      %v2856 = vsub.f32 %v1953, %v2833
      %v2857 = vsub.f32 %v1954, %v2833
      %v2858 = vsub.f32 %v1955, %v2833
      %v2859 = vsub.f32 %v1956, %v2833
      %v2860 = vsub.f32 %v1957, %v2833
      %v2861 = vsub.f32 %v1958, %v2833
      %v2862 = vsub.f32 %v1959, %v2833
      %v2863 = vsub.f32 %v1960, %v2833
      %v2864 = vsub.f32 %v1961, %v2833
      %v2865 = vsub.f32 %v1962, %v2833
      %v2866 = vsub.f32 %v1963, %v2833
      %v2867 = vsub.f32 %v1964, %v2833
      %v2868 = vsub.f32 %v1965, %v2833
      %v2869 = vsub.f32 %v1966, %v2833
      %v2870 = vsub.f32 %v1967, %v2833
      %v2871 = vsub.f32 %v1968, %v2833
      %v2872 = vsub.f32 %v1969, %v2833
      %v2873 = vsub.f32 %v1970, %v2833
      %v2874 = vsub.f32 %v1971, %v2833
      %v2875 = vsub.f32 %v1972, %v2833
      %v2876 = vsub.f32 %v1973, %v2833
      %v2877 = vsub.f32 %v1974, %v2833
      %v2878 = vsub.f32 %v1975, %v2833
      %v2879 = vsub.f32 %v1976, %v2833
      %v2880 = vsub.f32 %v1977, %v2833
      %v2881 = vsub.f32 %v1978, %v2833
      %v2882 = vsub.f32 %v1979, %v2833
      %v2883 = vsub.f32 %v1980, %v2833
      %v2884 = vsub.f32 %v1981, %v2833
      %v2885 = vsub.f32 %v1982, %v2833
      %v2886 = vsub.f32 %v1983, %v2833
      %v2887 = vsub.f32 %v1984, %v2833
      %v2888 = vsub.f32 %v1985, %v2833
      %v2889 = vsub.f32 %v1986, %v2833
      %v2890 = vsub.f32 %v1987, %v2833
      %v2891 = vsub.f32 %v1988, %v2833
      %v2892 = vsub.f32 %v1989, %v2833
      %v2893 = vsub.f32 %v1990, %v2833
      %v2894 = vsub.f32 %v1991, %v2833
      %v2895 = vsub.f32 %v1992, %v2833
      %v2896 = vsub.f32 %v1993, %v2833
      %v2897 = vsub.f32 %v1994, %v2833
      %v2898 = vsub.f32 %v1995, %v2833
      %v2899 = vld [vmem:[%s2] sm:$0x1]
      %v2901 = vlaneseq
      %v2902 = vshrl.u32 %v2901, 7
      %v2903 = vsub.s32 0, %v2902
      %v2904 = vrot.slane %v2899, %v2903
      %v2906 = vadd.f32 %v2764, %v2904
      %v2907 = vadd.f32 %v2765, %v2904
      %v2908 = vadd.f32 %v2766, %v2904
      %v2909 = vadd.f32 %v2767, %v2904
      %v2910 = vadd.f32 %v2768, %v2904
      %v2911 = vadd.f32 %v2769, %v2904
      %v2912 = vadd.f32 %v2770, %v2904
      %v2913 = vadd.f32 %v2771, %v2904
      %v2914 = vadd.f32 %v2772, %v2904
      %v2915 = vadd.f32 %v2773, %v2904
      %v2916 = vadd.f32 %v2774, %v2904
      %v2917 = vadd.f32 %v2775, %v2904
      %v2918 = vadd.f32 %v2776, %v2904
      %v2919 = vadd.f32 %v2777, %v2904
      %v2920 = vadd.f32 %v2778, %v2904
      %v2921 = vadd.f32 %v2779, %v2904
      %v2922 = vadd.f32 %v2780, %v2904
      %v2923 = vadd.f32 %v2781, %v2904
      %v2924 = vadd.f32 %v2782, %v2904
      %v2925 = vadd.f32 %v2783, %v2904
      %v2926 = vadd.f32 %v2784, %v2904
      %v2927 = vadd.f32 %v2785, %v2904
      %v2928 = vadd.f32 %v2786, %v2904
      %v2929 = vadd.f32 %v2787, %v2904
      %v2930 = vadd.f32 %v2788, %v2904
      %v2931 = vadd.f32 %v2789, %v2904
      %v2932 = vadd.f32 %v2790, %v2904
      %v2933 = vadd.f32 %v2791, %v2904
      %v2934 = vadd.f32 %v2792, %v2904
      %v2935 = vadd.f32 %v2793, %v2904
      %v2936 = vadd.f32 %v2794, %v2904
      %v2937 = vadd.f32 %v2795, %v2904
      %v2938 = vadd.f32 %v2796, %v2904
      %v2939 = vadd.f32 %v2797, %v2904
      %v2940 = vadd.f32 %v2798, %v2904
      %v2941 = vadd.f32 %v2799, %v2904
      %v2942 = vadd.f32 %v2800, %v2904
      %v2943 = vadd.f32 %v2801, %v2904
      %v2944 = vadd.f32 %v2802, %v2904
      %v2945 = vadd.f32 %v2803, %v2904
      %v2946 = vadd.f32 %v2804, %v2904
      %v2947 = vadd.f32 %v2805, %v2904
      %v2948 = vadd.f32 %v2806, %v2904
      %v2949 = vadd.f32 %v2807, %v2904
      %v2950 = vadd.f32 %v2808, %v2904
      %v2951 = vadd.f32 %v2809, %v2904
      %v2952 = vadd.f32 %v2810, %v2904
      %v2953 = vadd.f32 %v2811, %v2904
      %v2954 = vadd.f32 %v2812, %v2904
      %v2955 = vadd.f32 %v2813, %v2904
      %v2956 = vadd.f32 %v2814, %v2904
      %v2957 = vadd.f32 %v2815, %v2904
      %v2958 = vadd.f32 %v2816, %v2904
      %v2959 = vadd.f32 %v2817, %v2904
      %v2960 = vadd.f32 %v2818, %v2904
      %v2961 = vadd.f32 %v2819, %v2904
      %v2962 = vadd.f32 %v2820, %v2904
      %v2963 = vadd.f32 %v2821, %v2904
      %v2964 = vadd.f32 %v2822, %v2904
      %v2965 = vadd.f32 %v2823, %v2904
      %v2966 = vadd.f32 %v2824, %v2904
      %v2967 = vadd.f32 %v2825, %v2904
      %v2968 = vadd.f32 %v2826, %v2904
      %v2969 = vadd.f32 %v2827, %v2904
      %v2970 = vmul.f32 %v2835, %v2835
      %v2971 = vmul.f32 %v2836, %v2836
      %v2972 = vmul.f32 %v2837, %v2837
      %v2973 = vmul.f32 %v2838, %v2838
      %v2974 = vmul.f32 %v2839, %v2839
      %v2975 = vmul.f32 %v2840, %v2840
      %v2976 = vmul.f32 %v2841, %v2841
      %v2977 = vmul.f32 %v2842, %v2842
      %v2978 = vmul.f32 %v2843, %v2843
      %v2979 = vmul.f32 %v2844, %v2844
      %v2980 = vmul.f32 %v2845, %v2845
      %v2981 = vmul.f32 %v2846, %v2846
      %v2982 = vmul.f32 %v2847, %v2847
      %v2983 = vmul.f32 %v2848, %v2848
      %v2984 = vmul.f32 %v2849, %v2849
      %v2985 = vmul.f32 %v2850, %v2850
      %v2986 = vmul.f32 %v2851, %v2851
      %v2987 = vmul.f32 %v2852, %v2852
      %v2988 = vmul.f32 %v2853, %v2853
      %v2989 = vmul.f32 %v2854, %v2854
      %v2990 = vmul.f32 %v2855, %v2855
      %v2991 = vmul.f32 %v2856, %v2856
      %v2992 = vmul.f32 %v2857, %v2857
      %v2993 = vmul.f32 %v2858, %v2858
      %v2994 = vmul.f32 %v2859, %v2859
      %v2995 = vmul.f32 %v2860, %v2860
      %v2996 = vmul.f32 %v2861, %v2861
      %v2997 = vmul.f32 %v2862, %v2862
      %v2998 = vmul.f32 %v2863, %v2863
      %v2999 = vmul.f32 %v2864, %v2864
      %v3000 = vmul.f32 %v2865, %v2865
      %v3001 = vmul.f32 %v2866, %v2866
      %v3002 = vmul.f32 %v2867, %v2867
      %v3003 = vmul.f32 %v2868, %v2868
      %v3004 = vmul.f32 %v2869, %v2869
      %v3005 = vmul.f32 %v2870, %v2870
      %v3006 = vmul.f32 %v2871, %v2871
      %v3007 = vmul.f32 %v2872, %v2872
      %v3008 = vmul.f32 %v2873, %v2873
      %v3009 = vmul.f32 %v2874, %v2874
      %v3010 = vmul.f32 %v2875, %v2875
      %v3011 = vmul.f32 %v2876, %v2876
      %v3012 = vmul.f32 %v2877, %v2877
      %v3013 = vmul.f32 %v2878, %v2878
      %v3014 = vmul.f32 %v2879, %v2879
      %v3015 = vmul.f32 %v2880, %v2880
      %v3016 = vmul.f32 %v2881, %v2881
      %v3017 = vmul.f32 %v2882, %v2882
      %v3018 = vmul.f32 %v2883, %v2883
      %v3019 = vmul.f32 %v2884, %v2884
      %v3020 = vmul.f32 %v2885, %v2885
      %v3021 = vmul.f32 %v2886, %v2886
      %v3022 = vmul.f32 %v2887, %v2887
      %v3023 = vmul.f32 %v2888, %v2888
      %v3024 = vmul.f32 %v2889, %v2889
      %v3025 = vmul.f32 %v2890, %v2890
      %v3026 = vmul.f32 %v2891, %v2891
      %v3027 = vmul.f32 %v2892, %v2892
      %v3028 = vmul.f32 %v2893, %v2893
      %v3029 = vmul.f32 %v2894, %v2894
      %v3030 = vmul.f32 %v2895, %v2895
      %v3031 = vmul.f32 %v2896, %v2896
      %v3032 = vmul.f32 %v2897, %v2897
      %v3033 = vmul.f32 %v2898, %v2898
      %v3034 = vrcp.pop %v2906
      %v3035 = vmul.f32 %v2970, %v3034
      %v3036 = vrcp.pop %v2907
      %v3037 = vmul.f32 %v2971, %v3036
      %v3038 = vrcp.pop %v2908
      %v3039 = vmul.f32 %v2972, %v3038
      %v3040 = vrcp.pop %v2909
      %v3041 = vmul.f32 %v2973, %v3040
      %v3042 = vrcp.pop %v2910
      %v3043 = vmul.f32 %v2974, %v3042
      %v3044 = vrcp.pop %v2911
      %v3045 = vmul.f32 %v2975, %v3044
      %v3046 = vrcp.pop %v2912
      %v3047 = vmul.f32 %v2976, %v3046
      %v3048 = vrcp.pop %v2913
      %v3049 = vmul.f32 %v2977, %v3048
      %v3050 = vrcp.pop %v2914
      %v3051 = vmul.f32 %v2978, %v3050
      %v3052 = vrcp.pop %v2915
      %v3053 = vmul.f32 %v2979, %v3052
      %v3054 = vrcp.pop %v2916
      %v3055 = vmul.f32 %v2980, %v3054
      %v3056 = vrcp.pop %v2917
      %v3057 = vmul.f32 %v2981, %v3056
      %v3058 = vrcp.pop %v2918
      %v3059 = vmul.f32 %v2982, %v3058
      %v3060 = vrcp.pop %v2919
      %v3061 = vmul.f32 %v2983, %v3060
      %v3062 = vrcp.pop %v2920
      %v3063 = vmul.f32 %v2984, %v3062
      %v3064 = vrcp.pop %v2921
      %v3065 = vmul.f32 %v2985, %v3064
      %v3066 = vrcp.pop %v2922
      %v3067 = vmul.f32 %v2986, %v3066
      %v3068 = vrcp.pop %v2923
      %v3069 = vmul.f32 %v2987, %v3068
      %v3070 = vrcp.pop %v2924
      %v3071 = vmul.f32 %v2988, %v3070
      %v3072 = vrcp.pop %v2925
      %v3073 = vmul.f32 %v2989, %v3072
      %v3074 = vrcp.pop %v2926
      %v3075 = vmul.f32 %v2990, %v3074
      %v3076 = vrcp.pop %v2927
      %v3077 = vmul.f32 %v2991, %v3076
      %v3078 = vrcp.pop %v2928
      %v3079 = vmul.f32 %v2992, %v3078
      %v3080 = vrcp.pop %v2929
      %v3081 = vmul.f32 %v2993, %v3080
      %v3082 = vrcp.pop %v2930
      %v3083 = vmul.f32 %v2994, %v3082
      %v3084 = vrcp.pop %v2931
      %v3085 = vmul.f32 %v2995, %v3084
      %v3086 = vrcp.pop %v2932
      %v3087 = vmul.f32 %v2996, %v3086
      %v3088 = vrcp.pop %v2933
      %v3089 = vmul.f32 %v2997, %v3088
      %v3090 = vrcp.pop %v2934
      %v3091 = vmul.f32 %v2998, %v3090
      %v3092 = vrcp.pop %v2935
      %v3093 = vmul.f32 %v2999, %v3092
      %v3094 = vrcp.pop %v2936
      %v3095 = vmul.f32 %v3000, %v3094
      %v3096 = vrcp.pop %v2937
      %v3097 = vmul.f32 %v3001, %v3096
      %v3098 = vrcp.pop %v2938
      %v3099 = vmul.f32 %v3002, %v3098
      %v3100 = vrcp.pop %v2939
      %v3101 = vmul.f32 %v3003, %v3100
      %v3102 = vrcp.pop %v2940
      %v3103 = vmul.f32 %v3004, %v3102
      %v3104 = vrcp.pop %v2941
      %v3105 = vmul.f32 %v3005, %v3104
      %v3106 = vrcp.pop %v2942
      %v3107 = vmul.f32 %v3006, %v3106
      %v3108 = vrcp.pop %v2943
      %v3109 = vmul.f32 %v3007, %v3108
      %v3110 = vrcp.pop %v2944
      %v3111 = vmul.f32 %v3008, %v3110
      %v3112 = vrcp.pop %v2945
      %v3113 = vmul.f32 %v3009, %v3112
      %v3114 = vrcp.pop %v2946
      %v3115 = vmul.f32 %v3010, %v3114
      %v3116 = vrcp.pop %v2947
      %v3117 = vmul.f32 %v3011, %v3116
      %v3118 = vrcp.pop %v2948
      %v3119 = vmul.f32 %v3012, %v3118
      %v3120 = vrcp.pop %v2949
      %v3121 = vmul.f32 %v3013, %v3120
      %v3122 = vrcp.pop %v2950
      %v3123 = vmul.f32 %v3014, %v3122
      %v3124 = vrcp.pop %v2951
      %v3125 = vmul.f32 %v3015, %v3124
      %v3126 = vrcp.pop %v2952
      %v3127 = vmul.f32 %v3016, %v3126
      %v3128 = vrcp.pop %v2953
      %v3129 = vmul.f32 %v3017, %v3128
      %v3130 = vrcp.pop %v2954
      %v3131 = vmul.f32 %v3018, %v3130
      %v3132 = vrcp.pop %v2955
      %v3133 = vmul.f32 %v3019, %v3132
      %v3134 = vrcp.pop %v2956
      %v3135 = vmul.f32 %v3020, %v3134
      %v3136 = vrcp.pop %v2957
      %v3137 = vmul.f32 %v3021, %v3136
      %v3138 = vrcp.pop %v2958
      %v3139 = vmul.f32 %v3022, %v3138
      %v3140 = vrcp.pop %v2959
      %v3141 = vmul.f32 %v3023, %v3140
      %v3142 = vrcp.pop %v2960
      %v3143 = vmul.f32 %v3024, %v3142
      %v3144 = vrcp.pop %v2961
      %v3145 = vmul.f32 %v3025, %v3144
      %v3146 = vrcp.pop %v2962
      %v3147 = vmul.f32 %v3026, %v3146
      %v3148 = vrcp.pop %v2963
      %v3149 = vmul.f32 %v3027, %v3148
      %v3150 = vrcp.pop %v2964
      %v3151 = vmul.f32 %v3028, %v3150
      %v3152 = vrcp.pop %v2965
      %v3153 = vmul.f32 %v3029, %v3152
      %v3154 = vrcp.pop %v2966
      %v3155 = vmul.f32 %v3030, %v3154
      %v3156 = vrcp.pop %v2967
      %v3157 = vmul.f32 %v3031, %v3156
      %v3158 = vrcp.pop %v2968
      %v3159 = vmul.f32 %v3032, %v3158
      %v3160 = vrcp.pop %v2969
      %v3161 = vmul.f32 %v3033, %v3160
      %v3162 = vlog2.pop %v2906
      %v3163 = vmul.f32 %v3162, 0.6931472
      %v3164 = vlog2.pop %v2907
      %v3165 = vmul.f32 %v3164, 0.6931472
      %v3166 = vlog2.pop %v2908
      %v3167 = vmul.f32 %v3166, 0.6931472
      %v3168 = vlog2.pop %v2909
      %v3169 = vmul.f32 %v3168, 0.6931472
      %v3170 = vlog2.pop %v2910
      %v3171 = vmul.f32 %v3170, 0.6931472
      %v3172 = vlog2.pop %v2911
      %v3173 = vmul.f32 %v3172, 0.6931472
      %v3174 = vlog2.pop %v2912
      %v3175 = vmul.f32 %v3174, 0.6931472
      %v3176 = vlog2.pop %v2913
      %v3177 = vmul.f32 %v3176, 0.6931472
      %v3178 = vlog2.pop %v2914
      %v3179 = vmul.f32 %v3178, 0.6931472
      %v3180 = vlog2.pop %v2915
      %v3181 = vmul.f32 %v3180, 0.6931472
      %v3182 = vlog2.pop %v2916
      %v3183 = vmul.f32 %v3182, 0.6931472
      %v3184 = vlog2.pop %v2917
      %v3185 = vmul.f32 %v3184, 0.6931472
      %v3186 = vlog2.pop %v2918
      %v3187 = vmul.f32 %v3186, 0.6931472
      %v3188 = vlog2.pop %v2919
      %v3189 = vmul.f32 %v3188, 0.6931472
      %v3190 = vlog2.pop %v2920
      %v3191 = vmul.f32 %v3190, 0.6931472
      %v3192 = vlog2.pop %v2921
      %v3193 = vmul.f32 %v3192, 0.6931472
      %v3194 = vlog2.pop %v2922
      %v3195 = vmul.f32 %v3194, 0.6931472
      %v3196 = vlog2.pop %v2923
      %v3197 = vmul.f32 %v3196, 0.6931472
      %v3198 = vlog2.pop %v2924
      %v3199 = vmul.f32 %v3198, 0.6931472
      %v3200 = vlog2.pop %v2925
      %v3201 = vmul.f32 %v3200, 0.6931472
      %v3202 = vlog2.pop %v2926
      %v3203 = vmul.f32 %v3202, 0.6931472
      %v3204 = vlog2.pop %v2927
      %v3205 = vmul.f32 %v3204, 0.6931472
      %v3206 = vlog2.pop %v2928
      %v3207 = vmul.f32 %v3206, 0.6931472
      %v3208 = vlog2.pop %v2929
      %v3209 = vmul.f32 %v3208, 0.6931472
      %v3210 = vlog2.pop %v2930
      %v3211 = vmul.f32 %v3210, 0.6931472
      %v3212 = vlog2.pop %v2931
      %v3213 = vmul.f32 %v3212, 0.6931472
      %v3214 = vlog2.pop %v2932
      %v3215 = vmul.f32 %v3214, 0.6931472
      %v3216 = vlog2.pop %v2933
      %v3217 = vmul.f32 %v3216, 0.6931472
      %v3218 = vlog2.pop %v2934
      %v3219 = vmul.f32 %v3218, 0.6931472
      %v3220 = vlog2.pop %v2935
      %v3221 = vmul.f32 %v3220, 0.6931472
      %v3222 = vlog2.pop %v2936
      %v3223 = vmul.f32 %v3222, 0.6931472
      %v3224 = vlog2.pop %v2937
      %v3225 = vmul.f32 %v3224, 0.6931472
      %v3226 = vlog2.pop %v2938
      %v3227 = vmul.f32 %v3226, 0.6931472
      %v3228 = vlog2.pop %v2939
      %v3229 = vmul.f32 %v3228, 0.6931472
      %v3230 = vlog2.pop %v2940
      %v3231 = vmul.f32 %v3230, 0.6931472
      %v3232 = vlog2.pop %v2941
      %v3233 = vmul.f32 %v3232, 0.6931472
      %v3234 = vlog2.pop %v2942
      %v3235 = vmul.f32 %v3234, 0.6931472
      %v3236 = vlog2.pop %v2943
      %v3237 = vmul.f32 %v3236, 0.6931472
      %v3238 = vlog2.pop %v2944
      %v3239 = vmul.f32 %v3238, 0.6931472
      %v3240 = vlog2.pop %v2945
      %v3241 = vmul.f32 %v3240, 0.6931472
      %v3242 = vlog2.pop %v2946
      %v3243 = vmul.f32 %v3242, 0.6931472
      %v3244 = vlog2.pop %v2947
      %v3245 = vmul.f32 %v3244, 0.6931472
      %v3246 = vlog2.pop %v2948
      %v3247 = vmul.f32 %v3246, 0.6931472
      %v3248 = vlog2.pop %v2949
      %v3249 = vmul.f32 %v3248, 0.6931472
      %v3250 = vlog2.pop %v2950
      %v3251 = vmul.f32 %v3250, 0.6931472
      %v3252 = vlog2.pop %v2951
      %v3253 = vmul.f32 %v3252, 0.6931472
      %v3254 = vlog2.pop %v2952
      %v3255 = vmul.f32 %v3254, 0.6931472
      %v3256 = vlog2.pop %v2953
      %v3257 = vmul.f32 %v3256, 0.6931472
      %v3258 = vlog2.pop %v2954
      %v3259 = vmul.f32 %v3258, 0.6931472
      %v3260 = vlog2.pop %v2955
      %v3261 = vmul.f32 %v3260, 0.6931472
      %v3262 = vlog2.pop %v2956
      %v3263 = vmul.f32 %v3262, 0.6931472
      %v3264 = vlog2.pop %v2957
      %v3265 = vmul.f32 %v3264, 0.6931472
      %v3266 = vlog2.pop %v2958
      %v3267 = vmul.f32 %v3266, 0.6931472
      %v3268 = vlog2.pop %v2959
      %v3269 = vmul.f32 %v3268, 0.6931472
      %v3270 = vlog2.pop %v2960
      %v3271 = vmul.f32 %v3270, 0.6931472
      %v3272 = vlog2.pop %v2961
      %v3273 = vmul.f32 %v3272, 0.6931472
      %v3274 = vlog2.pop %v2962
      %v3275 = vmul.f32 %v3274, 0.6931472
      %v3276 = vlog2.pop %v2963
      %v3277 = vmul.f32 %v3276, 0.6931472
      %v3278 = vlog2.pop %v2964
      %v3279 = vmul.f32 %v3278, 0.6931472
      %v3280 = vlog2.pop %v2965
      %v3281 = vmul.f32 %v3280, 0.6931472
      %v3282 = vlog2.pop %v2966
      %v3283 = vmul.f32 %v3282, 0.6931472
      %v3284 = vlog2.pop %v2967
      %v3285 = vmul.f32 %v3284, 0.6931472
      %v3286 = vlog2.pop %v2968
      %v3287 = vmul.f32 %v3286, 0.6931472
      %v3288 = vlog2.pop %v2969
      %v3289 = vmul.f32 %v3288, 0.6931472
      %v3290 = vadd.f32 %v3035, %v3163
      %v3291 = vadd.f32 %v3037, %v3165
      %v3292 = vadd.f32 %v3039, %v3167
      %v3293 = vadd.f32 %v3041, %v3169
      %v3294 = vadd.f32 %v3043, %v3171
      %v3295 = vadd.f32 %v3045, %v3173
      %v3296 = vadd.f32 %v3047, %v3175
      %v3297 = vadd.f32 %v3049, %v3177
      %v3298 = vadd.f32 %v3051, %v3179
      %v3299 = vadd.f32 %v3053, %v3181
      %v3300 = vadd.f32 %v3055, %v3183
      %v3301 = vadd.f32 %v3057, %v3185
      %v3302 = vadd.f32 %v3059, %v3187
      %v3303 = vadd.f32 %v3061, %v3189
      %v3304 = vadd.f32 %v3063, %v3191
      %v3305 = vadd.f32 %v3065, %v3193
      %v3306 = vadd.f32 %v3067, %v3195
      %v3307 = vadd.f32 %v3069, %v3197
      %v3308 = vadd.f32 %v3071, %v3199
      %v3309 = vadd.f32 %v3073, %v3201
      %v3310 = vadd.f32 %v3075, %v3203
      %v3311 = vadd.f32 %v3077, %v3205
      %v3312 = vadd.f32 %v3079, %v3207
      %v3313 = vadd.f32 %v3081, %v3209
      %v3314 = vadd.f32 %v3083, %v3211
      %v3315 = vadd.f32 %v3085, %v3213
      %v3316 = vadd.f32 %v3087, %v3215
      %v3317 = vadd.f32 %v3089, %v3217
      %v3318 = vadd.f32 %v3091, %v3219
      %v3319 = vadd.f32 %v3093, %v3221
      %v3320 = vadd.f32 %v3095, %v3223
      %v3321 = vadd.f32 %v3097, %v3225
      %v3322 = vadd.f32 %v3099, %v3227
      %v3323 = vadd.f32 %v3101, %v3229
      %v3324 = vadd.f32 %v3103, %v3231
      %v3325 = vadd.f32 %v3105, %v3233
      %v3326 = vadd.f32 %v3107, %v3235
      %v3327 = vadd.f32 %v3109, %v3237
      %v3328 = vadd.f32 %v3111, %v3239
      %v3329 = vadd.f32 %v3113, %v3241
      %v3330 = vadd.f32 %v3115, %v3243
      %v3331 = vadd.f32 %v3117, %v3245
      %v3332 = vadd.f32 %v3119, %v3247
      %v3333 = vadd.f32 %v3121, %v3249
      %v3334 = vadd.f32 %v3123, %v3251
      %v3335 = vadd.f32 %v3125, %v3253
      %v3336 = vadd.f32 %v3127, %v3255
      %v3337 = vadd.f32 %v3129, %v3257
      %v3338 = vadd.f32 %v3131, %v3259
      %v3339 = vadd.f32 %v3133, %v3261
      %v3340 = vadd.f32 %v3135, %v3263
      %v3341 = vadd.f32 %v3137, %v3265
      %v3342 = vadd.f32 %v3139, %v3267
      %v3343 = vadd.f32 %v3141, %v3269
      %v3344 = vadd.f32 %v3143, %v3271
      %v3345 = vadd.f32 %v3145, %v3273
      %v3346 = vadd.f32 %v3147, %v3275
      %v3347 = vadd.f32 %v3149, %v3277
      %v3348 = vadd.f32 %v3151, %v3279
      %v3349 = vadd.f32 %v3153, %v3281
      %v3350 = vadd.f32 %v3155, %v3283
      %v3351 = vadd.f32 %v3157, %v3285
      %v3352 = vadd.f32 %v3159, %v3287
      %v3353 = vadd.f32 %v3161, %v3289
      %v3354 = vld [vmem:[%s3] sm:$0xff]
      %v3355 = vld [vmem:[%s3 + $0x8] sm:$0xff]
      %v3356 = vld [vmem:[%s3 + $0x10] sm:$0xff]
      %v3357 = vld [vmem:[%s3 + $0x18] sm:$0xff]
      %v3358 = vld [vmem:[%s3 + $0x20] sm:$0xff]
      %v3359 = vld [vmem:[%s3 + $0x28] sm:$0xff]
      %v3360 = vld [vmem:[%s3 + $0x30] sm:$0xff]
      %v3361 = vld [vmem:[%s3 + $0x38] sm:$0xff]
      %v3362 = vld [vmem:[%s3 + $0x40] sm:$0xff]
      %v3363 = vld [vmem:[%s3 + $0x48] sm:$0xff]
      %v3364 = vld [vmem:[%s3 + $0x50] sm:$0xff]
      %v3365 = vld [vmem:[%s3 + $0x58] sm:$0xff]
      %v3366 = vld [vmem:[%s3 + $0x60] sm:$0xff]
      %v3367 = vld [vmem:[%s3 + $0x68] sm:$0xff]
      %v3368 = vld [vmem:[%s3 + $0x70] sm:$0xff]
      %v3369 = vld [vmem:[%s3 + $0x78] sm:$0xff]
      %3370 = vmatprep.subr.mxu0 0.0
      %3371 = vmatpush1.msra.mxu0 %v3369
      %3372 = vmatprep.subr.mxu0 0.0
      %3373 = vmatpush1.msra.mxu0 %v3368
      %3374 = vmatprep.subr.mxu0 0.0
      %3375 = vmatpush1.msra.mxu0 %v3367
      %3376 = vmatprep.subr.mxu0 0.0
      %3377 = vmatpush1.msra.mxu0 %v3366
      %3378 = vmatprep.subr.mxu0 0.0
      %3379 = vmatpush1.msra.mxu0 %v3365
      %3380 = vmatprep.subr.mxu0 0.0
      %3381 = vmatpush1.msra.mxu0 %v3364
      %3382 = vmatprep.subr.mxu0 0.0
      %3383 = vmatpush1.msra.mxu0 %v3363
      %3384 = vmatprep.subr.mxu0 0.0
      %3385 = vmatpush1.msra.mxu0 %v3362
      %3386 = vmatprep.subr.mxu0 0.0
      %3387 = vmatpush1.msra.mxu0 %v3361
      %3388 = vmatprep.subr.mxu0 0.0
      %3389 = vmatpush1.msra.mxu0 %v3360
      %3390 = vmatprep.subr.mxu0 0.0
      %3391 = vmatpush1.msra.mxu0 %v3359
      %3392 = vmatprep.subr.mxu0 0.0
      %3393 = vmatpush1.msra.mxu0 %v3358
      %3394 = vmatprep.subr.mxu0 0.0
      %3395 = vmatpush1.msra.mxu0 %v3357
      %3396 = vmatprep.subr.mxu0 0.0
      %3397 = vmatpush1.msra.mxu0 %v3356
      %3398 = vmatprep.subr.mxu0 0.0
      %3399 = vmatpush1.msra.mxu0 %v3355
      %3400 = vmatprep.subr.mxu0 0.0
      %3401 = vmatpush1.msra.mxu0 %v3354
      %3402 = vmatprep.subr.mxu0 0.0
      %3403 = vmatpush2.msra.mxu0 0.0
      %3404 = vmatprep.subr.mxu0 0.0
      %3405 = vmatpush2.msra.mxu0 0.0
      %3406 = vmatprep.subr.mxu0 0.0
      %3407 = vmatpush2.msra.mxu0 0.0
      %3408 = vmatprep.subr.mxu0 0.0
      %3409 = vmatpush2.msra.mxu0 0.0
      %3410 = vmatprep.subr.mxu0 0.0
      %3411 = vmatpush2.msra.mxu0 0.0
      %3412 = vmatprep.subr.mxu0 0.0
      %3413 = vmatpush2.msra.mxu0 0.0
      %3414 = vmatprep.subr.mxu0 0.0
      %3415 = vmatpush2.msra.mxu0 0.0
      %3416 = vmatprep.subr.mxu0 0.0
      %3417 = vmatpush2.msra.mxu0 0.0
      %3418 = vmatprep.subr.mxu0 0.0
      %3419 = vmatpush2.msra.mxu0 0.0
      %3420 = vmatprep.subr.mxu0 0.0
      %3421 = vmatpush2.msra.mxu0 0.0
      %3422 = vmatprep.subr.mxu0 0.0
      %3423 = vmatpush2.msra.mxu0 0.0
      %3424 = vmatprep.subr.mxu0 0.0
      %3425 = vmatpush2.msra.mxu0 0.0
      %3426 = vmatprep.subr.mxu0 0.0
      %3427 = vmatpush2.msra.mxu0 0.0
      %3428 = vmatprep.subr.mxu0 0.0
      %3429 = vmatpush2.msra.mxu0 0.0
      %3430 = vmatprep.subr.mxu0 0.0
      %3431 = vmatpush2.msra.mxu0 0.0
      %3432 = vmatprep.subr.mxu0 0.0
      %3433 = vmatpush2.msra.mxu0 0.0
      %3434 = vmatprep.mubr.f32.mxu0 0.0
      %3435 = vmatmul.mubr.f32.gmra.mxu0 %v3290
      %v3436 = vpop.f32.mrf.mxu0
      %v3437 = vadd.f32 0.0, %v3436
      %v3438 = vpop.f32.mrf.mxu0
      %3439 = vmatprep.mubr.f32.mxu0 0.0
      %3440 = vmatmul.mubr.f32.gmra.mxu0 %v3291
      %v3441 = vpop.f32.mrf.mxu0
      %v3442 = vadd.f32 0.0, %v3441
      %v3443 = vpop.f32.mrf.mxu0
      %3444 = vmatprep.mubr.f32.mxu0 0.0
      %3445 = vmatmul.mubr.f32.gmra.mxu0 %v3292
      %v3446 = vpop.f32.mrf.mxu0
      %v3447 = vadd.f32 0.0, %v3446
      %v3448 = vpop.f32.mrf.mxu0
      %3449 = vmatprep.mubr.f32.mxu0 0.0
      %3450 = vmatmul.mubr.f32.gmra.mxu0 %v3293
      %v3451 = vpop.f32.mrf.mxu0
      %v3452 = vadd.f32 0.0, %v3451
      %v3453 = vpop.f32.mrf.mxu0
      %3454 = vmatprep.mubr.f32.mxu0 0.0
      %3455 = vmatmul.mubr.f32.gmra.mxu0 %v3294
      %v3456 = vpop.f32.mrf.mxu0
      %v3457 = vadd.f32 0.0, %v3456
      %v3458 = vpop.f32.mrf.mxu0
      %3459 = vmatprep.mubr.f32.mxu0 0.0
      %3460 = vmatmul.mubr.f32.gmra.mxu0 %v3295
      %v3461 = vpop.f32.mrf.mxu0
      %v3462 = vadd.f32 0.0, %v3461
      %v3463 = vpop.f32.mrf.mxu0
      %3464 = vmatprep.mubr.f32.mxu0 0.0
      %3465 = vmatmul.mubr.f32.gmra.mxu0 %v3296
      %v3466 = vpop.f32.mrf.mxu0
      %v3467 = vadd.f32 0.0, %v3466
      %v3468 = vpop.f32.mrf.mxu0
      %3469 = vmatprep.mubr.f32.mxu0 0.0
      %3470 = vmatmul.mubr.f32.gmra.mxu0 %v3297
      %v3471 = vpop.f32.mrf.mxu0
      %v3472 = vadd.f32 0.0, %v3471
      %v3473 = vpop.f32.mrf.mxu0
      %3474 = vmatprep.mubr.f32.mxu0 0.0
      %3475 = vmatmul.mubr.f32.gmra.mxu0 %v3298
      %v3476 = vpop.f32.mrf.mxu0
      %v3477 = vadd.f32 0.0, %v3476
      %v3478 = vpop.f32.mrf.mxu0
      %3479 = vmatprep.mubr.f32.mxu0 0.0
      %3480 = vmatmul.mubr.f32.gmra.mxu0 %v3299
      %v3481 = vpop.f32.mrf.mxu0
      %v3482 = vadd.f32 0.0, %v3481
      %v3483 = vpop.f32.mrf.mxu0
      %3484 = vmatprep.mubr.f32.mxu0 0.0
      %3485 = vmatmul.mubr.f32.gmra.mxu0 %v3300
      %v3486 = vpop.f32.mrf.mxu0
      %v3487 = vadd.f32 0.0, %v3486
      %v3488 = vpop.f32.mrf.mxu0
      %3489 = vmatprep.mubr.f32.mxu0 0.0
      %3490 = vmatmul.mubr.f32.gmra.mxu0 %v3301
      %v3491 = vpop.f32.mrf.mxu0
      %v3492 = vadd.f32 0.0, %v3491
      %v3493 = vpop.f32.mrf.mxu0
      %3494 = vmatprep.mubr.f32.mxu0 0.0
      %3495 = vmatmul.mubr.f32.gmra.mxu0 %v3302
      %v3496 = vpop.f32.mrf.mxu0
      %v3497 = vadd.f32 0.0, %v3496
      %v3498 = vpop.f32.mrf.mxu0
      %3499 = vmatprep.mubr.f32.mxu0 0.0
      %3500 = vmatmul.mubr.f32.gmra.mxu0 %v3303
      %v3501 = vpop.f32.mrf.mxu0
      %v3502 = vadd.f32 0.0, %v3501
      %v3503 = vpop.f32.mrf.mxu0
      %3504 = vmatprep.mubr.f32.mxu0 0.0
      %3505 = vmatmul.mubr.f32.gmra.mxu0 %v3304
      %v3506 = vpop.f32.mrf.mxu0
      %v3507 = vadd.f32 0.0, %v3506
      %v3508 = vpop.f32.mrf.mxu0
      %3509 = vmatprep.mubr.f32.mxu0 0.0
      %3510 = vmatmul.mubr.f32.gmra.mxu0 %v3305
      %v3511 = vpop.f32.mrf.mxu0
      %v3512 = vadd.f32 0.0, %v3511
      %v3513 = vpop.f32.mrf.mxu0
      %3514 = vmatprep.mubr.f32.mxu0 0.0
      %3515 = vmatmul.mubr.f32.gmra.mxu0 %v3306
      %v3516 = vpop.f32.mrf.mxu0
      %v3517 = vadd.f32 0.0, %v3516
      %v3518 = vpop.f32.mrf.mxu0
      %3519 = vmatprep.mubr.f32.mxu0 0.0
      %3520 = vmatmul.mubr.f32.gmra.mxu0 %v3307
      %v3521 = vpop.f32.mrf.mxu0
      %v3522 = vadd.f32 0.0, %v3521
      %v3523 = vpop.f32.mrf.mxu0
      %3524 = vmatprep.mubr.f32.mxu0 0.0
      %3525 = vmatmul.mubr.f32.gmra.mxu0 %v3308
      %v3526 = vpop.f32.mrf.mxu0
      %v3527 = vadd.f32 0.0, %v3526
      %v3528 = vpop.f32.mrf.mxu0
      %3529 = vmatprep.mubr.f32.mxu0 0.0
      %3530 = vmatmul.mubr.f32.gmra.mxu0 %v3309
      %v3531 = vpop.f32.mrf.mxu0
      %v3532 = vadd.f32 0.0, %v3531
      %v3533 = vpop.f32.mrf.mxu0
      %3534 = vmatprep.mubr.f32.mxu0 0.0
      %3535 = vmatmul.mubr.f32.gmra.mxu0 %v3310
      %v3536 = vpop.f32.mrf.mxu0
      %v3537 = vadd.f32 0.0, %v3536
      %v3538 = vpop.f32.mrf.mxu0
      %3539 = vmatprep.mubr.f32.mxu0 0.0
      %3540 = vmatmul.mubr.f32.gmra.mxu0 %v3311
      %v3541 = vpop.f32.mrf.mxu0
      %v3542 = vadd.f32 0.0, %v3541
      %v3543 = vpop.f32.mrf.mxu0
      %3544 = vmatprep.mubr.f32.mxu0 0.0
      %3545 = vmatmul.mubr.f32.gmra.mxu0 %v3312
      %v3546 = vpop.f32.mrf.mxu0
      %v3547 = vadd.f32 0.0, %v3546
      %v3548 = vpop.f32.mrf.mxu0
      %3549 = vmatprep.mubr.f32.mxu0 0.0
      %3550 = vmatmul.mubr.f32.gmra.mxu0 %v3313
      %v3551 = vpop.f32.mrf.mxu0
      %v3552 = vadd.f32 0.0, %v3551
      %v3553 = vpop.f32.mrf.mxu0
      %3554 = vmatprep.mubr.f32.mxu0 0.0
      %3555 = vmatmul.mubr.f32.gmra.mxu0 %v3314
      %v3556 = vpop.f32.mrf.mxu0
      %v3557 = vadd.f32 0.0, %v3556
      %v3558 = vpop.f32.mrf.mxu0
      %3559 = vmatprep.mubr.f32.mxu0 0.0
      %3560 = vmatmul.mubr.f32.gmra.mxu0 %v3315
      %v3561 = vpop.f32.mrf.mxu0
      %v3562 = vadd.f32 0.0, %v3561
      %v3563 = vpop.f32.mrf.mxu0
      %3564 = vmatprep.mubr.f32.mxu0 0.0
      %3565 = vmatmul.mubr.f32.gmra.mxu0 %v3316
      %v3566 = vpop.f32.mrf.mxu0
      %v3567 = vadd.f32 0.0, %v3566
      %v3568 = vpop.f32.mrf.mxu0
      %3569 = vmatprep.mubr.f32.mxu0 0.0
      %3570 = vmatmul.mubr.f32.gmra.mxu0 %v3317
      %v3571 = vpop.f32.mrf.mxu0
      %v3572 = vadd.f32 0.0, %v3571
      %v3573 = vpop.f32.mrf.mxu0
      %3574 = vmatprep.mubr.f32.mxu0 0.0
      %3575 = vmatmul.mubr.f32.gmra.mxu0 %v3318
      %v3576 = vpop.f32.mrf.mxu0
      %v3577 = vadd.f32 0.0, %v3576
      %v3578 = vpop.f32.mrf.mxu0
      %3579 = vmatprep.mubr.f32.mxu0 0.0
      %3580 = vmatmul.mubr.f32.gmra.mxu0 %v3319
      %v3581 = vpop.f32.mrf.mxu0
      %v3582 = vadd.f32 0.0, %v3581
      %v3583 = vpop.f32.mrf.mxu0
      %3584 = vmatprep.mubr.f32.mxu0 0.0
      %3585 = vmatmul.mubr.f32.gmra.mxu0 %v3320
      %v3586 = vpop.f32.mrf.mxu0
      %v3587 = vadd.f32 0.0, %v3586
      %v3588 = vpop.f32.mrf.mxu0
      %3589 = vmatprep.mubr.f32.mxu0 0.0
      %3590 = vmatmul.mubr.f32.gmra.mxu0 %v3321
      %v3591 = vpop.f32.mrf.mxu0
      %v3592 = vadd.f32 0.0, %v3591
      %v3593 = vpop.f32.mrf.mxu0
      %3594 = vmatprep.mubr.f32.mxu0 0.0
      %3595 = vmatmul.mubr.f32.gmra.mxu0 %v3322
      %v3596 = vpop.f32.mrf.mxu0
      %v3597 = vadd.f32 0.0, %v3596
      %v3598 = vpop.f32.mrf.mxu0
      %3599 = vmatprep.mubr.f32.mxu0 0.0
      %3600 = vmatmul.mubr.f32.gmra.mxu0 %v3323
      %v3601 = vpop.f32.mrf.mxu0
      %v3602 = vadd.f32 0.0, %v3601
      %v3603 = vpop.f32.mrf.mxu0
      %3604 = vmatprep.mubr.f32.mxu0 0.0
      %3605 = vmatmul.mubr.f32.gmra.mxu0 %v3324
      %v3606 = vpop.f32.mrf.mxu0
      %v3607 = vadd.f32 0.0, %v3606
      %v3608 = vpop.f32.mrf.mxu0
      %3609 = vmatprep.mubr.f32.mxu0 0.0
      %3610 = vmatmul.mubr.f32.gmra.mxu0 %v3325
      %v3611 = vpop.f32.mrf.mxu0
      %v3612 = vadd.f32 0.0, %v3611
      %v3613 = vpop.f32.mrf.mxu0
      %3614 = vmatprep.mubr.f32.mxu0 0.0
      %3615 = vmatmul.mubr.f32.gmra.mxu0 %v3326
      %v3616 = vpop.f32.mrf.mxu0
      %v3617 = vadd.f32 0.0, %v3616
      %v3618 = vpop.f32.mrf.mxu0
      %3619 = vmatprep.mubr.f32.mxu0 0.0
      %3620 = vmatmul.mubr.f32.gmra.mxu0 %v3327
      %v3621 = vpop.f32.mrf.mxu0
      %v3622 = vadd.f32 0.0, %v3621
      %v3623 = vpop.f32.mrf.mxu0
      %3624 = vmatprep.mubr.f32.mxu0 0.0
      %3625 = vmatmul.mubr.f32.gmra.mxu0 %v3328
      %v3626 = vpop.f32.mrf.mxu0
      %v3627 = vadd.f32 0.0, %v3626
      %v3628 = vpop.f32.mrf.mxu0
      %3629 = vmatprep.mubr.f32.mxu0 0.0
      %3630 = vmatmul.mubr.f32.gmra.mxu0 %v3329
      %v3631 = vpop.f32.mrf.mxu0
      %v3632 = vadd.f32 0.0, %v3631
      %v3633 = vpop.f32.mrf.mxu0
      %3634 = vmatprep.mubr.f32.mxu0 0.0
      %3635 = vmatmul.mubr.f32.gmra.mxu0 %v3330
      %v3636 = vpop.f32.mrf.mxu0
      %v3637 = vadd.f32 0.0, %v3636
      %v3638 = vpop.f32.mrf.mxu0
      %3639 = vmatprep.mubr.f32.mxu0 0.0
      %3640 = vmatmul.mubr.f32.gmra.mxu0 %v3331
      %v3641 = vpop.f32.mrf.mxu0
      %v3642 = vadd.f32 0.0, %v3641
      %v3643 = vpop.f32.mrf.mxu0
      %3644 = vmatprep.mubr.f32.mxu0 0.0
      %3645 = vmatmul.mubr.f32.gmra.mxu0 %v3332
      %v3646 = vpop.f32.mrf.mxu0
      %v3647 = vadd.f32 0.0, %v3646
      %v3648 = vpop.f32.mrf.mxu0
      %3649 = vmatprep.mubr.f32.mxu0 0.0
      %3650 = vmatmul.mubr.f32.gmra.mxu0 %v3333
      %v3651 = vpop.f32.mrf.mxu0
      %v3652 = vadd.f32 0.0, %v3651
      %v3653 = vpop.f32.mrf.mxu0
      %3654 = vmatprep.mubr.f32.mxu0 0.0
      %3655 = vmatmul.mubr.f32.gmra.mxu0 %v3334
      %v3656 = vpop.f32.mrf.mxu0
      %v3657 = vadd.f32 0.0, %v3656
      %v3658 = vpop.f32.mrf.mxu0
      %3659 = vmatprep.mubr.f32.mxu0 0.0
      %3660 = vmatmul.mubr.f32.gmra.mxu0 %v3335
      %v3661 = vpop.f32.mrf.mxu0
      %v3662 = vadd.f32 0.0, %v3661
      %v3663 = vpop.f32.mrf.mxu0
      %3664 = vmatprep.mubr.f32.mxu0 0.0
      %3665 = vmatmul.mubr.f32.gmra.mxu0 %v3336
      %v3666 = vpop.f32.mrf.mxu0
      %v3667 = vadd.f32 0.0, %v3666
      %v3668 = vpop.f32.mrf.mxu0
      %3669 = vmatprep.mubr.f32.mxu0 0.0
      %3670 = vmatmul.mubr.f32.gmra.mxu0 %v3337
      %v3671 = vpop.f32.mrf.mxu0
      %v3672 = vadd.f32 0.0, %v3671
      %v3673 = vpop.f32.mrf.mxu0
      %3674 = vmatprep.mubr.f32.mxu0 0.0
      %3675 = vmatmul.mubr.f32.gmra.mxu0 %v3338
      %v3676 = vpop.f32.mrf.mxu0
      %v3677 = vadd.f32 0.0, %v3676
      %v3678 = vpop.f32.mrf.mxu0
      %3679 = vmatprep.mubr.f32.mxu0 0.0
      %3680 = vmatmul.mubr.f32.gmra.mxu0 %v3339
      %v3681 = vpop.f32.mrf.mxu0
      %v3682 = vadd.f32 0.0, %v3681
      %v3683 = vpop.f32.mrf.mxu0
      %3684 = vmatprep.mubr.f32.mxu0 0.0
      %3685 = vmatmul.mubr.f32.gmra.mxu0 %v3340
      %v3686 = vpop.f32.mrf.mxu0
      %v3687 = vadd.f32 0.0, %v3686
      %v3688 = vpop.f32.mrf.mxu0
      %3689 = vmatprep.mubr.f32.mxu0 0.0
      %3690 = vmatmul.mubr.f32.gmra.mxu0 %v3341
      %v3691 = vpop.f32.mrf.mxu0
      %v3692 = vadd.f32 0.0, %v3691
      %v3693 = vpop.f32.mrf.mxu0
      %3694 = vmatprep.mubr.f32.mxu0 0.0
      %3695 = vmatmul.mubr.f32.gmra.mxu0 %v3342
      %v3696 = vpop.f32.mrf.mxu0
      %v3697 = vadd.f32 0.0, %v3696
      %v3698 = vpop.f32.mrf.mxu0
      %3699 = vmatprep.mubr.f32.mxu0 0.0
      %3700 = vmatmul.mubr.f32.gmra.mxu0 %v3343
      %v3701 = vpop.f32.mrf.mxu0
      %v3702 = vadd.f32 0.0, %v3701
      %v3703 = vpop.f32.mrf.mxu0
      %3704 = vmatprep.mubr.f32.mxu0 0.0
      %3705 = vmatmul.mubr.f32.gmra.mxu0 %v3344
      %v3706 = vpop.f32.mrf.mxu0
      %v3707 = vadd.f32 0.0, %v3706
      %v3708 = vpop.f32.mrf.mxu0
      %3709 = vmatprep.mubr.f32.mxu0 0.0
      %3710 = vmatmul.mubr.f32.gmra.mxu0 %v3345
      %v3711 = vpop.f32.mrf.mxu0
      %v3712 = vadd.f32 0.0, %v3711
      %v3713 = vpop.f32.mrf.mxu0
      %3714 = vmatprep.mubr.f32.mxu0 0.0
      %3715 = vmatmul.mubr.f32.gmra.mxu0 %v3346
      %v3716 = vpop.f32.mrf.mxu0
      %v3717 = vadd.f32 0.0, %v3716
      %v3718 = vpop.f32.mrf.mxu0
      %3719 = vmatprep.mubr.f32.mxu0 0.0
      %3720 = vmatmul.mubr.f32.gmra.mxu0 %v3347
      %v3721 = vpop.f32.mrf.mxu0
      %v3722 = vadd.f32 0.0, %v3721
      %v3723 = vpop.f32.mrf.mxu0
      %3724 = vmatprep.mubr.f32.mxu0 0.0
      %3725 = vmatmul.mubr.f32.gmra.mxu0 %v3348
      %v3726 = vpop.f32.mrf.mxu0
      %v3727 = vadd.f32 0.0, %v3726
      %v3728 = vpop.f32.mrf.mxu0
      %3729 = vmatprep.mubr.f32.mxu0 0.0
      %3730 = vmatmul.mubr.f32.gmra.mxu0 %v3349
      %v3731 = vpop.f32.mrf.mxu0
      %v3732 = vadd.f32 0.0, %v3731
      %v3733 = vpop.f32.mrf.mxu0
      %3734 = vmatprep.mubr.f32.mxu0 0.0
      %3735 = vmatmul.mubr.f32.gmra.mxu0 %v3350
      %v3736 = vpop.f32.mrf.mxu0
      %v3737 = vadd.f32 0.0, %v3736
      %v3738 = vpop.f32.mrf.mxu0
      %3739 = vmatprep.mubr.f32.mxu0 0.0
      %3740 = vmatmul.mubr.f32.gmra.mxu0 %v3351
      %v3741 = vpop.f32.mrf.mxu0
      %v3742 = vadd.f32 0.0, %v3741
      %v3743 = vpop.f32.mrf.mxu0
      %3744 = vmatprep.mubr.f32.mxu0 0.0
      %3745 = vmatmul.mubr.f32.gmra.mxu0 %v3352
      %v3746 = vpop.f32.mrf.mxu0
      %v3747 = vadd.f32 0.0, %v3746
      %v3748 = vpop.f32.mrf.mxu0
      %3749 = vmatprep.mubr.f32.mxu0 0.0
      %3750 = vmatmul.mubr.f32.gmra.mxu0 %v3353
      %v3751 = vpop.f32.mrf.mxu0
      %v3752 = vadd.f32 0.0, %v3751
      %v3753 = vpop.f32.mrf.mxu0
      %3754 = vdwg.mxu0
      %vm3755 = vcmask 31744
      %3756 = vst.msk [vmem:[%s199] sm:$0xff] %vm3755, %v3437
      %3757 = vst.msk [vmem:[%s199 + $0x8] sm:$0xff] %vm3755, %v3442
      %3758 = vst.msk [vmem:[%s199 + $0x10] sm:$0xff] %vm3755, %v3447
      %3759 = vst.msk [vmem:[%s199 + $0x18] sm:$0xff] %vm3755, %v3452
      %3760 = vst.msk [vmem:[%s199 + $0x20] sm:$0xff] %vm3755, %v3457
      %3761 = vst.msk [vmem:[%s199 + $0x28] sm:$0xff] %vm3755, %v3462
      %3762 = vst.msk [vmem:[%s199 + $0x30] sm:$0xff] %vm3755, %v3467
      %3763 = vst.msk [vmem:[%s199 + $0x38] sm:$0xff] %vm3755, %v3472
      %3764 = vst.msk [vmem:[%s199 + $0x40] sm:$0xff] %vm3755, %v3477
      %3765 = vst.msk [vmem:[%s199 + $0x48] sm:$0xff] %vm3755, %v3482
      %3766 = vst.msk [vmem:[%s199 + $0x50] sm:$0xff] %vm3755, %v3487
      %3767 = vst.msk [vmem:[%s199 + $0x58] sm:$0xff] %vm3755, %v3492
      %3768 = vst.msk [vmem:[%s199 + $0x60] sm:$0xff] %vm3755, %v3497
      %3769 = vst.msk [vmem:[%s199 + $0x68] sm:$0xff] %vm3755, %v3502
      %3770 = vst.msk [vmem:[%s199 + $0x70] sm:$0xff] %vm3755, %v3507
      %3771 = vst.msk [vmem:[%s199 + $0x78] sm:$0xff] %vm3755, %v3512
      %3772 = vst.msk [vmem:[%s199 + $0x80] sm:$0xff] %vm3755, %v3517
      %3773 = vst.msk [vmem:[%s199 + $0x88] sm:$0xff] %vm3755, %v3522
      %3774 = vst.msk [vmem:[%s199 + $0x90] sm:$0xff] %vm3755, %v3527
      %3775 = vst.msk [vmem:[%s199 + $0x98] sm:$0xff] %vm3755, %v3532
      %3776 = vst.msk [vmem:[%s199 + $0xa0] sm:$0xff] %vm3755, %v3537
      %3777 = vst.msk [vmem:[%s199 + $0xa8] sm:$0xff] %vm3755, %v3542
      %3778 = vst.msk [vmem:[%s199 + $0xb0] sm:$0xff] %vm3755, %v3547
      %3779 = vst.msk [vmem:[%s199 + $0xb8] sm:$0xff] %vm3755, %v3552
      %3780 = vst.msk [vmem:[%s199 + $0xc0] sm:$0xff] %vm3755, %v3557
      %3781 = vst.msk [vmem:[%s199 + $0xc8] sm:$0xff] %vm3755, %v3562
      %3782 = vst.msk [vmem:[%s199 + $0xd0] sm:$0xff] %vm3755, %v3567
      %3783 = vst.msk [vmem:[%s199 + $0xd8] sm:$0xff] %vm3755, %v3572
      %3784 = vst.msk [vmem:[%s199 + $0xe0] sm:$0xff] %vm3755, %v3577
      %3785 = vst.msk [vmem:[%s199 + $0xe8] sm:$0xff] %vm3755, %v3582
      %3786 = vst.msk [vmem:[%s199 + $0xf0] sm:$0xff] %vm3755, %v3587
      %3787 = vst.msk [vmem:[%s199 + $0xf8] sm:$0xff] %vm3755, %v3592
      %3788 = vst.msk [vmem:[%s199 + $0x100] sm:$0xff] %vm3755, %v3597
      %3789 = vst.msk [vmem:[%s199 + $0x108] sm:$0xff] %vm3755, %v3602
      %3790 = vst.msk [vmem:[%s199 + $0x110] sm:$0xff] %vm3755, %v3607
      %3791 = vst.msk [vmem:[%s199 + $0x118] sm:$0xff] %vm3755, %v3612
      %3792 = vst.msk [vmem:[%s199 + $0x120] sm:$0xff] %vm3755, %v3617
      %3793 = vst.msk [vmem:[%s199 + $0x128] sm:$0xff] %vm3755, %v3622
      %3794 = vst.msk [vmem:[%s199 + $0x130] sm:$0xff] %vm3755, %v3627
      %3795 = vst.msk [vmem:[%s199 + $0x138] sm:$0xff] %vm3755, %v3632
      %3796 = vst.msk [vmem:[%s199 + $0x140] sm:$0xff] %vm3755, %v3637
      %3797 = vst.msk [vmem:[%s199 + $0x148] sm:$0xff] %vm3755, %v3642
      %3798 = vst.msk [vmem:[%s199 + $0x150] sm:$0xff] %vm3755, %v3647
      %3799 = vst.msk [vmem:[%s199 + $0x158] sm:$0xff] %vm3755, %v3652
      %3800 = vst.msk [vmem:[%s199 + $0x160] sm:$0xff] %vm3755, %v3657
      %3801 = vst.msk [vmem:[%s199 + $0x168] sm:$0xff] %vm3755, %v3662
      %3802 = vst.msk [vmem:[%s199 + $0x170] sm:$0xff] %vm3755, %v3667
      %3803 = vst.msk [vmem:[%s199 + $0x178] sm:$0xff] %vm3755, %v3672
      %3804 = vst.msk [vmem:[%s199 + $0x180] sm:$0xff] %vm3755, %v3677
      %3805 = vst.msk [vmem:[%s199 + $0x188] sm:$0xff] %vm3755, %v3682
      %3806 = vst.msk [vmem:[%s199 + $0x190] sm:$0xff] %vm3755, %v3687
      %3807 = vst.msk [vmem:[%s199 + $0x198] sm:$0xff] %vm3755, %v3692
      %3808 = vst.msk [vmem:[%s199 + $0x1a0] sm:$0xff] %vm3755, %v3697
      %3809 = vst.msk [vmem:[%s199 + $0x1a8] sm:$0xff] %vm3755, %v3702
      %3810 = vst.msk [vmem:[%s199 + $0x1b0] sm:$0xff] %vm3755, %v3707
      %3811 = vst.msk [vmem:[%s199 + $0x1b8] sm:$0xff] %vm3755, %v3712
      %3812 = vst.msk [vmem:[%s199 + $0x1c0] sm:$0xff] %vm3755, %v3717
      %3813 = vst.msk [vmem:[%s199 + $0x1c8] sm:$0xff] %vm3755, %v3722
      %3814 = vst.msk [vmem:[%s199 + $0x1d0] sm:$0xff] %vm3755, %v3727
      %3815 = vst.msk [vmem:[%s199 + $0x1d8] sm:$0xff] %vm3755, %v3732
      %3816 = vst.msk [vmem:[%s199 + $0x1e0] sm:$0xff] %vm3755, %v3737
      %3817 = vst.msk [vmem:[%s199 + $0x1e8] sm:$0xff] %vm3755, %v3742
      %3818 = vst.msk [vmem:[%s199 + $0x1f0] sm:$0xff] %vm3755, %v3747
      %3819 = vst.msk [vmem:[%s199 + $0x1f8] sm:$0xff] %vm3755, %v3752
      %s3820 = smul.u32 64, %s15
      %p3821 = scmp.lt.s32.totalorder %s3820, 127
      %s3822 = scalar_select %p3821, %s3820, 127
      %s3823 = smul.addr %s3822, 8
      %s3824 = scalar_lea.vmem %s4, %s3823
      // Predicated region
      $region37: #{unet_proto_forward.3} parent=35 // pred_check
        %p3825 = pneg %p122
      $region38: #{unet_proto_forward.3} parent=35 // pred_check_branch
        %3827 = sbr.rel (%p3825) target = $region40
      $region39: #{unet_proto_forward.3} parent=35 // pred_region
        %s3828 = smul.u32 64, %s15
      $region40: #{unet_proto_forward.3} parent=35 // pred_fallthru
        _
    $region36: #{unet_proto_forward.3} parent=5 // pred_fallthru
      _
    %p3829 = scmp.le.s32.totalorder 2, %s10
    // Predicated region
    $region41: #{unet_proto_forward.3} parent=5 // pred_check
      %p3830 = pneg %p3829
    $region42: #{unet_proto_forward.3} parent=5 // pred_check_branch
      %3832 = sbr.rel (%p3830) target = $region44
    $region43: #{unet_proto_forward.3} parent=5 // pred_region
      %s3833 = ssub.s32 %s10, 2
      // Predicated region
      $region45: #{unet_proto_forward.3} parent=43 // pred_check
        %p3834 = pneg %p128
      $region46: #{unet_proto_forward.3} parent=43 // pred_check_branch
        %3836 = sbr.rel (%p3834) target = $region48
      $region47: #{unet_proto_forward.3} parent=43 // pred_region
        %s3837 = smul.u32 64, %s16
        %p3838 = scmp.lt.s32.totalorder %s3837, 127
        %s3839 = scalar_select %p3838, %s3837, 127
        %s3840 = smul.addr %s3839, 8
        %s3841 = scalar_lea.vmem %s4, %s3840
      $region48: #{unet_proto_forward.3} parent=43 // pred_fallthru
        _
    $region44: #{unet_proto_forward.3} parent=5 // pred_fallthru
      _
  $region6: #{unet_proto_forward.3} parent=0 // loop_footer
    %s14 = sadd.s32 1, %s10
  $region7: #{unet_proto_forward.3} parent=0 // loop_footer_branch
    %9 = sbr.rel target = $region3
  $region8: #{unet_proto_forward.3} parent=0 // loop_exit
    _

// kernel: unet_proto_forward.2
$region0: #{unet_proto_forward.2}
  #allocation0 [shape = 'u32[]', space=smem, size = 0x4, offset = 0x4, fixed_abs, tag = 'smem constant byte address 0x4 - core index']
  #allocation1 [shape = 'u32[144,128]{1,0:T(1,128)}', space=vmem, size = 0x12000, scoped, tag = 'internal scratch']
  %s0 = inlined_call_operand.vmem [shape: f32[1024,3], index: 0, kind: input, shape index: {}]
  %s1 = inlined_call_operand.vmem [shape: f32[1,64], index: 1, kind: input, shape index: {}]
  %s2 = inlined_call_operand.vmem [shape: f32[1,64], index: 2, kind: input, shape index: {}]
  %s3 = inlined_call_operand.vmem [shape: f32[64,52], index: 3, kind: input, shape index: {}]
  %s4 = inlined_call_operand.vmem [shape: f32[1,52], index: 4, kind: input, shape index: {}]
  %s5 = inlined_call_operand.vmem [shape: f32[16,32], index: 5, kind: input, shape index: {}]
  %s6 = inlined_call_operand.vmem [shape: f32[1,32], index: 6, kind: input, shape index: {}]
  %s7 = inlined_call_operand.vmem [shape: f32[32,32], index: 7, kind: input, shape index: {}]
  %s8 = inlined_call_operand.vmem [shape: f32[1,32], index: 8, kind: input, shape index: {}]
  %s9 = inlined_call_operand.vmem [shape: f32[1024,68], index: 9, kind: output, shape index: {0}]
  %s10 = inlined_call_operand.vmem [shape: f32[2,4,32], index: 10, kind: output, shape index: {1}]
  %s11 = inlined_call_operand.vmem [shape: f32[2,4,32], index: 11, kind: output, shape index: {2}]
  %s12 = inlined_call_operand.vmem [shape: f32[2,1,4], index: 12, kind: output, shape index: {3}]
  %13 = xla_tuple %s9, %s10, %s11, %s12
  %s14 = sld [smem:[#allocation0]]
  $region97: #{unet_proto_forward.2} parent=0
    _
  %s16 = ssub.s32 1, %s14
  %s17 = scalar_select 0, %s16, %s14
  loop: start=0, step=1, limit=4
  $region2: #{unet_proto_forward.2} parent=0 // loop_pre_header
    _
  $region3: #{unet_proto_forward.2} parent=0 // loop_header
    %s19 = sphi 0, %s23
    %p20 = scmp.ge.s32.totalorder %s19, 4
    %s26 = sphi 0, %s38
    %s27 = sphi 0, %s34
    %s28 = sphi 0, %s26
    %s29 = sphi 0, %s27
    %s30 = sphi 0, %s28
    %s31 = sphi 0, %s29
    %s43 = sphi 0, %s45
    %s46 = sphi 0, %s43
    %s47 = sphi 0, %s46
    %s63 = sphi 0, %s47
    %s67 = sphi 0, %s67
    %s69 = sphi 0, %s67
    %s70 = sphi 0, %s69
    %s84 = sphi 0, %s70
    %s88 = sphi 0, %s88
    %s90 = sphi 0, %s88
    %s91 = sphi 0, %s90
    %s105 = sphi 0, %s91
    %s109 = sphi 0, %s109
    %s111 = sphi 0, %s109
    %s112 = sphi 0, %s111
    %s126 = sphi 0, %s112
    %s130 = sphi 0, %s130
    %s132 = sphi 0, %s130
    %s133 = sphi 0, %s132
    %s147 = sphi 0, %s133
    %s151 = sphi 0, %s151
    %s153 = sphi 0, %s151
    %s154 = sphi 0, %s153
    %s168 = sphi 0, %s154
    %s172 = sphi 0, %s172
    %s174 = sphi 0, %s172
    %s175 = sphi 0, %s174
    %s189 = sphi 0, %s175
    %s193 = sphi 0, %s193
    %s195 = sphi 0, %s193
    %s196 = sphi 0, %s195
    %s210 = sphi 0, %s196
    %s214 = sphi 0, %s214
    %s216 = sphi 0, %s214
    %s217 = sphi 0, %s216
    %s231 = sphi 0, %s217
    %s239 = sphi 0, %s241
    %s242 = sphi 0, %s239
    %s243 = sphi 0, %s242
    %s259 = sphi 0, %s243
    %s265 = sphi 0, %s267
    %s268 = sphi 0, %s265
    %s269 = sphi 0, %s268
    %s285 = sphi 0, %s269
    %s291 = sphi 0, %s293
    %s294 = sphi 0, %s291
    %s295 = sphi 0, %s294
    %s311 = sphi 0, %s295
    %s317 = sphi 0, %s319
    %s320 = sphi 0, %s317
    %s321 = sphi 0, %s320
    %s337 = sphi 0, %s321
  $region4: #{unet_proto_forward.2} parent=0 // loop_header_branch
    %22 = sbr.rel (%p20) target = $region8
  $region5: #{unet_proto_forward.2} parent=0 // loop_body
    %s24 = ssub.s32 %s19, 1
    %s25 = ssub.s32 %s19, 2
    %s32 = sadd.s32 1, %s27
    %p33 = scmp.ge.s32.totalorder %s32, 1
    %s34 = scalar_select %p33, 0, %s32
    %s35 = sadd.s32 1, %s26
    %s36 = scalar_select %p33, %s35, %s26
    %p37 = scmp.ge.s32.totalorder %s36, 2
    %s38 = scalar_select %p37, 0, %s36
    %s39 = sadd.s32 %s26, %s27
    %s40 = sadd.s32 %s38, %s34
    %s41 = ssub.s32 %s39, %s40
    %p42 = scmp.eq.s32.totalorder %s41, 0
    %s44 = sadd.s32 %s43, 1
    %s45 = scalar_select %p42, %s43, %s44
    %p48 = pneg %p42
    %p49 = scmp.eq.s32.totalorder %s19, 1
    %p50 = por %p48, %p49
    %p51 = scmp.ne.s32.totalorder %s43, %s46
    %p52 = scmp.eq.s32.totalorder %s19, 0
    %p53 = por %p51, %p52
    %p54 = scmp.ne.s32.totalorder %s43, %s46
    %p55 = scmp.eq.s32.totalorder %s24, 1
    %p56 = por %p54, %p55
    %p57 = scmp.ne.s32.totalorder %s46, %s47
    %p58 = scmp.eq.s32.totalorder %s24, 0
    %p59 = por %p57, %p58
    %p60 = scmp.ne.s32.totalorder %s46, %s47
    %p61 = scmp.eq.s32.totalorder %s25, 1
    %p62 = por %p60, %p61
    %p64 = scmp.ne.s32.totalorder %s47, %s63
    %p65 = scmp.eq.s32.totalorder %s25, 0
    %p66 = por %p64, %p65
    %s68 = sadd.s32 %s67, 1
    %p71 = scmp.eq.s32.totalorder %s19, 1
    %p72 = scmp.ne.s32.totalorder %s67, %s69
    %p73 = scmp.eq.s32.totalorder %s19, 0
    %p74 = por %p72, %p73
    %p75 = scmp.ne.s32.totalorder %s67, %s69
    %p76 = scmp.eq.s32.totalorder %s24, 1
    %p77 = por %p75, %p76
    %p78 = scmp.ne.s32.totalorder %s69, %s70
    %p79 = scmp.eq.s32.totalorder %s24, 0
    %p80 = por %p78, %p79
    %p81 = scmp.ne.s32.totalorder %s69, %s70
    %p82 = scmp.eq.s32.totalorder %s25, 1
    %p83 = por %p81, %p82
    %p85 = scmp.ne.s32.totalorder %s70, %s84
    %p86 = scmp.eq.s32.totalorder %s25, 0
    %p87 = por %p85, %p86
    %s89 = sadd.s32 %s88, 1
    %p92 = scmp.eq.s32.totalorder %s19, 1
    %p93 = scmp.ne.s32.totalorder %s88, %s90
    %p94 = scmp.eq.s32.totalorder %s19, 0
    %p95 = por %p93, %p94
    %p96 = scmp.ne.s32.totalorder %s88, %s90
    %p97 = scmp.eq.s32.totalorder %s24, 1
    %p98 = por %p96, %p97
    %p99 = scmp.ne.s32.totalorder %s90, %s91
    %p100 = scmp.eq.s32.totalorder %s24, 0
    %p101 = por %p99, %p100
    %p102 = scmp.ne.s32.totalorder %s90, %s91
    %p103 = scmp.eq.s32.totalorder %s25, 1
    %p104 = por %p102, %p103
    %p106 = scmp.ne.s32.totalorder %s91, %s105
    %p107 = scmp.eq.s32.totalorder %s25, 0
    %p108 = por %p106, %p107
    %s110 = sadd.s32 %s109, 1
    %p113 = scmp.eq.s32.totalorder %s19, 1
    %p114 = scmp.ne.s32.totalorder %s109, %s111
    %p115 = scmp.eq.s32.totalorder %s19, 0
    %p116 = por %p114, %p115
    %p117 = scmp.ne.s32.totalorder %s109, %s111
    %p118 = scmp.eq.s32.totalorder %s24, 1
    %p119 = por %p117, %p118
    %p120 = scmp.ne.s32.totalorder %s111, %s112
    %p121 = scmp.eq.s32.totalorder %s24, 0
    %p122 = por %p120, %p121
    %p123 = scmp.ne.s32.totalorder %s111, %s112
    %p124 = scmp.eq.s32.totalorder %s25, 1
    %p125 = por %p123, %p124
    %p127 = scmp.ne.s32.totalorder %s112, %s126
    %p128 = scmp.eq.s32.totalorder %s25, 0
    %p129 = por %p127, %p128
    %s131 = sadd.s32 %s130, 1
    %p134 = scmp.eq.s32.totalorder %s19, 1
    %p135 = scmp.ne.s32.totalorder %s130, %s132
    %p136 = scmp.eq.s32.totalorder %s19, 0
    %p137 = por %p135, %p136
    %p138 = scmp.ne.s32.totalorder %s130, %s132
    %p139 = scmp.eq.s32.totalorder %s24, 1
    %p140 = por %p138, %p139
    %p141 = scmp.ne.s32.totalorder %s132, %s133
    %p142 = scmp.eq.s32.totalorder %s24, 0
    %p143 = por %p141, %p142
    %p144 = scmp.ne.s32.totalorder %s132, %s133
    %p145 = scmp.eq.s32.totalorder %s25, 1
    %p146 = por %p144, %p145
    %p148 = scmp.ne.s32.totalorder %s133, %s147
    %p149 = scmp.eq.s32.totalorder %s25, 0
    %p150 = por %p148, %p149
    %s152 = sadd.s32 %s151, 1
    %p155 = scmp.eq.s32.totalorder %s19, 1
    %p156 = scmp.ne.s32.totalorder %s151, %s153
    %p157 = scmp.eq.s32.totalorder %s19, 0
    %p158 = por %p156, %p157
    %p159 = scmp.ne.s32.totalorder %s151, %s153
    %p160 = scmp.eq.s32.totalorder %s24, 1
    %p161 = por %p159, %p160
    %p162 = scmp.ne.s32.totalorder %s153, %s154
    %p163 = scmp.eq.s32.totalorder %s24, 0
    %p164 = por %p162, %p163
    %p165 = scmp.ne.s32.totalorder %s153, %s154
    %p166 = scmp.eq.s32.totalorder %s25, 1
    %p167 = por %p165, %p166
    %p169 = scmp.ne.s32.totalorder %s154, %s168
    %p170 = scmp.eq.s32.totalorder %s25, 0
    %p171 = por %p169, %p170
    %s173 = sadd.s32 %s172, 1
    %p176 = scmp.eq.s32.totalorder %s19, 1
    %p177 = scmp.ne.s32.totalorder %s172, %s174
    %p178 = scmp.eq.s32.totalorder %s19, 0
    %p179 = por %p177, %p178
    %p180 = scmp.ne.s32.totalorder %s172, %s174
    %p181 = scmp.eq.s32.totalorder %s24, 1
    %p182 = por %p180, %p181
    %p183 = scmp.ne.s32.totalorder %s174, %s175
    %p184 = scmp.eq.s32.totalorder %s24, 0
    %p185 = por %p183, %p184
    %p186 = scmp.ne.s32.totalorder %s174, %s175
    %p187 = scmp.eq.s32.totalorder %s25, 1
    %p188 = por %p186, %p187
    %p190 = scmp.ne.s32.totalorder %s175, %s189
    %p191 = scmp.eq.s32.totalorder %s25, 0
    %p192 = por %p190, %p191
    %s194 = sadd.s32 %s193, 1
    %p197 = scmp.eq.s32.totalorder %s19, 1
    %p198 = scmp.ne.s32.totalorder %s193, %s195
    %p199 = scmp.eq.s32.totalorder %s19, 0
    %p200 = por %p198, %p199
    %p201 = scmp.ne.s32.totalorder %s193, %s195
    %p202 = scmp.eq.s32.totalorder %s24, 1
    %p203 = por %p201, %p202
    %p204 = scmp.ne.s32.totalorder %s195, %s196
    %p205 = scmp.eq.s32.totalorder %s24, 0
    %p206 = por %p204, %p205
    %p207 = scmp.ne.s32.totalorder %s195, %s196
    %p208 = scmp.eq.s32.totalorder %s25, 1
    %p209 = por %p207, %p208
    %p211 = scmp.ne.s32.totalorder %s196, %s210
    %p212 = scmp.eq.s32.totalorder %s25, 0
    %p213 = por %p211, %p212
    %s215 = sadd.s32 %s214, 1
    %p218 = scmp.eq.s32.totalorder %s19, 1
    %p219 = scmp.ne.s32.totalorder %s214, %s216
    %p220 = scmp.eq.s32.totalorder %s19, 0
    %p221 = por %p219, %p220
    %p222 = scmp.ne.s32.totalorder %s214, %s216
    %p223 = scmp.eq.s32.totalorder %s24, 1
    %p224 = por %p222, %p223
    %p225 = scmp.ne.s32.totalorder %s216, %s217
    %p226 = scmp.eq.s32.totalorder %s24, 0
    %p227 = por %p225, %p226
    %p228 = scmp.ne.s32.totalorder %s216, %s217
    %p229 = scmp.eq.s32.totalorder %s25, 1
    %p230 = por %p228, %p229
    %p232 = scmp.ne.s32.totalorder %s217, %s231
    %p233 = scmp.eq.s32.totalorder %s25, 0
    %p234 = por %p232, %p233
    %s235 = sadd.s32 %s26, %s27
    %s236 = sadd.s32 %s38, %s34
    %s237 = ssub.s32 %s235, %s236
    %p238 = scmp.eq.s32.totalorder %s237, 0
    %s240 = sadd.s32 %s239, 1
    %s241 = scalar_select %p238, %s239, %s240
    %p244 = pneg %p238
    %p245 = scmp.eq.s32.totalorder %s19, 1
    %p246 = por %p244, %p245
    %p247 = scmp.ne.s32.totalorder %s239, %s242
    %p248 = scmp.eq.s32.totalorder %s19, 0
    %p249 = por %p247, %p248
    %p250 = scmp.ne.s32.totalorder %s239, %s242
    %p251 = scmp.eq.s32.totalorder %s24, 1
    %p252 = por %p250, %p251
    %p253 = scmp.ne.s32.totalorder %s242, %s243
    %p254 = scmp.eq.s32.totalorder %s24, 0
    %p255 = por %p253, %p254
    %p256 = scmp.ne.s32.totalorder %s242, %s243
    %p257 = scmp.eq.s32.totalorder %s25, 1
    %p258 = por %p256, %p257
    %p260 = scmp.ne.s32.totalorder %s243, %s259
    %p261 = scmp.eq.s32.totalorder %s25, 0
    %p262 = por %p260, %p261
    %s263 = ssub.s32 %s26, %s38
    %p264 = scmp.eq.s32.totalorder %s263, 0
    %s266 = sadd.s32 %s265, 1
    %s267 = scalar_select %p264, %s265, %s266
    %p270 = pneg %p264
    %p271 = scmp.eq.s32.totalorder %s19, 1
    %p272 = por %p270, %p271
    %p273 = scmp.ne.s32.totalorder %s265, %s268
    %p274 = scmp.eq.s32.totalorder %s19, 0
    %p275 = por %p273, %p274
    %p276 = scmp.ne.s32.totalorder %s265, %s268
    %p277 = scmp.eq.s32.totalorder %s24, 1
    %p278 = por %p276, %p277
    %p279 = scmp.ne.s32.totalorder %s268, %s269
    %p280 = scmp.eq.s32.totalorder %s24, 0
    %p281 = por %p279, %p280
    %p282 = scmp.ne.s32.totalorder %s268, %s269
    %p283 = scmp.eq.s32.totalorder %s25, 1
    %p284 = por %p282, %p283
    %p286 = scmp.ne.s32.totalorder %s269, %s285
    %p287 = scmp.eq.s32.totalorder %s25, 0
    %p288 = por %p286, %p287
    %s289 = ssub.s32 %s26, %s38
    %p290 = scmp.eq.s32.totalorder %s289, 0
    %s292 = sadd.s32 %s291, 1
    %s293 = scalar_select %p290, %s291, %s292
    %p296 = pneg %p290
    %p297 = scmp.eq.s32.totalorder %s19, 1
    %p298 = por %p296, %p297
    %p299 = scmp.ne.s32.totalorder %s291, %s294
    %p300 = scmp.eq.s32.totalorder %s19, 0
    %p301 = por %p299, %p300
    %p302 = scmp.ne.s32.totalorder %s291, %s294
    %p303 = scmp.eq.s32.totalorder %s24, 1
    %p304 = por %p302, %p303
    %p305 = scmp.ne.s32.totalorder %s294, %s295
    %p306 = scmp.eq.s32.totalorder %s24, 0
    %p307 = por %p305, %p306
    %p308 = scmp.ne.s32.totalorder %s294, %s295
    %p309 = scmp.eq.s32.totalorder %s25, 1
    %p310 = por %p308, %p309
    %p312 = scmp.ne.s32.totalorder %s295, %s311
    %p313 = scmp.eq.s32.totalorder %s25, 0
    %p314 = por %p312, %p313
    %s315 = ssub.s32 %s26, %s38
    %p316 = scmp.eq.s32.totalorder %s315, 0
    %s318 = sadd.s32 %s317, 1
    %s319 = scalar_select %p316, %s317, %s318
    %p322 = pneg %p316
    %p323 = scmp.eq.s32.totalorder %s19, 1
    %p324 = por %p322, %p323
    %p325 = scmp.ne.s32.totalorder %s317, %s320
    %p326 = scmp.eq.s32.totalorder %s19, 0
    %p327 = por %p325, %p326
    %p328 = scmp.ne.s32.totalorder %s317, %s320
    %p329 = scmp.eq.s32.totalorder %s24, 1
    %p330 = por %p328, %p329
    %p331 = scmp.ne.s32.totalorder %s320, %s321
    %p332 = scmp.eq.s32.totalorder %s24, 0
    %p333 = por %p331, %p332
    %p334 = scmp.ne.s32.totalorder %s320, %s321
    %p335 = scmp.eq.s32.totalorder %s25, 1
    %p336 = por %p334, %p335
    %p338 = scmp.ne.s32.totalorder %s321, %s337
    %p339 = scmp.eq.s32.totalorder %s25, 0
    %p340 = por %p338, %p339
    %p341 = scmp.le.s32.totalorder 1, %s19
    %p342 = scmp.lt.s32.totalorder %s19, 3
    %p343 = pnand %p341, %p342
    %p344 = pneg %p343
    // Predicated region
    $region9: #{unet_proto_forward.2} parent=5 // pred_check
      _
    $region10: #{unet_proto_forward.2} parent=5 // pred_check_branch
      %346 = sbr.rel (%p343) target = $region12
    $region11: #{unet_proto_forward.2} parent=5 // pred_region
      %s347 = ssub.s32 %s19, 1
      // Predicated region
      $region13: #{unet_proto_forward.2} parent=11 // pred_check
        %p348 = pneg %p80
      $region14: #{unet_proto_forward.2} parent=11 // pred_check_branch
        %350 = sbr.rel (%p348) target = $region16
      $region15: #{unet_proto_forward.2} parent=11 // pred_region
        _
      $region16: #{unet_proto_forward.2} parent=11 // pred_fallthru
        _
      // Predicated region
      $region17: #{unet_proto_forward.2} parent=11 // pred_check
        %p351 = pneg %p101
      $region18: #{unet_proto_forward.2} parent=11 // pred_check_branch
        %353 = sbr.rel (%p351) target = $region20
      $region19: #{unet_proto_forward.2} parent=11 // pred_region
        _
      $region20: #{unet_proto_forward.2} parent=11 // pred_fallthru
        _
      // Predicated region
      $region21: #{unet_proto_forward.2} parent=11 // pred_check
        %p354 = pneg %p122
      $region22: #{unet_proto_forward.2} parent=11 // pred_check_branch
        %356 = sbr.rel (%p354) target = $region24
      $region23: #{unet_proto_forward.2} parent=11 // pred_region
        _
      $region24: #{unet_proto_forward.2} parent=11 // pred_fallthru
        _
      // Predicated region
      $region25: #{unet_proto_forward.2} parent=11 // pred_check
        %p357 = pneg %p143
      $region26: #{unet_proto_forward.2} parent=11 // pred_check_branch
        %359 = sbr.rel (%p357) target = $region28
      $region27: #{unet_proto_forward.2} parent=11 // pred_region
        _
      $region28: #{unet_proto_forward.2} parent=11 // pred_fallthru
        _
      // Predicated region
      $region29: #{unet_proto_forward.2} parent=11 // pred_check
        %p360 = pneg %p164
      $region30: #{unet_proto_forward.2} parent=11 // pred_check_branch
        %362 = sbr.rel (%p360) target = $region32
      $region31: #{unet_proto_forward.2} parent=11 // pred_region
        _
      $region32: #{unet_proto_forward.2} parent=11 // pred_fallthru
        _
      // Predicated region
      $region33: #{unet_proto_forward.2} parent=11 // pred_check
        %p363 = pneg %p185
      $region34: #{unet_proto_forward.2} parent=11 // pred_check_branch
        %365 = sbr.rel (%p363) target = $region36
      $region35: #{unet_proto_forward.2} parent=11 // pred_region
        _
      $region36: #{unet_proto_forward.2} parent=11 // pred_fallthru
        _
      // Predicated region
      $region37: #{unet_proto_forward.2} parent=11 // pred_check
        %p366 = pneg %p206
      $region38: #{unet_proto_forward.2} parent=11 // pred_check_branch
        %368 = sbr.rel (%p366) target = $region40
      $region39: #{unet_proto_forward.2} parent=11 // pred_region
        _
      $region40: #{unet_proto_forward.2} parent=11 // pred_fallthru
        _
      // Predicated region
      $region41: #{unet_proto_forward.2} parent=11 // pred_check
        %p369 = pneg %p227
      $region42: #{unet_proto_forward.2} parent=11 // pred_check_branch
        %371 = sbr.rel (%p369) target = $region44
      $region43: #{unet_proto_forward.2} parent=11 // pred_region
        _
      $region44: #{unet_proto_forward.2} parent=11 // pred_fallthru
        _
    $region12: #{unet_proto_forward.2} parent=5 // pred_fallthru
      _
    %p372 = scmp.lt.s32.totalorder %s19, 2
    // Predicated region
    $region45: #{unet_proto_forward.2} parent=5 // pred_check
      %p373 = pneg %p372
    $region46: #{unet_proto_forward.2} parent=5 // pred_check_branch
      %375 = sbr.rel (%p373) target = $region48
    $region47: #{unet_proto_forward.2} parent=5 // pred_region
      // Predicated region
      $region49: #{unet_proto_forward.2} parent=47 // pred_check
        %p376 = pneg %p53
      $region50: #{unet_proto_forward.2} parent=47 // pred_check_branch
        %378 = sbr.rel (%p376) target = $region52
      $region51: #{unet_proto_forward.2} parent=47 // pred_region
        %s379 = sadd.s32 %s26, %s27
        %s380 = smul.u32 64, %s379
        %p381 = scmp.lt.s32.totalorder %s380, 127
        %s382 = scalar_select %p381, %s380, 127
        %s383 = smul.addr %s382, 8
        %s384 = scalar_lea.vmem %s0, %s383
        %s385 = sadd.s32 %s26, %s27
        %s386 = smul.u32 64, %s385
      $region52: #{unet_proto_forward.2} parent=47 // pred_fallthru
        _
    $region48: #{unet_proto_forward.2} parent=5 // pred_fallthru
      _
    %p387 = scmp.le.s32.totalorder 1, %s19
    %p388 = scmp.lt.s32.totalorder %s19, 3
    %p389 = pnand %p387, %p388
    %p390 = pneg %p389
    // Predicated region
    $region53: #{unet_proto_forward.2} parent=5 // pred_check
      _
    $region54: #{unet_proto_forward.2} parent=5 // pred_check_branch
      %392 = sbr.rel (%p389) target = $region56
    $region55: #{unet_proto_forward.2} parent=5 // pred_region
      %s393 = ssub.s32 %s19, 1
      %s394 = sadd.s32 %s28, %s29
      %s395 = smul.u32 64, %s394
      %p396 = scmp.lt.s32.totalorder %s395, 127
      %s397 = scalar_select %p396, %s395, 127
      %s398 = smul.addr %s397, 8
      %s399 = scalar_lea.vmem %s0, %s398
      %p400 = pneg %p59
      %p401 = pneg %p56
      %p402 = pneg %p80
      %p403 = pneg %p77
      %p404 = pneg %p101
      %p405 = pneg %p98
      %p406 = pneg %p122
      %p407 = pneg %p119
      %p408 = pneg %p143
      %p409 = pneg %p140
      %p410 = pneg %p164
      %p411 = pneg %p161
      %p412 = pneg %p185
      %p413 = pneg %p182
      %p414 = pneg %p206
      %p415 = pneg %p203
      %p416 = pneg %p227
      %p417 = pneg %p224
      %p418 = pneg %p255
      %p419 = pneg %p252
      %s420 = sadd.s32 %s28, %s29
      %s421 = smul.u32 64, %s420
      %p422 = scmp.lt.s32.totalorder %s421, 127
      %s423 = scalar_select %p422, %s421, 127
      %s424 = smul.addr %s423, 8
      %s425 = scalar_lea.vmem %s9, %s424
      %p426 = pneg %p281
      %p427 = pneg %p278
      %p428 = scmp.lt.s32.totalorder %s28, 1
      %s429 = scalar_select %p428, %s28, 1
      %s430 = smul.addr %s429, 4
      %s431 = scalar_lea.vmem %s10, %s430
      %p432 = pneg %p307
      %p433 = pneg %p304
      %p434 = scmp.lt.s32.totalorder %s28, 1
      %s435 = scalar_select %p434, %s28, 1
      %s436 = smul.addr %s435, 4
      %s437 = scalar_lea.vmem %s11, %s436
      %p438 = pneg %p333
      %p439 = pneg %p330
      %p440 = scmp.lt.s32.totalorder %s28, 1
      %s441 = scalar_select %p440, %s28, 1
      %s442 = scalar_lea.vmem %s12, %s441
      %s443 = sadd.s32 %s28, %s29
      %s444 = smul.u32 64, %s443
      %p445 = scmp.lt.s32.totalorder %s444, 127
      %s446 = scalar_select %p445, %s444, 127
      %s447 = smul.addr %s446, 8
      %s448 = scalar_lea.vmem %s0, %s447
      %s449 = sadd.s32 %s28, %s29
      %s450 = smul.u32 64, %s449
      %s451 = sadd.s32 %s28, %s29
      %s452 = smul.u32 64, %s451
      %p453 = scmp.lt.s32.totalorder %s452, 127
      %s454 = scalar_select %p453, %s452, 127
      %s455 = smul.addr %s454, 8
      %s456 = scalar_lea.vmem %s9, %s455
      %s457 = sadd.s32 %s28, %s29
      %s458 = smul.u32 64, %s457
      %p459 = scmp.lt.s32.totalorder %s28, 1
      %s460 = scalar_select %p459, %s28, 1
      %s461 = smul.addr %s460, 4
      %s462 = scalar_lea.vmem %s10, %s461
      %p463 = scmp.lt.s32.totalorder %s28, 1
      %s464 = scalar_select %p463, %s28, 1
      %s465 = smul.addr %s464, 4
      %s466 = scalar_lea.vmem %s11, %s465
      %p467 = scmp.lt.s32.totalorder %s28, 1
      %s468 = scalar_select %p467, %s28, 1
      %s469 = scalar_lea.vmem %s12, %s468
      %p470 = scmp.eq.s32.totalorder %s29, 0
      // Predicated region
      $region57: #{unet_proto_forward.2} parent=55 // pred_check
        %p471 = pneg %p470
      $region58: #{unet_proto_forward.2} parent=55 // pred_check_branch
        %473 = sbr.rel (%p471) target = $region60
      $region59: #{unet_proto_forward.2} parent=55 // pred_region
        %vm474 = vcmask 257024
        %475 = vst.msk [vmem:[%s462] sm:$0xf] %vm474, 0.0
        %476 = vst.msk [vmem:[%s466] sm:$0xf] %vm474, 0.0
        %vm477 = vcmask 24576
        %478 = vst.msk [vmem:[%s469] sm:$0x1] %vm477, 0.0
      $region60: #{unet_proto_forward.2} parent=55 // pred_fallthru
        _
      %v479 = vld [vmem:[%s448] sm:$0xff]
      %v480 = vld [vmem:[%s448 + $0x8] sm:$0xff]
      %v481 = vld [vmem:[%s448 + $0x10] sm:$0xff]
      %v482 = vld [vmem:[%s448 + $0x18] sm:$0xff]
      %v483 = vld [vmem:[%s448 + $0x20] sm:$0xff]
      %v484 = vld [vmem:[%s448 + $0x28] sm:$0xff]
      %v485 = vld [vmem:[%s448 + $0x30] sm:$0xff]
      %v486 = vld [vmem:[%s448 + $0x38] sm:$0xff]
      %v487 = vld [vmem:[%s448 + $0x40] sm:$0xff]
      %v488 = vld [vmem:[%s448 + $0x48] sm:$0xff]
      %v489 = vld [vmem:[%s448 + $0x50] sm:$0xff]
      %v490 = vld [vmem:[%s448 + $0x58] sm:$0xff]
      %v491 = vld [vmem:[%s448 + $0x60] sm:$0xff]
      %v492 = vld [vmem:[%s448 + $0x68] sm:$0xff]
      %v493 = vld [vmem:[%s448 + $0x70] sm:$0xff]
      %v494 = vld [vmem:[%s448 + $0x78] sm:$0xff]
      %v495 = vld [vmem:[%s448 + $0x80] sm:$0xff]
      %v496 = vld [vmem:[%s448 + $0x88] sm:$0xff]
      %v497 = vld [vmem:[%s448 + $0x90] sm:$0xff]
      %v498 = vld [vmem:[%s448 + $0x98] sm:$0xff]
      %v499 = vld [vmem:[%s448 + $0xa0] sm:$0xff]
      %v500 = vld [vmem:[%s448 + $0xa8] sm:$0xff]
      %v501 = vld [vmem:[%s448 + $0xb0] sm:$0xff]
      %v502 = vld [vmem:[%s448 + $0xb8] sm:$0xff]
      %v503 = vld [vmem:[%s448 + $0xc0] sm:$0xff]
      %v504 = vld [vmem:[%s448 + $0xc8] sm:$0xff]
      %v505 = vld [vmem:[%s448 + $0xd0] sm:$0xff]
      %v506 = vld [vmem:[%s448 + $0xd8] sm:$0xff]
      %v507 = vld [vmem:[%s448 + $0xe0] sm:$0xff]
      %v508 = vld [vmem:[%s448 + $0xe8] sm:$0xff]
      %v509 = vld [vmem:[%s448 + $0xf0] sm:$0xff]
      %v510 = vld [vmem:[%s448 + $0xf8] sm:$0xff]
      %v511 = vld [vmem:[%s448 + $0x100] sm:$0xff]
      %v512 = vld [vmem:[%s448 + $0x108] sm:$0xff]
      %v513 = vld [vmem:[%s448 + $0x110] sm:$0xff]
      %v514 = vld [vmem:[%s448 + $0x118] sm:$0xff]
      %v515 = vld [vmem:[%s448 + $0x120] sm:$0xff]
      %v516 = vld [vmem:[%s448 + $0x128] sm:$0xff]
      %v517 = vld [vmem:[%s448 + $0x130] sm:$0xff]
      %v518 = vld [vmem:[%s448 + $0x138] sm:$0xff]
      %v519 = vld [vmem:[%s448 + $0x140] sm:$0xff]
      %v520 = vld [vmem:[%s448 + $0x148] sm:$0xff]
      %v521 = vld [vmem:[%s448 + $0x150] sm:$0xff]
      %v522 = vld [vmem:[%s448 + $0x158] sm:$0xff]
      %v523 = vld [vmem:[%s448 + $0x160] sm:$0xff]
      %v524 = vld [vmem:[%s448 + $0x168] sm:$0xff]
      %v525 = vld [vmem:[%s448 + $0x170] sm:$0xff]
      %v526 = vld [vmem:[%s448 + $0x178] sm:$0xff]
      %v527 = vld [vmem:[%s448 + $0x180] sm:$0xff]
      %v528 = vld [vmem:[%s448 + $0x188] sm:$0xff]
      %v529 = vld [vmem:[%s448 + $0x190] sm:$0xff]
      %v530 = vld [vmem:[%s448 + $0x198] sm:$0xff]
      %v531 = vld [vmem:[%s448 + $0x1a0] sm:$0xff]
      %v532 = vld [vmem:[%s448 + $0x1a8] sm:$0xff]
      %v533 = vld [vmem:[%s448 + $0x1b0] sm:$0xff]
      %v534 = vld [vmem:[%s448 + $0x1b8] sm:$0xff]
      %v535 = vld [vmem:[%s448 + $0x1c0] sm:$0xff]
      %v536 = vld [vmem:[%s448 + $0x1c8] sm:$0xff]
      %v537 = vld [vmem:[%s448 + $0x1d0] sm:$0xff]
      %v538 = vld [vmem:[%s448 + $0x1d8] sm:$0xff]
      %v539 = vld [vmem:[%s448 + $0x1e0] sm:$0xff]
      %v540 = vld [vmem:[%s448 + $0x1e8] sm:$0xff]
      %v541 = vld [vmem:[%s448 + $0x1f0] sm:$0xff]
      %v542 = vld [vmem:[%s448 + $0x1f8] sm:$0xff]
      %v543 = vmax.f32 %v479, 0.0
      %v544 = vmax.f32 %v480, 0.0
      %v545 = vmax.f32 %v481, 0.0
      %v546 = vmax.f32 %v482, 0.0
      %v547 = vmax.f32 %v483, 0.0
      %v548 = vmax.f32 %v484, 0.0
      %v549 = vmax.f32 %v485, 0.0
      %v550 = vmax.f32 %v486, 0.0
      %v551 = vmax.f32 %v487, 0.0
      %v552 = vmax.f32 %v488, 0.0
      %v553 = vmax.f32 %v489, 0.0
      %v554 = vmax.f32 %v490, 0.0
      %v555 = vmax.f32 %v491, 0.0
      %v556 = vmax.f32 %v492, 0.0
      %v557 = vmax.f32 %v493, 0.0
      %v558 = vmax.f32 %v494, 0.0
      %v559 = vmax.f32 %v495, 0.0
      %v560 = vmax.f32 %v496, 0.0
      %v561 = vmax.f32 %v497, 0.0
      %v562 = vmax.f32 %v498, 0.0
      %v563 = vmax.f32 %v499, 0.0
      %v564 = vmax.f32 %v500, 0.0
      %v565 = vmax.f32 %v501, 0.0
      %v566 = vmax.f32 %v502, 0.0
      %v567 = vmax.f32 %v503, 0.0
      %v568 = vmax.f32 %v504, 0.0
      %v569 = vmax.f32 %v505, 0.0
      %v570 = vmax.f32 %v506, 0.0
      %v571 = vmax.f32 %v507, 0.0
      %v572 = vmax.f32 %v508, 0.0
      %v573 = vmax.f32 %v509, 0.0
      %v574 = vmax.f32 %v510, 0.0
      %v575 = vmax.f32 %v511, 0.0
      %v576 = vmax.f32 %v512, 0.0
      %v577 = vmax.f32 %v513, 0.0
      %v578 = vmax.f32 %v514, 0.0
      %v579 = vmax.f32 %v515, 0.0
      %v580 = vmax.f32 %v516, 0.0
      %v581 = vmax.f32 %v517, 0.0
      %v582 = vmax.f32 %v518, 0.0
      %v583 = vmax.f32 %v519, 0.0
      %v584 = vmax.f32 %v520, 0.0
      %v585 = vmax.f32 %v521, 0.0
      %v586 = vmax.f32 %v522, 0.0
      %v587 = vmax.f32 %v523, 0.0
      %v588 = vmax.f32 %v524, 0.0
      %v589 = vmax.f32 %v525, 0.0
      %v590 = vmax.f32 %v526, 0.0
      %v591 = vmax.f32 %v527, 0.0
      %v592 = vmax.f32 %v528, 0.0
      %v593 = vmax.f32 %v529, 0.0
      %v594 = vmax.f32 %v530, 0.0
      %v595 = vmax.f32 %v531, 0.0
      %v596 = vmax.f32 %v532, 0.0
      %v597 = vmax.f32 %v533, 0.0
      %v598 = vmax.f32 %v534, 0.0
      %v599 = vmax.f32 %v535, 0.0
      %v600 = vmax.f32 %v536, 0.0
      %v601 = vmax.f32 %v537, 0.0
      %v602 = vmax.f32 %v538, 0.0
      %v603 = vmax.f32 %v539, 0.0
      %v604 = vmax.f32 %v540, 0.0
      %v605 = vmax.f32 %v541, 0.0
      %v606 = vmax.f32 %v542, 0.0
      %v607 = vlaneseq
      %v608 = vand.u32 %v607, 127
      %v609 = vcvt.s32.f32 %v608
      %611 = vset.pattern.permute.xlu0 1
      %612 = vperm.xlu0 %611, %v543
      %v613 = vpop.permute.xlu0 %612
      %616 = vset.pattern.permute.xlu0 1
      %617 = vperm.xlu0 %616, %v544
      %v618 = vpop.permute.xlu0 %617
      %621 = vset.pattern.permute.xlu0 1
      %622 = vperm.xlu0 %621, %v545
      %v623 = vpop.permute.xlu0 %622
      %626 = vset.pattern.permute.xlu0 1
      %627 = vperm.xlu0 %626, %v546
      %v628 = vpop.permute.xlu0 %627
      %631 = vset.pattern.permute.xlu0 1
      %632 = vperm.xlu0 %631, %v547
      %v633 = vpop.permute.xlu0 %632
      %636 = vset.pattern.permute.xlu0 1
      %637 = vperm.xlu0 %636, %v548
      %v638 = vpop.permute.xlu0 %637
      %641 = vset.pattern.permute.xlu0 1
      %642 = vperm.xlu0 %641, %v549
      %v643 = vpop.permute.xlu0 %642
      %646 = vset.pattern.permute.xlu0 1
      %647 = vperm.xlu0 %646, %v550
      %v648 = vpop.permute.xlu0 %647
      %651 = vset.pattern.permute.xlu0 1
      %652 = vperm.xlu0 %651, %v551
      %v653 = vpop.permute.xlu0 %652
      %656 = vset.pattern.permute.xlu0 1
      %657 = vperm.xlu0 %656, %v552
      %v658 = vpop.permute.xlu0 %657
      %661 = vset.pattern.permute.xlu0 1
      %662 = vperm.xlu0 %661, %v553
      %v663 = vpop.permute.xlu0 %662
      %666 = vset.pattern.permute.xlu0 1
      %667 = vperm.xlu0 %666, %v554
      %v668 = vpop.permute.xlu0 %667
      %671 = vset.pattern.permute.xlu0 1
      %672 = vperm.xlu0 %671, %v555
      %v673 = vpop.permute.xlu0 %672
      %676 = vset.pattern.permute.xlu0 1
      %677 = vperm.xlu0 %676, %v556
      %v678 = vpop.permute.xlu0 %677
      %681 = vset.pattern.permute.xlu0 1
      %682 = vperm.xlu0 %681, %v557
      %v683 = vpop.permute.xlu0 %682
      %686 = vset.pattern.permute.xlu0 1
      %687 = vperm.xlu0 %686, %v558
      %v688 = vpop.permute.xlu0 %687
      %691 = vset.pattern.permute.xlu0 1
      %692 = vperm.xlu0 %691, %v559
      %v693 = vpop.permute.xlu0 %692
      %696 = vset.pattern.permute.xlu0 1
      %697 = vperm.xlu0 %696, %v560
      %v698 = vpop.permute.xlu0 %697
      %701 = vset.pattern.permute.xlu0 1
      %702 = vperm.xlu0 %701, %v561
      %v703 = vpop.permute.xlu0 %702
      %706 = vset.pattern.permute.xlu0 1
      %707 = vperm.xlu0 %706, %v562
      %v708 = vpop.permute.xlu0 %707
      %711 = vset.pattern.permute.xlu0 1
      %712 = vperm.xlu0 %711, %v563
      %v713 = vpop.permute.xlu0 %712
      %716 = vset.pattern.permute.xlu0 1
      %717 = vperm.xlu0 %716, %v564
      %v718 = vpop.permute.xlu0 %717
      %721 = vset.pattern.permute.xlu0 1
      %722 = vperm.xlu0 %721, %v565
      %v723 = vpop.permute.xlu0 %722
      %726 = vset.pattern.permute.xlu0 1
      %727 = vperm.xlu0 %726, %v566
      %v728 = vpop.permute.xlu0 %727
      %731 = vset.pattern.permute.xlu0 1
      %732 = vperm.xlu0 %731, %v567
      %v733 = vpop.permute.xlu0 %732
      %736 = vset.pattern.permute.xlu0 1
      %737 = vperm.xlu0 %736, %v568
      %v738 = vpop.permute.xlu0 %737
      %741 = vset.pattern.permute.xlu0 1
      %742 = vperm.xlu0 %741, %v569
      %v743 = vpop.permute.xlu0 %742
      %746 = vset.pattern.permute.xlu0 1
      %747 = vperm.xlu0 %746, %v570
      %v748 = vpop.permute.xlu0 %747
      %751 = vset.pattern.permute.xlu0 1
      %752 = vperm.xlu0 %751, %v571
      %v753 = vpop.permute.xlu0 %752
      %756 = vset.pattern.permute.xlu0 1
      %757 = vperm.xlu0 %756, %v572
      %v758 = vpop.permute.xlu0 %757
      %761 = vset.pattern.permute.xlu0 1
      %762 = vperm.xlu0 %761, %v573
      %v763 = vpop.permute.xlu0 %762
      %766 = vset.pattern.permute.xlu0 1
      %767 = vperm.xlu0 %766, %v574
      %v768 = vpop.permute.xlu0 %767
      %771 = vset.pattern.permute.xlu0 1
      %772 = vperm.xlu0 %771, %v575
      %v773 = vpop.permute.xlu0 %772
      %776 = vset.pattern.permute.xlu0 1
      %777 = vperm.xlu0 %776, %v576
      %v778 = vpop.permute.xlu0 %777
      %781 = vset.pattern.permute.xlu0 1
      %782 = vperm.xlu0 %781, %v577
      %v783 = vpop.permute.xlu0 %782
      %786 = vset.pattern.permute.xlu0 1
      %787 = vperm.xlu0 %786, %v578
      %v788 = vpop.permute.xlu0 %787
      %791 = vset.pattern.permute.xlu0 1
      %792 = vperm.xlu0 %791, %v579
      %v793 = vpop.permute.xlu0 %792
      %796 = vset.pattern.permute.xlu0 1
      %797 = vperm.xlu0 %796, %v580
      %v798 = vpop.permute.xlu0 %797
      %801 = vset.pattern.permute.xlu0 1
      %802 = vperm.xlu0 %801, %v581
      %v803 = vpop.permute.xlu0 %802
      %806 = vset.pattern.permute.xlu0 1
      %807 = vperm.xlu0 %806, %v582
      %v808 = vpop.permute.xlu0 %807
      %811 = vset.pattern.permute.xlu0 1
      %812 = vperm.xlu0 %811, %v583
      %v813 = vpop.permute.xlu0 %812
      %816 = vset.pattern.permute.xlu0 1
      %817 = vperm.xlu0 %816, %v584
      %v818 = vpop.permute.xlu0 %817
      %821 = vset.pattern.permute.xlu0 1
      %822 = vperm.xlu0 %821, %v585
      %v823 = vpop.permute.xlu0 %822
      %826 = vset.pattern.permute.xlu0 1
      %827 = vperm.xlu0 %826, %v586
      %v828 = vpop.permute.xlu0 %827
      %831 = vset.pattern.permute.xlu0 1
      %832 = vperm.xlu0 %831, %v587
      %v833 = vpop.permute.xlu0 %832
      %836 = vset.pattern.permute.xlu0 1
      %837 = vperm.xlu0 %836, %v588
      %v838 = vpop.permute.xlu0 %837
      %841 = vset.pattern.permute.xlu0 1
      %842 = vperm.xlu0 %841, %v589
      %v843 = vpop.permute.xlu0 %842
      %846 = vset.pattern.permute.xlu0 1
      %847 = vperm.xlu0 %846, %v590
      %v848 = vpop.permute.xlu0 %847
      %851 = vset.pattern.permute.xlu0 1
      %852 = vperm.xlu0 %851, %v591
      %v853 = vpop.permute.xlu0 %852
      %856 = vset.pattern.permute.xlu0 1
      %857 = vperm.xlu0 %856, %v592
      %v858 = vpop.permute.xlu0 %857
      %861 = vset.pattern.permute.xlu0 1
      %862 = vperm.xlu0 %861, %v593
      %v863 = vpop.permute.xlu0 %862
      %866 = vset.pattern.permute.xlu0 1
      %867 = vperm.xlu0 %866, %v594
      %v868 = vpop.permute.xlu0 %867
      %871 = vset.pattern.permute.xlu0 1
      %872 = vperm.xlu0 %871, %v595
      %v873 = vpop.permute.xlu0 %872
      %876 = vset.pattern.permute.xlu0 1
      %877 = vperm.xlu0 %876, %v596
      %v878 = vpop.permute.xlu0 %877
      %881 = vset.pattern.permute.xlu0 1
      %882 = vperm.xlu0 %881, %v597
      %v883 = vpop.permute.xlu0 %882
      %886 = vset.pattern.permute.xlu0 1
      %887 = vperm.xlu0 %886, %v598
      %v888 = vpop.permute.xlu0 %887
      %891 = vset.pattern.permute.xlu0 1
      %892 = vperm.xlu0 %891, %v599
      %v893 = vpop.permute.xlu0 %892
      %896 = vset.pattern.permute.xlu0 1
      %897 = vperm.xlu0 %896, %v600
      %v898 = vpop.permute.xlu0 %897
      %901 = vset.pattern.permute.xlu0 1
      %902 = vperm.xlu0 %901, %v601
      %v903 = vpop.permute.xlu0 %902
      %906 = vset.pattern.permute.xlu0 1
      %907 = vperm.xlu0 %906, %v602
      %v908 = vpop.permute.xlu0 %907
      %911 = vset.pattern.permute.xlu0 1
      %912 = vperm.xlu0 %911, %v603
      %v913 = vpop.permute.xlu0 %912
      %916 = vset.pattern.permute.xlu0 1
      %917 = vperm.xlu0 %916, %v604
      %v918 = vpop.permute.xlu0 %917
      %921 = vset.pattern.permute.xlu0 1
      %922 = vperm.xlu0 %921, %v605
      %v923 = vpop.permute.xlu0 %922
      %926 = vset.pattern.permute.xlu0 1
      %927 = vperm.xlu0 %926, %v606
      %v928 = vpop.permute.xlu0 %927
      %vm930 = vcmp.eq.f32.partialorder %v609, %v613
      %vm931 = vcmp.eq.f32.partialorder %v609, %v618
      %vm932 = vcmp.eq.f32.partialorder %v609, %v623
      %vm933 = vcmp.eq.f32.partialorder %v609, %v628
      %vm934 = vcmp.eq.f32.partialorder %v609, %v633
      %vm935 = vcmp.eq.f32.partialorder %v609, %v638
      %vm936 = vcmp.eq.f32.partialorder %v609, %v643
      %vm937 = vcmp.eq.f32.partialorder %v609, %v648
      %vm938 = vcmp.eq.f32.partialorder %v609, %v653
      %vm939 = vcmp.eq.f32.partialorder %v609, %v658
      %vm940 = vcmp.eq.f32.partialorder %v609, %v663
      %vm941 = vcmp.eq.f32.partialorder %v609, %v668
      %vm942 = vcmp.eq.f32.partialorder %v609, %v673
      %vm943 = vcmp.eq.f32.partialorder %v609, %v678
      %vm944 = vcmp.eq.f32.partialorder %v609, %v683
      %vm945 = vcmp.eq.f32.partialorder %v609, %v688
      %vm946 = vcmp.eq.f32.partialorder %v609, %v693
      %vm947 = vcmp.eq.f32.partialorder %v609, %v698
      %vm948 = vcmp.eq.f32.partialorder %v609, %v703
      %vm949 = vcmp.eq.f32.partialorder %v609, %v708
      %vm950 = vcmp.eq.f32.partialorder %v609, %v713
      %vm951 = vcmp.eq.f32.partialorder %v609, %v718
      %vm952 = vcmp.eq.f32.partialorder %v609, %v723
      %vm953 = vcmp.eq.f32.partialorder %v609, %v728
      %vm954 = vcmp.eq.f32.partialorder %v609, %v733
      %vm955 = vcmp.eq.f32.partialorder %v609, %v738
      %vm956 = vcmp.eq.f32.partialorder %v609, %v743
      %vm957 = vcmp.eq.f32.partialorder %v609, %v748
      %vm958 = vcmp.eq.f32.partialorder %v609, %v753
      %vm959 = vcmp.eq.f32.partialorder %v609, %v758
      %vm960 = vcmp.eq.f32.partialorder %v609, %v763
      %vm961 = vcmp.eq.f32.partialorder %v609, %v768
      %vm962 = vcmp.eq.f32.partialorder %v609, %v773
      %vm963 = vcmp.eq.f32.partialorder %v609, %v778
      %vm964 = vcmp.eq.f32.partialorder %v609, %v783
      %vm965 = vcmp.eq.f32.partialorder %v609, %v788
      %vm966 = vcmp.eq.f32.partialorder %v609, %v793
      %vm967 = vcmp.eq.f32.partialorder %v609, %v798
      %vm968 = vcmp.eq.f32.partialorder %v609, %v803
      %vm969 = vcmp.eq.f32.partialorder %v609, %v808
      %vm970 = vcmp.eq.f32.partialorder %v609, %v813
      %vm971 = vcmp.eq.f32.partialorder %v609, %v818
      %vm972 = vcmp.eq.f32.partialorder %v609, %v823
      %vm973 = vcmp.eq.f32.partialorder %v609, %v828
      %vm974 = vcmp.eq.f32.partialorder %v609, %v833
      %vm975 = vcmp.eq.f32.partialorder %v609, %v838
      %vm976 = vcmp.eq.f32.partialorder %v609, %v843
      %vm977 = vcmp.eq.f32.partialorder %v609, %v848
      %vm978 = vcmp.eq.f32.partialorder %v609, %v853
      %vm979 = vcmp.eq.f32.partialorder %v609, %v858
      %vm980 = vcmp.eq.f32.partialorder %v609, %v863
      %vm981 = vcmp.eq.f32.partialorder %v609, %v868
      %vm982 = vcmp.eq.f32.partialorder %v609, %v873
      %vm983 = vcmp.eq.f32.partialorder %v609, %v878
      %vm984 = vcmp.eq.f32.partialorder %v609, %v883
      %vm985 = vcmp.eq.f32.partialorder %v609, %v888
      %vm986 = vcmp.eq.f32.partialorder %v609, %v893
      %vm987 = vcmp.eq.f32.partialorder %v609, %v898
      %vm988 = vcmp.eq.f32.partialorder %v609, %v903
      %vm989 = vcmp.eq.f32.partialorder %v609, %v908
      %vm990 = vcmp.eq.f32.partialorder %v609, %v913
      %vm991 = vcmp.eq.f32.partialorder %v609, %v918
      %vm992 = vcmp.eq.f32.partialorder %v609, %v923
      %vm993 = vcmp.eq.f32.partialorder %v609, %v928
      %995 = vset.pattern.permute.xlu0 2
      %996 = vperm.xlu0 %995, %v479
      %v997 = vpop.permute.xlu0 %996
      %1000 = vset.pattern.permute.xlu0 2
      %1001 = vperm.xlu0 %1000, %v480
      %v1002 = vpop.permute.xlu0 %1001
      %1005 = vset.pattern.permute.xlu0 2
      %1006 = vperm.xlu0 %1005, %v481
      %v1007 = vpop.permute.xlu0 %1006
      %1010 = vset.pattern.permute.xlu0 2
      %1011 = vperm.xlu0 %1010, %v482
      %v1012 = vpop.permute.xlu0 %1011
      %1015 = vset.pattern.permute.xlu0 2
      %1016 = vperm.xlu0 %1015, %v483
      %v1017 = vpop.permute.xlu0 %1016
      %1020 = vset.pattern.permute.xlu0 2
      %1021 = vperm.xlu0 %1020, %v484
      %v1022 = vpop.permute.xlu0 %1021
      %1025 = vset.pattern.permute.xlu0 2
      %1026 = vperm.xlu0 %1025, %v485
      %v1027 = vpop.permute.xlu0 %1026
      %1030 = vset.pattern.permute.xlu0 2
      %1031 = vperm.xlu0 %1030, %v486
      %v1032 = vpop.permute.xlu0 %1031
      %1035 = vset.pattern.permute.xlu0 2
      %1036 = vperm.xlu0 %1035, %v487
      %v1037 = vpop.permute.xlu0 %1036
      %1040 = vset.pattern.permute.xlu0 2
      %1041 = vperm.xlu0 %1040, %v488
      %v1042 = vpop.permute.xlu0 %1041
      %1045 = vset.pattern.permute.xlu0 2
      %1046 = vperm.xlu0 %1045, %v489
      %v1047 = vpop.permute.xlu0 %1046
      %1050 = vset.pattern.permute.xlu0 2
      %1051 = vperm.xlu0 %1050, %v490
      %v1052 = vpop.permute.xlu0 %1051
      %1055 = vset.pattern.permute.xlu0 2
      %1056 = vperm.xlu0 %1055, %v491
      %v1057 = vpop.permute.xlu0 %1056
      %1060 = vset.pattern.permute.xlu0 2
      %1061 = vperm.xlu0 %1060, %v492
      %v1062 = vpop.permute.xlu0 %1061
      %1065 = vset.pattern.permute.xlu0 2
      %1066 = vperm.xlu0 %1065, %v493
      %v1067 = vpop.permute.xlu0 %1066
      %1070 = vset.pattern.permute.xlu0 2
      %1071 = vperm.xlu0 %1070, %v494
      %v1072 = vpop.permute.xlu0 %1071
      %1075 = vset.pattern.permute.xlu0 2
      %1076 = vperm.xlu0 %1075, %v495
      %v1077 = vpop.permute.xlu0 %1076
      %1080 = vset.pattern.permute.xlu0 2
      %1081 = vperm.xlu0 %1080, %v496
      %v1082 = vpop.permute.xlu0 %1081
      %1085 = vset.pattern.permute.xlu0 2
      %1086 = vperm.xlu0 %1085, %v497
      %v1087 = vpop.permute.xlu0 %1086
      %1090 = vset.pattern.permute.xlu0 2
      %1091 = vperm.xlu0 %1090, %v498
      %v1092 = vpop.permute.xlu0 %1091
      %1095 = vset.pattern.permute.xlu0 2
      %1096 = vperm.xlu0 %1095, %v499
      %v1097 = vpop.permute.xlu0 %1096
      %1100 = vset.pattern.permute.xlu0 2
      %1101 = vperm.xlu0 %1100, %v500
      %v1102 = vpop.permute.xlu0 %1101
      %1105 = vset.pattern.permute.xlu0 2
      %1106 = vperm.xlu0 %1105, %v501
      %v1107 = vpop.permute.xlu0 %1106
      %1110 = vset.pattern.permute.xlu0 2
      %1111 = vperm.xlu0 %1110, %v502
      %v1112 = vpop.permute.xlu0 %1111
      %1115 = vset.pattern.permute.xlu0 2
      %1116 = vperm.xlu0 %1115, %v503
      %v1117 = vpop.permute.xlu0 %1116
      %1120 = vset.pattern.permute.xlu0 2
      %1121 = vperm.xlu0 %1120, %v504
      %v1122 = vpop.permute.xlu0 %1121
      %1125 = vset.pattern.permute.xlu0 2
      %1126 = vperm.xlu0 %1125, %v505
      %v1127 = vpop.permute.xlu0 %1126
      %1130 = vset.pattern.permute.xlu0 2
      %1131 = vperm.xlu0 %1130, %v506
      %v1132 = vpop.permute.xlu0 %1131
      %1135 = vset.pattern.permute.xlu0 2
      %1136 = vperm.xlu0 %1135, %v507
      %v1137 = vpop.permute.xlu0 %1136
      %1140 = vset.pattern.permute.xlu0 2
      %1141 = vperm.xlu0 %1140, %v508
      %v1142 = vpop.permute.xlu0 %1141
      %1145 = vset.pattern.permute.xlu0 2
      %1146 = vperm.xlu0 %1145, %v509
      %v1147 = vpop.permute.xlu0 %1146
      %1150 = vset.pattern.permute.xlu0 2
      %1151 = vperm.xlu0 %1150, %v510
      %v1152 = vpop.permute.xlu0 %1151
      %1155 = vset.pattern.permute.xlu0 2
      %1156 = vperm.xlu0 %1155, %v511
      %v1157 = vpop.permute.xlu0 %1156
      %1160 = vset.pattern.permute.xlu0 2
      %1161 = vperm.xlu0 %1160, %v512
      %v1162 = vpop.permute.xlu0 %1161
      %1165 = vset.pattern.permute.xlu0 2
      %1166 = vperm.xlu0 %1165, %v513
      %v1167 = vpop.permute.xlu0 %1166
      %1170 = vset.pattern.permute.xlu0 2
      %1171 = vperm.xlu0 %1170, %v514
      %v1172 = vpop.permute.xlu0 %1171
      %1175 = vset.pattern.permute.xlu0 2
      %1176 = vperm.xlu0 %1175, %v515
      %v1177 = vpop.permute.xlu0 %1176
      %1180 = vset.pattern.permute.xlu0 2
      %1181 = vperm.xlu0 %1180, %v516
      %v1182 = vpop.permute.xlu0 %1181
      %1185 = vset.pattern.permute.xlu0 2
      %1186 = vperm.xlu0 %1185, %v517
      %v1187 = vpop.permute.xlu0 %1186
      %1190 = vset.pattern.permute.xlu0 2
      %1191 = vperm.xlu0 %1190, %v518
      %v1192 = vpop.permute.xlu0 %1191
      %1195 = vset.pattern.permute.xlu0 2
      %1196 = vperm.xlu0 %1195, %v519
      %v1197 = vpop.permute.xlu0 %1196
      %1200 = vset.pattern.permute.xlu0 2
      %1201 = vperm.xlu0 %1200, %v520
      %v1202 = vpop.permute.xlu0 %1201
      %1205 = vset.pattern.permute.xlu0 2
      %1206 = vperm.xlu0 %1205, %v521
      %v1207 = vpop.permute.xlu0 %1206
      %1210 = vset.pattern.permute.xlu0 2
      %1211 = vperm.xlu0 %1210, %v522
      %v1212 = vpop.permute.xlu0 %1211
      %1215 = vset.pattern.permute.xlu0 2
      %1216 = vperm.xlu0 %1215, %v523
      %v1217 = vpop.permute.xlu0 %1216
      %1220 = vset.pattern.permute.xlu0 2
      %1221 = vperm.xlu0 %1220, %v524
      %v1222 = vpop.permute.xlu0 %1221
      %1225 = vset.pattern.permute.xlu0 2
      %1226 = vperm.xlu0 %1225, %v525
      %v1227 = vpop.permute.xlu0 %1226
      %1230 = vset.pattern.permute.xlu0 2
      %1231 = vperm.xlu0 %1230, %v526
      %v1232 = vpop.permute.xlu0 %1231
      %1235 = vset.pattern.permute.xlu0 2
      %1236 = vperm.xlu0 %1235, %v527
      %v1237 = vpop.permute.xlu0 %1236
      %1240 = vset.pattern.permute.xlu0 2
      %1241 = vperm.xlu0 %1240, %v528
      %v1242 = vpop.permute.xlu0 %1241
      %1245 = vset.pattern.permute.xlu0 2
      %1246 = vperm.xlu0 %1245, %v529
      %v1247 = vpop.permute.xlu0 %1246
      %1250 = vset.pattern.permute.xlu0 2
      %1251 = vperm.xlu0 %1250, %v530
      %v1252 = vpop.permute.xlu0 %1251
      %1255 = vset.pattern.permute.xlu0 2
      %1256 = vperm.xlu0 %1255, %v531
      %v1257 = vpop.permute.xlu0 %1256
      %1260 = vset.pattern.permute.xlu0 2
      %1261 = vperm.xlu0 %1260, %v532
      %v1262 = vpop.permute.xlu0 %1261
      %1265 = vset.pattern.permute.xlu0 2
      %1266 = vperm.xlu0 %1265, %v533
      %v1267 = vpop.permute.xlu0 %1266
      %1270 = vset.pattern.permute.xlu0 2
      %1271 = vperm.xlu0 %1270, %v534
      %v1272 = vpop.permute.xlu0 %1271
      %1275 = vset.pattern.permute.xlu0 2
      %1276 = vperm.xlu0 %1275, %v535
      %v1277 = vpop.permute.xlu0 %1276
      %1280 = vset.pattern.permute.xlu0 2
      %1281 = vperm.xlu0 %1280, %v536
      %v1282 = vpop.permute.xlu0 %1281
      %1285 = vset.pattern.permute.xlu0 2
      %1286 = vperm.xlu0 %1285, %v537
      %v1287 = vpop.permute.xlu0 %1286
      %1290 = vset.pattern.permute.xlu0 2
      %1291 = vperm.xlu0 %1290, %v538
      %v1292 = vpop.permute.xlu0 %1291
      %1295 = vset.pattern.permute.xlu0 2
      %1296 = vperm.xlu0 %1295, %v539
      %v1297 = vpop.permute.xlu0 %1296
      %1300 = vset.pattern.permute.xlu0 2
      %1301 = vperm.xlu0 %1300, %v540
      %v1302 = vpop.permute.xlu0 %1301
      %1305 = vset.pattern.permute.xlu0 2
      %1306 = vperm.xlu0 %1305, %v541
      %v1307 = vpop.permute.xlu0 %1306
      %1310 = vset.pattern.permute.xlu0 2
      %1311 = vperm.xlu0 %1310, %v542
      %v1312 = vpop.permute.xlu0 %1311
      %v1314 = vsel %vm930, %v997, 0.0
      %v1315 = vsel %vm931, %v1002, 0.0
      %v1316 = vsel %vm932, %v1007, 0.0
      %v1317 = vsel %vm933, %v1012, 0.0
      %v1318 = vsel %vm934, %v1017, 0.0
      %v1319 = vsel %vm935, %v1022, 0.0
      %v1320 = vsel %vm936, %v1027, 0.0
      %v1321 = vsel %vm937, %v1032, 0.0
      %v1322 = vsel %vm938, %v1037, 0.0
      %v1323 = vsel %vm939, %v1042, 0.0
      %v1324 = vsel %vm940, %v1047, 0.0
      %v1325 = vsel %vm941, %v1052, 0.0
      %v1326 = vsel %vm942, %v1057, 0.0
      %v1327 = vsel %vm943, %v1062, 0.0
      %v1328 = vsel %vm944, %v1067, 0.0
      %v1329 = vsel %vm945, %v1072, 0.0
      %v1330 = vsel %vm946, %v1077, 0.0
      %v1331 = vsel %vm947, %v1082, 0.0
      %v1332 = vsel %vm948, %v1087, 0.0
      %v1333 = vsel %vm949, %v1092, 0.0
      %v1334 = vsel %vm950, %v1097, 0.0
      %v1335 = vsel %vm951, %v1102, 0.0
      %v1336 = vsel %vm952, %v1107, 0.0
      %v1337 = vsel %vm953, %v1112, 0.0
      %v1338 = vsel %vm954, %v1117, 0.0
      %v1339 = vsel %vm955, %v1122, 0.0
      %v1340 = vsel %vm956, %v1127, 0.0
      %v1341 = vsel %vm957, %v1132, 0.0
      %v1342 = vsel %vm958, %v1137, 0.0
      %v1343 = vsel %vm959, %v1142, 0.0
      %v1344 = vsel %vm960, %v1147, 0.0
      %v1345 = vsel %vm961, %v1152, 0.0
      %v1346 = vsel %vm962, %v1157, 0.0
      %v1347 = vsel %vm963, %v1162, 0.0
      %v1348 = vsel %vm964, %v1167, 0.0
      %v1349 = vsel %vm965, %v1172, 0.0
      %v1350 = vsel %vm966, %v1177, 0.0
      %v1351 = vsel %vm967, %v1182, 0.0
      %v1352 = vsel %vm968, %v1187, 0.0
      %v1353 = vsel %vm969, %v1192, 0.0
      %v1354 = vsel %vm970, %v1197, 0.0
      %v1355 = vsel %vm971, %v1202, 0.0
      %v1356 = vsel %vm972, %v1207, 0.0
      %v1357 = vsel %vm973, %v1212, 0.0
      %v1358 = vsel %vm974, %v1217, 0.0
      %v1359 = vsel %vm975, %v1222, 0.0
      %v1360 = vsel %vm976, %v1227, 0.0
      %v1361 = vsel %vm977, %v1232, 0.0
      %v1362 = vsel %vm978, %v1237, 0.0
      %v1363 = vsel %vm979, %v1242, 0.0
      %v1364 = vsel %vm980, %v1247, 0.0
      %v1365 = vsel %vm981, %v1252, 0.0
      %v1366 = vsel %vm982, %v1257, 0.0
      %v1367 = vsel %vm983, %v1262, 0.0
      %v1368 = vsel %vm984, %v1267, 0.0
      %v1369 = vsel %vm985, %v1272, 0.0
      %v1370 = vsel %vm986, %v1277, 0.0
      %v1371 = vsel %vm987, %v1282, 0.0
      %v1372 = vsel %vm988, %v1287, 0.0
      %v1373 = vsel %vm989, %v1292, 0.0
      %v1374 = vsel %vm990, %v1297, 0.0
      %v1375 = vsel %vm991, %v1302, 0.0
      %v1376 = vsel %vm992, %v1307, 0.0
      %v1377 = vsel %vm993, %v1312, 0.0
      %v1378 = vld [vmem:[%s1] sm:$0x1]
      %1379 = vset.pattern.permute.xlu0 0
      %1380 = vperm.xlu0 %1379, %v479
      %v1381 = vpop.permute.xlu0 %1380
      %1383 = vset.pattern.permute.xlu0 0
      %1384 = vperm.xlu0 %1383, %v480
      %v1385 = vpop.permute.xlu0 %1384
      %1387 = vset.pattern.permute.xlu0 0
      %1388 = vperm.xlu0 %1387, %v481
      %v1389 = vpop.permute.xlu0 %1388
      %1391 = vset.pattern.permute.xlu0 0
      %1392 = vperm.xlu0 %1391, %v482
      %v1393 = vpop.permute.xlu0 %1392
      %1395 = vset.pattern.permute.xlu0 0
      %1396 = vperm.xlu0 %1395, %v483
      %v1397 = vpop.permute.xlu0 %1396
      %1399 = vset.pattern.permute.xlu0 0
      %1400 = vperm.xlu0 %1399, %v484
      %v1401 = vpop.permute.xlu0 %1400
      %1403 = vset.pattern.permute.xlu0 0
      %1404 = vperm.xlu0 %1403, %v485
      %v1405 = vpop.permute.xlu0 %1404
      %1407 = vset.pattern.permute.xlu0 0
      %1408 = vperm.xlu0 %1407, %v486
      %v1409 = vpop.permute.xlu0 %1408
      %1411 = vset.pattern.permute.xlu0 0
      %1412 = vperm.xlu0 %1411, %v487
      %v1413 = vpop.permute.xlu0 %1412
      %1415 = vset.pattern.permute.xlu0 0
      %1416 = vperm.xlu0 %1415, %v488
      %v1417 = vpop.permute.xlu0 %1416
      %1419 = vset.pattern.permute.xlu0 0
      %1420 = vperm.xlu0 %1419, %v489
      %v1421 = vpop.permute.xlu0 %1420
      %1423 = vset.pattern.permute.xlu0 0
      %1424 = vperm.xlu0 %1423, %v490
      %v1425 = vpop.permute.xlu0 %1424
      %1427 = vset.pattern.permute.xlu0 0
      %1428 = vperm.xlu0 %1427, %v491
      %v1429 = vpop.permute.xlu0 %1428
      %1431 = vset.pattern.permute.xlu0 0
      %1432 = vperm.xlu0 %1431, %v492
      %v1433 = vpop.permute.xlu0 %1432
      %1435 = vset.pattern.permute.xlu0 0
      %1436 = vperm.xlu0 %1435, %v493
      %v1437 = vpop.permute.xlu0 %1436
      %1439 = vset.pattern.permute.xlu0 0
      %1440 = vperm.xlu0 %1439, %v494
      %v1441 = vpop.permute.xlu0 %1440
      %1443 = vset.pattern.permute.xlu0 0
      %1444 = vperm.xlu0 %1443, %v495
      %v1445 = vpop.permute.xlu0 %1444
      %1447 = vset.pattern.permute.xlu0 0
      %1448 = vperm.xlu0 %1447, %v496
      %v1449 = vpop.permute.xlu0 %1448
      %1451 = vset.pattern.permute.xlu0 0
      %1452 = vperm.xlu0 %1451, %v497
      %v1453 = vpop.permute.xlu0 %1452
      %1455 = vset.pattern.permute.xlu0 0
      %1456 = vperm.xlu0 %1455, %v498
      %v1457 = vpop.permute.xlu0 %1456
      %1459 = vset.pattern.permute.xlu0 0
      %1460 = vperm.xlu0 %1459, %v499
      %v1461 = vpop.permute.xlu0 %1460
      %1463 = vset.pattern.permute.xlu0 0
      %1464 = vperm.xlu0 %1463, %v500
      %v1465 = vpop.permute.xlu0 %1464
      %1467 = vset.pattern.permute.xlu0 0
      %1468 = vperm.xlu0 %1467, %v501
      %v1469 = vpop.permute.xlu0 %1468
      %1471 = vset.pattern.permute.xlu0 0
      %1472 = vperm.xlu0 %1471, %v502
      %v1473 = vpop.permute.xlu0 %1472
      %1475 = vset.pattern.permute.xlu0 0
      %1476 = vperm.xlu0 %1475, %v503
      %v1477 = vpop.permute.xlu0 %1476
      %1479 = vset.pattern.permute.xlu0 0
      %1480 = vperm.xlu0 %1479, %v504
      %v1481 = vpop.permute.xlu0 %1480
      %1483 = vset.pattern.permute.xlu0 0
      %1484 = vperm.xlu0 %1483, %v505
      %v1485 = vpop.permute.xlu0 %1484
      %1487 = vset.pattern.permute.xlu0 0
      %1488 = vperm.xlu0 %1487, %v506
      %v1489 = vpop.permute.xlu0 %1488
      %1491 = vset.pattern.permute.xlu0 0
      %1492 = vperm.xlu0 %1491, %v507
      %v1493 = vpop.permute.xlu0 %1492
      %1495 = vset.pattern.permute.xlu0 0
      %1496 = vperm.xlu0 %1495, %v508
      %v1497 = vpop.permute.xlu0 %1496
      %1499 = vset.pattern.permute.xlu0 0
      %1500 = vperm.xlu0 %1499, %v509
      %v1501 = vpop.permute.xlu0 %1500
      %1503 = vset.pattern.permute.xlu0 0
      %1504 = vperm.xlu0 %1503, %v510
      %v1505 = vpop.permute.xlu0 %1504
      %1507 = vset.pattern.permute.xlu0 0
      %1508 = vperm.xlu0 %1507, %v511
      %v1509 = vpop.permute.xlu0 %1508
      %1511 = vset.pattern.permute.xlu0 0
      %1512 = vperm.xlu0 %1511, %v512
      %v1513 = vpop.permute.xlu0 %1512
      %1515 = vset.pattern.permute.xlu0 0
      %1516 = vperm.xlu0 %1515, %v513
      %v1517 = vpop.permute.xlu0 %1516
      %1519 = vset.pattern.permute.xlu0 0
      %1520 = vperm.xlu0 %1519, %v514
      %v1521 = vpop.permute.xlu0 %1520
      %1523 = vset.pattern.permute.xlu0 0
      %1524 = vperm.xlu0 %1523, %v515
      %v1525 = vpop.permute.xlu0 %1524
      %1527 = vset.pattern.permute.xlu0 0
      %1528 = vperm.xlu0 %1527, %v516
      %v1529 = vpop.permute.xlu0 %1528
      %1531 = vset.pattern.permute.xlu0 0
      %1532 = vperm.xlu0 %1531, %v517
      %v1533 = vpop.permute.xlu0 %1532
      %1535 = vset.pattern.permute.xlu0 0
      %1536 = vperm.xlu0 %1535, %v518
      %v1537 = vpop.permute.xlu0 %1536
      %1539 = vset.pattern.permute.xlu0 0
      %1540 = vperm.xlu0 %1539, %v519
      %v1541 = vpop.permute.xlu0 %1540
      %1543 = vset.pattern.permute.xlu0 0
      %1544 = vperm.xlu0 %1543, %v520
      %v1545 = vpop.permute.xlu0 %1544
      %1547 = vset.pattern.permute.xlu0 0
      %1548 = vperm.xlu0 %1547, %v521
      %v1549 = vpop.permute.xlu0 %1548
      %1551 = vset.pattern.permute.xlu0 0
      %1552 = vperm.xlu0 %1551, %v522
      %v1553 = vpop.permute.xlu0 %1552
      %1555 = vset.pattern.permute.xlu0 0
      %1556 = vperm.xlu0 %1555, %v523
      %v1557 = vpop.permute.xlu0 %1556
      %1559 = vset.pattern.permute.xlu0 0
      %1560 = vperm.xlu0 %1559, %v524
      %v1561 = vpop.permute.xlu0 %1560
      %1563 = vset.pattern.permute.xlu0 0
      %1564 = vperm.xlu0 %1563, %v525
      %v1565 = vpop.permute.xlu0 %1564
      %1567 = vset.pattern.permute.xlu0 0
      %1568 = vperm.xlu0 %1567, %v526
      %v1569 = vpop.permute.xlu0 %1568
      %1571 = vset.pattern.permute.xlu0 0
      %1572 = vperm.xlu0 %1571, %v527
      %v1573 = vpop.permute.xlu0 %1572
      %1575 = vset.pattern.permute.xlu0 0
      %1576 = vperm.xlu0 %1575, %v528
      %v1577 = vpop.permute.xlu0 %1576
      %1579 = vset.pattern.permute.xlu0 0
      %1580 = vperm.xlu0 %1579, %v529
      %v1581 = vpop.permute.xlu0 %1580
      %1583 = vset.pattern.permute.xlu0 0
      %1584 = vperm.xlu0 %1583, %v530
      %v1585 = vpop.permute.xlu0 %1584
      %1587 = vset.pattern.permute.xlu0 0
      %1588 = vperm.xlu0 %1587, %v531
      %v1589 = vpop.permute.xlu0 %1588
      %1591 = vset.pattern.permute.xlu0 0
      %1592 = vperm.xlu0 %1591, %v532
      %v1593 = vpop.permute.xlu0 %1592
      %1595 = vset.pattern.permute.xlu0 0
      %1596 = vperm.xlu0 %1595, %v533
      %v1597 = vpop.permute.xlu0 %1596
      %1599 = vset.pattern.permute.xlu0 0
      %1600 = vperm.xlu0 %1599, %v534
      %v1601 = vpop.permute.xlu0 %1600
      %1603 = vset.pattern.permute.xlu0 0
      %1604 = vperm.xlu0 %1603, %v535
      %v1605 = vpop.permute.xlu0 %1604
      %1607 = vset.pattern.permute.xlu0 0
      %1608 = vperm.xlu0 %1607, %v536
      %v1609 = vpop.permute.xlu0 %1608
      %1611 = vset.pattern.permute.xlu0 0
      %1612 = vperm.xlu0 %1611, %v537
      %v1613 = vpop.permute.xlu0 %1612
      %1615 = vset.pattern.permute.xlu0 0
      %1616 = vperm.xlu0 %1615, %v538
      %v1617 = vpop.permute.xlu0 %1616
      %1619 = vset.pattern.permute.xlu0 0
      %1620 = vperm.xlu0 %1619, %v539
      %v1621 = vpop.permute.xlu0 %1620
      %1623 = vset.pattern.permute.xlu0 0
      %1624 = vperm.xlu0 %1623, %v540
      %v1625 = vpop.permute.xlu0 %1624
      %1627 = vset.pattern.permute.xlu0 0
      %1628 = vperm.xlu0 %1627, %v541
      %v1629 = vpop.permute.xlu0 %1628
      %1631 = vset.pattern.permute.xlu0 0
      %1632 = vperm.xlu0 %1631, %v542
      %v1633 = vpop.permute.xlu0 %1632
      %v1636 = vlaneseq
      %v1637 = vshrl.u32 %v1636, 7
      %v1638 = vsub.s32 0, %v1637
      %v1639 = vrot.slane %v1378, %v1638
      %v1641 = vmul.f32 %v1381, %v1639
      %v1642 = vmul.f32 %v1385, %v1639
      %v1643 = vmul.f32 %v1389, %v1639
      %v1644 = vmul.f32 %v1393, %v1639
      %v1645 = vmul.f32 %v1397, %v1639
      %v1646 = vmul.f32 %v1401, %v1639
      %v1647 = vmul.f32 %v1405, %v1639
      %v1648 = vmul.f32 %v1409, %v1639
      %v1649 = vmul.f32 %v1413, %v1639
      %v1650 = vmul.f32 %v1417, %v1639
      %v1651 = vmul.f32 %v1421, %v1639
      %v1652 = vmul.f32 %v1425, %v1639
      %v1653 = vmul.f32 %v1429, %v1639
      %v1654 = vmul.f32 %v1433, %v1639
      %v1655 = vmul.f32 %v1437, %v1639
      %v1656 = vmul.f32 %v1441, %v1639
      %v1657 = vmul.f32 %v1445, %v1639
      %v1658 = vmul.f32 %v1449, %v1639
      %v1659 = vmul.f32 %v1453, %v1639
      %v1660 = vmul.f32 %v1457, %v1639
      %v1661 = vmul.f32 %v1461, %v1639
      %v1662 = vmul.f32 %v1465, %v1639
      %v1663 = vmul.f32 %v1469, %v1639
      %v1664 = vmul.f32 %v1473, %v1639
      %v1665 = vmul.f32 %v1477, %v1639
      %v1666 = vmul.f32 %v1481, %v1639
      %v1667 = vmul.f32 %v1485, %v1639
      %v1668 = vmul.f32 %v1489, %v1639
      %v1669 = vmul.f32 %v1493, %v1639
      %v1670 = vmul.f32 %v1497, %v1639
      %v1671 = vmul.f32 %v1501, %v1639
      %v1672 = vmul.f32 %v1505, %v1639
      %v1673 = vmul.f32 %v1509, %v1639
      %v1674 = vmul.f32 %v1513, %v1639
      %v1675 = vmul.f32 %v1517, %v1639
      %v1676 = vmul.f32 %v1521, %v1639
      %v1677 = vmul.f32 %v1525, %v1639
      %v1678 = vmul.f32 %v1529, %v1639
      %v1679 = vmul.f32 %v1533, %v1639
      %v1680 = vmul.f32 %v1537, %v1639
      %v1681 = vmul.f32 %v1541, %v1639
      %v1682 = vmul.f32 %v1545, %v1639
      %v1683 = vmul.f32 %v1549, %v1639
      %v1684 = vmul.f32 %v1553, %v1639
      %v1685 = vmul.f32 %v1557, %v1639
      %v1686 = vmul.f32 %v1561, %v1639
      %v1687 = vmul.f32 %v1565, %v1639
      %v1688 = vmul.f32 %v1569, %v1639
      %v1689 = vmul.f32 %v1573, %v1639
      %v1690 = vmul.f32 %v1577, %v1639
      %v1691 = vmul.f32 %v1581, %v1639
      %v1692 = vmul.f32 %v1585, %v1639
      %v1693 = vmul.f32 %v1589, %v1639
      %v1694 = vmul.f32 %v1593, %v1639
      %v1695 = vmul.f32 %v1597, %v1639
      %v1696 = vmul.f32 %v1601, %v1639
      %v1697 = vmul.f32 %v1605, %v1639
      %v1698 = vmul.f32 %v1609, %v1639
      %v1699 = vmul.f32 %v1613, %v1639
      %v1700 = vmul.f32 %v1617, %v1639
      %v1701 = vmul.f32 %v1621, %v1639
      %v1702 = vmul.f32 %v1625, %v1639
      %v1703 = vmul.f32 %v1629, %v1639
      %v1704 = vmul.f32 %v1633, %v1639
      %v1705 = vld [vmem:[%s2] sm:$0x1]
      %v1707 = vlaneseq
      %v1708 = vshrl.u32 %v1707, 7
      %v1709 = vsub.s32 0, %v1708
      %v1710 = vrot.slane %v1705, %v1709
      %v1712 = vadd.f32 %v1641, %v1710
      %v1713 = vadd.f32 %v1642, %v1710
      %v1714 = vadd.f32 %v1643, %v1710
      %v1715 = vadd.f32 %v1644, %v1710
      %v1716 = vadd.f32 %v1645, %v1710
      %v1717 = vadd.f32 %v1646, %v1710
      %v1718 = vadd.f32 %v1647, %v1710
      %v1719 = vadd.f32 %v1648, %v1710
      %v1720 = vadd.f32 %v1649, %v1710
      %v1721 = vadd.f32 %v1650, %v1710
      %v1722 = vadd.f32 %v1651, %v1710
      %v1723 = vadd.f32 %v1652, %v1710
      %v1724 = vadd.f32 %v1653, %v1710
      %v1725 = vadd.f32 %v1654, %v1710
      %v1726 = vadd.f32 %v1655, %v1710
      %v1727 = vadd.f32 %v1656, %v1710
      %v1728 = vadd.f32 %v1657, %v1710
      %v1729 = vadd.f32 %v1658, %v1710
      %v1730 = vadd.f32 %v1659, %v1710
      %v1731 = vadd.f32 %v1660, %v1710
      %v1732 = vadd.f32 %v1661, %v1710
      %v1733 = vadd.f32 %v1662, %v1710
      %v1734 = vadd.f32 %v1663, %v1710
      %v1735 = vadd.f32 %v1664, %v1710
      %v1736 = vadd.f32 %v1665, %v1710
      %v1737 = vadd.f32 %v1666, %v1710
      %v1738 = vadd.f32 %v1667, %v1710
      %v1739 = vadd.f32 %v1668, %v1710
      %v1740 = vadd.f32 %v1669, %v1710
      %v1741 = vadd.f32 %v1670, %v1710
      %v1742 = vadd.f32 %v1671, %v1710
      %v1743 = vadd.f32 %v1672, %v1710
      %v1744 = vadd.f32 %v1673, %v1710
      %v1745 = vadd.f32 %v1674, %v1710
      %v1746 = vadd.f32 %v1675, %v1710
      %v1747 = vadd.f32 %v1676, %v1710
      %v1748 = vadd.f32 %v1677, %v1710
      %v1749 = vadd.f32 %v1678, %v1710
      %v1750 = vadd.f32 %v1679, %v1710
      %v1751 = vadd.f32 %v1680, %v1710
      %v1752 = vadd.f32 %v1681, %v1710
      %v1753 = vadd.f32 %v1682, %v1710
      %v1754 = vadd.f32 %v1683, %v1710
      %v1755 = vadd.f32 %v1684, %v1710
      %v1756 = vadd.f32 %v1685, %v1710
      %v1757 = vadd.f32 %v1686, %v1710
      %v1758 = vadd.f32 %v1687, %v1710
      %v1759 = vadd.f32 %v1688, %v1710
      %v1760 = vadd.f32 %v1689, %v1710
      %v1761 = vadd.f32 %v1690, %v1710
      %v1762 = vadd.f32 %v1691, %v1710
      %v1763 = vadd.f32 %v1692, %v1710
      %v1764 = vadd.f32 %v1693, %v1710
      %v1765 = vadd.f32 %v1694, %v1710
      %v1766 = vadd.f32 %v1695, %v1710
      %v1767 = vadd.f32 %v1696, %v1710
      %v1768 = vadd.f32 %v1697, %v1710
      %v1769 = vadd.f32 %v1698, %v1710
      %v1770 = vadd.f32 %v1699, %v1710
      %v1771 = vadd.f32 %v1700, %v1710
      %v1772 = vadd.f32 %v1701, %v1710
      %v1773 = vadd.f32 %v1702, %v1710
      %v1774 = vadd.f32 %v1703, %v1710
      %v1775 = vadd.f32 %v1704, %v1710
      %v1776 = vmax.f32 %v1712, 0.0
      %v1777 = vmax.f32 %v1713, 0.0
      %v1778 = vmax.f32 %v1714, 0.0
      %v1779 = vmax.f32 %v1715, 0.0
      %v1780 = vmax.f32 %v1716, 0.0
      %v1781 = vmax.f32 %v1717, 0.0
      %v1782 = vmax.f32 %v1718, 0.0
      %v1783 = vmax.f32 %v1719, 0.0
      %v1784 = vmax.f32 %v1720, 0.0
      %v1785 = vmax.f32 %v1721, 0.0
      %v1786 = vmax.f32 %v1722, 0.0
      %v1787 = vmax.f32 %v1723, 0.0
      %v1788 = vmax.f32 %v1724, 0.0
      %v1789 = vmax.f32 %v1725, 0.0
      %v1790 = vmax.f32 %v1726, 0.0
      %v1791 = vmax.f32 %v1727, 0.0
      %v1792 = vmax.f32 %v1728, 0.0
      %v1793 = vmax.f32 %v1729, 0.0
      %v1794 = vmax.f32 %v1730, 0.0
      %v1795 = vmax.f32 %v1731, 0.0
      %v1796 = vmax.f32 %v1732, 0.0
      %v1797 = vmax.f32 %v1733, 0.0
      %v1798 = vmax.f32 %v1734, 0.0
      %v1799 = vmax.f32 %v1735, 0.0
      %v1800 = vmax.f32 %v1736, 0.0
      %v1801 = vmax.f32 %v1737, 0.0
      %v1802 = vmax.f32 %v1738, 0.0
      %v1803 = vmax.f32 %v1739, 0.0
      %v1804 = vmax.f32 %v1740, 0.0
      %v1805 = vmax.f32 %v1741, 0.0
      %v1806 = vmax.f32 %v1742, 0.0
      %v1807 = vmax.f32 %v1743, 0.0
      %v1808 = vmax.f32 %v1744, 0.0
      %v1809 = vmax.f32 %v1745, 0.0
      %v1810 = vmax.f32 %v1746, 0.0
      %v1811 = vmax.f32 %v1747, 0.0
      %v1812 = vmax.f32 %v1748, 0.0
      %v1813 = vmax.f32 %v1749, 0.0
      %v1814 = vmax.f32 %v1750, 0.0
      %v1815 = vmax.f32 %v1751, 0.0
      %v1816 = vmax.f32 %v1752, 0.0
      %v1817 = vmax.f32 %v1753, 0.0
      %v1818 = vmax.f32 %v1754, 0.0
      %v1819 = vmax.f32 %v1755, 0.0
      %v1820 = vmax.f32 %v1756, 0.0
      %v1821 = vmax.f32 %v1757, 0.0
      %v1822 = vmax.f32 %v1758, 0.0
      %v1823 = vmax.f32 %v1759, 0.0
      %v1824 = vmax.f32 %v1760, 0.0
      %v1825 = vmax.f32 %v1761, 0.0
      %v1826 = vmax.f32 %v1762, 0.0
      %v1827 = vmax.f32 %v1763, 0.0
      %v1828 = vmax.f32 %v1764, 0.0
      %v1829 = vmax.f32 %v1765, 0.0
      %v1830 = vmax.f32 %v1766, 0.0
      %v1831 = vmax.f32 %v1767, 0.0
      %v1832 = vmax.f32 %v1768, 0.0
      %v1833 = vmax.f32 %v1769, 0.0
      %v1834 = vmax.f32 %v1770, 0.0
      %v1835 = vmax.f32 %v1771, 0.0
      %v1836 = vmax.f32 %v1772, 0.0
      %v1837 = vmax.f32 %v1773, 0.0
      %v1838 = vmax.f32 %v1774, 0.0
      %v1839 = vmax.f32 %v1775, 0.0
      %v1840 = vld [vmem:[%s3] sm:$0xff]
      %v1841 = vld [vmem:[%s3 + $0x8] sm:$0xff]
      %v1842 = vld [vmem:[%s3 + $0x10] sm:$0xff]
      %v1843 = vld [vmem:[%s3 + $0x18] sm:$0xff]
      %v1844 = vld [vmem:[%s3 + $0x20] sm:$0xff]
      %v1845 = vld [vmem:[%s3 + $0x28] sm:$0xff]
      %v1846 = vld [vmem:[%s3 + $0x30] sm:$0xff]
      %v1847 = vld [vmem:[%s3 + $0x38] sm:$0xff]
      %v1848 = vld [vmem:[%s4] sm:$0x1]
      %v1850 = vlaneseq
      %v1851 = vshrl.u32 %v1850, 7
      %v1852 = vsub.s32 0, %v1851
      %v1853 = vrot.slane %v1848, %v1852
      %vm1855 = vcmask 523264
      %v1857 = vsel %vm1855, %v1776, 0
      %v1860 = vsel %vm1855, %v1777, 0
      %v1863 = vsel %vm1855, %v1778, 0
      %v1866 = vsel %vm1855, %v1779, 0
      %v1869 = vsel %vm1855, %v1780, 0
      %v1872 = vsel %vm1855, %v1781, 0
      %v1875 = vsel %vm1855, %v1782, 0
      %v1878 = vsel %vm1855, %v1783, 0
      %v1881 = vsel %vm1855, %v1784, 0
      %v1884 = vsel %vm1855, %v1785, 0
      %v1887 = vsel %vm1855, %v1786, 0
      %v1890 = vsel %vm1855, %v1787, 0
      %v1893 = vsel %vm1855, %v1788, 0
      %v1896 = vsel %vm1855, %v1789, 0
      %v1899 = vsel %vm1855, %v1790, 0
      %v1902 = vsel %vm1855, %v1791, 0
      %v1905 = vsel %vm1855, %v1792, 0
      %v1908 = vsel %vm1855, %v1793, 0
      %v1911 = vsel %vm1855, %v1794, 0
      %v1914 = vsel %vm1855, %v1795, 0
      %v1917 = vsel %vm1855, %v1796, 0
      %v1920 = vsel %vm1855, %v1797, 0
      %v1923 = vsel %vm1855, %v1798, 0
      %v1926 = vsel %vm1855, %v1799, 0
      %v1929 = vsel %vm1855, %v1800, 0
      %v1932 = vsel %vm1855, %v1801, 0
      %v1935 = vsel %vm1855, %v1802, 0
      %v1938 = vsel %vm1855, %v1803, 0
      %v1941 = vsel %vm1855, %v1804, 0
      %v1944 = vsel %vm1855, %v1805, 0
      %v1947 = vsel %vm1855, %v1806, 0
      %v1950 = vsel %vm1855, %v1807, 0
      %v1953 = vsel %vm1855, %v1808, 0
      %v1956 = vsel %vm1855, %v1809, 0
      %v1959 = vsel %vm1855, %v1810, 0
      %v1962 = vsel %vm1855, %v1811, 0
      %v1965 = vsel %vm1855, %v1812, 0
      %v1968 = vsel %vm1855, %v1813, 0
      %v1971 = vsel %vm1855, %v1814, 0
      %v1974 = vsel %vm1855, %v1815, 0
      %v1977 = vsel %vm1855, %v1816, 0
      %v1980 = vsel %vm1855, %v1817, 0
      %v1983 = vsel %vm1855, %v1818, 0
      %v1986 = vsel %vm1855, %v1819, 0
      %v1989 = vsel %vm1855, %v1820, 0
      %v1992 = vsel %vm1855, %v1821, 0
      %v1995 = vsel %vm1855, %v1822, 0
      %v1998 = vsel %vm1855, %v1823, 0
      %v2001 = vsel %vm1855, %v1824, 0
      %v2004 = vsel %vm1855, %v1825, 0
      %v2007 = vsel %vm1855, %v1826, 0
      %v2010 = vsel %vm1855, %v1827, 0
      %v2013 = vsel %vm1855, %v1828, 0
      %v2016 = vsel %vm1855, %v1829, 0
      %v2019 = vsel %vm1855, %v1830, 0
      %v2022 = vsel %vm1855, %v1831, 0
      %v2025 = vsel %vm1855, %v1832, 0
      %v2028 = vsel %vm1855, %v1833, 0
      %v2031 = vsel %vm1855, %v1834, 0
      %v2034 = vsel %vm1855, %v1835, 0
      %v2037 = vsel %vm1855, %v1836, 0
      %v2040 = vsel %vm1855, %v1837, 0
      %v2043 = vsel %vm1855, %v1838, 0
      %v2046 = vsel %vm1855, %v1839, 0
      %2048 = vmatprep.subr.mxu0 0.0
      %2049 = vmatpush1.msra.mxu0 0.0
      %2050 = vmatprep.subr.mxu0 0.0
      %2051 = vmatpush1.msra.mxu0 0.0
      %2052 = vmatprep.subr.mxu0 0.0
      %2053 = vmatpush1.msra.mxu0 0.0
      %2054 = vmatprep.subr.mxu0 0.0
      %2055 = vmatpush1.msra.mxu0 0.0
      %2056 = vmatprep.subr.mxu0 0.0
      %2057 = vmatpush1.msra.mxu0 0.0
      %2058 = vmatprep.subr.mxu0 0.0
      %2059 = vmatpush1.msra.mxu0 0.0
      %2060 = vmatprep.subr.mxu0 0.0
      %2061 = vmatpush1.msra.mxu0 0.0
      %2062 = vmatprep.subr.mxu0 0.0
      %2063 = vmatpush1.msra.mxu0 0.0
      %2064 = vmatprep.subr.mxu0 0.0
      %2065 = vmatpush1.msra.mxu0 %v1847
      %2066 = vmatprep.subr.mxu0 0.0
      %2067 = vmatpush1.msra.mxu0 %v1846
      %2068 = vmatprep.subr.mxu0 0.0
      %2069 = vmatpush1.msra.mxu0 %v1845
      %2070 = vmatprep.subr.mxu0 0.0
      %2071 = vmatpush1.msra.mxu0 %v1844
      %2072 = vmatprep.subr.mxu0 0.0
      %2073 = vmatpush1.msra.mxu0 %v1843
      %2074 = vmatprep.subr.mxu0 0.0
      %2075 = vmatpush1.msra.mxu0 %v1842
      %2076 = vmatprep.subr.mxu0 0.0
      %2077 = vmatpush1.msra.mxu0 %v1841
      %2078 = vmatprep.subr.mxu0 0.0
      %2079 = vmatpush1.msra.mxu0 %v1840
      %2080 = vmatprep.subr.mxu0 0.0
      %2081 = vmatpush2.msra.mxu0 0.0
      %2082 = vmatprep.subr.mxu0 0.0
      %2083 = vmatpush2.msra.mxu0 0.0
      %2084 = vmatprep.subr.mxu0 0.0
      %2085 = vmatpush2.msra.mxu0 0.0
      %2086 = vmatprep.subr.mxu0 0.0
      %2087 = vmatpush2.msra.mxu0 0.0
      %2088 = vmatprep.subr.mxu0 0.0
      %2089 = vmatpush2.msra.mxu0 0.0
      %2090 = vmatprep.subr.mxu0 0.0
      %2091 = vmatpush2.msra.mxu0 0.0
      %2092 = vmatprep.subr.mxu0 0.0
      %2093 = vmatpush2.msra.mxu0 0.0
      %2094 = vmatprep.subr.mxu0 0.0
      %2095 = vmatpush2.msra.mxu0 0.0
      %2096 = vmatprep.subr.mxu0 0.0
      %2097 = vmatpush2.msra.mxu0 0.0
      %2098 = vmatprep.subr.mxu0 0.0
      %2099 = vmatpush2.msra.mxu0 0.0
      %2100 = vmatprep.subr.mxu0 0.0
      %2101 = vmatpush2.msra.mxu0 0.0
      %2102 = vmatprep.subr.mxu0 0.0
      %2103 = vmatpush2.msra.mxu0 0.0
      %2104 = vmatprep.subr.mxu0 0.0
      %2105 = vmatpush2.msra.mxu0 0.0
      %2106 = vmatprep.subr.mxu0 0.0
      %2107 = vmatpush2.msra.mxu0 0.0
      %2108 = vmatprep.subr.mxu0 0.0
      %2109 = vmatpush2.msra.mxu0 0.0
      %2110 = vmatprep.subr.mxu0 0.0
      %2111 = vmatpush2.msra.mxu0 0.0
      %2112 = vmatprep.mubr.f32.mxu0 0.0
      %2113 = vmatmul.mubr.f32.gmra.mxu0 %v1857
      %v2114 = vpop.f32.mrf.mxu0
      %v2115 = vadd.f32 %v1853, %v2114
      %v2116 = vpop.f32.mrf.mxu0
      %2117 = vmatprep.mubr.f32.mxu0 0.0
      %2118 = vmatmul.mubr.f32.gmra.mxu0 %v1860
      %v2119 = vpop.f32.mrf.mxu0
      %v2120 = vadd.f32 %v1853, %v2119
      %v2121 = vpop.f32.mrf.mxu0
      %2122 = vmatprep.mubr.f32.mxu0 0.0
      %2123 = vmatmul.mubr.f32.gmra.mxu0 %v1863
      %v2124 = vpop.f32.mrf.mxu0
      %v2125 = vadd.f32 %v1853, %v2124
      %v2126 = vpop.f32.mrf.mxu0
      %2127 = vmatprep.mubr.f32.mxu0 0.0
      %2128 = vmatmul.mubr.f32.gmra.mxu0 %v1866
      %v2129 = vpop.f32.mrf.mxu0
      %v2130 = vadd.f32 %v1853, %v2129
      %v2131 = vpop.f32.mrf.mxu0
      %2132 = vmatprep.mubr.f32.mxu0 0.0
      %2133 = vmatmul.mubr.f32.gmra.mxu0 %v1869
      %v2134 = vpop.f32.mrf.mxu0
      %v2135 = vadd.f32 %v1853, %v2134
      %v2136 = vpop.f32.mrf.mxu0
      %2137 = vmatprep.mubr.f32.mxu0 0.0
      %2138 = vmatmul.mubr.f32.gmra.mxu0 %v1872
      %v2139 = vpop.f32.mrf.mxu0
      %v2140 = vadd.f32 %v1853, %v2139
      %v2141 = vpop.f32.mrf.mxu0
      %2142 = vmatprep.mubr.f32.mxu0 0.0
      %2143 = vmatmul.mubr.f32.gmra.mxu0 %v1875
      %v2144 = vpop.f32.mrf.mxu0
      %v2145 = vadd.f32 %v1853, %v2144
      %v2146 = vpop.f32.mrf.mxu0
      %2147 = vmatprep.mubr.f32.mxu0 0.0
      %2148 = vmatmul.mubr.f32.gmra.mxu0 %v1878
      %v2149 = vpop.f32.mrf.mxu0
      %v2150 = vadd.f32 %v1853, %v2149
      %v2151 = vpop.f32.mrf.mxu0
      %2152 = vmatprep.mubr.f32.mxu0 0.0
      %2153 = vmatmul.mubr.f32.gmra.mxu0 %v1881
      %v2154 = vpop.f32.mrf.mxu0
      %v2155 = vadd.f32 %v1853, %v2154
      %v2156 = vpop.f32.mrf.mxu0
      %2157 = vmatprep.mubr.f32.mxu0 0.0
      %2158 = vmatmul.mubr.f32.gmra.mxu0 %v1884
      %v2159 = vpop.f32.mrf.mxu0
      %v2160 = vadd.f32 %v1853, %v2159
      %v2161 = vpop.f32.mrf.mxu0
      %2162 = vmatprep.mubr.f32.mxu0 0.0
      %2163 = vmatmul.mubr.f32.gmra.mxu0 %v1887
      %v2164 = vpop.f32.mrf.mxu0
      %v2165 = vadd.f32 %v1853, %v2164
      %v2166 = vpop.f32.mrf.mxu0
      %2167 = vmatprep.mubr.f32.mxu0 0.0
      %2168 = vmatmul.mubr.f32.gmra.mxu0 %v1890
      %v2169 = vpop.f32.mrf.mxu0
      %v2170 = vadd.f32 %v1853, %v2169
      %v2171 = vpop.f32.mrf.mxu0
      %2172 = vmatprep.mubr.f32.mxu0 0.0
      %2173 = vmatmul.mubr.f32.gmra.mxu0 %v1893
      %v2174 = vpop.f32.mrf.mxu0
      %v2175 = vadd.f32 %v1853, %v2174
      %v2176 = vpop.f32.mrf.mxu0
      %2177 = vmatprep.mubr.f32.mxu0 0.0
      %2178 = vmatmul.mubr.f32.gmra.mxu0 %v1896
      %v2179 = vpop.f32.mrf.mxu0
      %v2180 = vadd.f32 %v1853, %v2179
      %v2181 = vpop.f32.mrf.mxu0
      %2182 = vmatprep.mubr.f32.mxu0 0.0
      %2183 = vmatmul.mubr.f32.gmra.mxu0 %v1899
      %v2184 = vpop.f32.mrf.mxu0
      %v2185 = vadd.f32 %v1853, %v2184
      %v2186 = vpop.f32.mrf.mxu0
      %2187 = vmatprep.mubr.f32.mxu0 0.0
      %2188 = vmatmul.mubr.f32.gmra.mxu0 %v1902
      %v2189 = vpop.f32.mrf.mxu0
      %v2190 = vadd.f32 %v1853, %v2189
      %v2191 = vpop.f32.mrf.mxu0
      %2192 = vmatprep.mubr.f32.mxu0 0.0
      %2193 = vmatmul.mubr.f32.gmra.mxu0 %v1905
      %v2194 = vpop.f32.mrf.mxu0
      %v2195 = vadd.f32 %v1853, %v2194
      %v2196 = vpop.f32.mrf.mxu0
      %2197 = vmatprep.mubr.f32.mxu0 0.0
      %2198 = vmatmul.mubr.f32.gmra.mxu0 %v1908
      %v2199 = vpop.f32.mrf.mxu0
      %v2200 = vadd.f32 %v1853, %v2199
      %v2201 = vpop.f32.mrf.mxu0
      %2202 = vmatprep.mubr.f32.mxu0 0.0
      %2203 = vmatmul.mubr.f32.gmra.mxu0 %v1911
      %v2204 = vpop.f32.mrf.mxu0
      %v2205 = vadd.f32 %v1853, %v2204
      %v2206 = vpop.f32.mrf.mxu0
      %2207 = vmatprep.mubr.f32.mxu0 0.0
      %2208 = vmatmul.mubr.f32.gmra.mxu0 %v1914
      %v2209 = vpop.f32.mrf.mxu0
      %v2210 = vadd.f32 %v1853, %v2209
      %v2211 = vpop.f32.mrf.mxu0
      %2212 = vmatprep.mubr.f32.mxu0 0.0
      %2213 = vmatmul.mubr.f32.gmra.mxu0 %v1917
      %v2214 = vpop.f32.mrf.mxu0
      %v2215 = vadd.f32 %v1853, %v2214
      %v2216 = vpop.f32.mrf.mxu0
      %2217 = vmatprep.mubr.f32.mxu0 0.0
      %2218 = vmatmul.mubr.f32.gmra.mxu0 %v1920
      %v2219 = vpop.f32.mrf.mxu0
      %v2220 = vadd.f32 %v1853, %v2219
      %v2221 = vpop.f32.mrf.mxu0
      %2222 = vmatprep.mubr.f32.mxu0 0.0
      %2223 = vmatmul.mubr.f32.gmra.mxu0 %v1923
      %v2224 = vpop.f32.mrf.mxu0
      %v2225 = vadd.f32 %v1853, %v2224
      %v2226 = vpop.f32.mrf.mxu0
      %2227 = vmatprep.mubr.f32.mxu0 0.0
      %2228 = vmatmul.mubr.f32.gmra.mxu0 %v1926
      %v2229 = vpop.f32.mrf.mxu0
      %v2230 = vadd.f32 %v1853, %v2229
      %v2231 = vpop.f32.mrf.mxu0
      %2232 = vmatprep.mubr.f32.mxu0 0.0
      %2233 = vmatmul.mubr.f32.gmra.mxu0 %v1929
      %v2234 = vpop.f32.mrf.mxu0
      %v2235 = vadd.f32 %v1853, %v2234
      %v2236 = vpop.f32.mrf.mxu0
      %2237 = vmatprep.mubr.f32.mxu0 0.0
      %2238 = vmatmul.mubr.f32.gmra.mxu0 %v1932
      %v2239 = vpop.f32.mrf.mxu0
      %v2240 = vadd.f32 %v1853, %v2239
      %v2241 = vpop.f32.mrf.mxu0
      %2242 = vmatprep.mubr.f32.mxu0 0.0
      %2243 = vmatmul.mubr.f32.gmra.mxu0 %v1935
      %v2244 = vpop.f32.mrf.mxu0
      %v2245 = vadd.f32 %v1853, %v2244
      %v2246 = vpop.f32.mrf.mxu0
      %2247 = vmatprep.mubr.f32.mxu0 0.0
      %2248 = vmatmul.mubr.f32.gmra.mxu0 %v1938
      %v2249 = vpop.f32.mrf.mxu0
      %v2250 = vadd.f32 %v1853, %v2249
      %v2251 = vpop.f32.mrf.mxu0
      %2252 = vmatprep.mubr.f32.mxu0 0.0
      %2253 = vmatmul.mubr.f32.gmra.mxu0 %v1941
      %v2254 = vpop.f32.mrf.mxu0
      %v2255 = vadd.f32 %v1853, %v2254
      %v2256 = vpop.f32.mrf.mxu0
      %2257 = vmatprep.mubr.f32.mxu0 0.0
      %2258 = vmatmul.mubr.f32.gmra.mxu0 %v1944
      %v2259 = vpop.f32.mrf.mxu0
      %v2260 = vadd.f32 %v1853, %v2259
      %v2261 = vpop.f32.mrf.mxu0
      %2262 = vmatprep.mubr.f32.mxu0 0.0
      %2263 = vmatmul.mubr.f32.gmra.mxu0 %v1947
      %v2264 = vpop.f32.mrf.mxu0
      %v2265 = vadd.f32 %v1853, %v2264
      %v2266 = vpop.f32.mrf.mxu0
      %2267 = vmatprep.mubr.f32.mxu0 0.0
      %2268 = vmatmul.mubr.f32.gmra.mxu0 %v1950
      %v2269 = vpop.f32.mrf.mxu0
      %v2270 = vadd.f32 %v1853, %v2269
      %v2271 = vpop.f32.mrf.mxu0
      %2272 = vmatprep.mubr.f32.mxu0 0.0
      %2273 = vmatmul.mubr.f32.gmra.mxu0 %v1953
      %v2274 = vpop.f32.mrf.mxu0
      %v2275 = vadd.f32 %v1853, %v2274
      %v2276 = vpop.f32.mrf.mxu0
      %2277 = vmatprep.mubr.f32.mxu0 0.0
      %2278 = vmatmul.mubr.f32.gmra.mxu0 %v1956
      %v2279 = vpop.f32.mrf.mxu0
      %v2280 = vadd.f32 %v1853, %v2279
      %v2281 = vpop.f32.mrf.mxu0
      %2282 = vmatprep.mubr.f32.mxu0 0.0
      %2283 = vmatmul.mubr.f32.gmra.mxu0 %v1959
      %v2284 = vpop.f32.mrf.mxu0
      %v2285 = vadd.f32 %v1853, %v2284
      %v2286 = vpop.f32.mrf.mxu0
      %2287 = vmatprep.mubr.f32.mxu0 0.0
      %2288 = vmatmul.mubr.f32.gmra.mxu0 %v1962
      %v2289 = vpop.f32.mrf.mxu0
      %v2290 = vadd.f32 %v1853, %v2289
      %v2291 = vpop.f32.mrf.mxu0
      %2292 = vmatprep.mubr.f32.mxu0 0.0
      %2293 = vmatmul.mubr.f32.gmra.mxu0 %v1965
      %v2294 = vpop.f32.mrf.mxu0
      %v2295 = vadd.f32 %v1853, %v2294
      %v2296 = vpop.f32.mrf.mxu0
      %2297 = vmatprep.mubr.f32.mxu0 0.0
      %2298 = vmatmul.mubr.f32.gmra.mxu0 %v1968
      %v2299 = vpop.f32.mrf.mxu0
      %v2300 = vadd.f32 %v1853, %v2299
      %v2301 = vpop.f32.mrf.mxu0
      %2302 = vmatprep.mubr.f32.mxu0 0.0
      %2303 = vmatmul.mubr.f32.gmra.mxu0 %v1971
      %v2304 = vpop.f32.mrf.mxu0
      %v2305 = vadd.f32 %v1853, %v2304
      %v2306 = vpop.f32.mrf.mxu0
      %2307 = vmatprep.mubr.f32.mxu0 0.0
      %2308 = vmatmul.mubr.f32.gmra.mxu0 %v1974
      %v2309 = vpop.f32.mrf.mxu0
      %v2310 = vadd.f32 %v1853, %v2309
      %v2311 = vpop.f32.mrf.mxu0
      %2312 = vmatprep.mubr.f32.mxu0 0.0
      %2313 = vmatmul.mubr.f32.gmra.mxu0 %v1977
      %v2314 = vpop.f32.mrf.mxu0
      %v2315 = vadd.f32 %v1853, %v2314
      %v2316 = vpop.f32.mrf.mxu0
      %2317 = vmatprep.mubr.f32.mxu0 0.0
      %2318 = vmatmul.mubr.f32.gmra.mxu0 %v1980
      %v2319 = vpop.f32.mrf.mxu0
      %v2320 = vadd.f32 %v1853, %v2319
      %v2321 = vpop.f32.mrf.mxu0
      %2322 = vmatprep.mubr.f32.mxu0 0.0
      %2323 = vmatmul.mubr.f32.gmra.mxu0 %v1983
      %v2324 = vpop.f32.mrf.mxu0
      %v2325 = vadd.f32 %v1853, %v2324
      %v2326 = vpop.f32.mrf.mxu0
      %2327 = vmatprep.mubr.f32.mxu0 0.0
      %2328 = vmatmul.mubr.f32.gmra.mxu0 %v1986
      %v2329 = vpop.f32.mrf.mxu0
      %v2330 = vadd.f32 %v1853, %v2329
      %v2331 = vpop.f32.mrf.mxu0
      %2332 = vmatprep.mubr.f32.mxu0 0.0
      %2333 = vmatmul.mubr.f32.gmra.mxu0 %v1989
      %v2334 = vpop.f32.mrf.mxu0
      %v2335 = vadd.f32 %v1853, %v2334
      %v2336 = vpop.f32.mrf.mxu0
      %2337 = vmatprep.mubr.f32.mxu0 0.0
      %2338 = vmatmul.mubr.f32.gmra.mxu0 %v1992
      %v2339 = vpop.f32.mrf.mxu0
      %v2340 = vadd.f32 %v1853, %v2339
      %v2341 = vpop.f32.mrf.mxu0
      %2342 = vmatprep.mubr.f32.mxu0 0.0
      %2343 = vmatmul.mubr.f32.gmra.mxu0 %v1995
      %v2344 = vpop.f32.mrf.mxu0
      %v2345 = vadd.f32 %v1853, %v2344
      %v2346 = vpop.f32.mrf.mxu0
      %2347 = vmatprep.mubr.f32.mxu0 0.0
      %2348 = vmatmul.mubr.f32.gmra.mxu0 %v1998
      %v2349 = vpop.f32.mrf.mxu0
      %v2350 = vadd.f32 %v1853, %v2349
      %v2351 = vpop.f32.mrf.mxu0
      %2352 = vmatprep.mubr.f32.mxu0 0.0
      %2353 = vmatmul.mubr.f32.gmra.mxu0 %v2001
      %v2354 = vpop.f32.mrf.mxu0
      %v2355 = vadd.f32 %v1853, %v2354
      %v2356 = vpop.f32.mrf.mxu0
      %2357 = vmatprep.mubr.f32.mxu0 0.0
      %2358 = vmatmul.mubr.f32.gmra.mxu0 %v2004
      %v2359 = vpop.f32.mrf.mxu0
      %v2360 = vadd.f32 %v1853, %v2359
      %v2361 = vpop.f32.mrf.mxu0
      %2362 = vmatprep.mubr.f32.mxu0 0.0
      %2363 = vmatmul.mubr.f32.gmra.mxu0 %v2007
      %v2364 = vpop.f32.mrf.mxu0
      %v2365 = vadd.f32 %v1853, %v2364
      %v2366 = vpop.f32.mrf.mxu0
      %2367 = vmatprep.mubr.f32.mxu0 0.0
      %2368 = vmatmul.mubr.f32.gmra.mxu0 %v2010
      %v2369 = vpop.f32.mrf.mxu0
      %v2370 = vadd.f32 %v1853, %v2369
      %v2371 = vpop.f32.mrf.mxu0
      %2372 = vmatprep.mubr.f32.mxu0 0.0
      %2373 = vmatmul.mubr.f32.gmra.mxu0 %v2013
      %v2374 = vpop.f32.mrf.mxu0
      %v2375 = vadd.f32 %v1853, %v2374
      %v2376 = vpop.f32.mrf.mxu0
      %2377 = vmatprep.mubr.f32.mxu0 0.0
      %2378 = vmatmul.mubr.f32.gmra.mxu0 %v2016
      %v2379 = vpop.f32.mrf.mxu0
      %v2380 = vadd.f32 %v1853, %v2379
      %v2381 = vpop.f32.mrf.mxu0
      %2382 = vmatprep.mubr.f32.mxu0 0.0
      %2383 = vmatmul.mubr.f32.gmra.mxu0 %v2019
      %v2384 = vpop.f32.mrf.mxu0
      %v2385 = vadd.f32 %v1853, %v2384
      %v2386 = vpop.f32.mrf.mxu0
      %2387 = vmatprep.mubr.f32.mxu0 0.0
      %2388 = vmatmul.mubr.f32.gmra.mxu0 %v2022
      %v2389 = vpop.f32.mrf.mxu0
      %v2390 = vadd.f32 %v1853, %v2389
      %v2391 = vpop.f32.mrf.mxu0
      %2392 = vmatprep.mubr.f32.mxu0 0.0
      %2393 = vmatmul.mubr.f32.gmra.mxu0 %v2025
      %v2394 = vpop.f32.mrf.mxu0
      %v2395 = vadd.f32 %v1853, %v2394
      %v2396 = vpop.f32.mrf.mxu0
      %2397 = vmatprep.mubr.f32.mxu0 0.0
      %2398 = vmatmul.mubr.f32.gmra.mxu0 %v2028
      %v2399 = vpop.f32.mrf.mxu0
      %v2400 = vadd.f32 %v1853, %v2399
      %v2401 = vpop.f32.mrf.mxu0
      %2402 = vmatprep.mubr.f32.mxu0 0.0
      %2403 = vmatmul.mubr.f32.gmra.mxu0 %v2031
      %v2404 = vpop.f32.mrf.mxu0
      %v2405 = vadd.f32 %v1853, %v2404
      %v2406 = vpop.f32.mrf.mxu0
      %2407 = vmatprep.mubr.f32.mxu0 0.0
      %2408 = vmatmul.mubr.f32.gmra.mxu0 %v2034
      %v2409 = vpop.f32.mrf.mxu0
      %v2410 = vadd.f32 %v1853, %v2409
      %v2411 = vpop.f32.mrf.mxu0
      %2412 = vmatprep.mubr.f32.mxu0 0.0
      %2413 = vmatmul.mubr.f32.gmra.mxu0 %v2037
      %v2414 = vpop.f32.mrf.mxu0
      %v2415 = vadd.f32 %v1853, %v2414
      %v2416 = vpop.f32.mrf.mxu0
      %2417 = vmatprep.mubr.f32.mxu0 0.0
      %2418 = vmatmul.mubr.f32.gmra.mxu0 %v2040
      %v2419 = vpop.f32.mrf.mxu0
      %v2420 = vadd.f32 %v1853, %v2419
      %v2421 = vpop.f32.mrf.mxu0
      %2422 = vmatprep.mubr.f32.mxu0 0.0
      %2423 = vmatmul.mubr.f32.gmra.mxu0 %v2043
      %v2424 = vpop.f32.mrf.mxu0
      %v2425 = vadd.f32 %v1853, %v2424
      %v2426 = vpop.f32.mrf.mxu0
      %2427 = vmatprep.mubr.f32.mxu0 0.0
      %2428 = vmatmul.mubr.f32.gmra.mxu0 %v2046
      %v2429 = vpop.f32.mrf.mxu0
      %v2430 = vadd.f32 %v1853, %v2429
      %v2431 = vpop.f32.mrf.mxu0
      %2432 = vdwg.mxu0
      %v2433 = vmax.f32 %v2115, 0.0
      %v2434 = vmax.f32 %v2120, 0.0
      %v2435 = vmax.f32 %v2125, 0.0
      %v2436 = vmax.f32 %v2130, 0.0
      %v2437 = vmax.f32 %v2135, 0.0
      %v2438 = vmax.f32 %v2140, 0.0
      %v2439 = vmax.f32 %v2145, 0.0
      %v2440 = vmax.f32 %v2150, 0.0
      %v2441 = vmax.f32 %v2155, 0.0
      %v2442 = vmax.f32 %v2160, 0.0
      %v2443 = vmax.f32 %v2165, 0.0
      %v2444 = vmax.f32 %v2170, 0.0
      %v2445 = vmax.f32 %v2175, 0.0
      %v2446 = vmax.f32 %v2180, 0.0
      %v2447 = vmax.f32 %v2185, 0.0
      %v2448 = vmax.f32 %v2190, 0.0
      %v2449 = vmax.f32 %v2195, 0.0
      %v2450 = vmax.f32 %v2200, 0.0
      %v2451 = vmax.f32 %v2205, 0.0
      %v2452 = vmax.f32 %v2210, 0.0
      %v2453 = vmax.f32 %v2215, 0.0
      %v2454 = vmax.f32 %v2220, 0.0
      %v2455 = vmax.f32 %v2225, 0.0
      %v2456 = vmax.f32 %v2230, 0.0
      %v2457 = vmax.f32 %v2235, 0.0
      %v2458 = vmax.f32 %v2240, 0.0
      %v2459 = vmax.f32 %v2245, 0.0
      %v2460 = vmax.f32 %v2250, 0.0
      %v2461 = vmax.f32 %v2255, 0.0
      %v2462 = vmax.f32 %v2260, 0.0
      %v2463 = vmax.f32 %v2265, 0.0
      %v2464 = vmax.f32 %v2270, 0.0
      %v2465 = vmax.f32 %v2275, 0.0
      %v2466 = vmax.f32 %v2280, 0.0
      %v2467 = vmax.f32 %v2285, 0.0
      %v2468 = vmax.f32 %v2290, 0.0
      %v2469 = vmax.f32 %v2295, 0.0
      %v2470 = vmax.f32 %v2300, 0.0
      %v2471 = vmax.f32 %v2305, 0.0
      %v2472 = vmax.f32 %v2310, 0.0
      %v2473 = vmax.f32 %v2315, 0.0
      %v2474 = vmax.f32 %v2320, 0.0
      %v2475 = vmax.f32 %v2325, 0.0
      %v2476 = vmax.f32 %v2330, 0.0
      %v2477 = vmax.f32 %v2335, 0.0
      %v2478 = vmax.f32 %v2340, 0.0
      %v2479 = vmax.f32 %v2345, 0.0
      %v2480 = vmax.f32 %v2350, 0.0
      %v2481 = vmax.f32 %v2355, 0.0
      %v2482 = vmax.f32 %v2360, 0.0
      %v2483 = vmax.f32 %v2365, 0.0
      %v2484 = vmax.f32 %v2370, 0.0
      %v2485 = vmax.f32 %v2375, 0.0
      %v2486 = vmax.f32 %v2380, 0.0
      %v2487 = vmax.f32 %v2385, 0.0
      %v2488 = vmax.f32 %v2390, 0.0
      %v2489 = vmax.f32 %v2395, 0.0
      %v2490 = vmax.f32 %v2400, 0.0
      %v2491 = vmax.f32 %v2405, 0.0
      %v2492 = vmax.f32 %v2410, 0.0
      %v2493 = vmax.f32 %v2415, 0.0
      %v2494 = vmax.f32 %v2420, 0.0
      %v2495 = vmax.f32 %v2425, 0.0
      %v2496 = vmax.f32 %v2430, 0.0
      %v2497 = vld [vmem:[%s5] sm:$0xff]
      %v2498 = vld [vmem:[%s5 + $0x8] sm:$0xff]
      %v2499 = vld [vmem:[%s6] sm:$0x1]
      %v2501 = vlaneseq
      %v2502 = vshrl.u32 %v2501, 7
      %v2503 = vsub.s32 0, %v2502
      %v2504 = vrot.slane %v2499, %v2503
      %2570 = vrot.lane.b32.xlu0 %v2433, 96
      %v2571 = vpop.permute.xlu0 %2570
      %2572 = vrot.lane.b32.xlu0 %v2434, 96
      %v2573 = vpop.permute.xlu0 %2572
      %2574 = vrot.lane.b32.xlu0 %v2435, 96
      %v2575 = vpop.permute.xlu0 %2574
      %2576 = vrot.lane.b32.xlu0 %v2436, 96
      %v2577 = vpop.permute.xlu0 %2576
      %2578 = vrot.lane.b32.xlu0 %v2437, 96
      %v2579 = vpop.permute.xlu0 %2578
      %2580 = vrot.lane.b32.xlu0 %v2438, 96
      %v2581 = vpop.permute.xlu0 %2580
      %2582 = vrot.lane.b32.xlu0 %v2439, 96
      %v2583 = vpop.permute.xlu0 %2582
      %2584 = vrot.lane.b32.xlu0 %v2440, 96
      %v2585 = vpop.permute.xlu0 %2584
      %2586 = vrot.lane.b32.xlu0 %v2441, 96
      %v2587 = vpop.permute.xlu0 %2586
      %2588 = vrot.lane.b32.xlu0 %v2442, 96
      %v2589 = vpop.permute.xlu0 %2588
      %2590 = vrot.lane.b32.xlu0 %v2443, 96
      %v2591 = vpop.permute.xlu0 %2590
      %2592 = vrot.lane.b32.xlu0 %v2444, 96
      %v2593 = vpop.permute.xlu0 %2592
      %2594 = vrot.lane.b32.xlu0 %v2445, 96
      %v2595 = vpop.permute.xlu0 %2594
      %2596 = vrot.lane.b32.xlu0 %v2446, 96
      %v2597 = vpop.permute.xlu0 %2596
      %2598 = vrot.lane.b32.xlu0 %v2447, 96
      %v2599 = vpop.permute.xlu0 %2598
      %2600 = vrot.lane.b32.xlu0 %v2448, 96
      %v2601 = vpop.permute.xlu0 %2600
      %2602 = vrot.lane.b32.xlu0 %v2449, 96
      %v2603 = vpop.permute.xlu0 %2602
      %2604 = vrot.lane.b32.xlu0 %v2450, 96
      %v2605 = vpop.permute.xlu0 %2604
      %2606 = vrot.lane.b32.xlu0 %v2451, 96
      %v2607 = vpop.permute.xlu0 %2606
      %2608 = vrot.lane.b32.xlu0 %v2452, 96
      %v2609 = vpop.permute.xlu0 %2608
      %2610 = vrot.lane.b32.xlu0 %v2453, 96
      %v2611 = vpop.permute.xlu0 %2610
      %2612 = vrot.lane.b32.xlu0 %v2454, 96
      %v2613 = vpop.permute.xlu0 %2612
      %2614 = vrot.lane.b32.xlu0 %v2455, 96
      %v2615 = vpop.permute.xlu0 %2614
      %2616 = vrot.lane.b32.xlu0 %v2456, 96
      %v2617 = vpop.permute.xlu0 %2616
      %2618 = vrot.lane.b32.xlu0 %v2457, 96
      %v2619 = vpop.permute.xlu0 %2618
      %2620 = vrot.lane.b32.xlu0 %v2458, 96
      %v2621 = vpop.permute.xlu0 %2620
      %2622 = vrot.lane.b32.xlu0 %v2459, 96
      %v2623 = vpop.permute.xlu0 %2622
      %2624 = vrot.lane.b32.xlu0 %v2460, 96
      %v2625 = vpop.permute.xlu0 %2624
      %2626 = vrot.lane.b32.xlu0 %v2461, 96
      %v2627 = vpop.permute.xlu0 %2626
      %2628 = vrot.lane.b32.xlu0 %v2462, 96
      %v2629 = vpop.permute.xlu0 %2628
      %2630 = vrot.lane.b32.xlu0 %v2463, 96
      %v2631 = vpop.permute.xlu0 %2630
      %2632 = vrot.lane.b32.xlu0 %v2464, 96
      %v2633 = vpop.permute.xlu0 %2632
      %2634 = vrot.lane.b32.xlu0 %v2465, 96
      %v2635 = vpop.permute.xlu0 %2634
      %2636 = vrot.lane.b32.xlu0 %v2466, 96
      %v2637 = vpop.permute.xlu0 %2636
      %2638 = vrot.lane.b32.xlu0 %v2467, 96
      %v2639 = vpop.permute.xlu0 %2638
      %2640 = vrot.lane.b32.xlu0 %v2468, 96
      %v2641 = vpop.permute.xlu0 %2640
      %2642 = vrot.lane.b32.xlu0 %v2469, 96
      %v2643 = vpop.permute.xlu0 %2642
      %2644 = vrot.lane.b32.xlu0 %v2470, 96
      %v2645 = vpop.permute.xlu0 %2644
      %2646 = vrot.lane.b32.xlu0 %v2471, 96
      %v2647 = vpop.permute.xlu0 %2646
      %2648 = vrot.lane.b32.xlu0 %v2472, 96
      %v2649 = vpop.permute.xlu0 %2648
      %2650 = vrot.lane.b32.xlu0 %v2473, 96
      %v2651 = vpop.permute.xlu0 %2650
      %2652 = vrot.lane.b32.xlu0 %v2474, 96
      %v2653 = vpop.permute.xlu0 %2652
      %2654 = vrot.lane.b32.xlu0 %v2475, 96
      %v2655 = vpop.permute.xlu0 %2654
      %2656 = vrot.lane.b32.xlu0 %v2476, 96
      %v2657 = vpop.permute.xlu0 %2656
      %2658 = vrot.lane.b32.xlu0 %v2477, 96
      %v2659 = vpop.permute.xlu0 %2658
      %2660 = vrot.lane.b32.xlu0 %v2478, 96
      %v2661 = vpop.permute.xlu0 %2660
      %2662 = vrot.lane.b32.xlu0 %v2479, 96
      %v2663 = vpop.permute.xlu0 %2662
      %2664 = vrot.lane.b32.xlu0 %v2480, 96
      %v2665 = vpop.permute.xlu0 %2664
      %2666 = vrot.lane.b32.xlu0 %v2481, 96
      %v2667 = vpop.permute.xlu0 %2666
      %2668 = vrot.lane.b32.xlu0 %v2482, 96
      %v2669 = vpop.permute.xlu0 %2668
      %2670 = vrot.lane.b32.xlu0 %v2483, 96
      %v2671 = vpop.permute.xlu0 %2670
      %2672 = vrot.lane.b32.xlu0 %v2484, 96
      %v2673 = vpop.permute.xlu0 %2672
      %2674 = vrot.lane.b32.xlu0 %v2485, 96
      %v2675 = vpop.permute.xlu0 %2674
      %2676 = vrot.lane.b32.xlu0 %v2486, 96
      %v2677 = vpop.permute.xlu0 %2676
      %2678 = vrot.lane.b32.xlu0 %v2487, 96
      %v2679 = vpop.permute.xlu0 %2678
      %2680 = vrot.lane.b32.xlu0 %v2488, 96
      %v2681 = vpop.permute.xlu0 %2680
      %2682 = vrot.lane.b32.xlu0 %v2489, 96
      %v2683 = vpop.permute.xlu0 %2682
      %2684 = vrot.lane.b32.xlu0 %v2490, 96
      %v2685 = vpop.permute.xlu0 %2684
      %2686 = vrot.lane.b32.xlu0 %v2491, 96
      %v2687 = vpop.permute.xlu0 %2686
      %2688 = vrot.lane.b32.xlu0 %v2492, 96
      %v2689 = vpop.permute.xlu0 %2688
      %2690 = vrot.lane.b32.xlu0 %v2493, 96
      %v2691 = vpop.permute.xlu0 %2690
      %2692 = vrot.lane.b32.xlu0 %v2494, 96
      %v2693 = vpop.permute.xlu0 %2692
      %2694 = vrot.lane.b32.xlu0 %v2495, 96
      %v2695 = vpop.permute.xlu0 %2694
      %2696 = vrot.lane.b32.xlu0 %v2496, 96
      %v2697 = vpop.permute.xlu0 %2696
      %vm2698 = vcmask 130048
      %v2699 = vsel %vm2698, %v2571, 0
      %v2701 = vsel %vm2698, %v2573, 0
      %v2703 = vsel %vm2698, %v2575, 0
      %v2705 = vsel %vm2698, %v2577, 0
      %v2707 = vsel %vm2698, %v2579, 0
      %v2709 = vsel %vm2698, %v2581, 0
      %v2711 = vsel %vm2698, %v2583, 0
      %v2713 = vsel %vm2698, %v2585, 0
      %v2715 = vsel %vm2698, %v2587, 0
      %v2717 = vsel %vm2698, %v2589, 0
      %v2719 = vsel %vm2698, %v2591, 0
      %v2721 = vsel %vm2698, %v2593, 0
      %v2723 = vsel %vm2698, %v2595, 0
      %v2725 = vsel %vm2698, %v2597, 0
      %v2727 = vsel %vm2698, %v2599, 0
      %v2729 = vsel %vm2698, %v2601, 0
      %v2731 = vsel %vm2698, %v2603, 0
      %v2733 = vsel %vm2698, %v2605, 0
      %v2735 = vsel %vm2698, %v2607, 0
      %v2737 = vsel %vm2698, %v2609, 0
      %v2739 = vsel %vm2698, %v2611, 0
      %v2741 = vsel %vm2698, %v2613, 0
      %v2743 = vsel %vm2698, %v2615, 0
      %v2745 = vsel %vm2698, %v2617, 0
      %v2747 = vsel %vm2698, %v2619, 0
      %v2749 = vsel %vm2698, %v2621, 0
      %v2751 = vsel %vm2698, %v2623, 0
      %v2753 = vsel %vm2698, %v2625, 0
      %v2755 = vsel %vm2698, %v2627, 0
      %v2757 = vsel %vm2698, %v2629, 0
      %v2759 = vsel %vm2698, %v2631, 0
      %v2761 = vsel %vm2698, %v2633, 0
      %v2763 = vsel %vm2698, %v2635, 0
      %v2765 = vsel %vm2698, %v2637, 0
      %v2767 = vsel %vm2698, %v2639, 0
      %v2769 = vsel %vm2698, %v2641, 0
      %v2771 = vsel %vm2698, %v2643, 0
      %v2773 = vsel %vm2698, %v2645, 0
      %v2775 = vsel %vm2698, %v2647, 0
      %v2777 = vsel %vm2698, %v2649, 0
      %v2779 = vsel %vm2698, %v2651, 0
      %v2781 = vsel %vm2698, %v2653, 0
      %v2783 = vsel %vm2698, %v2655, 0
      %v2785 = vsel %vm2698, %v2657, 0
      %v2787 = vsel %vm2698, %v2659, 0
      %v2789 = vsel %vm2698, %v2661, 0
      %v2791 = vsel %vm2698, %v2663, 0
      %v2793 = vsel %vm2698, %v2665, 0
      %v2795 = vsel %vm2698, %v2667, 0
      %v2797 = vsel %vm2698, %v2669, 0
      %v2799 = vsel %vm2698, %v2671, 0
      %v2801 = vsel %vm2698, %v2673, 0
      %v2803 = vsel %vm2698, %v2675, 0
      %v2805 = vsel %vm2698, %v2677, 0
      %v2807 = vsel %vm2698, %v2679, 0
      %v2809 = vsel %vm2698, %v2681, 0
      %v2811 = vsel %vm2698, %v2683, 0
      %v2813 = vsel %vm2698, %v2685, 0
      %v2815 = vsel %vm2698, %v2687, 0
      %v2817 = vsel %vm2698, %v2689, 0
      %v2819 = vsel %vm2698, %v2691, 0
      %v2821 = vsel %vm2698, %v2693, 0
      %v2823 = vsel %vm2698, %v2695, 0
      %v2825 = vsel %vm2698, %v2697, 0
      %2827 = vmatprep.subr.mxu0 0.0
      %2828 = vmatpush1.msra.mxu0 0.0
      %2829 = vmatprep.subr.mxu0 0.0
      %2830 = vmatpush1.msra.mxu0 0.0
      %2831 = vmatprep.subr.mxu0 0.0
      %2832 = vmatpush1.msra.mxu0 0.0
      %2833 = vmatprep.subr.mxu0 0.0
      %2834 = vmatpush1.msra.mxu0 0.0
      %2835 = vmatprep.subr.mxu0 0.0
      %2836 = vmatpush1.msra.mxu0 0.0
      %2837 = vmatprep.subr.mxu0 0.0
      %2838 = vmatpush1.msra.mxu0 0.0
      %2839 = vmatprep.subr.mxu0 0.0
      %2840 = vmatpush1.msra.mxu0 0.0
      %2841 = vmatprep.subr.mxu0 0.0
      %2842 = vmatpush1.msra.mxu0 0.0
      %2843 = vmatprep.subr.mxu0 0.0
      %2844 = vmatpush1.msra.mxu0 0.0
      %2845 = vmatprep.subr.mxu0 0.0
      %2846 = vmatpush1.msra.mxu0 0.0
      %2847 = vmatprep.subr.mxu0 0.0
      %2848 = vmatpush1.msra.mxu0 0.0
      %2849 = vmatprep.subr.mxu0 0.0
      %2850 = vmatpush1.msra.mxu0 0.0
      %2851 = vmatprep.subr.mxu0 0.0
      %2852 = vmatpush1.msra.mxu0 0.0
      %2853 = vmatprep.subr.mxu0 0.0
      %2854 = vmatpush1.msra.mxu0 0.0
      %2855 = vmatprep.subr.mxu0 0.0
      %2856 = vmatpush1.msra.mxu0 %v2498
      %2857 = vmatprep.subr.mxu0 0.0
      %2858 = vmatpush1.msra.mxu0 %v2497
      %2859 = vmatprep.subr.mxu0 0.0
      %2860 = vmatpush2.msra.mxu0 0.0
      %2861 = vmatprep.subr.mxu0 0.0
      %2862 = vmatpush2.msra.mxu0 0.0
      %2863 = vmatprep.subr.mxu0 0.0
      %2864 = vmatpush2.msra.mxu0 0.0
      %2865 = vmatprep.subr.mxu0 0.0
      %2866 = vmatpush2.msra.mxu0 0.0
      %2867 = vmatprep.subr.mxu0 0.0
      %2868 = vmatpush2.msra.mxu0 0.0
      %2869 = vmatprep.subr.mxu0 0.0
      %2870 = vmatpush2.msra.mxu0 0.0
      %2871 = vmatprep.subr.mxu0 0.0
      %2872 = vmatpush2.msra.mxu0 0.0
      %2873 = vmatprep.subr.mxu0 0.0
      %2874 = vmatpush2.msra.mxu0 0.0
      %2875 = vmatprep.subr.mxu0 0.0
      %2876 = vmatpush2.msra.mxu0 0.0
      %2877 = vmatprep.subr.mxu0 0.0
      %2878 = vmatpush2.msra.mxu0 0.0
      %2879 = vmatprep.subr.mxu0 0.0
      %2880 = vmatpush2.msra.mxu0 0.0
      %2881 = vmatprep.subr.mxu0 0.0
      %2882 = vmatpush2.msra.mxu0 0.0
      %2883 = vmatprep.subr.mxu0 0.0
      %2884 = vmatpush2.msra.mxu0 0.0
      %2885 = vmatprep.subr.mxu0 0.0
      %2886 = vmatpush2.msra.mxu0 0.0
      %2887 = vmatprep.subr.mxu0 0.0
      %2888 = vmatpush2.msra.mxu0 0.0
      %2889 = vmatprep.subr.mxu0 0.0
      %2890 = vmatpush2.msra.mxu0 0.0
      %2891 = vmatprep.mubr.f32.mxu0 0.0
      %2892 = vmatmul.mubr.f32.gmra.mxu0 %v2699
      %v2893 = vpop.f32.mrf.mxu0
      %v2894 = vadd.f32 %v2504, %v2893
      %v2895 = vpop.f32.mrf.mxu0
      %2896 = vmatprep.mubr.f32.mxu0 0.0
      %2897 = vmatmul.mubr.f32.gmra.mxu0 %v2701
      %v2898 = vpop.f32.mrf.mxu0
      %v2899 = vadd.f32 %v2504, %v2898
      %v2900 = vpop.f32.mrf.mxu0
      %2901 = vmatprep.mubr.f32.mxu0 0.0
      %2902 = vmatmul.mubr.f32.gmra.mxu0 %v2703
      %v2903 = vpop.f32.mrf.mxu0
      %v2904 = vadd.f32 %v2504, %v2903
      %v2905 = vpop.f32.mrf.mxu0
      %2906 = vmatprep.mubr.f32.mxu0 0.0
      %2907 = vmatmul.mubr.f32.gmra.mxu0 %v2705
      %v2908 = vpop.f32.mrf.mxu0
      %v2909 = vadd.f32 %v2504, %v2908
      %v2910 = vpop.f32.mrf.mxu0
      %2911 = vmatprep.mubr.f32.mxu0 0.0
      %2912 = vmatmul.mubr.f32.gmra.mxu0 %v2707
      %v2913 = vpop.f32.mrf.mxu0
      %v2914 = vadd.f32 %v2504, %v2913
      %v2915 = vpop.f32.mrf.mxu0
      %2916 = vmatprep.mubr.f32.mxu0 0.0
      %2917 = vmatmul.mubr.f32.gmra.mxu0 %v2709
      %v2918 = vpop.f32.mrf.mxu0
      %v2919 = vadd.f32 %v2504, %v2918
      %v2920 = vpop.f32.mrf.mxu0
      %2921 = vmatprep.mubr.f32.mxu0 0.0
      %2922 = vmatmul.mubr.f32.gmra.mxu0 %v2711
      %v2923 = vpop.f32.mrf.mxu0
      %v2924 = vadd.f32 %v2504, %v2923
      %v2925 = vpop.f32.mrf.mxu0
      %2926 = vmatprep.mubr.f32.mxu0 0.0
      %2927 = vmatmul.mubr.f32.gmra.mxu0 %v2713
      %v2928 = vpop.f32.mrf.mxu0
      %v2929 = vadd.f32 %v2504, %v2928
      %v2930 = vpop.f32.mrf.mxu0
      %2931 = vmatprep.mubr.f32.mxu0 0.0
      %2932 = vmatmul.mubr.f32.gmra.mxu0 %v2715
      %v2933 = vpop.f32.mrf.mxu0
      %v2934 = vadd.f32 %v2504, %v2933
      %v2935 = vpop.f32.mrf.mxu0
      %2936 = vmatprep.mubr.f32.mxu0 0.0
      %2937 = vmatmul.mubr.f32.gmra.mxu0 %v2717
      %v2938 = vpop.f32.mrf.mxu0
      %v2939 = vadd.f32 %v2504, %v2938
      %v2940 = vpop.f32.mrf.mxu0
      %2941 = vmatprep.mubr.f32.mxu0 0.0
      %2942 = vmatmul.mubr.f32.gmra.mxu0 %v2719
      %v2943 = vpop.f32.mrf.mxu0
      %v2944 = vadd.f32 %v2504, %v2943
      %v2945 = vpop.f32.mrf.mxu0
      %2946 = vmatprep.mubr.f32.mxu0 0.0
      %2947 = vmatmul.mubr.f32.gmra.mxu0 %v2721
      %v2948 = vpop.f32.mrf.mxu0
      %v2949 = vadd.f32 %v2504, %v2948
      %v2950 = vpop.f32.mrf.mxu0
      %2951 = vmatprep.mubr.f32.mxu0 0.0
      %2952 = vmatmul.mubr.f32.gmra.mxu0 %v2723
      %v2953 = vpop.f32.mrf.mxu0
      %v2954 = vadd.f32 %v2504, %v2953
      %v2955 = vpop.f32.mrf.mxu0
      %2956 = vmatprep.mubr.f32.mxu0 0.0
      %2957 = vmatmul.mubr.f32.gmra.mxu0 %v2725
      %v2958 = vpop.f32.mrf.mxu0
      %v2959 = vadd.f32 %v2504, %v2958
      %v2960 = vpop.f32.mrf.mxu0
      %2961 = vmatprep.mubr.f32.mxu0 0.0
      %2962 = vmatmul.mubr.f32.gmra.mxu0 %v2727
      %v2963 = vpop.f32.mrf.mxu0
      %v2964 = vadd.f32 %v2504, %v2963
      %v2965 = vpop.f32.mrf.mxu0
      %2966 = vmatprep.mubr.f32.mxu0 0.0
      %2967 = vmatmul.mubr.f32.gmra.mxu0 %v2729
      %v2968 = vpop.f32.mrf.mxu0
      %v2969 = vadd.f32 %v2504, %v2968
      %v2970 = vpop.f32.mrf.mxu0
      %2971 = vmatprep.mubr.f32.mxu0 0.0
      %2972 = vmatmul.mubr.f32.gmra.mxu0 %v2731
      %v2973 = vpop.f32.mrf.mxu0
      %v2974 = vadd.f32 %v2504, %v2973
      %v2975 = vpop.f32.mrf.mxu0
      %2976 = vmatprep.mubr.f32.mxu0 0.0
      %2977 = vmatmul.mubr.f32.gmra.mxu0 %v2733
      %v2978 = vpop.f32.mrf.mxu0
      %v2979 = vadd.f32 %v2504, %v2978
      %v2980 = vpop.f32.mrf.mxu0
      %2981 = vmatprep.mubr.f32.mxu0 0.0
      %2982 = vmatmul.mubr.f32.gmra.mxu0 %v2735
      %v2983 = vpop.f32.mrf.mxu0
      %v2984 = vadd.f32 %v2504, %v2983
      %v2985 = vpop.f32.mrf.mxu0
      %2986 = vmatprep.mubr.f32.mxu0 0.0
      %2987 = vmatmul.mubr.f32.gmra.mxu0 %v2737
      %v2988 = vpop.f32.mrf.mxu0
      %v2989 = vadd.f32 %v2504, %v2988
      %v2990 = vpop.f32.mrf.mxu0
      %2991 = vmatprep.mubr.f32.mxu0 0.0
      %2992 = vmatmul.mubr.f32.gmra.mxu0 %v2739
      %v2993 = vpop.f32.mrf.mxu0
      %v2994 = vadd.f32 %v2504, %v2993
      %v2995 = vpop.f32.mrf.mxu0
      %2996 = vmatprep.mubr.f32.mxu0 0.0
      %2997 = vmatmul.mubr.f32.gmra.mxu0 %v2741
      %v2998 = vpop.f32.mrf.mxu0
      %v2999 = vadd.f32 %v2504, %v2998
      %v3000 = vpop.f32.mrf.mxu0
      %3001 = vmatprep.mubr.f32.mxu0 0.0
      %3002 = vmatmul.mubr.f32.gmra.mxu0 %v2743
      %v3003 = vpop.f32.mrf.mxu0
      %v3004 = vadd.f32 %v2504, %v3003
      %v3005 = vpop.f32.mrf.mxu0
      %3006 = vmatprep.mubr.f32.mxu0 0.0
      %3007 = vmatmul.mubr.f32.gmra.mxu0 %v2745
      %v3008 = vpop.f32.mrf.mxu0
      %v3009 = vadd.f32 %v2504, %v3008
      %v3010 = vpop.f32.mrf.mxu0
      %3011 = vmatprep.mubr.f32.mxu0 0.0
      %3012 = vmatmul.mubr.f32.gmra.mxu0 %v2747
      %v3013 = vpop.f32.mrf.mxu0
      %v3014 = vadd.f32 %v2504, %v3013
      %v3015 = vpop.f32.mrf.mxu0
      %3016 = vmatprep.mubr.f32.mxu0 0.0
      %3017 = vmatmul.mubr.f32.gmra.mxu0 %v2749
      %v3018 = vpop.f32.mrf.mxu0
      %v3019 = vadd.f32 %v2504, %v3018
      %v3020 = vpop.f32.mrf.mxu0
      %3021 = vmatprep.mubr.f32.mxu0 0.0
      %3022 = vmatmul.mubr.f32.gmra.mxu0 %v2751
      %v3023 = vpop.f32.mrf.mxu0
      %v3024 = vadd.f32 %v2504, %v3023
      %v3025 = vpop.f32.mrf.mxu0
      %3026 = vmatprep.mubr.f32.mxu0 0.0
      %3027 = vmatmul.mubr.f32.gmra.mxu0 %v2753
      %v3028 = vpop.f32.mrf.mxu0
      %v3029 = vadd.f32 %v2504, %v3028
      %v3030 = vpop.f32.mrf.mxu0
      %3031 = vmatprep.mubr.f32.mxu0 0.0
      %3032 = vmatmul.mubr.f32.gmra.mxu0 %v2755
      %v3033 = vpop.f32.mrf.mxu0
      %v3034 = vadd.f32 %v2504, %v3033
      %v3035 = vpop.f32.mrf.mxu0
      %3036 = vmatprep.mubr.f32.mxu0 0.0
      %3037 = vmatmul.mubr.f32.gmra.mxu0 %v2757
      %v3038 = vpop.f32.mrf.mxu0
      %v3039 = vadd.f32 %v2504, %v3038
      %v3040 = vpop.f32.mrf.mxu0
      %3041 = vmatprep.mubr.f32.mxu0 0.0
      %3042 = vmatmul.mubr.f32.gmra.mxu0 %v2759
      %v3043 = vpop.f32.mrf.mxu0
      %v3044 = vadd.f32 %v2504, %v3043
      %v3045 = vpop.f32.mrf.mxu0
      %3046 = vmatprep.mubr.f32.mxu0 0.0
      %3047 = vmatmul.mubr.f32.gmra.mxu0 %v2761
      %v3048 = vpop.f32.mrf.mxu0
      %v3049 = vadd.f32 %v2504, %v3048
      %v3050 = vpop.f32.mrf.mxu0
      %3051 = vmatprep.mubr.f32.mxu0 0.0
      %3052 = vmatmul.mubr.f32.gmra.mxu0 %v2763
      %v3053 = vpop.f32.mrf.mxu0
      %v3054 = vadd.f32 %v2504, %v3053
      %v3055 = vpop.f32.mrf.mxu0
      %3056 = vmatprep.mubr.f32.mxu0 0.0
      %3057 = vmatmul.mubr.f32.gmra.mxu0 %v2765
      %v3058 = vpop.f32.mrf.mxu0
      %v3059 = vadd.f32 %v2504, %v3058
      %v3060 = vpop.f32.mrf.mxu0
      %3061 = vmatprep.mubr.f32.mxu0 0.0
      %3062 = vmatmul.mubr.f32.gmra.mxu0 %v2767
      %v3063 = vpop.f32.mrf.mxu0
      %v3064 = vadd.f32 %v2504, %v3063
      %v3065 = vpop.f32.mrf.mxu0
      %3066 = vmatprep.mubr.f32.mxu0 0.0
      %3067 = vmatmul.mubr.f32.gmra.mxu0 %v2769
      %v3068 = vpop.f32.mrf.mxu0
      %v3069 = vadd.f32 %v2504, %v3068
      %v3070 = vpop.f32.mrf.mxu0
      %3071 = vmatprep.mubr.f32.mxu0 0.0
      %3072 = vmatmul.mubr.f32.gmra.mxu0 %v2771
      %v3073 = vpop.f32.mrf.mxu0
      %v3074 = vadd.f32 %v2504, %v3073
      %v3075 = vpop.f32.mrf.mxu0
      %3076 = vmatprep.mubr.f32.mxu0 0.0
      %3077 = vmatmul.mubr.f32.gmra.mxu0 %v2773
      %v3078 = vpop.f32.mrf.mxu0
      %v3079 = vadd.f32 %v2504, %v3078
      %v3080 = vpop.f32.mrf.mxu0
      %3081 = vmatprep.mubr.f32.mxu0 0.0
      %3082 = vmatmul.mubr.f32.gmra.mxu0 %v2775
      %v3083 = vpop.f32.mrf.mxu0
      %v3084 = vadd.f32 %v2504, %v3083
      %v3085 = vpop.f32.mrf.mxu0
      %3086 = vmatprep.mubr.f32.mxu0 0.0
      %3087 = vmatmul.mubr.f32.gmra.mxu0 %v2777
      %v3088 = vpop.f32.mrf.mxu0
      %v3089 = vadd.f32 %v2504, %v3088
      %v3090 = vpop.f32.mrf.mxu0
      %3091 = vmatprep.mubr.f32.mxu0 0.0
      %3092 = vmatmul.mubr.f32.gmra.mxu0 %v2779
      %v3093 = vpop.f32.mrf.mxu0
      %v3094 = vadd.f32 %v2504, %v3093
      %v3095 = vpop.f32.mrf.mxu0
      %3096 = vmatprep.mubr.f32.mxu0 0.0
      %3097 = vmatmul.mubr.f32.gmra.mxu0 %v2781
      %v3098 = vpop.f32.mrf.mxu0
      %v3099 = vadd.f32 %v2504, %v3098
      %v3100 = vpop.f32.mrf.mxu0
      %3101 = vmatprep.mubr.f32.mxu0 0.0
      %3102 = vmatmul.mubr.f32.gmra.mxu0 %v2783
      %v3103 = vpop.f32.mrf.mxu0
      %v3104 = vadd.f32 %v2504, %v3103
      %v3105 = vpop.f32.mrf.mxu0
      %3106 = vmatprep.mubr.f32.mxu0 0.0
      %3107 = vmatmul.mubr.f32.gmra.mxu0 %v2785
      %v3108 = vpop.f32.mrf.mxu0
      %v3109 = vadd.f32 %v2504, %v3108
      %v3110 = vpop.f32.mrf.mxu0
      %3111 = vmatprep.mubr.f32.mxu0 0.0
      %3112 = vmatmul.mubr.f32.gmra.mxu0 %v2787
      %v3113 = vpop.f32.mrf.mxu0
      %v3114 = vadd.f32 %v2504, %v3113
      %v3115 = vpop.f32.mrf.mxu0
      %3116 = vmatprep.mubr.f32.mxu0 0.0
      %3117 = vmatmul.mubr.f32.gmra.mxu0 %v2789
      %v3118 = vpop.f32.mrf.mxu0
      %v3119 = vadd.f32 %v2504, %v3118
      %v3120 = vpop.f32.mrf.mxu0
      %3121 = vmatprep.mubr.f32.mxu0 0.0
      %3122 = vmatmul.mubr.f32.gmra.mxu0 %v2791
      %v3123 = vpop.f32.mrf.mxu0
      %v3124 = vadd.f32 %v2504, %v3123
      %v3125 = vpop.f32.mrf.mxu0
      %3126 = vmatprep.mubr.f32.mxu0 0.0
      %3127 = vmatmul.mubr.f32.gmra.mxu0 %v2793
      %v3128 = vpop.f32.mrf.mxu0
      %v3129 = vadd.f32 %v2504, %v3128
      %v3130 = vpop.f32.mrf.mxu0
      %3131 = vmatprep.mubr.f32.mxu0 0.0
      %3132 = vmatmul.mubr.f32.gmra.mxu0 %v2795
      %v3133 = vpop.f32.mrf.mxu0
      %v3134 = vadd.f32 %v2504, %v3133
      %v3135 = vpop.f32.mrf.mxu0
      %3136 = vmatprep.mubr.f32.mxu0 0.0
      %3137 = vmatmul.mubr.f32.gmra.mxu0 %v2797
      %v3138 = vpop.f32.mrf.mxu0
      %v3139 = vadd.f32 %v2504, %v3138
      %v3140 = vpop.f32.mrf.mxu0
      %3141 = vmatprep.mubr.f32.mxu0 0.0
      %3142 = vmatmul.mubr.f32.gmra.mxu0 %v2799
      %v3143 = vpop.f32.mrf.mxu0
      %v3144 = vadd.f32 %v2504, %v3143
      %v3145 = vpop.f32.mrf.mxu0
      %3146 = vmatprep.mubr.f32.mxu0 0.0
      %3147 = vmatmul.mubr.f32.gmra.mxu0 %v2801
      %v3148 = vpop.f32.mrf.mxu0
      %v3149 = vadd.f32 %v2504, %v3148
      %v3150 = vpop.f32.mrf.mxu0
      %3151 = vmatprep.mubr.f32.mxu0 0.0
      %3152 = vmatmul.mubr.f32.gmra.mxu0 %v2803
      %v3153 = vpop.f32.mrf.mxu0
      %v3154 = vadd.f32 %v2504, %v3153
      %v3155 = vpop.f32.mrf.mxu0
      %3156 = vmatprep.mubr.f32.mxu0 0.0
      %3157 = vmatmul.mubr.f32.gmra.mxu0 %v2805
      %v3158 = vpop.f32.mrf.mxu0
      %v3159 = vadd.f32 %v2504, %v3158
      %v3160 = vpop.f32.mrf.mxu0
      %3161 = vmatprep.mubr.f32.mxu0 0.0
      %3162 = vmatmul.mubr.f32.gmra.mxu0 %v2807
      %v3163 = vpop.f32.mrf.mxu0
      %v3164 = vadd.f32 %v2504, %v3163
      %v3165 = vpop.f32.mrf.mxu0
      %3166 = vmatprep.mubr.f32.mxu0 0.0
      %3167 = vmatmul.mubr.f32.gmra.mxu0 %v2809
      %v3168 = vpop.f32.mrf.mxu0
      %v3169 = vadd.f32 %v2504, %v3168
      %v3170 = vpop.f32.mrf.mxu0
      %3171 = vmatprep.mubr.f32.mxu0 0.0
      %3172 = vmatmul.mubr.f32.gmra.mxu0 %v2811
      %v3173 = vpop.f32.mrf.mxu0
      %v3174 = vadd.f32 %v2504, %v3173
      %v3175 = vpop.f32.mrf.mxu0
      %3176 = vmatprep.mubr.f32.mxu0 0.0
      %3177 = vmatmul.mubr.f32.gmra.mxu0 %v2813
      %v3178 = vpop.f32.mrf.mxu0
      %v3179 = vadd.f32 %v2504, %v3178
      %v3180 = vpop.f32.mrf.mxu0
      %3181 = vmatprep.mubr.f32.mxu0 0.0
      %3182 = vmatmul.mubr.f32.gmra.mxu0 %v2815
      %v3183 = vpop.f32.mrf.mxu0
      %v3184 = vadd.f32 %v2504, %v3183
      %v3185 = vpop.f32.mrf.mxu0
      %3186 = vmatprep.mubr.f32.mxu0 0.0
      %3187 = vmatmul.mubr.f32.gmra.mxu0 %v2817
      %v3188 = vpop.f32.mrf.mxu0
      %v3189 = vadd.f32 %v2504, %v3188
      %v3190 = vpop.f32.mrf.mxu0
      %3191 = vmatprep.mubr.f32.mxu0 0.0
      %3192 = vmatmul.mubr.f32.gmra.mxu0 %v2819
      %v3193 = vpop.f32.mrf.mxu0
      %v3194 = vadd.f32 %v2504, %v3193
      %v3195 = vpop.f32.mrf.mxu0
      %3196 = vmatprep.mubr.f32.mxu0 0.0
      %3197 = vmatmul.mubr.f32.gmra.mxu0 %v2821
      %v3198 = vpop.f32.mrf.mxu0
      %v3199 = vadd.f32 %v2504, %v3198
      %v3200 = vpop.f32.mrf.mxu0
      %3201 = vmatprep.mubr.f32.mxu0 0.0
      %3202 = vmatmul.mubr.f32.gmra.mxu0 %v2823
      %v3203 = vpop.f32.mrf.mxu0
      %v3204 = vadd.f32 %v2504, %v3203
      %v3205 = vpop.f32.mrf.mxu0
      %3206 = vmatprep.mubr.f32.mxu0 0.0
      %3207 = vmatmul.mubr.f32.gmra.mxu0 %v2825
      %v3208 = vpop.f32.mrf.mxu0
      %v3209 = vadd.f32 %v2504, %v3208
      %v3210 = vpop.f32.mrf.mxu0
      %3211 = vdwg.mxu0
      %v3212 = vmax.f32 %v2894, 0.0
      %v3213 = vmax.f32 %v2899, 0.0
      %v3214 = vmax.f32 %v2904, 0.0
      %v3215 = vmax.f32 %v2909, 0.0
      %v3216 = vmax.f32 %v2914, 0.0
      %v3217 = vmax.f32 %v2919, 0.0
      %v3218 = vmax.f32 %v2924, 0.0
      %v3219 = vmax.f32 %v2929, 0.0
      %v3220 = vmax.f32 %v2934, 0.0
      %v3221 = vmax.f32 %v2939, 0.0
      %v3222 = vmax.f32 %v2944, 0.0
      %v3223 = vmax.f32 %v2949, 0.0
      %v3224 = vmax.f32 %v2954, 0.0
      %v3225 = vmax.f32 %v2959, 0.0
      %v3226 = vmax.f32 %v2964, 0.0
      %v3227 = vmax.f32 %v2969, 0.0
      %v3228 = vmax.f32 %v2974, 0.0
      %v3229 = vmax.f32 %v2979, 0.0
      %v3230 = vmax.f32 %v2984, 0.0
      %v3231 = vmax.f32 %v2989, 0.0
      %v3232 = vmax.f32 %v2994, 0.0
      %v3233 = vmax.f32 %v2999, 0.0
      %v3234 = vmax.f32 %v3004, 0.0
      %v3235 = vmax.f32 %v3009, 0.0
      %v3236 = vmax.f32 %v3014, 0.0
      %v3237 = vmax.f32 %v3019, 0.0
      %v3238 = vmax.f32 %v3024, 0.0
      %v3239 = vmax.f32 %v3029, 0.0
      %v3240 = vmax.f32 %v3034, 0.0
      %v3241 = vmax.f32 %v3039, 0.0
      %v3242 = vmax.f32 %v3044, 0.0
      %v3243 = vmax.f32 %v3049, 0.0
      %v3244 = vmax.f32 %v3054, 0.0
      %v3245 = vmax.f32 %v3059, 0.0
      %v3246 = vmax.f32 %v3064, 0.0
      %v3247 = vmax.f32 %v3069, 0.0
      %v3248 = vmax.f32 %v3074, 0.0
      %v3249 = vmax.f32 %v3079, 0.0
      %v3250 = vmax.f32 %v3084, 0.0
      %v3251 = vmax.f32 %v3089, 0.0
      %v3252 = vmax.f32 %v3094, 0.0
      %v3253 = vmax.f32 %v3099, 0.0
      %v3254 = vmax.f32 %v3104, 0.0
      %v3255 = vmax.f32 %v3109, 0.0
      %v3256 = vmax.f32 %v3114, 0.0
      %v3257 = vmax.f32 %v3119, 0.0
      %v3258 = vmax.f32 %v3124, 0.0
      %v3259 = vmax.f32 %v3129, 0.0
      %v3260 = vmax.f32 %v3134, 0.0
      %v3261 = vmax.f32 %v3139, 0.0
      %v3262 = vmax.f32 %v3144, 0.0
      %v3263 = vmax.f32 %v3149, 0.0
      %v3264 = vmax.f32 %v3154, 0.0
      %v3265 = vmax.f32 %v3159, 0.0
      %v3266 = vmax.f32 %v3164, 0.0
      %v3267 = vmax.f32 %v3169, 0.0
      %v3268 = vmax.f32 %v3174, 0.0
      %v3269 = vmax.f32 %v3179, 0.0
      %v3270 = vmax.f32 %v3184, 0.0
      %v3271 = vmax.f32 %v3189, 0.0
      %v3272 = vmax.f32 %v3194, 0.0
      %v3273 = vmax.f32 %v3199, 0.0
      %v3274 = vmax.f32 %v3204, 0.0
      %v3275 = vmax.f32 %v3209, 0.0
      %v3276 = vld [vmem:[%s7] sm:$0xff]
      %v3277 = vld [vmem:[%s7 + $0x8] sm:$0xff]
      %v3278 = vld [vmem:[%s7 + $0x10] sm:$0xff]
      %v3279 = vld [vmem:[%s7 + $0x18] sm:$0xff]
      %v3280 = vld [vmem:[%s8] sm:$0x1]
      %v3282 = vlaneseq
      %v3283 = vshrl.u32 %v3282, 7
      %v3284 = vsub.s32 0, %v3283
      %v3285 = vrot.slane %v3280, %v3284
      %vm3287 = vcmask 261120
      %v3289 = vsel %vm3287, %v3212, 0
      %v3292 = vsel %vm3287, %v3213, 0
      %v3295 = vsel %vm3287, %v3214, 0
      %v3298 = vsel %vm3287, %v3215, 0
      %v3301 = vsel %vm3287, %v3216, 0
      %v3304 = vsel %vm3287, %v3217, 0
      %v3307 = vsel %vm3287, %v3218, 0
      %v3310 = vsel %vm3287, %v3219, 0
      %v3313 = vsel %vm3287, %v3220, 0
      %v3316 = vsel %vm3287, %v3221, 0
      %v3319 = vsel %vm3287, %v3222, 0
      %v3322 = vsel %vm3287, %v3223, 0
      %v3325 = vsel %vm3287, %v3224, 0
      %v3328 = vsel %vm3287, %v3225, 0
      %v3331 = vsel %vm3287, %v3226, 0
      %v3334 = vsel %vm3287, %v3227, 0
      %v3337 = vsel %vm3287, %v3228, 0
      %v3340 = vsel %vm3287, %v3229, 0
      %v3343 = vsel %vm3287, %v3230, 0
      %v3346 = vsel %vm3287, %v3231, 0
      %v3349 = vsel %vm3287, %v3232, 0
      %v3352 = vsel %vm3287, %v3233, 0
      %v3355 = vsel %vm3287, %v3234, 0
      %v3358 = vsel %vm3287, %v3235, 0
      %v3361 = vsel %vm3287, %v3236, 0
      %v3364 = vsel %vm3287, %v3237, 0
      %v3367 = vsel %vm3287, %v3238, 0
      %v3370 = vsel %vm3287, %v3239, 0
      %v3373 = vsel %vm3287, %v3240, 0
      %v3376 = vsel %vm3287, %v3241, 0
      %v3379 = vsel %vm3287, %v3242, 0
      %v3382 = vsel %vm3287, %v3243, 0
      %v3385 = vsel %vm3287, %v3244, 0
      %v3388 = vsel %vm3287, %v3245, 0
      %v3391 = vsel %vm3287, %v3246, 0
      %v3394 = vsel %vm3287, %v3247, 0
      %v3397 = vsel %vm3287, %v3248, 0
      %v3400 = vsel %vm3287, %v3249, 0
      %v3403 = vsel %vm3287, %v3250, 0
      %v3406 = vsel %vm3287, %v3251, 0
      %v3409 = vsel %vm3287, %v3252, 0
      %v3412 = vsel %vm3287, %v3253, 0
      %v3415 = vsel %vm3287, %v3254, 0
      %v3418 = vsel %vm3287, %v3255, 0
      %v3421 = vsel %vm3287, %v3256, 0
      %v3424 = vsel %vm3287, %v3257, 0
      %v3427 = vsel %vm3287, %v3258, 0
      %v3430 = vsel %vm3287, %v3259, 0
      %v3433 = vsel %vm3287, %v3260, 0
      %v3436 = vsel %vm3287, %v3261, 0
      %v3439 = vsel %vm3287, %v3262, 0
      %v3442 = vsel %vm3287, %v3263, 0
      %v3445 = vsel %vm3287, %v3264, 0
      %v3448 = vsel %vm3287, %v3265, 0
      %v3451 = vsel %vm3287, %v3266, 0
      %v3454 = vsel %vm3287, %v3267, 0
      %v3457 = vsel %vm3287, %v3268, 0
      %v3460 = vsel %vm3287, %v3269, 0
      %v3463 = vsel %vm3287, %v3270, 0
      %v3466 = vsel %vm3287, %v3271, 0
      %v3469 = vsel %vm3287, %v3272, 0
      %v3472 = vsel %vm3287, %v3273, 0
      %v3475 = vsel %vm3287, %v3274, 0
      %v3478 = vsel %vm3287, %v3275, 0
      %3480 = vmatprep.subr.mxu0 0.0
      %3481 = vmatpush1.msra.mxu0 0.0
      %3482 = vmatprep.subr.mxu0 0.0
      %3483 = vmatpush1.msra.mxu0 0.0
      %3484 = vmatprep.subr.mxu0 0.0
      %3485 = vmatpush1.msra.mxu0 0.0
      %3486 = vmatprep.subr.mxu0 0.0
      %3487 = vmatpush1.msra.mxu0 0.0
      %3488 = vmatprep.subr.mxu0 0.0
      %3489 = vmatpush1.msra.mxu0 0.0
      %3490 = vmatprep.subr.mxu0 0.0
      %3491 = vmatpush1.msra.mxu0 0.0
      %3492 = vmatprep.subr.mxu0 0.0
      %3493 = vmatpush1.msra.mxu0 0.0
      %3494 = vmatprep.subr.mxu0 0.0
      %3495 = vmatpush1.msra.mxu0 0.0
      %3496 = vmatprep.subr.mxu0 0.0
      %3497 = vmatpush1.msra.mxu0 0.0
      %3498 = vmatprep.subr.mxu0 0.0
      %3499 = vmatpush1.msra.mxu0 0.0
      %3500 = vmatprep.subr.mxu0 0.0
      %3501 = vmatpush1.msra.mxu0 0.0
      %3502 = vmatprep.subr.mxu0 0.0
      %3503 = vmatpush1.msra.mxu0 0.0
      %3504 = vmatprep.subr.mxu0 0.0
      %3505 = vmatpush1.msra.mxu0 %v3279
      %3506 = vmatprep.subr.mxu0 0.0
      %3507 = vmatpush1.msra.mxu0 %v3278
      %3508 = vmatprep.subr.mxu0 0.0
      %3509 = vmatpush1.msra.mxu0 %v3277
      %3510 = vmatprep.subr.mxu0 0.0
      %3511 = vmatpush1.msra.mxu0 %v3276
      %3512 = vmatprep.subr.mxu0 0.0
      %3513 = vmatpush2.msra.mxu0 0.0
      %3514 = vmatprep.subr.mxu0 0.0
      %3515 = vmatpush2.msra.mxu0 0.0
      %3516 = vmatprep.subr.mxu0 0.0
      %3517 = vmatpush2.msra.mxu0 0.0
      %3518 = vmatprep.subr.mxu0 0.0
      %3519 = vmatpush2.msra.mxu0 0.0
      %3520 = vmatprep.subr.mxu0 0.0
      %3521 = vmatpush2.msra.mxu0 0.0
      %3522 = vmatprep.subr.mxu0 0.0
      %3523 = vmatpush2.msra.mxu0 0.0
      %3524 = vmatprep.subr.mxu0 0.0
      %3525 = vmatpush2.msra.mxu0 0.0
      %3526 = vmatprep.subr.mxu0 0.0
      %3527 = vmatpush2.msra.mxu0 0.0
      %3528 = vmatprep.subr.mxu0 0.0
      %3529 = vmatpush2.msra.mxu0 0.0
      %3530 = vmatprep.subr.mxu0 0.0
      %3531 = vmatpush2.msra.mxu0 0.0
      %3532 = vmatprep.subr.mxu0 0.0
      %3533 = vmatpush2.msra.mxu0 0.0
      %3534 = vmatprep.subr.mxu0 0.0
      %3535 = vmatpush2.msra.mxu0 0.0
      %3536 = vmatprep.subr.mxu0 0.0
      %3537 = vmatpush2.msra.mxu0 0.0
      %3538 = vmatprep.subr.mxu0 0.0
      %3539 = vmatpush2.msra.mxu0 0.0
      %3540 = vmatprep.subr.mxu0 0.0
      %3541 = vmatpush2.msra.mxu0 0.0
      %3542 = vmatprep.subr.mxu0 0.0
      %3543 = vmatpush2.msra.mxu0 0.0
      %3544 = vmatprep.mubr.f32.mxu0 0.0
      %3545 = vmatmul.mubr.f32.gmra.mxu0 %v3289
      %v3546 = vpop.f32.mrf.mxu0
      %v3547 = vadd.f32 %v3285, %v3546
      %v3548 = vpop.f32.mrf.mxu0
      %3549 = vmatprep.mubr.f32.mxu0 0.0
      %3550 = vmatmul.mubr.f32.gmra.mxu0 %v3292
      %v3551 = vpop.f32.mrf.mxu0
      %v3552 = vadd.f32 %v3285, %v3551
      %v3553 = vpop.f32.mrf.mxu0
      %3554 = vmatprep.mubr.f32.mxu0 0.0
      %3555 = vmatmul.mubr.f32.gmra.mxu0 %v3295
      %v3556 = vpop.f32.mrf.mxu0
      %v3557 = vadd.f32 %v3285, %v3556
      %v3558 = vpop.f32.mrf.mxu0
      %3559 = vmatprep.mubr.f32.mxu0 0.0
      %3560 = vmatmul.mubr.f32.gmra.mxu0 %v3298
      %v3561 = vpop.f32.mrf.mxu0
      %v3562 = vadd.f32 %v3285, %v3561
      %v3563 = vpop.f32.mrf.mxu0
      %3564 = vmatprep.mubr.f32.mxu0 0.0
      %3565 = vmatmul.mubr.f32.gmra.mxu0 %v3301
      %v3566 = vpop.f32.mrf.mxu0
      %v3567 = vadd.f32 %v3285, %v3566
      %v3568 = vpop.f32.mrf.mxu0
      %3569 = vmatprep.mubr.f32.mxu0 0.0
      %3570 = vmatmul.mubr.f32.gmra.mxu0 %v3304
      %v3571 = vpop.f32.mrf.mxu0
      %v3572 = vadd.f32 %v3285, %v3571
      %v3573 = vpop.f32.mrf.mxu0
      %3574 = vmatprep.mubr.f32.mxu0 0.0
      %3575 = vmatmul.mubr.f32.gmra.mxu0 %v3307
      %v3576 = vpop.f32.mrf.mxu0
      %v3577 = vadd.f32 %v3285, %v3576
      %v3578 = vpop.f32.mrf.mxu0
      %3579 = vmatprep.mubr.f32.mxu0 0.0
      %3580 = vmatmul.mubr.f32.gmra.mxu0 %v3310
      %v3581 = vpop.f32.mrf.mxu0
      %v3582 = vadd.f32 %v3285, %v3581
      %v3583 = vpop.f32.mrf.mxu0
      %3584 = vmatprep.mubr.f32.mxu0 0.0
      %3585 = vmatmul.mubr.f32.gmra.mxu0 %v3313
      %v3586 = vpop.f32.mrf.mxu0
      %v3587 = vadd.f32 %v3285, %v3586
      %v3588 = vpop.f32.mrf.mxu0
      %3589 = vmatprep.mubr.f32.mxu0 0.0
      %3590 = vmatmul.mubr.f32.gmra.mxu0 %v3316
      %v3591 = vpop.f32.mrf.mxu0
      %v3592 = vadd.f32 %v3285, %v3591
      %v3593 = vpop.f32.mrf.mxu0
      %3594 = vmatprep.mubr.f32.mxu0 0.0
      %3595 = vmatmul.mubr.f32.gmra.mxu0 %v3319
      %v3596 = vpop.f32.mrf.mxu0
      %v3597 = vadd.f32 %v3285, %v3596
      %v3598 = vpop.f32.mrf.mxu0
      %3599 = vmatprep.mubr.f32.mxu0 0.0
      %3600 = vmatmul.mubr.f32.gmra.mxu0 %v3322
      %v3601 = vpop.f32.mrf.mxu0
      %v3602 = vadd.f32 %v3285, %v3601
      %v3603 = vpop.f32.mrf.mxu0
      %3604 = vmatprep.mubr.f32.mxu0 0.0
      %3605 = vmatmul.mubr.f32.gmra.mxu0 %v3325
      %v3606 = vpop.f32.mrf.mxu0
      %v3607 = vadd.f32 %v3285, %v3606
      %v3608 = vpop.f32.mrf.mxu0
      %3609 = vmatprep.mubr.f32.mxu0 0.0
      %3610 = vmatmul.mubr.f32.gmra.mxu0 %v3328
      %v3611 = vpop.f32.mrf.mxu0
      %v3612 = vadd.f32 %v3285, %v3611
      %v3613 = vpop.f32.mrf.mxu0
      %3614 = vmatprep.mubr.f32.mxu0 0.0
      %3615 = vmatmul.mubr.f32.gmra.mxu0 %v3331
      %v3616 = vpop.f32.mrf.mxu0
      %v3617 = vadd.f32 %v3285, %v3616
      %v3618 = vpop.f32.mrf.mxu0
      %3619 = vmatprep.mubr.f32.mxu0 0.0
      %3620 = vmatmul.mubr.f32.gmra.mxu0 %v3334
      %v3621 = vpop.f32.mrf.mxu0
      %v3622 = vadd.f32 %v3285, %v3621
      %v3623 = vpop.f32.mrf.mxu0
      %3624 = vmatprep.mubr.f32.mxu0 0.0
      %3625 = vmatmul.mubr.f32.gmra.mxu0 %v3337
      %v3626 = vpop.f32.mrf.mxu0
      %v3627 = vadd.f32 %v3285, %v3626
      %v3628 = vpop.f32.mrf.mxu0
      %3629 = vmatprep.mubr.f32.mxu0 0.0
      %3630 = vmatmul.mubr.f32.gmra.mxu0 %v3340
      %v3631 = vpop.f32.mrf.mxu0
      %v3632 = vadd.f32 %v3285, %v3631
      %v3633 = vpop.f32.mrf.mxu0
      %3634 = vmatprep.mubr.f32.mxu0 0.0
      %3635 = vmatmul.mubr.f32.gmra.mxu0 %v3343
      %v3636 = vpop.f32.mrf.mxu0
      %v3637 = vadd.f32 %v3285, %v3636
      %v3638 = vpop.f32.mrf.mxu0
      %3639 = vmatprep.mubr.f32.mxu0 0.0
      %3640 = vmatmul.mubr.f32.gmra.mxu0 %v3346
      %v3641 = vpop.f32.mrf.mxu0
      %v3642 = vadd.f32 %v3285, %v3641
      %v3643 = vpop.f32.mrf.mxu0
      %3644 = vmatprep.mubr.f32.mxu0 0.0
      %3645 = vmatmul.mubr.f32.gmra.mxu0 %v3349
      %v3646 = vpop.f32.mrf.mxu0
      %v3647 = vadd.f32 %v3285, %v3646
      %v3648 = vpop.f32.mrf.mxu0
      %3649 = vmatprep.mubr.f32.mxu0 0.0
      %3650 = vmatmul.mubr.f32.gmra.mxu0 %v3352
      %v3651 = vpop.f32.mrf.mxu0
      %v3652 = vadd.f32 %v3285, %v3651
      %v3653 = vpop.f32.mrf.mxu0
      %3654 = vmatprep.mubr.f32.mxu0 0.0
      %3655 = vmatmul.mubr.f32.gmra.mxu0 %v3355
      %v3656 = vpop.f32.mrf.mxu0
      %v3657 = vadd.f32 %v3285, %v3656
      %v3658 = vpop.f32.mrf.mxu0
      %3659 = vmatprep.mubr.f32.mxu0 0.0
      %3660 = vmatmul.mubr.f32.gmra.mxu0 %v3358
      %v3661 = vpop.f32.mrf.mxu0
      %v3662 = vadd.f32 %v3285, %v3661
      %v3663 = vpop.f32.mrf.mxu0
      %3664 = vmatprep.mubr.f32.mxu0 0.0
      %3665 = vmatmul.mubr.f32.gmra.mxu0 %v3361
      %v3666 = vpop.f32.mrf.mxu0
      %v3667 = vadd.f32 %v3285, %v3666
      %v3668 = vpop.f32.mrf.mxu0
      %3669 = vmatprep.mubr.f32.mxu0 0.0
      %3670 = vmatmul.mubr.f32.gmra.mxu0 %v3364
      %v3671 = vpop.f32.mrf.mxu0
      %v3672 = vadd.f32 %v3285, %v3671
      %v3673 = vpop.f32.mrf.mxu0
      %3674 = vmatprep.mubr.f32.mxu0 0.0
      %3675 = vmatmul.mubr.f32.gmra.mxu0 %v3367
      %v3676 = vpop.f32.mrf.mxu0
      %v3677 = vadd.f32 %v3285, %v3676
      %v3678 = vpop.f32.mrf.mxu0
      %3679 = vmatprep.mubr.f32.mxu0 0.0
      %3680 = vmatmul.mubr.f32.gmra.mxu0 %v3370
      %v3681 = vpop.f32.mrf.mxu0
      %v3682 = vadd.f32 %v3285, %v3681
      %v3683 = vpop.f32.mrf.mxu0
      %3684 = vmatprep.mubr.f32.mxu0 0.0
      %3685 = vmatmul.mubr.f32.gmra.mxu0 %v3373
      %v3686 = vpop.f32.mrf.mxu0
      %v3687 = vadd.f32 %v3285, %v3686
      %v3688 = vpop.f32.mrf.mxu0
      %3689 = vmatprep.mubr.f32.mxu0 0.0
      %3690 = vmatmul.mubr.f32.gmra.mxu0 %v3376
      %v3691 = vpop.f32.mrf.mxu0
      %v3692 = vadd.f32 %v3285, %v3691
      %v3693 = vpop.f32.mrf.mxu0
      %3694 = vmatprep.mubr.f32.mxu0 0.0
      %3695 = vmatmul.mubr.f32.gmra.mxu0 %v3379
      %v3696 = vpop.f32.mrf.mxu0
      %v3697 = vadd.f32 %v3285, %v3696
      %v3698 = vpop.f32.mrf.mxu0
      %3699 = vmatprep.mubr.f32.mxu0 0.0
      %3700 = vmatmul.mubr.f32.gmra.mxu0 %v3382
      %v3701 = vpop.f32.mrf.mxu0
      %v3702 = vadd.f32 %v3285, %v3701
      %v3703 = vpop.f32.mrf.mxu0
      %3704 = vmatprep.mubr.f32.mxu0 0.0
      %3705 = vmatmul.mubr.f32.gmra.mxu0 %v3385
      %v3706 = vpop.f32.mrf.mxu0
      %v3707 = vadd.f32 %v3285, %v3706
      %v3708 = vpop.f32.mrf.mxu0
      %3709 = vmatprep.mubr.f32.mxu0 0.0
      %3710 = vmatmul.mubr.f32.gmra.mxu0 %v3388
      %v3711 = vpop.f32.mrf.mxu0
      %v3712 = vadd.f32 %v3285, %v3711
      %v3713 = vpop.f32.mrf.mxu0
      %3714 = vmatprep.mubr.f32.mxu0 0.0
      %3715 = vmatmul.mubr.f32.gmra.mxu0 %v3391
      %v3716 = vpop.f32.mrf.mxu0
      %v3717 = vadd.f32 %v3285, %v3716
      %v3718 = vpop.f32.mrf.mxu0
      %3719 = vmatprep.mubr.f32.mxu0 0.0
      %3720 = vmatmul.mubr.f32.gmra.mxu0 %v3394
      %v3721 = vpop.f32.mrf.mxu0
      %v3722 = vadd.f32 %v3285, %v3721
      %v3723 = vpop.f32.mrf.mxu0
      %3724 = vmatprep.mubr.f32.mxu0 0.0
      %3725 = vmatmul.mubr.f32.gmra.mxu0 %v3397
      %v3726 = vpop.f32.mrf.mxu0
      %v3727 = vadd.f32 %v3285, %v3726
      %v3728 = vpop.f32.mrf.mxu0
      %3729 = vmatprep.mubr.f32.mxu0 0.0
      %3730 = vmatmul.mubr.f32.gmra.mxu0 %v3400
      %v3731 = vpop.f32.mrf.mxu0
      %v3732 = vadd.f32 %v3285, %v3731
      %v3733 = vpop.f32.mrf.mxu0
      %3734 = vmatprep.mubr.f32.mxu0 0.0
      %3735 = vmatmul.mubr.f32.gmra.mxu0 %v3403
      %v3736 = vpop.f32.mrf.mxu0
      %v3737 = vadd.f32 %v3285, %v3736
      %v3738 = vpop.f32.mrf.mxu0
      %3739 = vmatprep.mubr.f32.mxu0 0.0
      %3740 = vmatmul.mubr.f32.gmra.mxu0 %v3406
      %v3741 = vpop.f32.mrf.mxu0
      %v3742 = vadd.f32 %v3285, %v3741
      %v3743 = vpop.f32.mrf.mxu0
      %3744 = vmatprep.mubr.f32.mxu0 0.0
      %3745 = vmatmul.mubr.f32.gmra.mxu0 %v3409
      %v3746 = vpop.f32.mrf.mxu0
      %v3747 = vadd.f32 %v3285, %v3746
      %v3748 = vpop.f32.mrf.mxu0
      %3749 = vmatprep.mubr.f32.mxu0 0.0
      %3750 = vmatmul.mubr.f32.gmra.mxu0 %v3412
      %v3751 = vpop.f32.mrf.mxu0
      %v3752 = vadd.f32 %v3285, %v3751
      %v3753 = vpop.f32.mrf.mxu0
      %3754 = vmatprep.mubr.f32.mxu0 0.0
      %3755 = vmatmul.mubr.f32.gmra.mxu0 %v3415
      %v3756 = vpop.f32.mrf.mxu0
      %v3757 = vadd.f32 %v3285, %v3756
      %v3758 = vpop.f32.mrf.mxu0
      %3759 = vmatprep.mubr.f32.mxu0 0.0
      %3760 = vmatmul.mubr.f32.gmra.mxu0 %v3418
      %v3761 = vpop.f32.mrf.mxu0
      %v3762 = vadd.f32 %v3285, %v3761
      %v3763 = vpop.f32.mrf.mxu0
      %3764 = vmatprep.mubr.f32.mxu0 0.0
      %3765 = vmatmul.mubr.f32.gmra.mxu0 %v3421
      %v3766 = vpop.f32.mrf.mxu0
      %v3767 = vadd.f32 %v3285, %v3766
      %v3768 = vpop.f32.mrf.mxu0
      %3769 = vmatprep.mubr.f32.mxu0 0.0
      %3770 = vmatmul.mubr.f32.gmra.mxu0 %v3424
      %v3771 = vpop.f32.mrf.mxu0
      %v3772 = vadd.f32 %v3285, %v3771
      %v3773 = vpop.f32.mrf.mxu0
      %3774 = vmatprep.mubr.f32.mxu0 0.0
      %3775 = vmatmul.mubr.f32.gmra.mxu0 %v3427
      %v3776 = vpop.f32.mrf.mxu0
      %v3777 = vadd.f32 %v3285, %v3776
      %v3778 = vpop.f32.mrf.mxu0
      %3779 = vmatprep.mubr.f32.mxu0 0.0
      %3780 = vmatmul.mubr.f32.gmra.mxu0 %v3430
      %v3781 = vpop.f32.mrf.mxu0
      %v3782 = vadd.f32 %v3285, %v3781
      %v3783 = vpop.f32.mrf.mxu0
      %3784 = vmatprep.mubr.f32.mxu0 0.0
      %3785 = vmatmul.mubr.f32.gmra.mxu0 %v3433
      %v3786 = vpop.f32.mrf.mxu0
      %v3787 = vadd.f32 %v3285, %v3786
      %v3788 = vpop.f32.mrf.mxu0
      %3789 = vmatprep.mubr.f32.mxu0 0.0
      %3790 = vmatmul.mubr.f32.gmra.mxu0 %v3436
      %v3791 = vpop.f32.mrf.mxu0
      %v3792 = vadd.f32 %v3285, %v3791
      %v3793 = vpop.f32.mrf.mxu0
      %3794 = vmatprep.mubr.f32.mxu0 0.0
      %3795 = vmatmul.mubr.f32.gmra.mxu0 %v3439
      %v3796 = vpop.f32.mrf.mxu0
      %v3797 = vadd.f32 %v3285, %v3796
      %v3798 = vpop.f32.mrf.mxu0
      %3799 = vmatprep.mubr.f32.mxu0 0.0
      %3800 = vmatmul.mubr.f32.gmra.mxu0 %v3442
      %v3801 = vpop.f32.mrf.mxu0
      %v3802 = vadd.f32 %v3285, %v3801
      %v3803 = vpop.f32.mrf.mxu0
      %3804 = vmatprep.mubr.f32.mxu0 0.0
      %3805 = vmatmul.mubr.f32.gmra.mxu0 %v3445
      %v3806 = vpop.f32.mrf.mxu0
      %v3807 = vadd.f32 %v3285, %v3806
      %v3808 = vpop.f32.mrf.mxu0
      %3809 = vmatprep.mubr.f32.mxu0 0.0
      %3810 = vmatmul.mubr.f32.gmra.mxu0 %v3448
      %v3811 = vpop.f32.mrf.mxu0
      %v3812 = vadd.f32 %v3285, %v3811
      %v3813 = vpop.f32.mrf.mxu0
      %3814 = vmatprep.mubr.f32.mxu0 0.0
      %3815 = vmatmul.mubr.f32.gmra.mxu0 %v3451
      %v3816 = vpop.f32.mrf.mxu0
      %v3817 = vadd.f32 %v3285, %v3816
      %v3818 = vpop.f32.mrf.mxu0
      %3819 = vmatprep.mubr.f32.mxu0 0.0
      %3820 = vmatmul.mubr.f32.gmra.mxu0 %v3454
      %v3821 = vpop.f32.mrf.mxu0
      %v3822 = vadd.f32 %v3285, %v3821
      %v3823 = vpop.f32.mrf.mxu0
      %3824 = vmatprep.mubr.f32.mxu0 0.0
      %3825 = vmatmul.mubr.f32.gmra.mxu0 %v3457
      %v3826 = vpop.f32.mrf.mxu0
      %v3827 = vadd.f32 %v3285, %v3826
      %v3828 = vpop.f32.mrf.mxu0
      %3829 = vmatprep.mubr.f32.mxu0 0.0
      %3830 = vmatmul.mubr.f32.gmra.mxu0 %v3460
      %v3831 = vpop.f32.mrf.mxu0
      %v3832 = vadd.f32 %v3285, %v3831
      %v3833 = vpop.f32.mrf.mxu0
      %3834 = vmatprep.mubr.f32.mxu0 0.0
      %3835 = vmatmul.mubr.f32.gmra.mxu0 %v3463
      %v3836 = vpop.f32.mrf.mxu0
      %v3837 = vadd.f32 %v3285, %v3836
      %v3838 = vpop.f32.mrf.mxu0
      %3839 = vmatprep.mubr.f32.mxu0 0.0
      %3840 = vmatmul.mubr.f32.gmra.mxu0 %v3466
      %v3841 = vpop.f32.mrf.mxu0
      %v3842 = vadd.f32 %v3285, %v3841
      %v3843 = vpop.f32.mrf.mxu0
      %3844 = vmatprep.mubr.f32.mxu0 0.0
      %3845 = vmatmul.mubr.f32.gmra.mxu0 %v3469
      %v3846 = vpop.f32.mrf.mxu0
      %v3847 = vadd.f32 %v3285, %v3846
      %v3848 = vpop.f32.mrf.mxu0
      %3849 = vmatprep.mubr.f32.mxu0 0.0
      %3850 = vmatmul.mubr.f32.gmra.mxu0 %v3472
      %v3851 = vpop.f32.mrf.mxu0
      %v3852 = vadd.f32 %v3285, %v3851
      %v3853 = vpop.f32.mrf.mxu0
      %3854 = vmatprep.mubr.f32.mxu0 0.0
      %3855 = vmatmul.mubr.f32.gmra.mxu0 %v3475
      %v3856 = vpop.f32.mrf.mxu0
      %v3857 = vadd.f32 %v3285, %v3856
      %v3858 = vpop.f32.mrf.mxu0
      %3859 = vmatprep.mubr.f32.mxu0 0.0
      %3860 = vmatmul.mubr.f32.gmra.mxu0 %v3478
      %v3861 = vpop.f32.mrf.mxu0
      %v3862 = vadd.f32 %v3285, %v3861
      %v3863 = vpop.f32.mrf.mxu0
      %3864 = vdwg.mxu0
      %v3865 = vmax.f32 %v3547, 0.0
      %v3866 = vmax.f32 %v3552, 0.0
      %v3867 = vmax.f32 %v3557, 0.0
      %v3868 = vmax.f32 %v3562, 0.0
      %v3869 = vmax.f32 %v3567, 0.0
      %v3870 = vmax.f32 %v3572, 0.0
      %v3871 = vmax.f32 %v3577, 0.0
      %v3872 = vmax.f32 %v3582, 0.0
      %v3873 = vmax.f32 %v3587, 0.0
      %v3874 = vmax.f32 %v3592, 0.0
      %v3875 = vmax.f32 %v3597, 0.0
      %v3876 = vmax.f32 %v3602, 0.0
      %v3877 = vmax.f32 %v3607, 0.0
      %v3878 = vmax.f32 %v3612, 0.0
      %v3879 = vmax.f32 %v3617, 0.0
      %v3880 = vmax.f32 %v3622, 0.0
      %v3881 = vmax.f32 %v3627, 0.0
      %v3882 = vmax.f32 %v3632, 0.0
      %v3883 = vmax.f32 %v3637, 0.0
      %v3884 = vmax.f32 %v3642, 0.0
      %v3885 = vmax.f32 %v3647, 0.0
      %v3886 = vmax.f32 %v3652, 0.0
      %v3887 = vmax.f32 %v3657, 0.0
      %v3888 = vmax.f32 %v3662, 0.0
      %v3889 = vmax.f32 %v3667, 0.0
      %v3890 = vmax.f32 %v3672, 0.0
      %v3891 = vmax.f32 %v3677, 0.0
      %v3892 = vmax.f32 %v3682, 0.0
      %v3893 = vmax.f32 %v3687, 0.0
      %v3894 = vmax.f32 %v3692, 0.0
      %v3895 = vmax.f32 %v3697, 0.0
      %v3896 = vmax.f32 %v3702, 0.0
      %v3897 = vmax.f32 %v3707, 0.0
      %v3898 = vmax.f32 %v3712, 0.0
      %v3899 = vmax.f32 %v3717, 0.0
      %v3900 = vmax.f32 %v3722, 0.0
      %v3901 = vmax.f32 %v3727, 0.0
      %v3902 = vmax.f32 %v3732, 0.0
      %v3903 = vmax.f32 %v3737, 0.0
      %v3904 = vmax.f32 %v3742, 0.0
      %v3905 = vmax.f32 %v3747, 0.0
      %v3906 = vmax.f32 %v3752, 0.0
      %v3907 = vmax.f32 %v3757, 0.0
      %v3908 = vmax.f32 %v3762, 0.0
      %v3909 = vmax.f32 %v3767, 0.0
      %v3910 = vmax.f32 %v3772, 0.0
      %v3911 = vmax.f32 %v3777, 0.0
      %v3912 = vmax.f32 %v3782, 0.0
      %v3913 = vmax.f32 %v3787, 0.0
      %v3914 = vmax.f32 %v3792, 0.0
      %v3915 = vmax.f32 %v3797, 0.0
      %v3916 = vmax.f32 %v3802, 0.0
      %v3917 = vmax.f32 %v3807, 0.0
      %v3918 = vmax.f32 %v3812, 0.0
      %v3919 = vmax.f32 %v3817, 0.0
      %v3920 = vmax.f32 %v3822, 0.0
      %v3921 = vmax.f32 %v3827, 0.0
      %v3922 = vmax.f32 %v3832, 0.0
      %v3923 = vmax.f32 %v3837, 0.0
      %v3924 = vmax.f32 %v3842, 0.0
      %v3925 = vmax.f32 %v3847, 0.0
      %v3926 = vmax.f32 %v3852, 0.0
      %v3927 = vmax.f32 %v3857, 0.0
      %v3928 = vmax.f32 %v3862, 0.0
      %vm3929 = vcmp.ne.f32.partialorder %v3547, %v3547
      %vm3930 = vcmp.ne.f32.partialorder %v3552, %v3552
      %vm3931 = vcmp.ne.f32.partialorder %v3557, %v3557
      %vm3932 = vcmp.ne.f32.partialorder %v3562, %v3562
      %vm3933 = vcmp.ne.f32.partialorder %v3567, %v3567
      %vm3934 = vcmp.ne.f32.partialorder %v3572, %v3572
      %vm3935 = vcmp.ne.f32.partialorder %v3577, %v3577
      %vm3936 = vcmp.ne.f32.partialorder %v3582, %v3582
      %vm3937 = vcmp.ne.f32.partialorder %v3587, %v3587
      %vm3938 = vcmp.ne.f32.partialorder %v3592, %v3592
      %vm3939 = vcmp.ne.f32.partialorder %v3597, %v3597
      %vm3940 = vcmp.ne.f32.partialorder %v3602, %v3602
      %vm3941 = vcmp.ne.f32.partialorder %v3607, %v3607
      %vm3942 = vcmp.ne.f32.partialorder %v3612, %v3612
      %vm3943 = vcmp.ne.f32.partialorder %v3617, %v3617
      %vm3944 = vcmp.ne.f32.partialorder %v3622, %v3622
      %vm3945 = vcmp.ne.f32.partialorder %v3627, %v3627
      %vm3946 = vcmp.ne.f32.partialorder %v3632, %v3632
      %vm3947 = vcmp.ne.f32.partialorder %v3637, %v3637
      %vm3948 = vcmp.ne.f32.partialorder %v3642, %v3642
      %vm3949 = vcmp.ne.f32.partialorder %v3647, %v3647
      %vm3950 = vcmp.ne.f32.partialorder %v3652, %v3652
      %vm3951 = vcmp.ne.f32.partialorder %v3657, %v3657
      %vm3952 = vcmp.ne.f32.partialorder %v3662, %v3662
      %vm3953 = vcmp.ne.f32.partialorder %v3667, %v3667
      %vm3954 = vcmp.ne.f32.partialorder %v3672, %v3672
      %vm3955 = vcmp.ne.f32.partialorder %v3677, %v3677
      %vm3956 = vcmp.ne.f32.partialorder %v3682, %v3682
      %vm3957 = vcmp.ne.f32.partialorder %v3687, %v3687
      %vm3958 = vcmp.ne.f32.partialorder %v3692, %v3692
      %vm3959 = vcmp.ne.f32.partialorder %v3697, %v3697
      %vm3960 = vcmp.ne.f32.partialorder %v3702, %v3702
      %vm3961 = vcmp.ne.f32.partialorder %v3707, %v3707
      %vm3962 = vcmp.ne.f32.partialorder %v3712, %v3712
      %vm3963 = vcmp.ne.f32.partialorder %v3717, %v3717
      %vm3964 = vcmp.ne.f32.partialorder %v3722, %v3722
      %vm3965 = vcmp.ne.f32.partialorder %v3727, %v3727
      %vm3966 = vcmp.ne.f32.partialorder %v3732, %v3732
      %vm3967 = vcmp.ne.f32.partialorder %v3737, %v3737
      %vm3968 = vcmp.ne.f32.partialorder %v3742, %v3742
      %vm3969 = vcmp.ne.f32.partialorder %v3747, %v3747
      %vm3970 = vcmp.ne.f32.partialorder %v3752, %v3752
      %vm3971 = vcmp.ne.f32.partialorder %v3757, %v3757
      %vm3972 = vcmp.ne.f32.partialorder %v3762, %v3762
      %vm3973 = vcmp.ne.f32.partialorder %v3767, %v3767
      %vm3974 = vcmp.ne.f32.partialorder %v3772, %v3772
      %vm3975 = vcmp.ne.f32.partialorder %v3777, %v3777
      %vm3976 = vcmp.ne.f32.partialorder %v3782, %v3782
      %vm3977 = vcmp.ne.f32.partialorder %v3787, %v3787
      %vm3978 = vcmp.ne.f32.partialorder %v3792, %v3792
      %vm3979 = vcmp.ne.f32.partialorder %v3797, %v3797
      %vm3980 = vcmp.ne.f32.partialorder %v3802, %v3802
      %vm3981 = vcmp.ne.f32.partialorder %v3807, %v3807
      %vm3982 = vcmp.ne.f32.partialorder %v3812, %v3812
      %vm3983 = vcmp.ne.f32.partialorder %v3817, %v3817
      %vm3984 = vcmp.ne.f32.partialorder %v3822, %v3822
      %vm3985 = vcmp.ne.f32.partialorder %v3827, %v3827
      %vm3986 = vcmp.ne.f32.partialorder %v3832, %v3832
      %vm3987 = vcmp.ne.f32.partialorder %v3837, %v3837
      %vm3988 = vcmp.ne.f32.partialorder %v3842, %v3842
      %vm3989 = vcmp.ne.f32.partialorder %v3847, %v3847
      %vm3990 = vcmp.ne.f32.partialorder %v3852, %v3852
      %vm3991 = vcmp.ne.f32.partialorder %v3857, %v3857
      %vm3992 = vcmp.ne.f32.partialorder %v3862, %v3862
      %v3993 = vadd.f32 %v3547, 0.0
      %v3994 = vadd.f32 %v3552, 0.0
      %v3995 = vadd.f32 %v3557, 0.0
      %v3996 = vadd.f32 %v3562, 0.0
      %v3997 = vadd.f32 %v3567, 0.0
      %v3998 = vadd.f32 %v3572, 0.0
      %v3999 = vadd.f32 %v3577, 0.0
      %v4000 = vadd.f32 %v3582, 0.0
      %v4001 = vadd.f32 %v3587, 0.0
      %v4002 = vadd.f32 %v3592, 0.0
      %v4003 = vadd.f32 %v3597, 0.0
      %v4004 = vadd.f32 %v3602, 0.0
      %v4005 = vadd.f32 %v3607, 0.0
      %v4006 = vadd.f32 %v3612, 0.0
      %v4007 = vadd.f32 %v3617, 0.0
      %v4008 = vadd.f32 %v3622, 0.0
      %v4009 = vadd.f32 %v3627, 0.0
      %v4010 = vadd.f32 %v3632, 0.0
      %v4011 = vadd.f32 %v3637, 0.0
      %v4012 = vadd.f32 %v3642, 0.0
      %v4013 = vadd.f32 %v3647, 0.0
      %v4014 = vadd.f32 %v3652, 0.0
      %v4015 = vadd.f32 %v3657, 0.0
      %v4016 = vadd.f32 %v3662, 0.0
      %v4017 = vadd.f32 %v3667, 0.0
      %v4018 = vadd.f32 %v3672, 0.0
      %v4019 = vadd.f32 %v3677, 0.0
      %v4020 = vadd.f32 %v3682, 0.0
      %v4021 = vadd.f32 %v3687, 0.0
      %v4022 = vadd.f32 %v3692, 0.0
      %v4023 = vadd.f32 %v3697, 0.0
      %v4024 = vadd.f32 %v3702, 0.0
      %v4025 = vadd.f32 %v3707, 0.0
      %v4026 = vadd.f32 %v3712, 0.0
      %v4027 = vadd.f32 %v3717, 0.0
      %v4028 = vadd.f32 %v3722, 0.0
      %v4029 = vadd.f32 %v3727, 0.0
      %v4030 = vadd.f32 %v3732, 0.0
      %v4031 = vadd.f32 %v3737, 0.0
      %v4032 = vadd.f32 %v3742, 0.0
      %v4033 = vadd.f32 %v3747, 0.0
      %v4034 = vadd.f32 %v3752, 0.0
      %v4035 = vadd.f32 %v3757, 0.0
      %v4036 = vadd.f32 %v3762, 0.0
      %v4037 = vadd.f32 %v3767, 0.0
      %v4038 = vadd.f32 %v3772, 0.0
      %v4039 = vadd.f32 %v3777, 0.0
      %v4040 = vadd.f32 %v3782, 0.0
      %v4041 = vadd.f32 %v3787, 0.0
      %v4042 = vadd.f32 %v3792, 0.0
      %v4043 = vadd.f32 %v3797, 0.0
      %v4044 = vadd.f32 %v3802, 0.0
      %v4045 = vadd.f32 %v3807, 0.0
      %v4046 = vadd.f32 %v3812, 0.0
      %v4047 = vadd.f32 %v3817, 0.0
      %v4048 = vadd.f32 %v3822, 0.0
      %v4049 = vadd.f32 %v3827, 0.0
      %v4050 = vadd.f32 %v3832, 0.0
      %v4051 = vadd.f32 %v3837, 0.0
      %v4052 = vadd.f32 %v3842, 0.0
      %v4053 = vadd.f32 %v3847, 0.0
      %v4054 = vadd.f32 %v3852, 0.0
      %v4055 = vadd.f32 %v3857, 0.0
      %v4056 = vadd.f32 %v3862, 0.0
      %v4057 = vand.u32 2147483647, %v3547
      %v4058 = vand.u32 2147483647, %v3552
      %v4059 = vand.u32 2147483647, %v3557
      %v4060 = vand.u32 2147483647, %v3562
      %v4061 = vand.u32 2147483647, %v3567
      %v4062 = vand.u32 2147483647, %v3572
      %v4063 = vand.u32 2147483647, %v3577
      %v4064 = vand.u32 2147483647, %v3582
      %v4065 = vand.u32 2147483647, %v3587
      %v4066 = vand.u32 2147483647, %v3592
      %v4067 = vand.u32 2147483647, %v3597
      %v4068 = vand.u32 2147483647, %v3602
      %v4069 = vand.u32 2147483647, %v3607
      %v4070 = vand.u32 2147483647, %v3612
      %v4071 = vand.u32 2147483647, %v3617
      %v4072 = vand.u32 2147483647, %v3622
      %v4073 = vand.u32 2147483647, %v3627
      %v4074 = vand.u32 2147483647, %v3632
      %v4075 = vand.u32 2147483647, %v3637
      %v4076 = vand.u32 2147483647, %v3642
      %v4077 = vand.u32 2147483647, %v3647
      %v4078 = vand.u32 2147483647, %v3652
      %v4079 = vand.u32 2147483647, %v3657
      %v4080 = vand.u32 2147483647, %v3662
      %v4081 = vand.u32 2147483647, %v3667
      %v4082 = vand.u32 2147483647, %v3672
      %v4083 = vand.u32 2147483647, %v3677
      %v4084 = vand.u32 2147483647, %v3682
      %v4085 = vand.u32 2147483647, %v3687
      %v4086 = vand.u32 2147483647, %v3692
      %v4087 = vand.u32 2147483647, %v3697
      %v4088 = vand.u32 2147483647, %v3702
      %v4089 = vand.u32 2147483647, %v3707
      %v4090 = vand.u32 2147483647, %v3712
      %v4091 = vand.u32 2147483647, %v3717
      %v4092 = vand.u32 2147483647, %v3722
      %v4093 = vand.u32 2147483647, %v3727
      %v4094 = vand.u32 2147483647, %v3732
      %v4095 = vand.u32 2147483647, %v3737
      %v4096 = vand.u32 2147483647, %v3742
      %v4097 = vand.u32 2147483647, %v3747
      %v4098 = vand.u32 2147483647, %v3752
      %v4099 = vand.u32 2147483647, %v3757
      %v4100 = vand.u32 2147483647, %v3762
      %v4101 = vand.u32 2147483647, %v3767
      %v4102 = vand.u32 2147483647, %v3772
      %v4103 = vand.u32 2147483647, %v3777
      %v4104 = vand.u32 2147483647, %v3782
      %v4105 = vand.u32 2147483647, %v3787
      %v4106 = vand.u32 2147483647, %v3792
      %v4107 = vand.u32 2147483647, %v3797
      %v4108 = vand.u32 2147483647, %v3802
      %v4109 = vand.u32 2147483647, %v3807
      %v4110 = vand.u32 2147483647, %v3812
      %v4111 = vand.u32 2147483647, %v3817
      %v4112 = vand.u32 2147483647, %v3822
      %v4113 = vand.u32 2147483647, %v3827
      %v4114 = vand.u32 2147483647, %v3832
      %v4115 = vand.u32 2147483647, %v3837
      %v4116 = vand.u32 2147483647, %v3842
      %v4117 = vand.u32 2147483647, %v3847
      %v4118 = vand.u32 2147483647, %v3852
      %v4119 = vand.u32 2147483647, %v3857
      %v4120 = vand.u32 2147483647, %v3862
      %v4121 = vsub.f32 0.0, %v4057
      %v4122 = vsub.f32 0.0, %v4058
      %v4123 = vsub.f32 0.0, %v4059
      %v4124 = vsub.f32 0.0, %v4060
      %v4125 = vsub.f32 0.0, %v4061
      %v4126 = vsub.f32 0.0, %v4062
      %v4127 = vsub.f32 0.0, %v4063
      %v4128 = vsub.f32 0.0, %v4064
      %v4129 = vsub.f32 0.0, %v4065
      %v4130 = vsub.f32 0.0, %v4066
      %v4131 = vsub.f32 0.0, %v4067
      %v4132 = vsub.f32 0.0, %v4068
      %v4133 = vsub.f32 0.0, %v4069
      %v4134 = vsub.f32 0.0, %v4070
      %v4135 = vsub.f32 0.0, %v4071
      %v4136 = vsub.f32 0.0, %v4072
      %v4137 = vsub.f32 0.0, %v4073
      %v4138 = vsub.f32 0.0, %v4074
      %v4139 = vsub.f32 0.0, %v4075
      %v4140 = vsub.f32 0.0, %v4076
      %v4141 = vsub.f32 0.0, %v4077
      %v4142 = vsub.f32 0.0, %v4078
      %v4143 = vsub.f32 0.0, %v4079
      %v4144 = vsub.f32 0.0, %v4080
      %v4145 = vsub.f32 0.0, %v4081
      %v4146 = vsub.f32 0.0, %v4082
      %v4147 = vsub.f32 0.0, %v4083
      %v4148 = vsub.f32 0.0, %v4084
      %v4149 = vsub.f32 0.0, %v4085
      %v4150 = vsub.f32 0.0, %v4086
      %v4151 = vsub.f32 0.0, %v4087
      %v4152 = vsub.f32 0.0, %v4088
      %v4153 = vsub.f32 0.0, %v4089
      %v4154 = vsub.f32 0.0, %v4090
      %v4155 = vsub.f32 0.0, %v4091
      %v4156 = vsub.f32 0.0, %v4092
      %v4157 = vsub.f32 0.0, %v4093
      %v4158 = vsub.f32 0.0, %v4094
      %v4159 = vsub.f32 0.0, %v4095
      %v4160 = vsub.f32 0.0, %v4096
      %v4161 = vsub.f32 0.0, %v4097
      %v4162 = vsub.f32 0.0, %v4098
      %v4163 = vsub.f32 0.0, %v4099
      %v4164 = vsub.f32 0.0, %v4100
      %v4165 = vsub.f32 0.0, %v4101
      %v4166 = vsub.f32 0.0, %v4102
      %v4167 = vsub.f32 0.0, %v4103
      %v4168 = vsub.f32 0.0, %v4104
      %v4169 = vsub.f32 0.0, %v4105
      %v4170 = vsub.f32 0.0, %v4106
      %v4171 = vsub.f32 0.0, %v4107
      %v4172 = vsub.f32 0.0, %v4108
      %v4173 = vsub.f32 0.0, %v4109
      %v4174 = vsub.f32 0.0, %v4110
      %v4175 = vsub.f32 0.0, %v4111
      %v4176 = vsub.f32 0.0, %v4112
      %v4177 = vsub.f32 0.0, %v4113
      %v4178 = vsub.f32 0.0, %v4114
      %v4179 = vsub.f32 0.0, %v4115
      %v4180 = vsub.f32 0.0, %v4116
      %v4181 = vsub.f32 0.0, %v4117
      %v4182 = vsub.f32 0.0, %v4118
      %v4183 = vsub.f32 0.0, %v4119
      %v4184 = vsub.f32 0.0, %v4120
      %v4185 = vmul.f32 %v4121, 1.442695
      %v4186 = vpow.pop %v4185
      %v4187 = vmul.f32 %v4122, 1.442695
      %v4188 = vpow.pop %v4187
      %v4189 = vmul.f32 %v4123, 1.442695
      %v4190 = vpow.pop %v4189
      %v4191 = vmul.f32 %v4124, 1.442695
      %v4192 = vpow.pop %v4191
      %v4193 = vmul.f32 %v4125, 1.442695
      %v4194 = vpow.pop %v4193
      %v4195 = vmul.f32 %v4126, 1.442695
      %v4196 = vpow.pop %v4195
      %v4197 = vmul.f32 %v4127, 1.442695
      %v4198 = vpow.pop %v4197
      %v4199 = vmul.f32 %v4128, 1.442695
      %v4200 = vpow.pop %v4199
      %v4201 = vmul.f32 %v4129, 1.442695
      %v4202 = vpow.pop %v4201
      %v4203 = vmul.f32 %v4130, 1.442695
      %v4204 = vpow.pop %v4203
      %v4205 = vmul.f32 %v4131, 1.442695
      %v4206 = vpow.pop %v4205
      %v4207 = vmul.f32 %v4132, 1.442695
      %v4208 = vpow.pop %v4207
      %v4209 = vmul.f32 %v4133, 1.442695
      %v4210 = vpow.pop %v4209
      %v4211 = vmul.f32 %v4134, 1.442695
      %v4212 = vpow.pop %v4211
      %v4213 = vmul.f32 %v4135, 1.442695
      %v4214 = vpow.pop %v4213
      %v4215 = vmul.f32 %v4136, 1.442695
      %v4216 = vpow.pop %v4215
      %v4217 = vmul.f32 %v4137, 1.442695
      %v4218 = vpow.pop %v4217
      %v4219 = vmul.f32 %v4138, 1.442695
      %v4220 = vpow.pop %v4219
      %v4221 = vmul.f32 %v4139, 1.442695
      %v4222 = vpow.pop %v4221
      %v4223 = vmul.f32 %v4140, 1.442695
      %v4224 = vpow.pop %v4223
      %v4225 = vmul.f32 %v4141, 1.442695
      %v4226 = vpow.pop %v4225
      %v4227 = vmul.f32 %v4142, 1.442695
      %v4228 = vpow.pop %v4227
      %v4229 = vmul.f32 %v4143, 1.442695
      %v4230 = vpow.pop %v4229
      %v4231 = vmul.f32 %v4144, 1.442695
      %v4232 = vpow.pop %v4231
      %v4233 = vmul.f32 %v4145, 1.442695
      %v4234 = vpow.pop %v4233
      %v4235 = vmul.f32 %v4146, 1.442695
      %v4236 = vpow.pop %v4235
      %v4237 = vmul.f32 %v4147, 1.442695
      %v4238 = vpow.pop %v4237
      %v4239 = vmul.f32 %v4148, 1.442695
      %v4240 = vpow.pop %v4239
      %v4241 = vmul.f32 %v4149, 1.442695
      %v4242 = vpow.pop %v4241
      %v4243 = vmul.f32 %v4150, 1.442695
      %v4244 = vpow.pop %v4243
      %v4245 = vmul.f32 %v4151, 1.442695
      %v4246 = vpow.pop %v4245
      %v4247 = vmul.f32 %v4152, 1.442695
      %v4248 = vpow.pop %v4247
      %v4249 = vmul.f32 %v4153, 1.442695
      %v4250 = vpow.pop %v4249
      %v4251 = vmul.f32 %v4154, 1.442695
      %v4252 = vpow.pop %v4251
      %v4253 = vmul.f32 %v4155, 1.442695
      %v4254 = vpow.pop %v4253
      %v4255 = vmul.f32 %v4156, 1.442695
      %v4256 = vpow.pop %v4255
      %v4257 = vmul.f32 %v4157, 1.442695
      %v4258 = vpow.pop %v4257
      %v4259 = vmul.f32 %v4158, 1.442695
      %v4260 = vpow.pop %v4259
      %v4261 = vmul.f32 %v4159, 1.442695
      %v4262 = vpow.pop %v4261
      %v4263 = vmul.f32 %v4160, 1.442695
      %v4264 = vpow.pop %v4263
      %v4265 = vmul.f32 %v4161, 1.442695
      %v4266 = vpow.pop %v4265
      %v4267 = vmul.f32 %v4162, 1.442695
      %v4268 = vpow.pop %v4267
      %v4269 = vmul.f32 %v4163, 1.442695
      %v4270 = vpow.pop %v4269
      %v4271 = vmul.f32 %v4164, 1.442695
      %v4272 = vpow.pop %v4271
      %v4273 = vmul.f32 %v4165, 1.442695
      %v4274 = vpow.pop %v4273
      %v4275 = vmul.f32 %v4166, 1.442695
      %v4276 = vpow.pop %v4275
      %v4277 = vmul.f32 %v4167, 1.442695
      %v4278 = vpow.pop %v4277
      %v4279 = vmul.f32 %v4168, 1.442695
      %v4280 = vpow.pop %v4279
      %v4281 = vmul.f32 %v4169, 1.442695
      %v4282 = vpow.pop %v4281
      %v4283 = vmul.f32 %v4170, 1.442695
      %v4284 = vpow.pop %v4283
      %v4285 = vmul.f32 %v4171, 1.442695
      %v4286 = vpow.pop %v4285
      %v4287 = vmul.f32 %v4172, 1.442695
      %v4288 = vpow.pop %v4287
      %v4289 = vmul.f32 %v4173, 1.442695
      %v4290 = vpow.pop %v4289
      %v4291 = vmul.f32 %v4174, 1.442695
      %v4292 = vpow.pop %v4291
      %v4293 = vmul.f32 %v4175, 1.442695
      %v4294 = vpow.pop %v4293
      %v4295 = vmul.f32 %v4176, 1.442695
      %v4296 = vpow.pop %v4295
      %v4297 = vmul.f32 %v4177, 1.442695
      %v4298 = vpow.pop %v4297
      %v4299 = vmul.f32 %v4178, 1.442695
      %v4300 = vpow.pop %v4299
      %v4301 = vmul.f32 %v4179, 1.442695
      %v4302 = vpow.pop %v4301
      %v4303 = vmul.f32 %v4180, 1.442695
      %v4304 = vpow.pop %v4303
      %v4305 = vmul.f32 %v4181, 1.442695
      %v4306 = vpow.pop %v4305
      %v4307 = vmul.f32 %v4182, 1.442695
      %v4308 = vpow.pop %v4307
      %v4309 = vmul.f32 %v4183, 1.442695
      %v4310 = vpow.pop %v4309
      %v4311 = vmul.f32 %v4184, 1.442695
      %v4312 = vpow.pop %v4311
      %v4313 = vadd.f32 %v4186, 1.0
      %v4314 = vlog2.pop %v4313
      %v4315 = vmul.f32 %v4314, 0.6931472
      %v4316 = vmul.f32 -0.5, %v4186
      %v4317 = vadd.f32 %v4316, 1.0
      %v4318 = vmul.f32 %v4317, %v4186
      %v4319 = vand.u32 2147483647, %v4186
      %vm4320 = vcmp.lt.f32.partialorder %v4319, 0.0004427343
      %v4321 = vsel %vm4320, %v4318, %v4315
      %v4322 = vadd.f32 %v4188, 1.0
      %v4323 = vlog2.pop %v4322
      %v4324 = vmul.f32 %v4323, 0.6931472
      %v4325 = vmul.f32 -0.5, %v4188
      %v4326 = vadd.f32 %v4325, 1.0
      %v4327 = vmul.f32 %v4326, %v4188
      %v4328 = vand.u32 2147483647, %v4188
      %vm4329 = vcmp.lt.f32.partialorder %v4328, 0.0004427343
      %v4330 = vsel %vm4329, %v4327, %v4324
      %v4331 = vadd.f32 %v4190, 1.0
      %v4332 = vlog2.pop %v4331
      %v4333 = vmul.f32 %v4332, 0.6931472
      %v4334 = vmul.f32 -0.5, %v4190
      %v4335 = vadd.f32 %v4334, 1.0
      %v4336 = vmul.f32 %v4335, %v4190
      %v4337 = vand.u32 2147483647, %v4190
      %vm4338 = vcmp.lt.f32.partialorder %v4337, 0.0004427343
      %v4339 = vsel %vm4338, %v4336, %v4333
      %v4340 = vadd.f32 %v4192, 1.0
      %v4341 = vlog2.pop %v4340
      %v4342 = vmul.f32 %v4341, 0.6931472
      %v4343 = vmul.f32 -0.5, %v4192
      %v4344 = vadd.f32 %v4343, 1.0
      %v4345 = vmul.f32 %v4344, %v4192
      %v4346 = vand.u32 2147483647, %v4192
      %vm4347 = vcmp.lt.f32.partialorder %v4346, 0.0004427343
      %v4348 = vsel %vm4347, %v4345, %v4342
      %v4349 = vadd.f32 %v4194, 1.0
      %v4350 = vlog2.pop %v4349
      %v4351 = vmul.f32 %v4350, 0.6931472
      %v4352 = vmul.f32 -0.5, %v4194
      %v4353 = vadd.f32 %v4352, 1.0
      %v4354 = vmul.f32 %v4353, %v4194
      %v4355 = vand.u32 2147483647, %v4194
      %vm4356 = vcmp.lt.f32.partialorder %v4355, 0.0004427343
      %v4357 = vsel %vm4356, %v4354, %v4351
      %v4358 = vadd.f32 %v4196, 1.0
      %v4359 = vlog2.pop %v4358
      %v4360 = vmul.f32 %v4359, 0.6931472
      %v4361 = vmul.f32 -0.5, %v4196
      %v4362 = vadd.f32 %v4361, 1.0
      %v4363 = vmul.f32 %v4362, %v4196
      %v4364 = vand.u32 2147483647, %v4196
      %vm4365 = vcmp.lt.f32.partialorder %v4364, 0.0004427343
      %v4366 = vsel %vm4365, %v4363, %v4360
      %v4367 = vadd.f32 %v4198, 1.0
      %v4368 = vlog2.pop %v4367
      %v4369 = vmul.f32 %v4368, 0.6931472
      %v4370 = vmul.f32 -0.5, %v4198
      %v4371 = vadd.f32 %v4370, 1.0
      %v4372 = vmul.f32 %v4371, %v4198
      %v4373 = vand.u32 2147483647, %v4198
      %vm4374 = vcmp.lt.f32.partialorder %v4373, 0.0004427343
      %v4375 = vsel %vm4374, %v4372, %v4369
      %v4376 = vadd.f32 %v4200, 1.0
      %v4377 = vlog2.pop %v4376
      %v4378 = vmul.f32 %v4377, 0.6931472
      %v4379 = vmul.f32 -0.5, %v4200
      %v4380 = vadd.f32 %v4379, 1.0
      %v4381 = vmul.f32 %v4380, %v4200
      %v4382 = vand.u32 2147483647, %v4200
      %vm4383 = vcmp.lt.f32.partialorder %v4382, 0.0004427343
      %v4384 = vsel %vm4383, %v4381, %v4378
      %v4385 = vadd.f32 %v4202, 1.0
      %v4386 = vlog2.pop %v4385
      %v4387 = vmul.f32 %v4386, 0.6931472
      %v4388 = vmul.f32 -0.5, %v4202
      %v4389 = vadd.f32 %v4388, 1.0
      %v4390 = vmul.f32 %v4389, %v4202
      %v4391 = vand.u32 2147483647, %v4202
      %vm4392 = vcmp.lt.f32.partialorder %v4391, 0.0004427343
      %v4393 = vsel %vm4392, %v4390, %v4387
      %v4394 = vadd.f32 %v4204, 1.0
      %v4395 = vlog2.pop %v4394
      %v4396 = vmul.f32 %v4395, 0.6931472
      %v4397 = vmul.f32 -0.5, %v4204
      %v4398 = vadd.f32 %v4397, 1.0
      %v4399 = vmul.f32 %v4398, %v4204
      %v4400 = vand.u32 2147483647, %v4204
      %vm4401 = vcmp.lt.f32.partialorder %v4400, 0.0004427343
      %v4402 = vsel %vm4401, %v4399, %v4396
      %v4403 = vadd.f32 %v4206, 1.0
      %v4404 = vlog2.pop %v4403
      %v4405 = vmul.f32 %v4404, 0.6931472
      %v4406 = vmul.f32 -0.5, %v4206
      %v4407 = vadd.f32 %v4406, 1.0
      %v4408 = vmul.f32 %v4407, %v4206
      %v4409 = vand.u32 2147483647, %v4206
      %vm4410 = vcmp.lt.f32.partialorder %v4409, 0.0004427343
      %v4411 = vsel %vm4410, %v4408, %v4405
      %v4412 = vadd.f32 %v4208, 1.0
      %v4413 = vlog2.pop %v4412
      %v4414 = vmul.f32 %v4413, 0.6931472
      %v4415 = vmul.f32 -0.5, %v4208
      %v4416 = vadd.f32 %v4415, 1.0
      %v4417 = vmul.f32 %v4416, %v4208
      %v4418 = vand.u32 2147483647, %v4208
      %vm4419 = vcmp.lt.f32.partialorder %v4418, 0.0004427343
      %v4420 = vsel %vm4419, %v4417, %v4414
      %v4421 = vadd.f32 %v4210, 1.0
      %v4422 = vlog2.pop %v4421
      %v4423 = vmul.f32 %v4422, 0.6931472
      %v4424 = vmul.f32 -0.5, %v4210
      %v4425 = vadd.f32 %v4424, 1.0
      %v4426 = vmul.f32 %v4425, %v4210
      %v4427 = vand.u32 2147483647, %v4210
      %vm4428 = vcmp.lt.f32.partialorder %v4427, 0.0004427343
      %v4429 = vsel %vm4428, %v4426, %v4423
      %v4430 = vadd.f32 %v4212, 1.0
      %v4431 = vlog2.pop %v4430
      %v4432 = vmul.f32 %v4431, 0.6931472
      %v4433 = vmul.f32 -0.5, %v4212
      %v4434 = vadd.f32 %v4433, 1.0
      %v4435 = vmul.f32 %v4434, %v4212
      %v4436 = vand.u32 2147483647, %v4212
      %vm4437 = vcmp.lt.f32.partialorder %v4436, 0.0004427343
      %v4438 = vsel %vm4437, %v4435, %v4432
      %v4439 = vadd.f32 %v4214, 1.0
      %v4440 = vlog2.pop %v4439
      %v4441 = vmul.f32 %v4440, 0.6931472
      %v4442 = vmul.f32 -0.5, %v4214
      %v4443 = vadd.f32 %v4442, 1.0
      %v4444 = vmul.f32 %v4443, %v4214
      %v4445 = vand.u32 2147483647, %v4214
      %vm4446 = vcmp.lt.f32.partialorder %v4445, 0.0004427343
      %v4447 = vsel %vm4446, %v4444, %v4441
      %v4448 = vadd.f32 %v4216, 1.0
      %v4449 = vlog2.pop %v4448
      %v4450 = vmul.f32 %v4449, 0.6931472
      %v4451 = vmul.f32 -0.5, %v4216
      %v4452 = vadd.f32 %v4451, 1.0
      %v4453 = vmul.f32 %v4452, %v4216
      %v4454 = vand.u32 2147483647, %v4216
      %vm4455 = vcmp.lt.f32.partialorder %v4454, 0.0004427343
      %v4456 = vsel %vm4455, %v4453, %v4450
      %v4457 = vadd.f32 %v4218, 1.0
      %v4458 = vlog2.pop %v4457
      %v4459 = vmul.f32 %v4458, 0.6931472
      %v4460 = vmul.f32 -0.5, %v4218
      %v4461 = vadd.f32 %v4460, 1.0
      %v4462 = vmul.f32 %v4461, %v4218
      %v4463 = vand.u32 2147483647, %v4218
      %vm4464 = vcmp.lt.f32.partialorder %v4463, 0.0004427343
      %v4465 = vsel %vm4464, %v4462, %v4459
      %v4466 = vadd.f32 %v4220, 1.0
      %v4467 = vlog2.pop %v4466
      %v4468 = vmul.f32 %v4467, 0.6931472
      %v4469 = vmul.f32 -0.5, %v4220
      %v4470 = vadd.f32 %v4469, 1.0
      %v4471 = vmul.f32 %v4470, %v4220
      %v4472 = vand.u32 2147483647, %v4220
      %vm4473 = vcmp.lt.f32.partialorder %v4472, 0.0004427343
      %v4474 = vsel %vm4473, %v4471, %v4468
      %v4475 = vadd.f32 %v4222, 1.0
      %v4476 = vlog2.pop %v4475
      %v4477 = vmul.f32 %v4476, 0.6931472
      %v4478 = vmul.f32 -0.5, %v4222
      %v4479 = vadd.f32 %v4478, 1.0
      %v4480 = vmul.f32 %v4479, %v4222
      %v4481 = vand.u32 2147483647, %v4222
      %vm4482 = vcmp.lt.f32.partialorder %v4481, 0.0004427343
      %v4483 = vsel %vm4482, %v4480, %v4477
      %v4484 = vadd.f32 %v4224, 1.0
      %v4485 = vlog2.pop %v4484
      %v4486 = vmul.f32 %v4485, 0.6931472
      %v4487 = vmul.f32 -0.5, %v4224
      %v4488 = vadd.f32 %v4487, 1.0
      %v4489 = vmul.f32 %v4488, %v4224
      %v4490 = vand.u32 2147483647, %v4224
      %vm4491 = vcmp.lt.f32.partialorder %v4490, 0.0004427343
      %v4492 = vsel %vm4491, %v4489, %v4486
      %v4493 = vadd.f32 %v4226, 1.0
      %v4494 = vlog2.pop %v4493
      %v4495 = vmul.f32 %v4494, 0.6931472
      %v4496 = vmul.f32 -0.5, %v4226
      %v4497 = vadd.f32 %v4496, 1.0
      %v4498 = vmul.f32 %v4497, %v4226
      %v4499 = vand.u32 2147483647, %v4226
      %vm4500 = vcmp.lt.f32.partialorder %v4499, 0.0004427343
      %v4501 = vsel %vm4500, %v4498, %v4495
      %v4502 = vadd.f32 %v4228, 1.0
      %v4503 = vlog2.pop %v4502
      %v4504 = vmul.f32 %v4503, 0.6931472
      %v4505 = vmul.f32 -0.5, %v4228
      %v4506 = vadd.f32 %v4505, 1.0
      %v4507 = vmul.f32 %v4506, %v4228
      %v4508 = vand.u32 2147483647, %v4228
      %vm4509 = vcmp.lt.f32.partialorder %v4508, 0.0004427343
      %v4510 = vsel %vm4509, %v4507, %v4504
      %v4511 = vadd.f32 %v4230, 1.0
      %v4512 = vlog2.pop %v4511
      %v4513 = vmul.f32 %v4512, 0.6931472
      %v4514 = vmul.f32 -0.5, %v4230
      %v4515 = vadd.f32 %v4514, 1.0
      %v4516 = vmul.f32 %v4515, %v4230
      %v4517 = vand.u32 2147483647, %v4230
      %vm4518 = vcmp.lt.f32.partialorder %v4517, 0.0004427343
      %v4519 = vsel %vm4518, %v4516, %v4513
      %v4520 = vadd.f32 %v4232, 1.0
      %v4521 = vlog2.pop %v4520
      %v4522 = vmul.f32 %v4521, 0.6931472
      %v4523 = vmul.f32 -0.5, %v4232
      %v4524 = vadd.f32 %v4523, 1.0
      %v4525 = vmul.f32 %v4524, %v4232
      %v4526 = vand.u32 2147483647, %v4232
      %vm4527 = vcmp.lt.f32.partialorder %v4526, 0.0004427343
      %v4528 = vsel %vm4527, %v4525, %v4522
      %v4529 = vadd.f32 %v4234, 1.0
      %v4530 = vlog2.pop %v4529
      %v4531 = vmul.f32 %v4530, 0.6931472
      %v4532 = vmul.f32 -0.5, %v4234
      %v4533 = vadd.f32 %v4532, 1.0
      %v4534 = vmul.f32 %v4533, %v4234
      %v4535 = vand.u32 2147483647, %v4234
      %vm4536 = vcmp.lt.f32.partialorder %v4535, 0.0004427343
      %v4537 = vsel %vm4536, %v4534, %v4531
      %v4538 = vadd.f32 %v4236, 1.0
      %v4539 = vlog2.pop %v4538
      %v4540 = vmul.f32 %v4539, 0.6931472
      %v4541 = vmul.f32 -0.5, %v4236
      %v4542 = vadd.f32 %v4541, 1.0
      %v4543 = vmul.f32 %v4542, %v4236
      %v4544 = vand.u32 2147483647, %v4236
      %vm4545 = vcmp.lt.f32.partialorder %v4544, 0.0004427343
      %v4546 = vsel %vm4545, %v4543, %v4540
      %v4547 = vadd.f32 %v4238, 1.0
      %v4548 = vlog2.pop %v4547
      %v4549 = vmul.f32 %v4548, 0.6931472
      %v4550 = vmul.f32 -0.5, %v4238
      %v4551 = vadd.f32 %v4550, 1.0
      %v4552 = vmul.f32 %v4551, %v4238
      %v4553 = vand.u32 2147483647, %v4238
      %vm4554 = vcmp.lt.f32.partialorder %v4553, 0.0004427343
      %v4555 = vsel %vm4554, %v4552, %v4549
      %v4556 = vadd.f32 %v4240, 1.0
      %v4557 = vlog2.pop %v4556
      %v4558 = vmul.f32 %v4557, 0.6931472
      %v4559 = vmul.f32 -0.5, %v4240
      %v4560 = vadd.f32 %v4559, 1.0
      %v4561 = vmul.f32 %v4560, %v4240
      %v4562 = vand.u32 2147483647, %v4240
      %vm4563 = vcmp.lt.f32.partialorder %v4562, 0.0004427343
      %v4564 = vsel %vm4563, %v4561, %v4558
      %v4565 = vadd.f32 %v4242, 1.0
      %v4566 = vlog2.pop %v4565
      %v4567 = vmul.f32 %v4566, 0.6931472
      %v4568 = vmul.f32 -0.5, %v4242
      %v4569 = vadd.f32 %v4568, 1.0
      %v4570 = vmul.f32 %v4569, %v4242
      %v4571 = vand.u32 2147483647, %v4242
      %vm4572 = vcmp.lt.f32.partialorder %v4571, 0.0004427343
      %v4573 = vsel %vm4572, %v4570, %v4567
      %v4574 = vadd.f32 %v4244, 1.0
      %v4575 = vlog2.pop %v4574
      %v4576 = vmul.f32 %v4575, 0.6931472
      %v4577 = vmul.f32 -0.5, %v4244
      %v4578 = vadd.f32 %v4577, 1.0
      %v4579 = vmul.f32 %v4578, %v4244
      %v4580 = vand.u32 2147483647, %v4244
      %vm4581 = vcmp.lt.f32.partialorder %v4580, 0.0004427343
      %v4582 = vsel %vm4581, %v4579, %v4576
      %v4583 = vadd.f32 %v4246, 1.0
      %v4584 = vlog2.pop %v4583
      %v4585 = vmul.f32 %v4584, 0.6931472
      %v4586 = vmul.f32 -0.5, %v4246
      %v4587 = vadd.f32 %v4586, 1.0
      %v4588 = vmul.f32 %v4587, %v4246
      %v4589 = vand.u32 2147483647, %v4246
      %vm4590 = vcmp.lt.f32.partialorder %v4589, 0.0004427343
      %v4591 = vsel %vm4590, %v4588, %v4585
      %v4592 = vadd.f32 %v4248, 1.0
      %v4593 = vlog2.pop %v4592
      %v4594 = vmul.f32 %v4593, 0.6931472
      %v4595 = vmul.f32 -0.5, %v4248
      %v4596 = vadd.f32 %v4595, 1.0
      %v4597 = vmul.f32 %v4596, %v4248
      %v4598 = vand.u32 2147483647, %v4248
      %vm4599 = vcmp.lt.f32.partialorder %v4598, 0.0004427343
      %v4600 = vsel %vm4599, %v4597, %v4594
      %v4601 = vadd.f32 %v4250, 1.0
      %v4602 = vlog2.pop %v4601
      %v4603 = vmul.f32 %v4602, 0.6931472
      %v4604 = vmul.f32 -0.5, %v4250
      %v4605 = vadd.f32 %v4604, 1.0
      %v4606 = vmul.f32 %v4605, %v4250
      %v4607 = vand.u32 2147483647, %v4250
      %vm4608 = vcmp.lt.f32.partialorder %v4607, 0.0004427343
      %v4609 = vsel %vm4608, %v4606, %v4603
      %v4610 = vadd.f32 %v4252, 1.0
      %v4611 = vlog2.pop %v4610
      %v4612 = vmul.f32 %v4611, 0.6931472
      %v4613 = vmul.f32 -0.5, %v4252
      %v4614 = vadd.f32 %v4613, 1.0
      %v4615 = vmul.f32 %v4614, %v4252
      %v4616 = vand.u32 2147483647, %v4252
      %vm4617 = vcmp.lt.f32.partialorder %v4616, 0.0004427343
      %v4618 = vsel %vm4617, %v4615, %v4612
      %v4619 = vadd.f32 %v4254, 1.0
      %v4620 = vlog2.pop %v4619
      %v4621 = vmul.f32 %v4620, 0.6931472
      %v4622 = vmul.f32 -0.5, %v4254
      %v4623 = vadd.f32 %v4622, 1.0
      %v4624 = vmul.f32 %v4623, %v4254
      %v4625 = vand.u32 2147483647, %v4254
      %vm4626 = vcmp.lt.f32.partialorder %v4625, 0.0004427343
      %v4627 = vsel %vm4626, %v4624, %v4621
      %v4628 = vadd.f32 %v4256, 1.0
      %v4629 = vlog2.pop %v4628
      %v4630 = vmul.f32 %v4629, 0.6931472
      %v4631 = vmul.f32 -0.5, %v4256
      %v4632 = vadd.f32 %v4631, 1.0
      %v4633 = vmul.f32 %v4632, %v4256
      %v4634 = vand.u32 2147483647, %v4256
      %vm4635 = vcmp.lt.f32.partialorder %v4634, 0.0004427343
      %v4636 = vsel %vm4635, %v4633, %v4630
      %v4637 = vadd.f32 %v4258, 1.0
      %v4638 = vlog2.pop %v4637
      %v4639 = vmul.f32 %v4638, 0.6931472
      %v4640 = vmul.f32 -0.5, %v4258
      %v4641 = vadd.f32 %v4640, 1.0
      %v4642 = vmul.f32 %v4641, %v4258
      %v4643 = vand.u32 2147483647, %v4258
      %vm4644 = vcmp.lt.f32.partialorder %v4643, 0.0004427343
      %v4645 = vsel %vm4644, %v4642, %v4639
      %v4646 = vadd.f32 %v4260, 1.0
      %v4647 = vlog2.pop %v4646
      %v4648 = vmul.f32 %v4647, 0.6931472
      %v4649 = vmul.f32 -0.5, %v4260
      %v4650 = vadd.f32 %v4649, 1.0
      %v4651 = vmul.f32 %v4650, %v4260
      %v4652 = vand.u32 2147483647, %v4260
      %vm4653 = vcmp.lt.f32.partialorder %v4652, 0.0004427343
      %v4654 = vsel %vm4653, %v4651, %v4648
      %v4655 = vadd.f32 %v4262, 1.0
      %v4656 = vlog2.pop %v4655
      %v4657 = vmul.f32 %v4656, 0.6931472
      %v4658 = vmul.f32 -0.5, %v4262
      %v4659 = vadd.f32 %v4658, 1.0
      %v4660 = vmul.f32 %v4659, %v4262
      %v4661 = vand.u32 2147483647, %v4262
      %vm4662 = vcmp.lt.f32.partialorder %v4661, 0.0004427343
      %v4663 = vsel %vm4662, %v4660, %v4657
      %v4664 = vadd.f32 %v4264, 1.0
      %v4665 = vlog2.pop %v4664
      %v4666 = vmul.f32 %v4665, 0.6931472
      %v4667 = vmul.f32 -0.5, %v4264
      %v4668 = vadd.f32 %v4667, 1.0
      %v4669 = vmul.f32 %v4668, %v4264
      %v4670 = vand.u32 2147483647, %v4264
      %vm4671 = vcmp.lt.f32.partialorder %v4670, 0.0004427343
      %v4672 = vsel %vm4671, %v4669, %v4666
      %v4673 = vadd.f32 %v4266, 1.0
      %v4674 = vlog2.pop %v4673
      %v4675 = vmul.f32 %v4674, 0.6931472
      %v4676 = vmul.f32 -0.5, %v4266
      %v4677 = vadd.f32 %v4676, 1.0
      %v4678 = vmul.f32 %v4677, %v4266
      %v4679 = vand.u32 2147483647, %v4266
      %vm4680 = vcmp.lt.f32.partialorder %v4679, 0.0004427343
      %v4681 = vsel %vm4680, %v4678, %v4675
      %v4682 = vadd.f32 %v4268, 1.0
      %v4683 = vlog2.pop %v4682
      %v4684 = vmul.f32 %v4683, 0.6931472
      %v4685 = vmul.f32 -0.5, %v4268
      %v4686 = vadd.f32 %v4685, 1.0
      %v4687 = vmul.f32 %v4686, %v4268
      %v4688 = vand.u32 2147483647, %v4268
      %vm4689 = vcmp.lt.f32.partialorder %v4688, 0.0004427343
      %v4690 = vsel %vm4689, %v4687, %v4684
      %v4691 = vadd.f32 %v4270, 1.0
      %v4692 = vlog2.pop %v4691
      %v4693 = vmul.f32 %v4692, 0.6931472
      %v4694 = vmul.f32 -0.5, %v4270
      %v4695 = vadd.f32 %v4694, 1.0
      %v4696 = vmul.f32 %v4695, %v4270
      %v4697 = vand.u32 2147483647, %v4270
      %vm4698 = vcmp.lt.f32.partialorder %v4697, 0.0004427343
      %v4699 = vsel %vm4698, %v4696, %v4693
      %v4700 = vadd.f32 %v4272, 1.0
      %v4701 = vlog2.pop %v4700
      %v4702 = vmul.f32 %v4701, 0.6931472
      %v4703 = vmul.f32 -0.5, %v4272
      %v4704 = vadd.f32 %v4703, 1.0
      %v4705 = vmul.f32 %v4704, %v4272
      %v4706 = vand.u32 2147483647, %v4272
      %vm4707 = vcmp.lt.f32.partialorder %v4706, 0.0004427343
      %v4708 = vsel %vm4707, %v4705, %v4702
      %v4709 = vadd.f32 %v4274, 1.0
      %v4710 = vlog2.pop %v4709
      %v4711 = vmul.f32 %v4710, 0.6931472
      %v4712 = vmul.f32 -0.5, %v4274
      %v4713 = vadd.f32 %v4712, 1.0
      %v4714 = vmul.f32 %v4713, %v4274
      %v4715 = vand.u32 2147483647, %v4274
      %vm4716 = vcmp.lt.f32.partialorder %v4715, 0.0004427343
      %v4717 = vsel %vm4716, %v4714, %v4711
      %v4718 = vadd.f32 %v4276, 1.0
      %v4719 = vlog2.pop %v4718
      %v4720 = vmul.f32 %v4719, 0.6931472
      %v4721 = vmul.f32 -0.5, %v4276
      %v4722 = vadd.f32 %v4721, 1.0
      %v4723 = vmul.f32 %v4722, %v4276
      %v4724 = vand.u32 2147483647, %v4276
      %vm4725 = vcmp.lt.f32.partialorder %v4724, 0.0004427343
      %v4726 = vsel %vm4725, %v4723, %v4720
      %v4727 = vadd.f32 %v4278, 1.0
      %v4728 = vlog2.pop %v4727
      %v4729 = vmul.f32 %v4728, 0.6931472
      %v4730 = vmul.f32 -0.5, %v4278
      %v4731 = vadd.f32 %v4730, 1.0
      %v4732 = vmul.f32 %v4731, %v4278
      %v4733 = vand.u32 2147483647, %v4278
      %vm4734 = vcmp.lt.f32.partialorder %v4733, 0.0004427343
      %v4735 = vsel %vm4734, %v4732, %v4729
      %v4736 = vadd.f32 %v4280, 1.0
      %v4737 = vlog2.pop %v4736
      %v4738 = vmul.f32 %v4737, 0.6931472
      %v4739 = vmul.f32 -0.5, %v4280
      %v4740 = vadd.f32 %v4739, 1.0
      %v4741 = vmul.f32 %v4740, %v4280
      %v4742 = vand.u32 2147483647, %v4280
      %vm4743 = vcmp.lt.f32.partialorder %v4742, 0.0004427343
      %v4744 = vsel %vm4743, %v4741, %v4738
      %v4745 = vadd.f32 %v4282, 1.0
      %v4746 = vlog2.pop %v4745
      %v4747 = vmul.f32 %v4746, 0.6931472
      %v4748 = vmul.f32 -0.5, %v4282
      %v4749 = vadd.f32 %v4748, 1.0
      %v4750 = vmul.f32 %v4749, %v4282
      %v4751 = vand.u32 2147483647, %v4282
      %vm4752 = vcmp.lt.f32.partialorder %v4751, 0.0004427343
      %v4753 = vsel %vm4752, %v4750, %v4747
      %v4754 = vadd.f32 %v4284, 1.0
      %v4755 = vlog2.pop %v4754
      %v4756 = vmul.f32 %v4755, 0.6931472
      %v4757 = vmul.f32 -0.5, %v4284
      %v4758 = vadd.f32 %v4757, 1.0
      %v4759 = vmul.f32 %v4758, %v4284
      %v4760 = vand.u32 2147483647, %v4284
      %vm4761 = vcmp.lt.f32.partialorder %v4760, 0.0004427343
      %v4762 = vsel %vm4761, %v4759, %v4756
      %v4763 = vadd.f32 %v4286, 1.0
      %v4764 = vlog2.pop %v4763
      %v4765 = vmul.f32 %v4764, 0.6931472
      %v4766 = vmul.f32 -0.5, %v4286
      %v4767 = vadd.f32 %v4766, 1.0
      %v4768 = vmul.f32 %v4767, %v4286
      %v4769 = vand.u32 2147483647, %v4286
      %vm4770 = vcmp.lt.f32.partialorder %v4769, 0.0004427343
      %v4771 = vsel %vm4770, %v4768, %v4765
      %v4772 = vadd.f32 %v4288, 1.0
      %v4773 = vlog2.pop %v4772
      %v4774 = vmul.f32 %v4773, 0.6931472
      %v4775 = vmul.f32 -0.5, %v4288
      %v4776 = vadd.f32 %v4775, 1.0
      %v4777 = vmul.f32 %v4776, %v4288
      %v4778 = vand.u32 2147483647, %v4288
      %vm4779 = vcmp.lt.f32.partialorder %v4778, 0.0004427343
      %v4780 = vsel %vm4779, %v4777, %v4774
      %v4781 = vadd.f32 %v4290, 1.0
      %v4782 = vlog2.pop %v4781
      %v4783 = vmul.f32 %v4782, 0.6931472
      %v4784 = vmul.f32 -0.5, %v4290
      %v4785 = vadd.f32 %v4784, 1.0
      %v4786 = vmul.f32 %v4785, %v4290
      %v4787 = vand.u32 2147483647, %v4290
      %vm4788 = vcmp.lt.f32.partialorder %v4787, 0.0004427343
      %v4789 = vsel %vm4788, %v4786, %v4783
      %v4790 = vadd.f32 %v4292, 1.0
      %v4791 = vlog2.pop %v4790
      %v4792 = vmul.f32 %v4791, 0.6931472
      %v4793 = vmul.f32 -0.5, %v4292
      %v4794 = vadd.f32 %v4793, 1.0
      %v4795 = vmul.f32 %v4794, %v4292
      %v4796 = vand.u32 2147483647, %v4292
      %vm4797 = vcmp.lt.f32.partialorder %v4796, 0.0004427343
      %v4798 = vsel %vm4797, %v4795, %v4792
      %v4799 = vadd.f32 %v4294, 1.0
      %v4800 = vlog2.pop %v4799
      %v4801 = vmul.f32 %v4800, 0.6931472
      %v4802 = vmul.f32 -0.5, %v4294
      %v4803 = vadd.f32 %v4802, 1.0
      %v4804 = vmul.f32 %v4803, %v4294
      %v4805 = vand.u32 2147483647, %v4294
      %vm4806 = vcmp.lt.f32.partialorder %v4805, 0.0004427343
      %v4807 = vsel %vm4806, %v4804, %v4801
      %v4808 = vadd.f32 %v4296, 1.0
      %v4809 = vlog2.pop %v4808
      %v4810 = vmul.f32 %v4809, 0.6931472
      %v4811 = vmul.f32 -0.5, %v4296
      %v4812 = vadd.f32 %v4811, 1.0
      %v4813 = vmul.f32 %v4812, %v4296
      %v4814 = vand.u32 2147483647, %v4296
      %vm4815 = vcmp.lt.f32.partialorder %v4814, 0.0004427343
      %v4816 = vsel %vm4815, %v4813, %v4810
      %v4817 = vadd.f32 %v4298, 1.0
      %v4818 = vlog2.pop %v4817
      %v4819 = vmul.f32 %v4818, 0.6931472
      %v4820 = vmul.f32 -0.5, %v4298
      %v4821 = vadd.f32 %v4820, 1.0
      %v4822 = vmul.f32 %v4821, %v4298
      %v4823 = vand.u32 2147483647, %v4298
      %vm4824 = vcmp.lt.f32.partialorder %v4823, 0.0004427343
      %v4825 = vsel %vm4824, %v4822, %v4819
      %v4826 = vadd.f32 %v4300, 1.0
      %v4827 = vlog2.pop %v4826
      %v4828 = vmul.f32 %v4827, 0.6931472
      %v4829 = vmul.f32 -0.5, %v4300
      %v4830 = vadd.f32 %v4829, 1.0
      %v4831 = vmul.f32 %v4830, %v4300
      %v4832 = vand.u32 2147483647, %v4300
      %vm4833 = vcmp.lt.f32.partialorder %v4832, 0.0004427343
      %v4834 = vsel %vm4833, %v4831, %v4828
      %v4835 = vadd.f32 %v4302, 1.0
      %v4836 = vlog2.pop %v4835
      %v4837 = vmul.f32 %v4836, 0.6931472
      %v4838 = vmul.f32 -0.5, %v4302
      %v4839 = vadd.f32 %v4838, 1.0
      %v4840 = vmul.f32 %v4839, %v4302
      %v4841 = vand.u32 2147483647, %v4302
      %vm4842 = vcmp.lt.f32.partialorder %v4841, 0.0004427343
      %v4843 = vsel %vm4842, %v4840, %v4837
      %v4844 = vadd.f32 %v4304, 1.0
      %v4845 = vlog2.pop %v4844
      %v4846 = vmul.f32 %v4845, 0.6931472
      %v4847 = vmul.f32 -0.5, %v4304
      %v4848 = vadd.f32 %v4847, 1.0
      %v4849 = vmul.f32 %v4848, %v4304
      %v4850 = vand.u32 2147483647, %v4304
      %vm4851 = vcmp.lt.f32.partialorder %v4850, 0.0004427343
      %v4852 = vsel %vm4851, %v4849, %v4846
      %v4853 = vadd.f32 %v4306, 1.0
      %v4854 = vlog2.pop %v4853
      %v4855 = vmul.f32 %v4854, 0.6931472
      %v4856 = vmul.f32 -0.5, %v4306
      %v4857 = vadd.f32 %v4856, 1.0
      %v4858 = vmul.f32 %v4857, %v4306
      %v4859 = vand.u32 2147483647, %v4306
      %vm4860 = vcmp.lt.f32.partialorder %v4859, 0.0004427343
      %v4861 = vsel %vm4860, %v4858, %v4855
      %v4862 = vadd.f32 %v4308, 1.0
      %v4863 = vlog2.pop %v4862
      %v4864 = vmul.f32 %v4863, 0.6931472
      %v4865 = vmul.f32 -0.5, %v4308
      %v4866 = vadd.f32 %v4865, 1.0
      %v4867 = vmul.f32 %v4866, %v4308
      %v4868 = vand.u32 2147483647, %v4308
      %vm4869 = vcmp.lt.f32.partialorder %v4868, 0.0004427343
      %v4870 = vsel %vm4869, %v4867, %v4864
      %v4871 = vadd.f32 %v4310, 1.0
      %v4872 = vlog2.pop %v4871
      %v4873 = vmul.f32 %v4872, 0.6931472
      %v4874 = vmul.f32 -0.5, %v4310
      %v4875 = vadd.f32 %v4874, 1.0
      %v4876 = vmul.f32 %v4875, %v4310
      %v4877 = vand.u32 2147483647, %v4310
      %vm4878 = vcmp.lt.f32.partialorder %v4877, 0.0004427343
      %v4879 = vsel %vm4878, %v4876, %v4873
      %v4880 = vadd.f32 %v4312, 1.0
      %v4881 = vlog2.pop %v4880
      %v4882 = vmul.f32 %v4881, 0.6931472
      %v4883 = vmul.f32 -0.5, %v4312
      %v4884 = vadd.f32 %v4883, 1.0
      %v4885 = vmul.f32 %v4884, %v4312
      %v4886 = vand.u32 2147483647, %v4312
      %vm4887 = vcmp.lt.f32.partialorder %v4886, 0.0004427343
      %v4888 = vsel %vm4887, %v4885, %v4882
      %v4889 = vadd.f32 %v3865, %v4321
      %v4890 = vadd.f32 %v3866, %v4330
      %v4891 = vadd.f32 %v3867, %v4339
      %v4892 = vadd.f32 %v3868, %v4348
      %v4893 = vadd.f32 %v3869, %v4357
      %v4894 = vadd.f32 %v3870, %v4366
      %v4895 = vadd.f32 %v3871, %v4375
      %v4896 = vadd.f32 %v3872, %v4384
      %v4897 = vadd.f32 %v3873, %v4393
      %v4898 = vadd.f32 %v3874, %v4402
      %v4899 = vadd.f32 %v3875, %v4411
      %v4900 = vadd.f32 %v3876, %v4420
      %v4901 = vadd.f32 %v3877, %v4429
      %v4902 = vadd.f32 %v3878, %v4438
      %v4903 = vadd.f32 %v3879, %v4447
      %v4904 = vadd.f32 %v3880, %v4456
      %v4905 = vadd.f32 %v3881, %v4465
      %v4906 = vadd.f32 %v3882, %v4474
      %v4907 = vadd.f32 %v3883, %v4483
      %v4908 = vadd.f32 %v3884, %v4492
      %v4909 = vadd.f32 %v3885, %v4501
      %v4910 = vadd.f32 %v3886, %v4510
      %v4911 = vadd.f32 %v3887, %v4519
      %v4912 = vadd.f32 %v3888, %v4528
      %v4913 = vadd.f32 %v3889, %v4537
      %v4914 = vadd.f32 %v3890, %v4546
      %v4915 = vadd.f32 %v3891, %v4555
      %v4916 = vadd.f32 %v3892, %v4564
      %v4917 = vadd.f32 %v3893, %v4573
      %v4918 = vadd.f32 %v3894, %v4582
      %v4919 = vadd.f32 %v3895, %v4591
      %v4920 = vadd.f32 %v3896, %v4600
      %v4921 = vadd.f32 %v3897, %v4609
      %v4922 = vadd.f32 %v3898, %v4618
      %v4923 = vadd.f32 %v3899, %v4627
      %v4924 = vadd.f32 %v3900, %v4636
      %v4925 = vadd.f32 %v3901, %v4645
      %v4926 = vadd.f32 %v3902, %v4654
      %v4927 = vadd.f32 %v3903, %v4663
      %v4928 = vadd.f32 %v3904, %v4672
      %v4929 = vadd.f32 %v3905, %v4681
      %v4930 = vadd.f32 %v3906, %v4690
      %v4931 = vadd.f32 %v3907, %v4699
      %v4932 = vadd.f32 %v3908, %v4708
      %v4933 = vadd.f32 %v3909, %v4717
      %v4934 = vadd.f32 %v3910, %v4726
      %v4935 = vadd.f32 %v3911, %v4735
      %v4936 = vadd.f32 %v3912, %v4744
      %v4937 = vadd.f32 %v3913, %v4753
      %v4938 = vadd.f32 %v3914, %v4762
      %v4939 = vadd.f32 %v3915, %v4771
      %v4940 = vadd.f32 %v3916, %v4780
      %v4941 = vadd.f32 %v3917, %v4789
      %v4942 = vadd.f32 %v3918, %v4798
      %v4943 = vadd.f32 %v3919, %v4807
      %v4944 = vadd.f32 %v3920, %v4816
      %v4945 = vadd.f32 %v3921, %v4825
      %v4946 = vadd.f32 %v3922, %v4834
      %v4947 = vadd.f32 %v3923, %v4843
      %v4948 = vadd.f32 %v3924, %v4852
      %v4949 = vadd.f32 %v3925, %v4861
      %v4950 = vadd.f32 %v3926, %v4870
      %v4951 = vadd.f32 %v3927, %v4879
      %v4952 = vadd.f32 %v3928, %v4888
      %v4953 = vsel %vm3929, %v3993, %v4889
      %v4954 = vsel %vm3930, %v3994, %v4890
      %v4955 = vsel %vm3931, %v3995, %v4891
      %v4956 = vsel %vm3932, %v3996, %v4892
      %v4957 = vsel %vm3933, %v3997, %v4893
      %v4958 = vsel %vm3934, %v3998, %v4894
      %v4959 = vsel %vm3935, %v3999, %v4895
      %v4960 = vsel %vm3936, %v4000, %v4896
      %v4961 = vsel %vm3937, %v4001, %v4897
      %v4962 = vsel %vm3938, %v4002, %v4898
      %v4963 = vsel %vm3939, %v4003, %v4899
      %v4964 = vsel %vm3940, %v4004, %v4900
      %v4965 = vsel %vm3941, %v4005, %v4901
      %v4966 = vsel %vm3942, %v4006, %v4902
      %v4967 = vsel %vm3943, %v4007, %v4903
      %v4968 = vsel %vm3944, %v4008, %v4904
      %v4969 = vsel %vm3945, %v4009, %v4905
      %v4970 = vsel %vm3946, %v4010, %v4906
      %v4971 = vsel %vm3947, %v4011, %v4907
      %v4972 = vsel %vm3948, %v4012, %v4908
      %v4973 = vsel %vm3949, %v4013, %v4909
      %v4974 = vsel %vm3950, %v4014, %v4910
      %v4975 = vsel %vm3951, %v4015, %v4911
      %v4976 = vsel %vm3952, %v4016, %v4912
      %v4977 = vsel %vm3953, %v4017, %v4913
      %v4978 = vsel %vm3954, %v4018, %v4914
      %v4979 = vsel %vm3955, %v4019, %v4915
      %v4980 = vsel %vm3956, %v4020, %v4916
      %v4981 = vsel %vm3957, %v4021, %v4917
      %v4982 = vsel %vm3958, %v4022, %v4918
      %v4983 = vsel %vm3959, %v4023, %v4919
      %v4984 = vsel %vm3960, %v4024, %v4920
      %v4985 = vsel %vm3961, %v4025, %v4921
      %v4986 = vsel %vm3962, %v4026, %v4922
      %v4987 = vsel %vm3963, %v4027, %v4923
      %v4988 = vsel %vm3964, %v4028, %v4924
      %v4989 = vsel %vm3965, %v4029, %v4925
      %v4990 = vsel %vm3966, %v4030, %v4926
      %v4991 = vsel %vm3967, %v4031, %v4927
      %v4992 = vsel %vm3968, %v4032, %v4928
      %v4993 = vsel %vm3969, %v4033, %v4929
      %v4994 = vsel %vm3970, %v4034, %v4930
      %v4995 = vsel %vm3971, %v4035, %v4931
      %v4996 = vsel %vm3972, %v4036, %v4932
      %v4997 = vsel %vm3973, %v4037, %v4933
      %v4998 = vsel %vm3974, %v4038, %v4934
      %v4999 = vsel %vm3975, %v4039, %v4935
      %v5000 = vsel %vm3976, %v4040, %v4936
      %v5001 = vsel %vm3977, %v4041, %v4937
      %v5002 = vsel %vm3978, %v4042, %v4938
      %v5003 = vsel %vm3979, %v4043, %v4939
      %v5004 = vsel %vm3980, %v4044, %v4940
      %v5005 = vsel %vm3981, %v4045, %v4941
      %v5006 = vsel %vm3982, %v4046, %v4942
      %v5007 = vsel %vm3983, %v4047, %v4943
      %v5008 = vsel %vm3984, %v4048, %v4944
      %v5009 = vsel %vm3985, %v4049, %v4945
      %v5010 = vsel %vm3986, %v4050, %v4946
      %v5011 = vsel %vm3987, %v4051, %v4947
      %v5012 = vsel %vm3988, %v4052, %v4948
      %v5013 = vsel %vm3989, %v4053, %v4949
      %v5014 = vsel %vm3990, %v4054, %v4950
      %v5015 = vsel %vm3991, %v4055, %v4951
      %v5016 = vsel %vm3992, %v4056, %v4952
      %v5017 = vadd.f32 %v4953, 1e-06
      %v5018 = vadd.f32 %v4954, 1e-06
      %v5019 = vadd.f32 %v4955, 1e-06
      %v5020 = vadd.f32 %v4956, 1e-06
      %v5021 = vadd.f32 %v4957, 1e-06
      %v5022 = vadd.f32 %v4958, 1e-06
      %v5023 = vadd.f32 %v4959, 1e-06
      %v5024 = vadd.f32 %v4960, 1e-06
      %v5025 = vadd.f32 %v4961, 1e-06
      %v5026 = vadd.f32 %v4962, 1e-06
      %v5027 = vadd.f32 %v4963, 1e-06
      %v5028 = vadd.f32 %v4964, 1e-06
      %v5029 = vadd.f32 %v4965, 1e-06
      %v5030 = vadd.f32 %v4966, 1e-06
      %v5031 = vadd.f32 %v4967, 1e-06
      %v5032 = vadd.f32 %v4968, 1e-06
      %v5033 = vadd.f32 %v4969, 1e-06
      %v5034 = vadd.f32 %v4970, 1e-06
      %v5035 = vadd.f32 %v4971, 1e-06
      %v5036 = vadd.f32 %v4972, 1e-06
      %v5037 = vadd.f32 %v4973, 1e-06
      %v5038 = vadd.f32 %v4974, 1e-06
      %v5039 = vadd.f32 %v4975, 1e-06
      %v5040 = vadd.f32 %v4976, 1e-06
      %v5041 = vadd.f32 %v4977, 1e-06
      %v5042 = vadd.f32 %v4978, 1e-06
      %v5043 = vadd.f32 %v4979, 1e-06
      %v5044 = vadd.f32 %v4980, 1e-06
      %v5045 = vadd.f32 %v4981, 1e-06
      %v5046 = vadd.f32 %v4982, 1e-06
      %v5047 = vadd.f32 %v4983, 1e-06
      %v5048 = vadd.f32 %v4984, 1e-06
      %v5049 = vadd.f32 %v4985, 1e-06
      %v5050 = vadd.f32 %v4986, 1e-06
      %v5051 = vadd.f32 %v4987, 1e-06
      %v5052 = vadd.f32 %v4988, 1e-06
      %v5053 = vadd.f32 %v4989, 1e-06
      %v5054 = vadd.f32 %v4990, 1e-06
      %v5055 = vadd.f32 %v4991, 1e-06
      %v5056 = vadd.f32 %v4992, 1e-06
      %v5057 = vadd.f32 %v4993, 1e-06
      %v5058 = vadd.f32 %v4994, 1e-06
      %v5059 = vadd.f32 %v4995, 1e-06
      %v5060 = vadd.f32 %v4996, 1e-06
      %v5061 = vadd.f32 %v4997, 1e-06
      %v5062 = vadd.f32 %v4998, 1e-06
      %v5063 = vadd.f32 %v4999, 1e-06
      %v5064 = vadd.f32 %v5000, 1e-06
      %v5065 = vadd.f32 %v5001, 1e-06
      %v5066 = vadd.f32 %v5002, 1e-06
      %v5067 = vadd.f32 %v5003, 1e-06
      %v5068 = vadd.f32 %v5004, 1e-06
      %v5069 = vadd.f32 %v5005, 1e-06
      %v5070 = vadd.f32 %v5006, 1e-06
      %v5071 = vadd.f32 %v5007, 1e-06
      %v5072 = vadd.f32 %v5008, 1e-06
      %v5073 = vadd.f32 %v5009, 1e-06
      %v5074 = vadd.f32 %v5010, 1e-06
      %v5075 = vadd.f32 %v5011, 1e-06
      %v5076 = vadd.f32 %v5012, 1e-06
      %v5077 = vadd.f32 %v5013, 1e-06
      %v5078 = vadd.f32 %v5014, 1e-06
      %v5079 = vadd.f32 %v5015, 1e-06
      %v5080 = vadd.f32 %v5016, 1e-06
      %v5081 = vrcp.pop %v5017
      %v5082 = vmul.f32 1.0, %v5081
      %v5083 = vrcp.pop %v5018
      %v5084 = vmul.f32 1.0, %v5083
      %v5085 = vrcp.pop %v5019
      %v5086 = vmul.f32 1.0, %v5085
      %v5087 = vrcp.pop %v5020
      %v5088 = vmul.f32 1.0, %v5087
      %v5089 = vrcp.pop %v5021
      %v5090 = vmul.f32 1.0, %v5089
      %v5091 = vrcp.pop %v5022
      %v5092 = vmul.f32 1.0, %v5091
      %v5093 = vrcp.pop %v5023
      %v5094 = vmul.f32 1.0, %v5093
      %v5095 = vrcp.pop %v5024
      %v5096 = vmul.f32 1.0, %v5095
      %v5097 = vrcp.pop %v5025
      %v5098 = vmul.f32 1.0, %v5097
      %v5099 = vrcp.pop %v5026
      %v5100 = vmul.f32 1.0, %v5099
      %v5101 = vrcp.pop %v5027
      %v5102 = vmul.f32 1.0, %v5101
      %v5103 = vrcp.pop %v5028
      %v5104 = vmul.f32 1.0, %v5103
      %v5105 = vrcp.pop %v5029
      %v5106 = vmul.f32 1.0, %v5105
      %v5107 = vrcp.pop %v5030
      %v5108 = vmul.f32 1.0, %v5107
      %v5109 = vrcp.pop %v5031
      %v5110 = vmul.f32 1.0, %v5109
      %v5111 = vrcp.pop %v5032
      %v5112 = vmul.f32 1.0, %v5111
      %v5113 = vrcp.pop %v5033
      %v5114 = vmul.f32 1.0, %v5113
      %v5115 = vrcp.pop %v5034
      %v5116 = vmul.f32 1.0, %v5115
      %v5117 = vrcp.pop %v5035
      %v5118 = vmul.f32 1.0, %v5117
      %v5119 = vrcp.pop %v5036
      %v5120 = vmul.f32 1.0, %v5119
      %v5121 = vrcp.pop %v5037
      %v5122 = vmul.f32 1.0, %v5121
      %v5123 = vrcp.pop %v5038
      %v5124 = vmul.f32 1.0, %v5123
      %v5125 = vrcp.pop %v5039
      %v5126 = vmul.f32 1.0, %v5125
      %v5127 = vrcp.pop %v5040
      %v5128 = vmul.f32 1.0, %v5127
      %v5129 = vrcp.pop %v5041
      %v5130 = vmul.f32 1.0, %v5129
      %v5131 = vrcp.pop %v5042
      %v5132 = vmul.f32 1.0, %v5131
      %v5133 = vrcp.pop %v5043
      %v5134 = vmul.f32 1.0, %v5133
      %v5135 = vrcp.pop %v5044
      %v5136 = vmul.f32 1.0, %v5135
      %v5137 = vrcp.pop %v5045
      %v5138 = vmul.f32 1.0, %v5137
      %v5139 = vrcp.pop %v5046
      %v5140 = vmul.f32 1.0, %v5139
      %v5141 = vrcp.pop %v5047
      %v5142 = vmul.f32 1.0, %v5141
      %v5143 = vrcp.pop %v5048
      %v5144 = vmul.f32 1.0, %v5143
      %v5145 = vrcp.pop %v5049
      %v5146 = vmul.f32 1.0, %v5145
      %v5147 = vrcp.pop %v5050
      %v5148 = vmul.f32 1.0, %v5147
      %v5149 = vrcp.pop %v5051
      %v5150 = vmul.f32 1.0, %v5149
      %v5151 = vrcp.pop %v5052
      %v5152 = vmul.f32 1.0, %v5151
      %v5153 = vrcp.pop %v5053
      %v5154 = vmul.f32 1.0, %v5153
      %v5155 = vrcp.pop %v5054
      %v5156 = vmul.f32 1.0, %v5155
      %v5157 = vrcp.pop %v5055
      %v5158 = vmul.f32 1.0, %v5157
      %v5159 = vrcp.pop %v5056
      %v5160 = vmul.f32 1.0, %v5159
      %v5161 = vrcp.pop %v5057
      %v5162 = vmul.f32 1.0, %v5161
      %v5163 = vrcp.pop %v5058
      %v5164 = vmul.f32 1.0, %v5163
      %v5165 = vrcp.pop %v5059
      %v5166 = vmul.f32 1.0, %v5165
      %v5167 = vrcp.pop %v5060
      %v5168 = vmul.f32 1.0, %v5167
      %v5169 = vrcp.pop %v5061
      %v5170 = vmul.f32 1.0, %v5169
      %v5171 = vrcp.pop %v5062
      %v5172 = vmul.f32 1.0, %v5171
      %v5173 = vrcp.pop %v5063
      %v5174 = vmul.f32 1.0, %v5173
      %v5175 = vrcp.pop %v5064
      %v5176 = vmul.f32 1.0, %v5175
      %v5177 = vrcp.pop %v5065
      %v5178 = vmul.f32 1.0, %v5177
      %v5179 = vrcp.pop %v5066
      %v5180 = vmul.f32 1.0, %v5179
      %v5181 = vrcp.pop %v5067
      %v5182 = vmul.f32 1.0, %v5181
      %v5183 = vrcp.pop %v5068
      %v5184 = vmul.f32 1.0, %v5183
      %v5185 = vrcp.pop %v5069
      %v5186 = vmul.f32 1.0, %v5185
      %v5187 = vrcp.pop %v5070
      %v5188 = vmul.f32 1.0, %v5187
      %v5189 = vrcp.pop %v5071
      %v5190 = vmul.f32 1.0, %v5189
      %v5191 = vrcp.pop %v5072
      %v5192 = vmul.f32 1.0, %v5191
      %v5193 = vrcp.pop %v5073
      %v5194 = vmul.f32 1.0, %v5193
      %v5195 = vrcp.pop %v5074
      %v5196 = vmul.f32 1.0, %v5195
      %v5197 = vrcp.pop %v5075
      %v5198 = vmul.f32 1.0, %v5197
      %v5199 = vrcp.pop %v5076
      %v5200 = vmul.f32 1.0, %v5199
      %v5201 = vrcp.pop %v5077
      %v5202 = vmul.f32 1.0, %v5201
      %v5203 = vrcp.pop %v5078
      %v5204 = vmul.f32 1.0, %v5203
      %v5205 = vrcp.pop %v5079
      %v5206 = vmul.f32 1.0, %v5205
      %v5207 = vrcp.pop %v5080
      %v5208 = vmul.f32 1.0, %v5207
      %v5209 = vld [vmem:[%s462] sm:$0xf]
      %5210 = vxpose.xlu0.b32.start [1/16] %v1314, 128
      %5211 = vxpose.xlu0.b32.cont [2/16] %v1315, 128
      %5212 = vxpose.xlu0.b32.cont [3/16] %v1316, 128
      %5213 = vxpose.xlu0.b32.cont [4/16] %v1317, 128
      %5214 = vxpose.xlu0.b32.cont [5/16] %v1318, 128
      %5215 = vxpose.xlu0.b32.cont [6/16] %v1319, 128
      %5216 = vxpose.xlu0.b32.cont [7/16] %v1320, 128
      %5217 = vxpose.xlu0.b32.cont [8/16] %v1321, 128
      %5218 = vxpose.xlu0.b32.cont [9/16] %v1322, 128
      %5219 = vxpose.xlu0.b32.cont [10/16] %v1323, 128
      %5220 = vxpose.xlu0.b32.cont [11/16] %v1324, 128
      %5221 = vxpose.xlu0.b32.cont [12/16] %v1325, 128
      %5222 = vxpose.xlu0.b32.cont [13/16] %v1326, 128
      %5223 = vxpose.xlu0.b32.cont [14/16] %v1327, 128
      %5224 = vxpose.xlu0.b32.cont [15/16] %v1328, 128
      %5225 = vxpose.xlu0.b32.end [16/16] %v1329, 128
      %v5226 = vpop.trf.xlu0
      %v5227 = vpop.trf.xlu0
      %v5228 = vpop.trf.xlu0
      %v5229 = vpop.trf.xlu0
      %v5230 = vpop.trf.xlu0
      %v5231 = vpop.trf.xlu0
      %v5232 = vpop.trf.xlu0
      %v5233 = vpop.trf.xlu0
      %v5234 = vpop.trf.xlu0
      %v5235 = vpop.trf.xlu0
      %v5236 = vpop.trf.xlu0
      %v5237 = vpop.trf.xlu0
      %v5238 = vpop.trf.xlu0
      %v5239 = vpop.trf.xlu0
      %v5240 = vpop.trf.xlu0
      %v5241 = vpop.trf.xlu0
      %5242 = vxpose.xlu0.b32.start [1/16] %v1330, 128
      %5243 = vxpose.xlu0.b32.cont [2/16] %v1331, 128
      %5244 = vxpose.xlu0.b32.cont [3/16] %v1332, 128
      %5245 = vxpose.xlu0.b32.cont [4/16] %v1333, 128
      %5246 = vxpose.xlu0.b32.cont [5/16] %v1334, 128
      %5247 = vxpose.xlu0.b32.cont [6/16] %v1335, 128
      %5248 = vxpose.xlu0.b32.cont [7/16] %v1336, 128
      %5249 = vxpose.xlu0.b32.cont [8/16] %v1337, 128
      %5250 = vxpose.xlu0.b32.cont [9/16] %v1338, 128
      %5251 = vxpose.xlu0.b32.cont [10/16] %v1339, 128
      %5252 = vxpose.xlu0.b32.cont [11/16] %v1340, 128
      %5253 = vxpose.xlu0.b32.cont [12/16] %v1341, 128
      %5254 = vxpose.xlu0.b32.cont [13/16] %v1342, 128
      %5255 = vxpose.xlu0.b32.cont [14/16] %v1343, 128
      %5256 = vxpose.xlu0.b32.cont [15/16] %v1344, 128
      %5257 = vxpose.xlu0.b32.end [16/16] %v1345, 128
      %v5258 = vpop.trf.xlu0
      %v5259 = vpop.trf.xlu0
      %v5260 = vpop.trf.xlu0
      %v5261 = vpop.trf.xlu0
      %v5262 = vpop.trf.xlu0
      %v5263 = vpop.trf.xlu0
      %v5264 = vpop.trf.xlu0
      %v5265 = vpop.trf.xlu0
      %v5266 = vpop.trf.xlu0
      %v5267 = vpop.trf.xlu0
      %v5268 = vpop.trf.xlu0
      %v5269 = vpop.trf.xlu0
      %v5270 = vpop.trf.xlu0
      %v5271 = vpop.trf.xlu0
      %v5272 = vpop.trf.xlu0
      %v5273 = vpop.trf.xlu0
      %5274 = vxpose.xlu0.b32.start [1/16] %v1346, 128
      %5275 = vxpose.xlu0.b32.cont [2/16] %v1347, 128
      %5276 = vxpose.xlu0.b32.cont [3/16] %v1348, 128
      %5277 = vxpose.xlu0.b32.cont [4/16] %v1349, 128
      %5278 = vxpose.xlu0.b32.cont [5/16] %v1350, 128
      %5279 = vxpose.xlu0.b32.cont [6/16] %v1351, 128
      %5280 = vxpose.xlu0.b32.cont [7/16] %v1352, 128
      %5281 = vxpose.xlu0.b32.cont [8/16] %v1353, 128
      %5282 = vxpose.xlu0.b32.cont [9/16] %v1354, 128
      %5283 = vxpose.xlu0.b32.cont [10/16] %v1355, 128
      %5284 = vxpose.xlu0.b32.cont [11/16] %v1356, 128
      %5285 = vxpose.xlu0.b32.cont [12/16] %v1357, 128
      %5286 = vxpose.xlu0.b32.cont [13/16] %v1358, 128
      %5287 = vxpose.xlu0.b32.cont [14/16] %v1359, 128
      %5288 = vxpose.xlu0.b32.cont [15/16] %v1360, 128
      %5289 = vxpose.xlu0.b32.end [16/16] %v1361, 128
      %v5290 = vpop.trf.xlu0
      %v5291 = vpop.trf.xlu0
      %v5292 = vpop.trf.xlu0
      %v5293 = vpop.trf.xlu0
      %v5294 = vpop.trf.xlu0
      %v5295 = vpop.trf.xlu0
      %v5296 = vpop.trf.xlu0
      %v5297 = vpop.trf.xlu0
      %v5298 = vpop.trf.xlu0
      %v5299 = vpop.trf.xlu0
      %v5300 = vpop.trf.xlu0
      %v5301 = vpop.trf.xlu0
      %v5302 = vpop.trf.xlu0
      %v5303 = vpop.trf.xlu0
      %v5304 = vpop.trf.xlu0
      %v5305 = vpop.trf.xlu0
      %5306 = vxpose.xlu0.b32.start [1/16] %v1362, 128
      %5307 = vxpose.xlu0.b32.cont [2/16] %v1363, 128
      %5308 = vxpose.xlu0.b32.cont [3/16] %v1364, 128
      %5309 = vxpose.xlu0.b32.cont [4/16] %v1365, 128
      %5310 = vxpose.xlu0.b32.cont [5/16] %v1366, 128
      %5311 = vxpose.xlu0.b32.cont [6/16] %v1367, 128
      %5312 = vxpose.xlu0.b32.cont [7/16] %v1368, 128
      %5313 = vxpose.xlu0.b32.cont [8/16] %v1369, 128
      %5314 = vxpose.xlu0.b32.cont [9/16] %v1370, 128
      %5315 = vxpose.xlu0.b32.cont [10/16] %v1371, 128
      %5316 = vxpose.xlu0.b32.cont [11/16] %v1372, 128
      %5317 = vxpose.xlu0.b32.cont [12/16] %v1373, 128
      %5318 = vxpose.xlu0.b32.cont [13/16] %v1374, 128
      %5319 = vxpose.xlu0.b32.cont [14/16] %v1375, 128
      %5320 = vxpose.xlu0.b32.cont [15/16] %v1376, 128
      %5321 = vxpose.xlu0.b32.end [16/16] %v1377, 128
      %v5322 = vpop.trf.xlu0
      %v5323 = vpop.trf.xlu0
      %v5324 = vpop.trf.xlu0
      %v5325 = vpop.trf.xlu0
      %v5326 = vpop.trf.xlu0
      %v5327 = vpop.trf.xlu0
      %v5328 = vpop.trf.xlu0
      %v5329 = vpop.trf.xlu0
      %v5330 = vpop.trf.xlu0
      %v5331 = vpop.trf.xlu0
      %v5332 = vpop.trf.xlu0
      %v5333 = vpop.trf.xlu0
      %v5334 = vpop.trf.xlu0
      %v5335 = vpop.trf.xlu0
      %v5336 = vpop.trf.xlu0
      %v5337 = vpop.trf.xlu0
      %5338 = vmatprep.subr.mxu0 0.0
      %5339 = vmatpush1.msra.mxu0 %v5032
      %5340 = vmatprep.subr.mxu0 0.0
      %5341 = vmatpush1.msra.mxu0 %v5031
      %5342 = vmatprep.subr.mxu0 0.0
      %5343 = vmatpush1.msra.mxu0 %v5030
      %5344 = vmatprep.subr.mxu0 0.0
      %5345 = vmatpush1.msra.mxu0 %v5029
      %5346 = vmatprep.subr.mxu0 0.0
      %5347 = vmatpush1.msra.mxu0 %v5028
      %5348 = vmatprep.subr.mxu0 0.0
      %5349 = vmatpush1.msra.mxu0 %v5027
      %5350 = vmatprep.subr.mxu0 0.0
      %5351 = vmatpush1.msra.mxu0 %v5026
      %5352 = vmatprep.subr.mxu0 0.0
      %5353 = vmatpush1.msra.mxu0 %v5025
      %5354 = vmatprep.subr.mxu0 0.0
      %5355 = vmatpush1.msra.mxu0 %v5024
      %5356 = vmatprep.subr.mxu0 0.0
      %5357 = vmatpush1.msra.mxu0 %v5023
      %5358 = vmatprep.subr.mxu0 0.0
      %5359 = vmatpush1.msra.mxu0 %v5022
      %5360 = vmatprep.subr.mxu0 0.0
      %5361 = vmatpush1.msra.mxu0 %v5021
      %5362 = vmatprep.subr.mxu0 0.0
      %5363 = vmatpush1.msra.mxu0 %v5020
      %5364 = vmatprep.subr.mxu0 0.0
      %5365 = vmatpush1.msra.mxu0 %v5019
      %5366 = vmatprep.subr.mxu0 0.0
      %5367 = vmatpush1.msra.mxu0 %v5018
      %5368 = vmatprep.subr.mxu0 0.0
      %5369 = vmatpush1.msra.mxu0 %v5017
      %5370 = vmatprep.subr.mxu0 0.0
      %5371 = vmatpush2.msra.mxu0 %v5048
      %5372 = vmatprep.subr.mxu0 0.0
      %5373 = vmatpush2.msra.mxu0 %v5047
      %5374 = vmatprep.subr.mxu0 0.0
      %5375 = vmatpush2.msra.mxu0 %v5046
      %5376 = vmatprep.subr.mxu0 0.0
      %5377 = vmatpush2.msra.mxu0 %v5045
      %5378 = vmatprep.subr.mxu0 0.0
      %5379 = vmatpush2.msra.mxu0 %v5044
      %5380 = vmatprep.subr.mxu0 0.0
      %5381 = vmatpush2.msra.mxu0 %v5043
      %5382 = vmatprep.subr.mxu0 0.0
      %5383 = vmatpush2.msra.mxu0 %v5042
      %5384 = vmatprep.subr.mxu0 0.0
      %5385 = vmatpush2.msra.mxu0 %v5041
      %5386 = vmatprep.subr.mxu0 0.0
      %5387 = vmatpush2.msra.mxu0 %v5040
      %5388 = vmatprep.subr.mxu0 0.0
      %5389 = vmatpush2.msra.mxu0 %v5039
      %5390 = vmatprep.subr.mxu0 0.0
      %5391 = vmatpush2.msra.mxu0 %v5038
      %5392 = vmatprep.subr.mxu0 0.0
      %5393 = vmatpush2.msra.mxu0 %v5037
      %5394 = vmatprep.subr.mxu0 0.0
      %5395 = vmatpush2.msra.mxu0 %v5036
      %5396 = vmatprep.subr.mxu0 0.0
      %5397 = vmatpush2.msra.mxu0 %v5035
      %5398 = vmatprep.subr.mxu0 0.0
      %5399 = vmatpush2.msra.mxu0 %v5034
      %5400 = vmatprep.subr.mxu0 0.0
      %5401 = vmatpush2.msra.mxu0 %v5033
      %5402 = vmatprep.mubr.f32.mxu0 %v5258
      %5403 = vmatmul.mubr.f32.gmra.mxu0 %v5226
      %v5404 = vpop.f32.mrf.mxu0
      %v5405 = vadd.f32 0.0, %v5404
      %v5406 = vpop.f32.mrf.mxu0
      %5407 = vdwg.mxu0
      %5408 = vmatprep.subr.mxu0 0.0
      %5409 = vmatpush1.msra.mxu0 %v5064
      %5410 = vmatprep.subr.mxu0 0.0
      %5411 = vmatpush1.msra.mxu0 %v5063
      %5412 = vmatprep.subr.mxu0 0.0
      %5413 = vmatpush1.msra.mxu0 %v5062
      %5414 = vmatprep.subr.mxu0 0.0
      %5415 = vmatpush1.msra.mxu0 %v5061
      %5416 = vmatprep.subr.mxu0 0.0
      %5417 = vmatpush1.msra.mxu0 %v5060
      %5418 = vmatprep.subr.mxu0 0.0
      %5419 = vmatpush1.msra.mxu0 %v5059
      %5420 = vmatprep.subr.mxu0 0.0
      %5421 = vmatpush1.msra.mxu0 %v5058
      %5422 = vmatprep.subr.mxu0 0.0
      %5423 = vmatpush1.msra.mxu0 %v5057
      %5424 = vmatprep.subr.mxu0 0.0
      %5425 = vmatpush1.msra.mxu0 %v5056
      %5426 = vmatprep.subr.mxu0 0.0
      %5427 = vmatpush1.msra.mxu0 %v5055
      %5428 = vmatprep.subr.mxu0 0.0
      %5429 = vmatpush1.msra.mxu0 %v5054
      %5430 = vmatprep.subr.mxu0 0.0
      %5431 = vmatpush1.msra.mxu0 %v5053
      %5432 = vmatprep.subr.mxu0 0.0
      %5433 = vmatpush1.msra.mxu0 %v5052
      %5434 = vmatprep.subr.mxu0 0.0
      %5435 = vmatpush1.msra.mxu0 %v5051
      %5436 = vmatprep.subr.mxu0 0.0
      %5437 = vmatpush1.msra.mxu0 %v5050
      %5438 = vmatprep.subr.mxu0 0.0
      %5439 = vmatpush1.msra.mxu0 %v5049
      %5440 = vmatprep.subr.mxu0 0.0
      %5441 = vmatpush2.msra.mxu0 %v5080
      %5442 = vmatprep.subr.mxu0 0.0
      %5443 = vmatpush2.msra.mxu0 %v5079
      %5444 = vmatprep.subr.mxu0 0.0
      %5445 = vmatpush2.msra.mxu0 %v5078
      %5446 = vmatprep.subr.mxu0 0.0
      %5447 = vmatpush2.msra.mxu0 %v5077
      %5448 = vmatprep.subr.mxu0 0.0
      %5449 = vmatpush2.msra.mxu0 %v5076
      %5450 = vmatprep.subr.mxu0 0.0
      %5451 = vmatpush2.msra.mxu0 %v5075
      %5452 = vmatprep.subr.mxu0 0.0
      %5453 = vmatpush2.msra.mxu0 %v5074
      %5454 = vmatprep.subr.mxu0 0.0
      %5455 = vmatpush2.msra.mxu0 %v5073
      %5456 = vmatprep.subr.mxu0 0.0
      %5457 = vmatpush2.msra.mxu0 %v5072
      %5458 = vmatprep.subr.mxu0 0.0
      %5459 = vmatpush2.msra.mxu0 %v5071
      %5460 = vmatprep.subr.mxu0 0.0
      %5461 = vmatpush2.msra.mxu0 %v5070
      %5462 = vmatprep.subr.mxu0 0.0
      %5463 = vmatpush2.msra.mxu0 %v5069
      %5464 = vmatprep.subr.mxu0 0.0
      %5465 = vmatpush2.msra.mxu0 %v5068
      %5466 = vmatprep.subr.mxu0 0.0
      %5467 = vmatpush2.msra.mxu0 %v5067
      %5468 = vmatprep.subr.mxu0 0.0
      %5469 = vmatpush2.msra.mxu0 %v5066
      %5470 = vmatprep.subr.mxu0 0.0
      %5471 = vmatpush2.msra.mxu0 %v5065
      %5472 = vmatprep.mubr.f32.mxu0 %v5322
      %5473 = vmatmul.mubr.f32.gmra.mxu0 %v5290
      %v5474 = vpop.f32.mrf.mxu0
      %v5475 = vadd.f32 %v5405, %v5474
      %v5476 = vpop.f32.mrf.mxu0
      %5477 = vdwg.mxu0
      %v5478 = vadd.f32 %v5209, %v5475
      %vm5479 = vcmask 257024
      %5480 = vst.msk [vmem:[%s462] sm:$0xf] %vm5479, %v5478
      %v5481 = vld [vmem:[%s466] sm:$0xf]
      %v5482 = vmul.f32 %v2115, %v5017
      %v5483 = vmul.f32 %v2120, %v5018
      %v5484 = vmul.f32 %v2125, %v5019
      %v5485 = vmul.f32 %v2130, %v5020
      %v5486 = vmul.f32 %v2135, %v5021
      %v5487 = vmul.f32 %v2140, %v5022
      %v5488 = vmul.f32 %v2145, %v5023
      %v5489 = vmul.f32 %v2150, %v5024
      %v5490 = vmul.f32 %v2155, %v5025
      %v5491 = vmul.f32 %v2160, %v5026
      %v5492 = vmul.f32 %v2165, %v5027
      %v5493 = vmul.f32 %v2170, %v5028
      %v5494 = vmul.f32 %v2175, %v5029
      %v5495 = vmul.f32 %v2180, %v5030
      %v5496 = vmul.f32 %v2185, %v5031
      %v5497 = vmul.f32 %v2190, %v5032
      %v5498 = vmul.f32 %v2195, %v5033
      %v5499 = vmul.f32 %v2200, %v5034
      %v5500 = vmul.f32 %v2205, %v5035
      %v5501 = vmul.f32 %v2210, %v5036
      %v5502 = vmul.f32 %v2215, %v5037
      %v5503 = vmul.f32 %v2220, %v5038
      %v5504 = vmul.f32 %v2225, %v5039
      %v5505 = vmul.f32 %v2230, %v5040
      %v5506 = vmul.f32 %v2235, %v5041
      %v5507 = vmul.f32 %v2240, %v5042
      %v5508 = vmul.f32 %v2245, %v5043
      %v5509 = vmul.f32 %v2250, %v5044
      %v5510 = vmul.f32 %v2255, %v5045
      %v5511 = vmul.f32 %v2260, %v5046
      %v5512 = vmul.f32 %v2265, %v5047
      %v5513 = vmul.f32 %v2270, %v5048
      %v5514 = vmul.f32 %v2275, %v5049
      %v5515 = vmul.f32 %v2280, %v5050
      %v5516 = vmul.f32 %v2285, %v5051
      %v5517 = vmul.f32 %v2290, %v5052
      %v5518 = vmul.f32 %v2295, %v5053
      %v5519 = vmul.f32 %v2300, %v5054
      %v5520 = vmul.f32 %v2305, %v5055
      %v5521 = vmul.f32 %v2310, %v5056
      %v5522 = vmul.f32 %v2315, %v5057
      %v5523 = vmul.f32 %v2320, %v5058
      %v5524 = vmul.f32 %v2325, %v5059
      %v5525 = vmul.f32 %v2330, %v5060
      %v5526 = vmul.f32 %v2335, %v5061
      %v5527 = vmul.f32 %v2340, %v5062
      %v5528 = vmul.f32 %v2345, %v5063
      %v5529 = vmul.f32 %v2350, %v5064
      %v5530 = vmul.f32 %v2355, %v5065
      %v5531 = vmul.f32 %v2360, %v5066
      %v5532 = vmul.f32 %v2365, %v5067
      %v5533 = vmul.f32 %v2370, %v5068
      %v5534 = vmul.f32 %v2375, %v5069
      %v5535 = vmul.f32 %v2380, %v5070
      %v5536 = vmul.f32 %v2385, %v5071
      %v5537 = vmul.f32 %v2390, %v5072
      %v5538 = vmul.f32 %v2395, %v5073
      %v5539 = vmul.f32 %v2400, %v5074
      %v5540 = vmul.f32 %v2405, %v5075
      %v5541 = vmul.f32 %v2410, %v5076
      %v5542 = vmul.f32 %v2415, %v5077
      %v5543 = vmul.f32 %v2420, %v5078
      %v5544 = vmul.f32 %v2425, %v5079
      %v5545 = vmul.f32 %v2430, %v5080
      %5546 = vmatprep.subr.mxu0 0.0
      %5547 = vmatpush1.msra.mxu0 %v5497
      %5548 = vmatprep.subr.mxu0 0.0
      %5549 = vmatpush1.msra.mxu0 %v5496
      %5550 = vmatprep.subr.mxu0 0.0
      %5551 = vmatpush1.msra.mxu0 %v5495
      %5552 = vmatprep.subr.mxu0 0.0
      %5553 = vmatpush1.msra.mxu0 %v5494
      %5554 = vmatprep.subr.mxu0 0.0
      %5555 = vmatpush1.msra.mxu0 %v5493
      %5556 = vmatprep.subr.mxu0 0.0
      %5557 = vmatpush1.msra.mxu0 %v5492
      %5558 = vmatprep.subr.mxu0 0.0
      %5559 = vmatpush1.msra.mxu0 %v5491
      %5560 = vmatprep.subr.mxu0 0.0
      %5561 = vmatpush1.msra.mxu0 %v5490
      %5562 = vmatprep.subr.mxu0 0.0
      %5563 = vmatpush1.msra.mxu0 %v5489
      %5564 = vmatprep.subr.mxu0 0.0
      %5565 = vmatpush1.msra.mxu0 %v5488
      %5566 = vmatprep.subr.mxu0 0.0
      %5567 = vmatpush1.msra.mxu0 %v5487
      %5568 = vmatprep.subr.mxu0 0.0
      %5569 = vmatpush1.msra.mxu0 %v5486
      %5570 = vmatprep.subr.mxu0 0.0
      %5571 = vmatpush1.msra.mxu0 %v5485
      %5572 = vmatprep.subr.mxu0 0.0
      %5573 = vmatpush1.msra.mxu0 %v5484
      %5574 = vmatprep.subr.mxu0 0.0
      %5575 = vmatpush1.msra.mxu0 %v5483
      %5576 = vmatprep.subr.mxu0 0.0
      %5577 = vmatpush1.msra.mxu0 %v5482
      %5578 = vmatprep.subr.mxu0 0.0
      %5579 = vmatpush2.msra.mxu0 %v5513
      %5580 = vmatprep.subr.mxu0 0.0
      %5581 = vmatpush2.msra.mxu0 %v5512
      %5582 = vmatprep.subr.mxu0 0.0
      %5583 = vmatpush2.msra.mxu0 %v5511
      %5584 = vmatprep.subr.mxu0 0.0
      %5585 = vmatpush2.msra.mxu0 %v5510
      %5586 = vmatprep.subr.mxu0 0.0
      %5587 = vmatpush2.msra.mxu0 %v5509
      %5588 = vmatprep.subr.mxu0 0.0
      %5589 = vmatpush2.msra.mxu0 %v5508
      %5590 = vmatprep.subr.mxu0 0.0
      %5591 = vmatpush2.msra.mxu0 %v5507
      %5592 = vmatprep.subr.mxu0 0.0
      %5593 = vmatpush2.msra.mxu0 %v5506
      %5594 = vmatprep.subr.mxu0 0.0
      %5595 = vmatpush2.msra.mxu0 %v5505
      %5596 = vmatprep.subr.mxu0 0.0
      %5597 = vmatpush2.msra.mxu0 %v5504
      %5598 = vmatprep.subr.mxu0 0.0
      %5599 = vmatpush2.msra.mxu0 %v5503
      %5600 = vmatprep.subr.mxu0 0.0
      %5601 = vmatpush2.msra.mxu0 %v5502
      %5602 = vmatprep.subr.mxu0 0.0
      %5603 = vmatpush2.msra.mxu0 %v5501
      %5604 = vmatprep.subr.mxu0 0.0
      %5605 = vmatpush2.msra.mxu0 %v5500
      %5606 = vmatprep.subr.mxu0 0.0
      %5607 = vmatpush2.msra.mxu0 %v5499
      %5608 = vmatprep.subr.mxu0 0.0
      %5609 = vmatpush2.msra.mxu0 %v5498
      %5610 = vmatprep.mubr.f32.mxu0 %v5258
      %5611 = vmatmul.mubr.f32.gmra.mxu0 %v5226
      %v5612 = vpop.f32.mrf.mxu0
      %v5613 = vadd.f32 0.0, %v5612
      %v5614 = vpop.f32.mrf.mxu0
      %5615 = vdwg.mxu0
      %5616 = vmatprep.subr.mxu0 0.0
      %5617 = vmatpush1.msra.mxu0 %v5529
      %5618 = vmatprep.subr.mxu0 0.0
      %5619 = vmatpush1.msra.mxu0 %v5528
      %5620 = vmatprep.subr.mxu0 0.0
      %5621 = vmatpush1.msra.mxu0 %v5527
      %5622 = vmatprep.subr.mxu0 0.0
      %5623 = vmatpush1.msra.mxu0 %v5526
      %5624 = vmatprep.subr.mxu0 0.0
      %5625 = vmatpush1.msra.mxu0 %v5525
      %5626 = vmatprep.subr.mxu0 0.0
      %5627 = vmatpush1.msra.mxu0 %v5524
      %5628 = vmatprep.subr.mxu0 0.0
      %5629 = vmatpush1.msra.mxu0 %v5523
      %5630 = vmatprep.subr.mxu0 0.0
      %5631 = vmatpush1.msra.mxu0 %v5522
      %5632 = vmatprep.subr.mxu0 0.0
      %5633 = vmatpush1.msra.mxu0 %v5521
      %5634 = vmatprep.subr.mxu0 0.0
      %5635 = vmatpush1.msra.mxu0 %v5520
      %5636 = vmatprep.subr.mxu0 0.0
      %5637 = vmatpush1.msra.mxu0 %v5519
      %5638 = vmatprep.subr.mxu0 0.0
      %5639 = vmatpush1.msra.mxu0 %v5518
      %5640 = vmatprep.subr.mxu0 0.0
      %5641 = vmatpush1.msra.mxu0 %v5517
      %5642 = vmatprep.subr.mxu0 0.0
      %5643 = vmatpush1.msra.mxu0 %v5516
      %5644 = vmatprep.subr.mxu0 0.0
      %5645 = vmatpush1.msra.mxu0 %v5515
      %5646 = vmatprep.subr.mxu0 0.0
      %5647 = vmatpush1.msra.mxu0 %v5514
      %5648 = vmatprep.subr.mxu0 0.0
      %5649 = vmatpush2.msra.mxu0 %v5545
      %5650 = vmatprep.subr.mxu0 0.0
      %5651 = vmatpush2.msra.mxu0 %v5544
      %5652 = vmatprep.subr.mxu0 0.0
      %5653 = vmatpush2.msra.mxu0 %v5543
      %5654 = vmatprep.subr.mxu0 0.0
      %5655 = vmatpush2.msra.mxu0 %v5542
      %5656 = vmatprep.subr.mxu0 0.0
      %5657 = vmatpush2.msra.mxu0 %v5541
      %5658 = vmatprep.subr.mxu0 0.0
      %5659 = vmatpush2.msra.mxu0 %v5540
      %5660 = vmatprep.subr.mxu0 0.0
      %5661 = vmatpush2.msra.mxu0 %v5539
      %5662 = vmatprep.subr.mxu0 0.0
      %5663 = vmatpush2.msra.mxu0 %v5538
      %5664 = vmatprep.subr.mxu0 0.0
      %5665 = vmatpush2.msra.mxu0 %v5537
      %5666 = vmatprep.subr.mxu0 0.0
      %5667 = vmatpush2.msra.mxu0 %v5536
      %5668 = vmatprep.subr.mxu0 0.0
      %5669 = vmatpush2.msra.mxu0 %v5535
      %5670 = vmatprep.subr.mxu0 0.0
      %5671 = vmatpush2.msra.mxu0 %v5534
      %5672 = vmatprep.subr.mxu0 0.0
      %5673 = vmatpush2.msra.mxu0 %v5533
      %5674 = vmatprep.subr.mxu0 0.0
      %5675 = vmatpush2.msra.mxu0 %v5532
      %5676 = vmatprep.subr.mxu0 0.0
      %5677 = vmatpush2.msra.mxu0 %v5531
      %5678 = vmatprep.subr.mxu0 0.0
      %5679 = vmatpush2.msra.mxu0 %v5530
      %5680 = vmatprep.mubr.f32.mxu0 %v5322
      %5681 = vmatmul.mubr.f32.gmra.mxu0 %v5290
      %v5682 = vpop.f32.mrf.mxu0
      %v5683 = vadd.f32 %v5613, %v5682
      %v5684 = vpop.f32.mrf.mxu0
      %5685 = vdwg.mxu0
      %v5686 = vadd.f32 %v5481, %v5683
      %5687 = vst.msk [vmem:[%s466] sm:$0xf] %vm5479, %v5686
      %v5688 = vld [vmem:[%s469] sm:$0x1]
      %vm5689 = vcmask 31744
      %v5690 = vsel %vm5689, %v1314, 0.0
      %v5691 = vsel %vm5689, %v1315, 0.0
      %v5692 = vadd.f32 %v5690, %v5691
      %v5693 = vsel %vm5689, %v1316, 0.0
      %v5694 = vadd.f32 %v5692, %v5693
      %v5695 = vsel %vm5689, %v1317, 0.0
      %v5696 = vadd.f32 %v5694, %v5695
      %v5697 = vsel %vm5689, %v1318, 0.0
      %v5698 = vadd.f32 %v5696, %v5697
      %v5699 = vsel %vm5689, %v1319, 0.0
      %v5700 = vadd.f32 %v5698, %v5699
      %v5701 = vsel %vm5689, %v1320, 0.0
      %v5702 = vadd.f32 %v5700, %v5701
      %v5703 = vsel %vm5689, %v1321, 0.0
      %v5704 = vadd.f32 %v5702, %v5703
      %v5705 = vsel %vm5689, %v1322, 0.0
      %v5706 = vadd.f32 %v5704, %v5705
      %v5707 = vsel %vm5689, %v1323, 0.0
      %v5708 = vadd.f32 %v5706, %v5707
      %v5709 = vsel %vm5689, %v1324, 0.0
      %v5710 = vadd.f32 %v5708, %v5709
      %v5711 = vsel %vm5689, %v1325, 0.0
      %v5712 = vadd.f32 %v5710, %v5711
      %v5713 = vsel %vm5689, %v1326, 0.0
      %v5714 = vadd.f32 %v5712, %v5713
      %v5715 = vsel %vm5689, %v1327, 0.0
      %v5716 = vadd.f32 %v5714, %v5715
      %v5717 = vsel %vm5689, %v1328, 0.0
      %v5718 = vadd.f32 %v5716, %v5717
      %v5719 = vsel %vm5689, %v1329, 0.0
      %v5720 = vadd.f32 %v5718, %v5719
      %v5721 = vsel %vm5689, %v1330, 0.0
      %v5722 = vadd.f32 %v5720, %v5721
      %v5723 = vsel %vm5689, %v1331, 0.0
      %v5724 = vadd.f32 %v5722, %v5723
      %v5725 = vsel %vm5689, %v1332, 0.0
      %v5726 = vadd.f32 %v5724, %v5725
      %v5727 = vsel %vm5689, %v1333, 0.0
      %v5728 = vadd.f32 %v5726, %v5727
      %v5729 = vsel %vm5689, %v1334, 0.0
      %v5730 = vadd.f32 %v5728, %v5729
      %v5731 = vsel %vm5689, %v1335, 0.0
      %v5732 = vadd.f32 %v5730, %v5731
      %v5733 = vsel %vm5689, %v1336, 0.0
      %v5734 = vadd.f32 %v5732, %v5733
      %v5735 = vsel %vm5689, %v1337, 0.0
      %v5736 = vadd.f32 %v5734, %v5735
      %v5737 = vsel %vm5689, %v1338, 0.0
      %v5738 = vadd.f32 %v5736, %v5737
      %v5739 = vsel %vm5689, %v1339, 0.0
      %v5740 = vadd.f32 %v5738, %v5739
      %v5741 = vsel %vm5689, %v1340, 0.0
      %v5742 = vadd.f32 %v5740, %v5741
      %v5743 = vsel %vm5689, %v1341, 0.0
      %v5744 = vadd.f32 %v5742, %v5743
      %v5745 = vsel %vm5689, %v1342, 0.0
      %v5746 = vadd.f32 %v5744, %v5745
      %v5747 = vsel %vm5689, %v1343, 0.0
      %v5748 = vadd.f32 %v5746, %v5747
      %v5749 = vsel %vm5689, %v1344, 0.0
      %v5750 = vadd.f32 %v5748, %v5749
      %v5751 = vsel %vm5689, %v1345, 0.0
      %v5752 = vadd.f32 %v5750, %v5751
      %v5753 = vsel %vm5689, %v1346, 0.0
      %v5754 = vadd.f32 %v5752, %v5753
      %v5755 = vsel %vm5689, %v1347, 0.0
      %v5756 = vadd.f32 %v5754, %v5755
      %v5757 = vsel %vm5689, %v1348, 0.0
      %v5758 = vadd.f32 %v5756, %v5757
      %v5759 = vsel %vm5689, %v1349, 0.0
      %v5760 = vadd.f32 %v5758, %v5759
      %v5761 = vsel %vm5689, %v1350, 0.0
      %v5762 = vadd.f32 %v5760, %v5761
      %v5763 = vsel %vm5689, %v1351, 0.0
      %v5764 = vadd.f32 %v5762, %v5763
      %v5765 = vsel %vm5689, %v1352, 0.0
      %v5766 = vadd.f32 %v5764, %v5765
      %v5767 = vsel %vm5689, %v1353, 0.0
      %v5768 = vadd.f32 %v5766, %v5767
      %v5769 = vsel %vm5689, %v1354, 0.0
      %v5770 = vadd.f32 %v5768, %v5769
      %v5771 = vsel %vm5689, %v1355, 0.0
      %v5772 = vadd.f32 %v5770, %v5771
      %v5773 = vsel %vm5689, %v1356, 0.0
      %v5774 = vadd.f32 %v5772, %v5773
      %v5775 = vsel %vm5689, %v1357, 0.0
      %v5776 = vadd.f32 %v5774, %v5775
      %v5777 = vsel %vm5689, %v1358, 0.0
      %v5778 = vadd.f32 %v5776, %v5777
      %v5779 = vsel %vm5689, %v1359, 0.0
      %v5780 = vadd.f32 %v5778, %v5779
      %v5781 = vsel %vm5689, %v1360, 0.0
      %v5782 = vadd.f32 %v5780, %v5781
      %v5783 = vsel %vm5689, %v1361, 0.0
      %v5784 = vadd.f32 %v5782, %v5783
      %v5785 = vsel %vm5689, %v1362, 0.0
      %v5786 = vadd.f32 %v5784, %v5785
      %v5787 = vsel %vm5689, %v1363, 0.0
      %v5788 = vadd.f32 %v5786, %v5787
      %v5789 = vsel %vm5689, %v1364, 0.0
      %v5790 = vadd.f32 %v5788, %v5789
      %v5791 = vsel %vm5689, %v1365, 0.0
      %v5792 = vadd.f32 %v5790, %v5791
      %v5793 = vsel %vm5689, %v1366, 0.0
      %v5794 = vadd.f32 %v5792, %v5793
      %v5795 = vsel %vm5689, %v1367, 0.0
      %v5796 = vadd.f32 %v5794, %v5795
      %v5797 = vsel %vm5689, %v1368, 0.0
      %v5798 = vadd.f32 %v5796, %v5797
      %v5799 = vsel %vm5689, %v1369, 0.0
      %v5800 = vadd.f32 %v5798, %v5799
      %v5801 = vsel %vm5689, %v1370, 0.0
      %v5802 = vadd.f32 %v5800, %v5801
      %v5803 = vsel %vm5689, %v1371, 0.0
      %v5804 = vadd.f32 %v5802, %v5803
      %v5805 = vsel %vm5689, %v1372, 0.0
      %v5806 = vadd.f32 %v5804, %v5805
      %v5807 = vsel %vm5689, %v1373, 0.0
      %v5808 = vadd.f32 %v5806, %v5807
      %v5809 = vsel %vm5689, %v1374, 0.0
      %v5810 = vadd.f32 %v5808, %v5809
      %v5811 = vsel %vm5689, %v1375, 0.0
      %v5812 = vadd.f32 %v5810, %v5811
      %v5813 = vsel %vm5689, %v1376, 0.0
      %v5814 = vadd.f32 %v5812, %v5813
      %v5815 = vsel %vm5689, %v1377, 0.0
      %v5816 = vadd.f32 %v5814, %v5815
      %v5817 = vrot.slane %v5816, 4
      %v5818 = vadd.f32 %v5816, %v5817
      %v5819 = vrot.slane %v5818, 2
      %v5820 = vadd.f32 %v5818, %v5819
      %v5821 = vrot.slane %v5820, 1
      %v5822 = vadd.f32 %v5820, %v5821
      %v5823 = vadd.f32 %v5688, %v5822
      %vm5824 = vcmask 24576
      %5825 = vst.msk [vmem:[%s469] sm:$0x1] %vm5824, %v5823
      %5890 = vrot.lane.b32.xlu0 %v5082, 32
      %v5891 = vpop.permute.xlu0 %5890
      %5892 = vrot.lane.b32.xlu0 %v5084, 32
      %v5893 = vpop.permute.xlu0 %5892
      %5894 = vrot.lane.b32.xlu0 %v5086, 32
      %v5895 = vpop.permute.xlu0 %5894
      %5896 = vrot.lane.b32.xlu0 %v5088, 32
      %v5897 = vpop.permute.xlu0 %5896
      %5898 = vrot.lane.b32.xlu0 %v5090, 32
      %v5899 = vpop.permute.xlu0 %5898
      %5900 = vrot.lane.b32.xlu0 %v5092, 32
      %v5901 = vpop.permute.xlu0 %5900
      %5902 = vrot.lane.b32.xlu0 %v5094, 32
      %v5903 = vpop.permute.xlu0 %5902
      %5904 = vrot.lane.b32.xlu0 %v5096, 32
      %v5905 = vpop.permute.xlu0 %5904
      %5906 = vrot.lane.b32.xlu0 %v5098, 32
      %v5907 = vpop.permute.xlu0 %5906
      %5908 = vrot.lane.b32.xlu0 %v5100, 32
      %v5909 = vpop.permute.xlu0 %5908
      %5910 = vrot.lane.b32.xlu0 %v5102, 32
      %v5911 = vpop.permute.xlu0 %5910
      %5912 = vrot.lane.b32.xlu0 %v5104, 32
      %v5913 = vpop.permute.xlu0 %5912
      %5914 = vrot.lane.b32.xlu0 %v5106, 32
      %v5915 = vpop.permute.xlu0 %5914
      %5916 = vrot.lane.b32.xlu0 %v5108, 32
      %v5917 = vpop.permute.xlu0 %5916
      %5918 = vrot.lane.b32.xlu0 %v5110, 32
      %v5919 = vpop.permute.xlu0 %5918
      %5920 = vrot.lane.b32.xlu0 %v5112, 32
      %v5921 = vpop.permute.xlu0 %5920
      %5922 = vrot.lane.b32.xlu0 %v5114, 32
      %v5923 = vpop.permute.xlu0 %5922
      %5924 = vrot.lane.b32.xlu0 %v5116, 32
      %v5925 = vpop.permute.xlu0 %5924
      %5926 = vrot.lane.b32.xlu0 %v5118, 32
      %v5927 = vpop.permute.xlu0 %5926
      %5928 = vrot.lane.b32.xlu0 %v5120, 32
      %v5929 = vpop.permute.xlu0 %5928
      %5930 = vrot.lane.b32.xlu0 %v5122, 32
      %v5931 = vpop.permute.xlu0 %5930
      %5932 = vrot.lane.b32.xlu0 %v5124, 32
      %v5933 = vpop.permute.xlu0 %5932
      %5934 = vrot.lane.b32.xlu0 %v5126, 32
      %v5935 = vpop.permute.xlu0 %5934
      %5936 = vrot.lane.b32.xlu0 %v5128, 32
      %v5937 = vpop.permute.xlu0 %5936
      %5938 = vrot.lane.b32.xlu0 %v5130, 32
      %v5939 = vpop.permute.xlu0 %5938
      %5940 = vrot.lane.b32.xlu0 %v5132, 32
      %v5941 = vpop.permute.xlu0 %5940
      %5942 = vrot.lane.b32.xlu0 %v5134, 32
      %v5943 = vpop.permute.xlu0 %5942
      %5944 = vrot.lane.b32.xlu0 %v5136, 32
      %v5945 = vpop.permute.xlu0 %5944
      %5946 = vrot.lane.b32.xlu0 %v5138, 32
      %v5947 = vpop.permute.xlu0 %5946
      %5948 = vrot.lane.b32.xlu0 %v5140, 32
      %v5949 = vpop.permute.xlu0 %5948
      %5950 = vrot.lane.b32.xlu0 %v5142, 32
      %v5951 = vpop.permute.xlu0 %5950
      %5952 = vrot.lane.b32.xlu0 %v5144, 32
      %v5953 = vpop.permute.xlu0 %5952
      %5954 = vrot.lane.b32.xlu0 %v5146, 32
      %v5955 = vpop.permute.xlu0 %5954
      %5956 = vrot.lane.b32.xlu0 %v5148, 32
      %v5957 = vpop.permute.xlu0 %5956
      %5958 = vrot.lane.b32.xlu0 %v5150, 32
      %v5959 = vpop.permute.xlu0 %5958
      %5960 = vrot.lane.b32.xlu0 %v5152, 32
      %v5961 = vpop.permute.xlu0 %5960
      %5962 = vrot.lane.b32.xlu0 %v5154, 32
      %v5963 = vpop.permute.xlu0 %5962
      %5964 = vrot.lane.b32.xlu0 %v5156, 32
      %v5965 = vpop.permute.xlu0 %5964
      %5966 = vrot.lane.b32.xlu0 %v5158, 32
      %v5967 = vpop.permute.xlu0 %5966
      %5968 = vrot.lane.b32.xlu0 %v5160, 32
      %v5969 = vpop.permute.xlu0 %5968
      %5970 = vrot.lane.b32.xlu0 %v5162, 32
      %v5971 = vpop.permute.xlu0 %5970
      %5972 = vrot.lane.b32.xlu0 %v5164, 32
      %v5973 = vpop.permute.xlu0 %5972
      %5974 = vrot.lane.b32.xlu0 %v5166, 32
      %v5975 = vpop.permute.xlu0 %5974
      %5976 = vrot.lane.b32.xlu0 %v5168, 32
      %v5977 = vpop.permute.xlu0 %5976
      %5978 = vrot.lane.b32.xlu0 %v5170, 32
      %v5979 = vpop.permute.xlu0 %5978
      %5980 = vrot.lane.b32.xlu0 %v5172, 32
      %v5981 = vpop.permute.xlu0 %5980
      %5982 = vrot.lane.b32.xlu0 %v5174, 32
      %v5983 = vpop.permute.xlu0 %5982
      %5984 = vrot.lane.b32.xlu0 %v5176, 32
      %v5985 = vpop.permute.xlu0 %5984
      %5986 = vrot.lane.b32.xlu0 %v5178, 32
      %v5987 = vpop.permute.xlu0 %5986
      %5988 = vrot.lane.b32.xlu0 %v5180, 32
      %v5989 = vpop.permute.xlu0 %5988
      %5990 = vrot.lane.b32.xlu0 %v5182, 32
      %v5991 = vpop.permute.xlu0 %5990
      %5992 = vrot.lane.b32.xlu0 %v5184, 32
      %v5993 = vpop.permute.xlu0 %5992
      %5994 = vrot.lane.b32.xlu0 %v5186, 32
      %v5995 = vpop.permute.xlu0 %5994
      %5996 = vrot.lane.b32.xlu0 %v5188, 32
      %v5997 = vpop.permute.xlu0 %5996
      %5998 = vrot.lane.b32.xlu0 %v5190, 32
      %v5999 = vpop.permute.xlu0 %5998
      %6000 = vrot.lane.b32.xlu0 %v5192, 32
      %v6001 = vpop.permute.xlu0 %6000
      %6002 = vrot.lane.b32.xlu0 %v5194, 32
      %v6003 = vpop.permute.xlu0 %6002
      %6004 = vrot.lane.b32.xlu0 %v5196, 32
      %v6005 = vpop.permute.xlu0 %6004
      %6006 = vrot.lane.b32.xlu0 %v5198, 32
      %v6007 = vpop.permute.xlu0 %6006
      %6008 = vrot.lane.b32.xlu0 %v5200, 32
      %v6009 = vpop.permute.xlu0 %6008
      %6010 = vrot.lane.b32.xlu0 %v5202, 32
      %v6011 = vpop.permute.xlu0 %6010
      %6012 = vrot.lane.b32.xlu0 %v5204, 32
      %v6013 = vpop.permute.xlu0 %6012
      %6014 = vrot.lane.b32.xlu0 %v5206, 32
      %v6015 = vpop.permute.xlu0 %6014
      %6016 = vrot.lane.b32.xlu0 %v5208, 32
      %v6017 = vpop.permute.xlu0 %6016
      %6146 = vrot.lane.b32.xlu0 %v2115, 16
      %v6147 = vpop.permute.xlu0 %6146
      %6148 = vrot.lane.b32.xlu0 %v2120, 16
      %v6149 = vpop.permute.xlu0 %6148
      %6150 = vrot.lane.b32.xlu0 %v2125, 16
      %v6151 = vpop.permute.xlu0 %6150
      %6152 = vrot.lane.b32.xlu0 %v2130, 16
      %v6153 = vpop.permute.xlu0 %6152
      %6154 = vrot.lane.b32.xlu0 %v2135, 16
      %v6155 = vpop.permute.xlu0 %6154
      %6156 = vrot.lane.b32.xlu0 %v2140, 16
      %v6157 = vpop.permute.xlu0 %6156
      %6158 = vrot.lane.b32.xlu0 %v2145, 16
      %v6159 = vpop.permute.xlu0 %6158
      %6160 = vrot.lane.b32.xlu0 %v2150, 16
      %v6161 = vpop.permute.xlu0 %6160
      %6162 = vrot.lane.b32.xlu0 %v2155, 16
      %v6163 = vpop.permute.xlu0 %6162
      %6164 = vrot.lane.b32.xlu0 %v2160, 16
      %v6165 = vpop.permute.xlu0 %6164
      %6166 = vrot.lane.b32.xlu0 %v2165, 16
      %v6167 = vpop.permute.xlu0 %6166
      %6168 = vrot.lane.b32.xlu0 %v2170, 16
      %v6169 = vpop.permute.xlu0 %6168
      %6170 = vrot.lane.b32.xlu0 %v2175, 16
      %v6171 = vpop.permute.xlu0 %6170
      %6172 = vrot.lane.b32.xlu0 %v2180, 16
      %v6173 = vpop.permute.xlu0 %6172
      %6174 = vrot.lane.b32.xlu0 %v2185, 16
      %v6175 = vpop.permute.xlu0 %6174
      %6176 = vrot.lane.b32.xlu0 %v2190, 16
      %v6177 = vpop.permute.xlu0 %6176
      %6178 = vrot.lane.b32.xlu0 %v2195, 16
      %v6179 = vpop.permute.xlu0 %6178
      %6180 = vrot.lane.b32.xlu0 %v2200, 16
      %v6181 = vpop.permute.xlu0 %6180
      %6182 = vrot.lane.b32.xlu0 %v2205, 16
      %v6183 = vpop.permute.xlu0 %6182
      %6184 = vrot.lane.b32.xlu0 %v2210, 16
      %v6185 = vpop.permute.xlu0 %6184
      %6186 = vrot.lane.b32.xlu0 %v2215, 16
      %v6187 = vpop.permute.xlu0 %6186
      %6188 = vrot.lane.b32.xlu0 %v2220, 16
      %v6189 = vpop.permute.xlu0 %6188
      %6190 = vrot.lane.b32.xlu0 %v2225, 16
      %v6191 = vpop.permute.xlu0 %6190
      %6192 = vrot.lane.b32.xlu0 %v2230, 16
      %v6193 = vpop.permute.xlu0 %6192
      %6194 = vrot.lane.b32.xlu0 %v2235, 16
      %v6195 = vpop.permute.xlu0 %6194
      %6196 = vrot.lane.b32.xlu0 %v2240, 16
      %v6197 = vpop.permute.xlu0 %6196
      %6198 = vrot.lane.b32.xlu0 %v2245, 16
      %v6199 = vpop.permute.xlu0 %6198
      %6200 = vrot.lane.b32.xlu0 %v2250, 16
      %v6201 = vpop.permute.xlu0 %6200
      %6202 = vrot.lane.b32.xlu0 %v2255, 16
      %v6203 = vpop.permute.xlu0 %6202
      %6204 = vrot.lane.b32.xlu0 %v2260, 16
      %v6205 = vpop.permute.xlu0 %6204
      %6206 = vrot.lane.b32.xlu0 %v2265, 16
      %v6207 = vpop.permute.xlu0 %6206
      %6208 = vrot.lane.b32.xlu0 %v2270, 16
      %v6209 = vpop.permute.xlu0 %6208
      %6210 = vrot.lane.b32.xlu0 %v2275, 16
      %v6211 = vpop.permute.xlu0 %6210
      %6212 = vrot.lane.b32.xlu0 %v2280, 16
      %v6213 = vpop.permute.xlu0 %6212
      %6214 = vrot.lane.b32.xlu0 %v2285, 16
      %v6215 = vpop.permute.xlu0 %6214
      %6216 = vrot.lane.b32.xlu0 %v2290, 16
      %v6217 = vpop.permute.xlu0 %6216
      %6218 = vrot.lane.b32.xlu0 %v2295, 16
      %v6219 = vpop.permute.xlu0 %6218
      %6220 = vrot.lane.b32.xlu0 %v2300, 16
      %v6221 = vpop.permute.xlu0 %6220
      %6222 = vrot.lane.b32.xlu0 %v2305, 16
      %v6223 = vpop.permute.xlu0 %6222
      %6224 = vrot.lane.b32.xlu0 %v2310, 16
      %v6225 = vpop.permute.xlu0 %6224
      %6226 = vrot.lane.b32.xlu0 %v2315, 16
      %v6227 = vpop.permute.xlu0 %6226
      %6228 = vrot.lane.b32.xlu0 %v2320, 16
      %v6229 = vpop.permute.xlu0 %6228
      %6230 = vrot.lane.b32.xlu0 %v2325, 16
      %v6231 = vpop.permute.xlu0 %6230
      %6232 = vrot.lane.b32.xlu0 %v2330, 16
      %v6233 = vpop.permute.xlu0 %6232
      %6234 = vrot.lane.b32.xlu0 %v2335, 16
      %v6235 = vpop.permute.xlu0 %6234
      %6236 = vrot.lane.b32.xlu0 %v2340, 16
      %v6237 = vpop.permute.xlu0 %6236
      %6238 = vrot.lane.b32.xlu0 %v2345, 16
      %v6239 = vpop.permute.xlu0 %6238
      %6240 = vrot.lane.b32.xlu0 %v2350, 16
      %v6241 = vpop.permute.xlu0 %6240
      %6242 = vrot.lane.b32.xlu0 %v2355, 16
      %v6243 = vpop.permute.xlu0 %6242
      %6244 = vrot.lane.b32.xlu0 %v2360, 16
      %v6245 = vpop.permute.xlu0 %6244
      %6246 = vrot.lane.b32.xlu0 %v2365, 16
      %v6247 = vpop.permute.xlu0 %6246
      %6248 = vrot.lane.b32.xlu0 %v2370, 16
      %v6249 = vpop.permute.xlu0 %6248
      %6250 = vrot.lane.b32.xlu0 %v2375, 16
      %v6251 = vpop.permute.xlu0 %6250
      %6252 = vrot.lane.b32.xlu0 %v2380, 16
      %v6253 = vpop.permute.xlu0 %6252
      %6254 = vrot.lane.b32.xlu0 %v2385, 16
      %v6255 = vpop.permute.xlu0 %6254
      %6256 = vrot.lane.b32.xlu0 %v2390, 16
      %v6257 = vpop.permute.xlu0 %6256
      %6258 = vrot.lane.b32.xlu0 %v2395, 16
      %v6259 = vpop.permute.xlu0 %6258
      %6260 = vrot.lane.b32.xlu0 %v2400, 16
      %v6261 = vpop.permute.xlu0 %6260
      %6262 = vrot.lane.b32.xlu0 %v2405, 16
      %v6263 = vpop.permute.xlu0 %6262
      %6264 = vrot.lane.b32.xlu0 %v2410, 16
      %v6265 = vpop.permute.xlu0 %6264
      %6266 = vrot.lane.b32.xlu0 %v2415, 16
      %v6267 = vpop.permute.xlu0 %6266
      %6268 = vrot.lane.b32.xlu0 %v2420, 16
      %v6269 = vpop.permute.xlu0 %6268
      %6270 = vrot.lane.b32.xlu0 %v2425, 16
      %v6271 = vpop.permute.xlu0 %6270
      %6272 = vrot.lane.b32.xlu0 %v2430, 16
      %v6273 = vpop.permute.xlu0 %6272
      %v6338 = vsel %vm3287, %v2115, %v5891
      %v6339 = vsel %vm3287, %v2120, %v5893
      %v6340 = vsel %vm3287, %v2125, %v5895
      %v6341 = vsel %vm3287, %v2130, %v5897
      %v6342 = vsel %vm3287, %v2135, %v5899
      %v6343 = vsel %vm3287, %v2140, %v5901
      %v6344 = vsel %vm3287, %v2145, %v5903
      %v6345 = vsel %vm3287, %v2150, %v5905
      %v6346 = vsel %vm3287, %v2155, %v5907
      %v6347 = vsel %vm3287, %v2160, %v5909
      %v6348 = vsel %vm3287, %v2165, %v5911
      %v6349 = vsel %vm3287, %v2170, %v5913
      %v6350 = vsel %vm3287, %v2175, %v5915
      %v6351 = vsel %vm3287, %v2180, %v5917
      %v6352 = vsel %vm3287, %v2185, %v5919
      %v6353 = vsel %vm3287, %v2190, %v5921
      %v6354 = vsel %vm3287, %v2195, %v5923
      %v6355 = vsel %vm3287, %v2200, %v5925
      %v6356 = vsel %vm3287, %v2205, %v5927
      %v6357 = vsel %vm3287, %v2210, %v5929
      %v6358 = vsel %vm3287, %v2215, %v5931
      %v6359 = vsel %vm3287, %v2220, %v5933
      %v6360 = vsel %vm3287, %v2225, %v5935
      %v6361 = vsel %vm3287, %v2230, %v5937
      %v6362 = vsel %vm3287, %v2235, %v5939
      %v6363 = vsel %vm3287, %v2240, %v5941
      %v6364 = vsel %vm3287, %v2245, %v5943
      %v6365 = vsel %vm3287, %v2250, %v5945
      %v6366 = vsel %vm3287, %v2255, %v5947
      %v6367 = vsel %vm3287, %v2260, %v5949
      %v6368 = vsel %vm3287, %v2265, %v5951
      %v6369 = vsel %vm3287, %v2270, %v5953
      %v6370 = vsel %vm3287, %v2275, %v5955
      %v6371 = vsel %vm3287, %v2280, %v5957
      %v6372 = vsel %vm3287, %v2285, %v5959
      %v6373 = vsel %vm3287, %v2290, %v5961
      %v6374 = vsel %vm3287, %v2295, %v5963
      %v6375 = vsel %vm3287, %v2300, %v5965
      %v6376 = vsel %vm3287, %v2305, %v5967
      %v6377 = vsel %vm3287, %v2310, %v5969
      %v6378 = vsel %vm3287, %v2315, %v5971
      %v6379 = vsel %vm3287, %v2320, %v5973
      %v6380 = vsel %vm3287, %v2325, %v5975
      %v6381 = vsel %vm3287, %v2330, %v5977
      %v6382 = vsel %vm3287, %v2335, %v5979
      %v6383 = vsel %vm3287, %v2340, %v5981
      %v6384 = vsel %vm3287, %v2345, %v5983
      %v6385 = vsel %vm3287, %v2350, %v5985
      %v6386 = vsel %vm3287, %v2355, %v5987
      %v6387 = vsel %vm3287, %v2360, %v5989
      %v6388 = vsel %vm3287, %v2365, %v5991
      %v6389 = vsel %vm3287, %v2370, %v5993
      %v6390 = vsel %vm3287, %v2375, %v5995
      %v6391 = vsel %vm3287, %v2380, %v5997
      %v6392 = vsel %vm3287, %v2385, %v5999
      %v6393 = vsel %vm3287, %v2390, %v6001
      %v6394 = vsel %vm3287, %v2395, %v6003
      %v6395 = vsel %vm3287, %v2400, %v6005
      %v6396 = vsel %vm3287, %v2405, %v6007
      %v6397 = vsel %vm3287, %v2410, %v6009
      %v6398 = vsel %vm3287, %v2415, %v6011
      %v6399 = vsel %vm3287, %v2420, %v6013
      %v6400 = vsel %vm3287, %v2425, %v6015
      %v6401 = vsel %vm3287, %v2430, %v6017
      %v6402 = vsel %vm1855, %v6338, %v6147
      %v6403 = vsel %vm1855, %v6339, %v6149
      %v6404 = vsel %vm1855, %v6340, %v6151
      %v6405 = vsel %vm1855, %v6341, %v6153
      %v6406 = vsel %vm1855, %v6342, %v6155
      %v6407 = vsel %vm1855, %v6343, %v6157
      %v6408 = vsel %vm1855, %v6344, %v6159
      %v6409 = vsel %vm1855, %v6345, %v6161
      %v6410 = vsel %vm1855, %v6346, %v6163
      %v6411 = vsel %vm1855, %v6347, %v6165
      %v6412 = vsel %vm1855, %v6348, %v6167
      %v6413 = vsel %vm1855, %v6349, %v6169
      %v6414 = vsel %vm1855, %v6350, %v6171
      %v6415 = vsel %vm1855, %v6351, %v6173
      %v6416 = vsel %vm1855, %v6352, %v6175
      %v6417 = vsel %vm1855, %v6353, %v6177
      %v6418 = vsel %vm1855, %v6354, %v6179
      %v6419 = vsel %vm1855, %v6355, %v6181
      %v6420 = vsel %vm1855, %v6356, %v6183
      %v6421 = vsel %vm1855, %v6357, %v6185
      %v6422 = vsel %vm1855, %v6358, %v6187
      %v6423 = vsel %vm1855, %v6359, %v6189
      %v6424 = vsel %vm1855, %v6360, %v6191
      %v6425 = vsel %vm1855, %v6361, %v6193
      %v6426 = vsel %vm1855, %v6362, %v6195
      %v6427 = vsel %vm1855, %v6363, %v6197
      %v6428 = vsel %vm1855, %v6364, %v6199
      %v6429 = vsel %vm1855, %v6365, %v6201
      %v6430 = vsel %vm1855, %v6366, %v6203
      %v6431 = vsel %vm1855, %v6367, %v6205
      %v6432 = vsel %vm1855, %v6368, %v6207
      %v6433 = vsel %vm1855, %v6369, %v6209
      %v6434 = vsel %vm1855, %v6370, %v6211
      %v6435 = vsel %vm1855, %v6371, %v6213
      %v6436 = vsel %vm1855, %v6372, %v6215
      %v6437 = vsel %vm1855, %v6373, %v6217
      %v6438 = vsel %vm1855, %v6374, %v6219
      %v6439 = vsel %vm1855, %v6375, %v6221
      %v6440 = vsel %vm1855, %v6376, %v6223
      %v6441 = vsel %vm1855, %v6377, %v6225
      %v6442 = vsel %vm1855, %v6378, %v6227
      %v6443 = vsel %vm1855, %v6379, %v6229
      %v6444 = vsel %vm1855, %v6380, %v6231
      %v6445 = vsel %vm1855, %v6381, %v6233
      %v6446 = vsel %vm1855, %v6382, %v6235
      %v6447 = vsel %vm1855, %v6383, %v6237
      %v6448 = vsel %vm1855, %v6384, %v6239
      %v6449 = vsel %vm1855, %v6385, %v6241
      %v6450 = vsel %vm1855, %v6386, %v6243
      %v6451 = vsel %vm1855, %v6387, %v6245
      %v6452 = vsel %vm1855, %v6388, %v6247
      %v6453 = vsel %vm1855, %v6389, %v6249
      %v6454 = vsel %vm1855, %v6390, %v6251
      %v6455 = vsel %vm1855, %v6391, %v6253
      %v6456 = vsel %vm1855, %v6392, %v6255
      %v6457 = vsel %vm1855, %v6393, %v6257
      %v6458 = vsel %vm1855, %v6394, %v6259
      %v6459 = vsel %vm1855, %v6395, %v6261
      %v6460 = vsel %vm1855, %v6396, %v6263
      %v6461 = vsel %vm1855, %v6397, %v6265
      %v6462 = vsel %vm1855, %v6398, %v6267
      %v6463 = vsel %vm1855, %v6399, %v6269
      %v6464 = vsel %vm1855, %v6400, %v6271
      %v6465 = vsel %vm1855, %v6401, %v6273
      %vm6466 = vcmask 556032
      %6467 = vst.msk [vmem:[%s456] sm:$0xff] %vm6466, %v6402
      %6468 = vst.msk [vmem:[%s456 + $0x8] sm:$0xff] %vm6466, %v6403
      %6469 = vst.msk [vmem:[%s456 + $0x10] sm:$0xff] %vm6466, %v6404
      %6470 = vst.msk [vmem:[%s456 + $0x18] sm:$0xff] %vm6466, %v6405
      %6471 = vst.msk [vmem:[%s456 + $0x20] sm:$0xff] %vm6466, %v6406
      %6472 = vst.msk [vmem:[%s456 + $0x28] sm:$0xff] %vm6466, %v6407
      %6473 = vst.msk [vmem:[%s456 + $0x30] sm:$0xff] %vm6466, %v6408
      %6474 = vst.msk [vmem:[%s456 + $0x38] sm:$0xff] %vm6466, %v6409
      %6475 = vst.msk [vmem:[%s456 + $0x40] sm:$0xff] %vm6466, %v6410
      %6476 = vst.msk [vmem:[%s456 + $0x48] sm:$0xff] %vm6466, %v6411
      %6477 = vst.msk [vmem:[%s456 + $0x50] sm:$0xff] %vm6466, %v6412
      %6478 = vst.msk [vmem:[%s456 + $0x58] sm:$0xff] %vm6466, %v6413
      %6479 = vst.msk [vmem:[%s456 + $0x60] sm:$0xff] %vm6466, %v6414
      %6480 = vst.msk [vmem:[%s456 + $0x68] sm:$0xff] %vm6466, %v6415
      %6481 = vst.msk [vmem:[%s456 + $0x70] sm:$0xff] %vm6466, %v6416
      %6482 = vst.msk [vmem:[%s456 + $0x78] sm:$0xff] %vm6466, %v6417
      %6483 = vst.msk [vmem:[%s456 + $0x80] sm:$0xff] %vm6466, %v6418
      %6484 = vst.msk [vmem:[%s456 + $0x88] sm:$0xff] %vm6466, %v6419
      %6485 = vst.msk [vmem:[%s456 + $0x90] sm:$0xff] %vm6466, %v6420
      %6486 = vst.msk [vmem:[%s456 + $0x98] sm:$0xff] %vm6466, %v6421
      %6487 = vst.msk [vmem:[%s456 + $0xa0] sm:$0xff] %vm6466, %v6422
      %6488 = vst.msk [vmem:[%s456 + $0xa8] sm:$0xff] %vm6466, %v6423
      %6489 = vst.msk [vmem:[%s456 + $0xb0] sm:$0xff] %vm6466, %v6424
      %6490 = vst.msk [vmem:[%s456 + $0xb8] sm:$0xff] %vm6466, %v6425
      %6491 = vst.msk [vmem:[%s456 + $0xc0] sm:$0xff] %vm6466, %v6426
      %6492 = vst.msk [vmem:[%s456 + $0xc8] sm:$0xff] %vm6466, %v6427
      %6493 = vst.msk [vmem:[%s456 + $0xd0] sm:$0xff] %vm6466, %v6428
      %6494 = vst.msk [vmem:[%s456 + $0xd8] sm:$0xff] %vm6466, %v6429
      %6495 = vst.msk [vmem:[%s456 + $0xe0] sm:$0xff] %vm6466, %v6430
      %6496 = vst.msk [vmem:[%s456 + $0xe8] sm:$0xff] %vm6466, %v6431
      %6497 = vst.msk [vmem:[%s456 + $0xf0] sm:$0xff] %vm6466, %v6432
      %6498 = vst.msk [vmem:[%s456 + $0xf8] sm:$0xff] %vm6466, %v6433
      %6499 = vst.msk [vmem:[%s456 + $0x100] sm:$0xff] %vm6466, %v6434
      %6500 = vst.msk [vmem:[%s456 + $0x108] sm:$0xff] %vm6466, %v6435
      %6501 = vst.msk [vmem:[%s456 + $0x110] sm:$0xff] %vm6466, %v6436
      %6502 = vst.msk [vmem:[%s456 + $0x118] sm:$0xff] %vm6466, %v6437
      %6503 = vst.msk [vmem:[%s456 + $0x120] sm:$0xff] %vm6466, %v6438
      %6504 = vst.msk [vmem:[%s456 + $0x128] sm:$0xff] %vm6466, %v6439
      %6505 = vst.msk [vmem:[%s456 + $0x130] sm:$0xff] %vm6466, %v6440
      %6506 = vst.msk [vmem:[%s456 + $0x138] sm:$0xff] %vm6466, %v6441
      %6507 = vst.msk [vmem:[%s456 + $0x140] sm:$0xff] %vm6466, %v6442
      %6508 = vst.msk [vmem:[%s456 + $0x148] sm:$0xff] %vm6466, %v6443
      %6509 = vst.msk [vmem:[%s456 + $0x150] sm:$0xff] %vm6466, %v6444
      %6510 = vst.msk [vmem:[%s456 + $0x158] sm:$0xff] %vm6466, %v6445
      %6511 = vst.msk [vmem:[%s456 + $0x160] sm:$0xff] %vm6466, %v6446
      %6512 = vst.msk [vmem:[%s456 + $0x168] sm:$0xff] %vm6466, %v6447
      %6513 = vst.msk [vmem:[%s456 + $0x170] sm:$0xff] %vm6466, %v6448
      %6514 = vst.msk [vmem:[%s456 + $0x178] sm:$0xff] %vm6466, %v6449
      %6515 = vst.msk [vmem:[%s456 + $0x180] sm:$0xff] %vm6466, %v6450
      %6516 = vst.msk [vmem:[%s456 + $0x188] sm:$0xff] %vm6466, %v6451
      %6517 = vst.msk [vmem:[%s456 + $0x190] sm:$0xff] %vm6466, %v6452
      %6518 = vst.msk [vmem:[%s456 + $0x198] sm:$0xff] %vm6466, %v6453
      %6519 = vst.msk [vmem:[%s456 + $0x1a0] sm:$0xff] %vm6466, %v6454
      %6520 = vst.msk [vmem:[%s456 + $0x1a8] sm:$0xff] %vm6466, %v6455
      %6521 = vst.msk [vmem:[%s456 + $0x1b0] sm:$0xff] %vm6466, %v6456
      %6522 = vst.msk [vmem:[%s456 + $0x1b8] sm:$0xff] %vm6466, %v6457
      %6523 = vst.msk [vmem:[%s456 + $0x1c0] sm:$0xff] %vm6466, %v6458
      %6524 = vst.msk [vmem:[%s456 + $0x1c8] sm:$0xff] %vm6466, %v6459
      %6525 = vst.msk [vmem:[%s456 + $0x1d0] sm:$0xff] %vm6466, %v6460
      %6526 = vst.msk [vmem:[%s456 + $0x1d8] sm:$0xff] %vm6466, %v6461
      %6527 = vst.msk [vmem:[%s456 + $0x1e0] sm:$0xff] %vm6466, %v6462
      %6528 = vst.msk [vmem:[%s456 + $0x1e8] sm:$0xff] %vm6466, %v6463
      %6529 = vst.msk [vmem:[%s456 + $0x1f0] sm:$0xff] %vm6466, %v6464
      %6530 = vst.msk [vmem:[%s456 + $0x1f8] sm:$0xff] %vm6466, %v6465
      %s6531 = sadd.s32 %s28, %s29
      %s6532 = smul.u32 64, %s6531
      %p6533 = scmp.lt.s32.totalorder %s6532, 127
      %s6534 = scalar_select %p6533, %s6532, 127
      %s6535 = smul.addr %s6534, 8
      %s6536 = scalar_lea.vmem %s9, %s6535
      %p6537 = scmp.lt.s32.totalorder %s28, 1
      %s6538 = scalar_select %p6537, %s28, 1
      %s6539 = smul.addr %s6538, 4
      %s6540 = scalar_lea.vmem %s10, %s6539
      %p6541 = scmp.lt.s32.totalorder %s28, 1
      %s6542 = scalar_select %p6541, %s28, 1
      %s6543 = smul.addr %s6542, 4
      %s6544 = scalar_lea.vmem %s11, %s6543
      %p6545 = scmp.lt.s32.totalorder %s28, 1
      %s6546 = scalar_select %p6545, %s28, 1
      %s6547 = scalar_lea.vmem %s12, %s6546
      // Predicated region
      $region61: #{unet_proto_forward.2} parent=55 // pred_check
        %p6548 = pneg %p252
      $region62: #{unet_proto_forward.2} parent=55 // pred_check_branch
        %6550 = sbr.rel (%p6548) target = $region64
      $region63: #{unet_proto_forward.2} parent=55 // pred_region
        %s6551 = sadd.s32 %s28, %s29
        %s6552 = smul.u32 64, %s6551
      $region64: #{unet_proto_forward.2} parent=55 // pred_fallthru
        _
      // Predicated region
      $region65: #{unet_proto_forward.2} parent=55 // pred_check
        %p6553 = pneg %p278
      $region66: #{unet_proto_forward.2} parent=55 // pred_check_branch
        %6555 = sbr.rel (%p6553) target = $region68
      $region67: #{unet_proto_forward.2} parent=55 // pred_region
        _
      $region68: #{unet_proto_forward.2} parent=55 // pred_fallthru
        _
      // Predicated region
      $region69: #{unet_proto_forward.2} parent=55 // pred_check
        %p6556 = pneg %p304
      $region70: #{unet_proto_forward.2} parent=55 // pred_check_branch
        %6558 = sbr.rel (%p6556) target = $region72
      $region71: #{unet_proto_forward.2} parent=55 // pred_region
        _
      $region72: #{unet_proto_forward.2} parent=55 // pred_fallthru
        _
      // Predicated region
      $region73: #{unet_proto_forward.2} parent=55 // pred_check
        %p6559 = pneg %p330
      $region74: #{unet_proto_forward.2} parent=55 // pred_check_branch
        %6561 = sbr.rel (%p6559) target = $region76
      $region75: #{unet_proto_forward.2} parent=55 // pred_region
        _
      $region76: #{unet_proto_forward.2} parent=55 // pred_fallthru
        _
    $region56: #{unet_proto_forward.2} parent=5 // pred_fallthru
      _
    %p6562 = scmp.le.s32.totalorder 2, %s19
    // Predicated region
    $region77: #{unet_proto_forward.2} parent=5 // pred_check
      %p6563 = pneg %p6562
    $region78: #{unet_proto_forward.2} parent=5 // pred_check_branch
      %6565 = sbr.rel (%p6563) target = $region80
    $region79: #{unet_proto_forward.2} parent=5 // pred_region
      %s6566 = ssub.s32 %s19, 2
      // Predicated region
      $region81: #{unet_proto_forward.2} parent=79 // pred_check
        %p6567 = pneg %p258
      $region82: #{unet_proto_forward.2} parent=79 // pred_check_branch
        %6569 = sbr.rel (%p6567) target = $region84
      $region83: #{unet_proto_forward.2} parent=79 // pred_region
        %s6570 = sadd.s32 %s30, %s31
        %s6571 = smul.u32 64, %s6570
        %p6572 = scmp.lt.s32.totalorder %s6571, 127
        %s6573 = scalar_select %p6572, %s6571, 127
        %s6574 = smul.addr %s6573, 8
        %s6575 = scalar_lea.vmem %s9, %s6574
      $region84: #{unet_proto_forward.2} parent=79 // pred_fallthru
        _
      // Predicated region
      $region85: #{unet_proto_forward.2} parent=79 // pred_check
        %p6576 = pneg %p284
      $region86: #{unet_proto_forward.2} parent=79 // pred_check_branch
        %6578 = sbr.rel (%p6576) target = $region88
      $region87: #{unet_proto_forward.2} parent=79 // pred_region
        %p6579 = scmp.lt.s32.totalorder %s30, 1
        %s6580 = scalar_select %p6579, %s30, 1
        %s6581 = smul.addr %s6580, 4
        %s6582 = scalar_lea.vmem %s10, %s6581
      $region88: #{unet_proto_forward.2} parent=79 // pred_fallthru
        _
      // Predicated region
      $region89: #{unet_proto_forward.2} parent=79 // pred_check
        %p6583 = pneg %p310
      $region90: #{unet_proto_forward.2} parent=79 // pred_check_branch
        %6585 = sbr.rel (%p6583) target = $region92
      $region91: #{unet_proto_forward.2} parent=79 // pred_region
        %p6586 = scmp.lt.s32.totalorder %s30, 1
        %s6587 = scalar_select %p6586, %s30, 1
        %s6588 = smul.addr %s6587, 4
        %s6589 = scalar_lea.vmem %s11, %s6588
      $region92: #{unet_proto_forward.2} parent=79 // pred_fallthru
        _
      // Predicated region
      $region93: #{unet_proto_forward.2} parent=79 // pred_check
        %p6590 = pneg %p336
      $region94: #{unet_proto_forward.2} parent=79 // pred_check_branch
        %6592 = sbr.rel (%p6590) target = $region96
      $region95: #{unet_proto_forward.2} parent=79 // pred_region
        %p6593 = scmp.lt.s32.totalorder %s30, 1
        %s6594 = scalar_select %p6593, %s30, 1
        %s6595 = scalar_lea.vmem %s12, %s6594
      $region96: #{unet_proto_forward.2} parent=79 // pred_fallthru
        _
    $region80: #{unet_proto_forward.2} parent=5 // pred_fallthru
      _
  $region6: #{unet_proto_forward.2} parent=0 // loop_footer
    %s23 = sadd.s32 1, %s19
  $region7: #{unet_proto_forward.2} parent=0 // loop_footer_branch
    %18 = sbr.rel target = $region3
  $region8: #{unet_proto_forward.2} parent=0 // loop_exit
    _

</llo_original>
